<compile_context>
chip_gen: v5e
topology: v5e:2x2
jax: 0.10.0
libtpu: 0.0.40
codegen_flags: <defaults>
</compile_context>

<pallas_src>
import functools

import jax
import jax.numpy as jnp
from jax.experimental import pallas as pl
from jax.experimental.pallas import tpu as pltpu

BN_EPS = 1e-5
LANE = 128


# ------------------------------ small helpers ------------------------------

def _round_up(x, m):
    return ((x + m - 1) // m) * m


def _choose_tm(m):
    """Return (tm, padded_m). Full-extent tile for small M => no pad/slice."""
    if m <= 512:
        return m, m
    for tm in range(512, 127, -8):        # largest divisor of m in [128, 512]
        if m % tm == 0:
            return tm, m
    return 512, _round_up(m, 512)


def _choose_tk(k):
    """k is a multiple of 128 by construction."""
    if k <= 2048:
        return k                          # single K step -> scratch-free kernel
    for tk in range(2048, 127, -128):
        if k % tk == 0:
            return tk
    return 128


def _choose_tn(n):
    if n % 256 == 0:
        return 256                        # full 256-wide MXU cols; N-grid >= 2
    if n % 128 == 0:
        return 128
    return n                              # small real cout: full extent


def _row_tile(rows, bytes_per_row, budget=4 * 1024 * 1024):
    cap = max(1, budget // max(bytes_per_row, 1))
    for t in (1024, 512, 256, 128, 64, 32, 16, 8, 4, 2, 1):
        if t <= cap and rows % t == 0:
            return t
    return 1


# ----------------------------- Pallas kernels ------------------------------

def _conv_mm_acc_kernel(relu, has_res, *refs):
    """Tiled matmul over a K grid with f32 VMEM accumulator + fused epilogue."""
    if has_res:
        x_ref, w_ref, b_ref, r_ref, o_ref, acc_ref = refs
    else:
        x_ref, w_ref, b_ref, o_ref, acc_ref = refs

    k = pl.program_id(2)

    @pl.when(k == 0)
    def _():
        acc_ref[...] = jnp.zeros_like(acc_ref)

    acc_ref[...] += jnp.dot(x_ref[...], w_ref[...],
                            preferred_element_type=jnp.float32)

    @pl.when(k == pl.num_programs(2) - 1)
    def _():
        out = acc_ref[...] + b_ref[...]
        if has_res:
            out = out + r_ref[...].astype(jnp.float32)
        if relu:
            out = jnp.maximum(out, 0.0)
        o_ref[...] = out.astype(o_ref.dtype)


def _conv_mm_1k_kernel(relu, has_res, *refs):
    """Single-K-step matmul: no scratch, no phases, direct fused epilogue."""
    if has_res:
        x_ref, w_ref, b_ref, r_ref, o_ref = refs
    else:
        x_ref, w_ref, b_ref, o_ref = refs

    out = jnp.dot(x_ref[...], w_ref[...],
                  preferred_element_type=jnp.float32) + b_ref[...]
    if has_res:
        out = out + r_ref[...].astype(jnp.float32)
    if relu:
        out = jnp.maximum(out, 0.0)
    o_ref[...] = out.astype(o_ref.dtype)


def _maxpool_s2_kernel(c, x_ref, o_ref):
    # x_ref: (TR, 2, Wo, 2*C) -> 2x2 window max, stride 2 (non-overlapping).
    v = x_ref[...]
    r = jnp.maximum(v[:, 0], v[:, 1])                     # (TR, Wo, 2*C)
    o_ref[...] = jnp.maximum(r[:, :, :c], r[:, :, c:])    # (TR, Wo, C)


def _maxpool_s1w_kernel(wo, x_ref, o_ref):
    # x_ref: (TR, 2, Wp, C) -> 2x2 window max, H-stride 2, W-stride 1.
    v = x_ref[...]
    r = jnp.maximum(v[:, 0], v[:, 1])                     # (TR, Wp, C)
    o_ref[...] = jnp.maximum(r[:, 0:wo, :], r[:, 1:wo + 1, :])


# ------------------------------ conv wrapper -------------------------------

def conv_matmul(patches, wmat, bias, residual, relu):
    m, k = patches.shape                  # k is a multiple of 128
    n_out = wmat.shape[1]

    tm, mp = _choose_tm(m)
    tk = _choose_tk(k)
    tn = _choose_tn(n_out)

    if mp != m:                           # rare: only when m > 512 and ragged
        patches = jnp.pad(patches, ((0, mp - m), (0, 0)))
        if residual is not None:
            residual = jnp.pad(residual, ((0, mp - m), (0, 0)))

    gm, gn, gk = mp // tm, n_out // tn, k // tk
    has_res = residual is not None
    args = [patches, wmat, bias] + ([residual] if has_res else [])

    in_specs = [
        pl.BlockSpec((tm, tk), lambda i, j, kk: (i, kk)),
        pl.BlockSpec((tk, tn), lambda i, j, kk: (kk, j)),
        pl.BlockSpec((1, tn), lambda i, j, kk: (0, j)),
    ]
    if has_res:
        in_specs.append(pl.BlockSpec((tm, tn), lambda i, j, kk: (i, j)))

    if gk == 1:
        kernel = functools.partial(_conv_mm_1k_kernel, relu, has_res)
        scratch = []
    else:
        kernel = functools.partial(_conv_mm_acc_kernel, relu, has_res)
        scratch = [pltpu.VMEM((tm, tn), jnp.float32)]

    out = pl.pallas_call(
        kernel,
        out_shape=jax.ShapeDtypeStruct((mp, n_out), jnp.bfloat16),
        grid_spec=pltpu.PrefetchScalarGridSpec(
            num_scalar_prefetch=0,
            grid=(gm, gn, gk),
            in_specs=in_specs,
            out_specs=pl.BlockSpec((tm, tn), lambda i, j, kk: (i, j)),
            scratch_shapes=scratch,
        ),
        compiler_params=pltpu.CompilerParams(
            dimension_semantics=("parallel", "parallel", "arbitrary"),
            vmem_limit_bytes=32 * 1024 * 1024,
        ),
    )(*args)

    if mp != m:
        out = out[:m]
    return out


def _im2col(x, kh, kw, sh, sw, ph, pw, k_eff):
    """NHWC -> (N*Ho*Wo, k_eff) patches, columns ordered (kh, kw, c) to match
    the folded weight; K padded to k_eff with a zero tail block."""
    n, h, w, c = x.shape
    ho = (h + 2 * ph - kh) // sh + 1
    wo = (w + 2 * pw - kw) // sw + 1
    k_real = kh * kw * c

    if kh == 1 and kw == 1 and sh == 1 and sw == 1 and ph == 0 and pw == 0:
        flat = x.reshape(n * h * w, c)
        if k_eff != c:
            flat = jnp.pad(flat, ((0, 0), (0, k_eff - c)))
        return flat, ho, wo

    xp = x if (ph == 0 and pw == 0) else jnp.pad(
        x, ((0, 0), (ph, ph), (pw, pw), (0, 0)))
    cols = [xp[:, i:i + sh * ho:sh, j:j + sw * wo:sw, :]
            for i in range(kh) for j in range(kw)]
    if k_eff != k_real:
        cols.append(jnp.zeros((n, ho, wo, k_eff - k_real), x.dtype))
    patches = jnp.concatenate(cols, axis=-1)        # (N, Ho, Wo, k_eff)
    return patches.reshape(n * ho * wo, k_eff), ho, wo


def conv(x, cp, kh, kw, stride, padding, relu=True, residual=None):
    """x: (N, H, W, Cin) bf16 NHWC (real channels). cp = (wmat, bias), folded."""
    wmat, bias = cp
    n = x.shape[0]
    k_eff = wmat.shape[0]
    cout = wmat.shape[1]

    patches, ho, wo = _im2col(x, kh, kw, stride[0], stride[1],
                              padding[0], padding[1], k_eff)
    assert patches.shape[1] == k_eff

    res2d = None
    if residual is not None:
        res2d = residual.reshape(n * ho * wo, cout)

    out = conv_matmul(patches, wmat, bias, res2d, relu)   # (M, cout) bf16
    return out.reshape(n, ho, wo, cout)


# ----------------------------- maxpool wrappers ----------------------------

def maxpool_2x2_s2(x):
    """MaxPool2d(kernel=2, stride=2, padding=0) on NHWC bf16."""
    n, h, w, c = x.shape
    ho, wo = h // 2, w // 2
    x = x[:, :2 * ho, :2 * wo, :]
    # Pure row-major regroup: (N, 2Ho, 2Wo, C) -> (N*Ho, 2, Wo, 2*C).
    xr = x.reshape(n * ho, 2, wo, 2 * c)
    rows = n * ho
    tr = _row_tile(rows, 2 * wo * 2 * c * x.dtype.itemsize)
    out = pl.pallas_call(
        functools.partial(_maxpool_s2_kernel, c),
        out_shape=jax.ShapeDtypeStruct((rows, wo, c), x.dtype),
        grid=(rows // tr,),
        in_specs=[pl.BlockSpec((tr, 2, wo, 2 * c), lambda r: (r, 0, 0, 0))],
        out_specs=pl.BlockSpec((tr, wo, c), lambda r: (r, 0, 0)),
        compiler_params=pltpu.CompilerParams(
            dimension_semantics=("parallel",)),
    )(xr)
    return out.reshape(n, ho, wo, c)


def maxpool_2x2_s21_p01(x):
    """MaxPool2d(kernel=2, stride=(2,1), padding=(0,1)) on NHWC bf16."""
    n, h, w, c = x.shape
    ho = h // 2
    x = x[:, :2 * ho, :, :]
    xp = jnp.pad(x, ((0, 0), (0, 0), (1, 1), (0, 0)),
                 constant_values=-jnp.inf)
    wp, wo = w + 2, w + 1
    xr = xp.reshape(n * ho, 2, wp, c)
    rows = n * ho
    tr = _row_tile(rows, 2 * wp * c * x.dtype.itemsize)
    out = pl.pallas_call(
        functools.partial(_maxpool_s1w_kernel, wo),
        out_shape=jax.ShapeDtypeStruct((rows, wo, c), x.dtype),
        grid=(rows // tr,),
        in_specs=[pl.BlockSpec((tr, 2, wp, c), lambda r: (r, 0, 0, 0))],
        out_specs=pl.BlockSpec((tr, wo, c), lambda r: (r, 0, 0)),
        compiler_params=pltpu.CompilerParams(
            dimension_semantics=("parallel",)),
    )(xr)
    return out.reshape(n, ho, wo, c)


# ------------------------- hoisted parameter prep --------------------------

def fold_conv_bn(w, bn):
    """Fold inference-mode BN into the conv weight + bias, lay out as a dense
    (K_eff, Cout) bf16 matmul operand (K padded once to a multiple of 128)."""
    gamma, beta, mean, var = bn
    scale = gamma / jnp.sqrt(var + BN_EPS)
    bvec = beta - mean * scale
    cout, cin, kh, kw = w.shape
    k_real = kh * kw * cin
    k_eff = _round_up(k_real, LANE)
    wt = jnp.transpose(w, (2, 3, 1, 0)) * scale           # (kh, kw, cin, cout)
    wmat = wt.reshape(k_real, cout)
    wmat = jnp.pad(wmat, ((0, k_eff - k_real), (0, 0))).astype(jnp.bfloat16)
    bmat = bvec.reshape(1, cout).astype(jnp.float32)
    return (wmat, bmat)


def prepare_params(P):
    """Done once, outside the jitted forward."""
    prep = {
        'conv0_1': fold_conv_bn(P['conv0_1'], P['bn0_1']),
        'conv0_2': fold_conv_bn(P['conv0_2'], P['bn0_2']),
        'conv1': fold_conv_bn(P['conv1'], P['bn1']),
        'conv2': fold_conv_bn(P['conv2'], P['bn2']),
        'conv3': fold_conv_bn(P['conv3'], P['bn3']),
        'conv4_1': fold_conv_bn(P['conv4_1'], P['bn4_1']),
        'conv4_2': fold_conv_bn(P['conv4_2'], P['bn4_2']),
    }
    for lname in ('layer1', 'layer2', 'layer3', 'layer4'):
        blocks = []
        for bp in P[lname]:
            blocks.append({
                'conv1': fold_conv_bn(bp['conv1'], bp['bn1']),
                'conv2': fold_conv_bn(bp['conv2'], bp['bn2']),
                'downsample': (fold_conv_bn(*bp['downsample'])
                               if bp['downsample'] is not None else None),
            })
        prep[lname] = blocks
    return prep


# ------------------------------ network graph ------------------------------

def basic_block(bp, x):
    residual = x
    if bp['downsample'] is not None:
        residual = conv(x, bp['downsample'], 1, 1, (1, 1), (0, 0), relu=False)
    out = conv(x, bp['conv1'], 3, 3, (1, 1), (1, 1), relu=True)
    # conv2 -> bn2 -> (+ residual) -> relu fused into one Pallas epilogue.
    out = conv(out, bp['conv2'], 3, 3, (1, 1), (1, 1),
               relu=True, residual=residual)
    return out


def resnet_forward(prep, x_nchw):
    # NCHW -> NHWC (channels-last) once; bf16; REAL channel count, no padding.
    x = jnp.transpose(x_nchw, (0, 2, 3, 1)).astype(jnp.bfloat16)

    x = conv(x, prep['conv0_1'], 3, 3, (1, 1), (1, 1), relu=True)
    x = conv(x, prep['conv0_2'], 3, 3, (1, 1), (1, 1), relu=True)
    x = maxpool_2x2_s2(x)
    for bp in prep['layer1']:
        x = basic_block(bp, x)
    x = conv(x, prep['conv1'], 3, 3, (1, 1), (1, 1), relu=True)
    x = maxpool_2x2_s2(x)
    for bp in prep['layer2']:
        x = basic_block(bp, x)
    x = conv(x, prep['conv2'], 3, 3, (1, 1), (1, 1), relu=True)
    x = maxpool_2x2_s21_p01(x)
    for bp in prep['layer3']:
        x = basic_block(bp, x)
    x = conv(x, prep['conv3'], 3, 3, (1, 1), (1, 1), relu=True)
    for bp in prep['layer4']:
        x = basic_block(bp, x)
    x = conv(x, prep['conv4_1'], 2, 2, (2, 1), (0, 1), relu=True)
    x = conv(x, prep['conv4_2'], 2, 2, (1, 1), (0, 0), relu=True)

    return jnp.transpose(x.astype(jnp.float32), (0, 3, 1, 2))   # back to NCHW


# --------------------------- parameter creation ---------------------------

class KeyGen:
    def __init__(self, key):
        self.key = key

    def __call__(self):
        self.key, k = jax.random.split(self.key)
        return k


def conv_w(key, cout, cin, kh, kw):
    fan_in = cin * kh * kw
    return jax.random.normal(key, (cout, cin, kh, kw), jnp.float32) * (2.0 / fan_in) ** 0.5


def bn_p(key, c):
    k1, k2, k3, k4 = jax.random.split(key, 4)
    gamma = 1.0 + 0.1 * jax.random.normal(k1, (c,), jnp.float32)
    beta = 0.1 * jax.random.normal(k2, (c,), jnp.float32)
    mean = 0.1 * jax.random.normal(k3, (c,), jnp.float32)
    var = 1.0 + 0.1 * jnp.abs(jax.random.normal(k4, (c,), jnp.float32))
    return (gamma, beta, mean, var)


def init_params(key, input_channel, output_channel, layers):
    kg = KeyGen(key)
    ocb = [output_channel // 4, output_channel // 2, output_channel, output_channel]
    inplanes = output_channel // 8

    P = {}
    P['conv0_1'] = conv_w(kg(), output_channel // 16, input_channel, 3, 3)
    P['bn0_1'] = bn_p(kg(), output_channel // 16)
    P['conv0_2'] = conv_w(kg(), inplanes, output_channel // 16, 3, 3)
    P['bn0_2'] = bn_p(kg(), inplanes)

    def make_layer(planes, blocks):
        nonlocal inplanes
        blocks_p = []
        for bi in range(blocks):
            bp = {}
            if bi == 0 and inplanes != planes:  # BasicBlock.expansion == 1, stride == 1
                bp['downsample'] = (conv_w(kg(), planes, inplanes, 1, 1), bn_p(kg(), planes))
            else:
                bp['downsample'] = None
            bp['conv1'] = conv_w(kg(), planes, inplanes, 3, 3)
            bp['bn1'] = bn_p(kg(), planes)
            bp['conv2'] = conv_w(kg(), planes, planes, 3, 3)
            bp['bn2'] = bn_p(kg(), planes)
            blocks_p.append(bp)
            inplanes = planes
        return blocks_p

    P['layer1'] = make_layer(ocb[0], layers[0])
    P['conv1'] = conv_w(kg(), ocb[0], ocb[0], 3, 3)
    P['bn1'] = bn_p(kg(), ocb[0])
    P['layer2'] = make_layer(ocb[1], layers[1])
    P['conv2'] = conv_w(kg(), ocb[1], ocb[1], 3, 3)
    P['bn2'] = bn_p(kg(), ocb[1])
    P['layer3'] = make_layer(ocb[2], layers[2])
    P['conv3'] = conv_w(kg(), ocb[2], ocb[2], 3, 3)
    P['bn3'] = bn_p(kg(), ocb[2])
    P['layer4'] = make_layer(ocb[3], layers[3])
    P['conv4_1'] = conv_w(kg(), ocb[3], ocb[3], 2, 2)
    P['bn4_1'] = bn_p(kg(), ocb[3])
    P['conv4_2'] = conv_w(kg(), ocb[3], ocb[3], 2, 2)
    P['bn4_2'] = bn_p(kg(), ocb[3])
    return P


# ---------------------------------- main ----------------------------------

if __name__ == "__main__":
    key = jax.random.PRNGKey(0)
    k_par, k_x = jax.random.split(key)

    input_channel = 1
    output_channel = 64
    layers = [1, 1, 1, 1]           # small synthetic depth (block = BasicBlock)

    raw_params = init_params(k_par, input_channel, output_channel, layers)
    prep = prepare_params(raw_params)          # BN fold + weight layout, hoisted
    x = jax.random.normal(k_x, (2, input_channel, 32, 32), jnp.float32)  # NCHW

    fwd = jax.jit(resnet_forward)
    out = fwd(prep, x)
    out = jax.block_until_ready(out)

    assert out.shape == (2, output_channel, 1, 9), out.shape
    assert bool(jnp.all(jnp.isfinite(out)))
    print("KERNEL_OK")
</pallas_src>

<mosaic_0001>
module attributes {stable_mosaic.version = 11 : i64} {
  func.func @_conv_mm_1k_kernel(%arg0: i32, %arg1: i32, %arg2: i32, %arg3: memref<512x128xbf16, #tpu.memory_space<vmem>>, %arg4: memref<128x4xbf16, #tpu.memory_space<vmem>>, %arg5: memref<1x4xf32, #tpu.memory_space<vmem>>, %arg6: memref<512x4xbf16, #tpu.memory_space<vmem>>) attributes {dimension_semantics = [#tpu.dimension_semantics<parallel>, #tpu.dimension_semantics<parallel>, #tpu.dimension_semantics<arbitrary>], iteration_bounds = array<i64: 4, 1, 1>, scalar_prefetch = 0 : i64, scratch_operands = 0 : i64, tpu.core_type = #tpu.core_type<tc>, window_params = [{transform_indices = @transform_0, window_bounds = array<i64: 512, 128>}, {transform_indices = @transform_1, window_bounds = array<i64: 128, 4>}, {transform_indices = @transform_2, window_bounds = array<i64: 1, 4>}, {transform_indices = @transform_3, window_bounds = array<i64: 512, 4>}]} {
    %c0 = arith.constant 0 : index
    %c0_0 = arith.constant 0 : index
    %0 = vector.load %arg3[%c0, %c0_0] : memref<512x128xbf16, #tpu.memory_space<vmem>>, vector<512x128xbf16>
    %c0_1 = arith.constant 0 : index
    %c0_2 = arith.constant 0 : index
    %1 = vector.load %arg4[%c0_1, %c0_2] : memref<128x4xbf16, #tpu.memory_space<vmem>>, vector<128x4xbf16>
    %cst = arith.constant dense<0.000000e+00> : vector<512x4xf32>
    %2 = tpu.matmul %0, %1, %cst {dimension_numbers = #tpu.dot_dimension_numbers<[1], [0], [0], [1], [0, 0, 1, 1], [], []>} : vector<512x128xbf16>, vector<128x4xbf16>, vector<512x4xf32> -> vector<512x4xf32>
    %c0_3 = arith.constant 0 : index
    %c0_4 = arith.constant 0 : index
    %3 = vector.load %arg5[%c0_3, %c0_4] : memref<1x4xf32, #tpu.memory_space<vmem>>, vector<1x4xf32>
    %4 = vector.broadcast %3 : vector<1x4xf32> to vector<512x4xf32>
    %5 = arith.addf %2, %4 : vector<512x4xf32>
    %cst_5 = arith.constant 0.000000e+00 : f32
    %6 = vector.broadcast %cst_5 : f32 to vector<512x4xf32>
    %7 = arith.maximumf %5, %6 : vector<512x4xf32>
    %8 = arith.truncf %7 : vector<512x4xf32> to vector<512x4xbf16>
    %c0_6 = arith.constant 0 : index
    %c0_7 = arith.constant 0 : index
    %9 = vector.load %arg6[%c0_6, %c0_7] : memref<512x4xbf16, #tpu.memory_space<vmem>>, vector<512x4xbf16>
    tpu.vector_store %arg6[%c0_6, %c0_7], %8 {strides = array<i32>} : memref<512x4xbf16, #tpu.memory_space<vmem>>, vector<512x4xbf16>,
    return
  }
  func.func @transform_0(%arg0: i32, %arg1: i32, %arg2: i32) -> (i32, i32) {
    %c0_i32 = arith.constant 0 : i32
    return %arg0, %arg2 : i32, i32
  }
  func.func @transform_1(%arg0: i32, %arg1: i32, %arg2: i32) -> (i32, i32) {
    %c0_i32 = arith.constant 0 : i32
    return %arg2, %arg1 : i32, i32
  }
  func.func @transform_2(%arg0: i32, %arg1: i32, %arg2: i32) -> (i32, i32) {
    %c0_i32 = arith.constant 0 : i32
    %c0_i32_0 = arith.constant 0 : i32
    return %c0_i32, %arg1 : i32, i32
  }
  func.func @transform_3(%arg0: i32, %arg1: i32, %arg2: i32) -> (i32, i32) {
    %c0_i32 = arith.constant 0 : i32
    return %arg0, %arg1 : i32, i32
  }
}

module attributes {stable_mosaic.version = 11 : i64} {
  func.func @_conv_mm_1k_kernel(%arg0: i32, %arg1: i32, %arg2: i32, %arg3: memref<512x128xbf16, #tpu.memory_space<vmem>>, %arg4: memref<128x8xbf16, #tpu.memory_space<vmem>>, %arg5: memref<1x8xf32, #tpu.memory_space<vmem>>, %arg6: memref<512x8xbf16, #tpu.memory_space<vmem>>) attributes {dimension_semantics = [#tpu.dimension_semantics<parallel>, #tpu.dimension_semantics<parallel>, #tpu.dimension_semantics<arbitrary>], iteration_bounds = array<i64: 4, 1, 1>, scalar_prefetch = 0 : i64, scratch_operands = 0 : i64, tpu.core_type = #tpu.core_type<tc>, window_params = [{transform_indices = @transform_0, window_bounds = array<i64: 512, 128>}, {transform_indices = @transform_1, window_bounds = array<i64: 128, 8>}, {transform_indices = @transform_2, window_bounds = array<i64: 1, 8>}, {transform_indices = @transform_3, window_bounds = array<i64: 512, 8>}]} {
    %c0 = arith.constant 0 : index
    %c0_0 = arith.constant 0 : index
    %0 = vector.load %arg3[%c0, %c0_0] : memref<512x128xbf16, #tpu.memory_space<vmem>>, vector<512x128xbf16>
    %c0_1 = arith.constant 0 : index
    %c0_2 = arith.constant 0 : index
    %1 = vector.load %arg4[%c0_1, %c0_2] : memref<128x8xbf16, #tpu.memory_space<vmem>>, vector<128x8xbf16>
    %cst = arith.constant dense<0.000000e+00> : vector<512x8xf32>
    %2 = tpu.matmul %0, %1, %cst {dimension_numbers = #tpu.dot_dimension_numbers<[1], [0], [0], [1], [0, 0, 1, 1], [], []>} : vector<512x128xbf16>, vector<128x8xbf16>, vector<512x8xf32> -> vector<512x8xf32>
    %c0_3 = arith.constant 0 : index
    %c0_4 = arith.constant 0 : index
    %3 = vector.load %arg5[%c0_3, %c0_4] : memref<1x8xf32, #tpu.memory_space<vmem>>, vector<1x8xf32>
    %4 = vector.broadcast %3 : vector<1x8xf32> to vector<512x8xf32>
    %5 = arith.addf %2, %4 : vector<512x8xf32>
    %cst_5 = arith.constant 0.000000e+00 : f32
    %6 = vector.broadcast %cst_5 : f32 to vector<512x8xf32>
    %7 = arith.maximumf %5, %6 : vector<512x8xf32>
    %8 = arith.truncf %7 : vector<512x8xf32> to vector<512x8xbf16>
    %c0_6 = arith.constant 0 : index
    %c0_7 = arith.constant 0 : index
    %9 = vector.load %arg6[%c0_6, %c0_7] : memref<512x8xbf16, #tpu.memory_space<vmem>>, vector<512x8xbf16>
    tpu.vector_store %arg6[%c0_6, %c0_7], %8 {strides = array<i32>} : memref<512x8xbf16, #tpu.memory_space<vmem>>, vector<512x8xbf16>,
    return
  }
  func.func @transform_0(%arg0: i32, %arg1: i32, %arg2: i32) -> (i32, i32) {
    %c0_i32 = arith.constant 0 : i32
    return %arg0, %arg2 : i32, i32
  }
  func.func @transform_1(%arg0: i32, %arg1: i32, %arg2: i32) -> (i32, i32) {
    %c0_i32 = arith.constant 0 : i32
    return %arg2, %arg1 : i32, i32
  }
  func.func @transform_2(%arg0: i32, %arg1: i32, %arg2: i32) -> (i32, i32) {
    %c0_i32 = arith.constant 0 : i32
    %c0_i32_0 = arith.constant 0 : i32
    return %c0_i32, %arg1 : i32, i32
  }
  func.func @transform_3(%arg0: i32, %arg1: i32, %arg2: i32) -> (i32, i32) {
    %c0_i32 = arith.constant 0 : i32
    return %arg0, %arg1 : i32, i32
  }
}

module attributes {stable_mosaic.version = 11 : i64} {
  func.func @_maxpool_s2_kernel(%arg0: i32, %arg1: memref<32x2x16x16xbf16, #tpu.memory_space<vmem>>, %arg2: memref<32x16x8xbf16, #tpu.memory_space<vmem>>) attributes {dimension_semantics = [#tpu.dimension_semantics<parallel>], iteration_bounds = array<i64: 1>, scalar_prefetch = 0 : i64, scratch_operands = 0 : i64, tpu.core_type = #tpu.core_type<tc>, window_params = [{transform_indices = @transform_0, window_bounds = array<i64: 32, 2, 16, 16>}, {transform_indices = @transform_1, window_bounds = array<i64: 32, 16, 8>}]} {
    %c0 = arith.constant 0 : index
    %c0_0 = arith.constant 0 : index
    %c0_1 = arith.constant 0 : index
    %c0_2 = arith.constant 0 : index
    %0 = vector.load %arg1[%c0, %c0_0, %c0_1, %c0_2] : memref<32x2x16x16xbf16, #tpu.memory_space<vmem>>, vector<32x2x16x16xbf16>
    %1 = vector.extract_strided_slice %0 {offsets = [0, 0, 0, 0], sizes = [32, 1, 16, 16], strides = [1, 1, 1, 1]} : vector<32x2x16x16xbf16> to vector<32x1x16x16xbf16>
    %2 = vector.shape_cast %1 : vector<32x1x16x16xbf16> to vector<32x16x16xbf16>
    %3 = vector.extract_strided_slice %0 {offsets = [0, 1, 0, 0], sizes = [32, 1, 16, 16], strides = [1, 1, 1, 1]} : vector<32x2x16x16xbf16> to vector<32x1x16x16xbf16>
    %4 = vector.shape_cast %3 : vector<32x1x16x16xbf16> to vector<32x16x16xbf16>
    %5 = arith.maximumf %2, %4 : vector<32x16x16xbf16>
    %6 = vector.extract_strided_slice %5 {offsets = [0, 0, 0], sizes = [32, 16, 8], strides = [1, 1, 1]} : vector<32x16x16xbf16> to vector<32x16x8xbf16>
    %7 = vector.extract_strided_slice %5 {offsets = [0, 0, 8], sizes = [32, 16, 8], strides = [1, 1, 1]} : vector<32x16x16xbf16> to vector<32x16x8xbf16>
    %8 = arith.maximumf %6, %7 : vector<32x16x8xbf16>
    %c0_3 = arith.constant 0 : index
    %c0_4 = arith.constant 0 : index
    %c0_5 = arith.constant 0 : index
    %9 = vector.load %arg2[%c0_3, %c0_4, %c0_5] : memref<32x16x8xbf16, #tpu.memory_space<vmem>>, vector<32x16x8xbf16>
    tpu.vector_store %arg2[%c0_3, %c0_4, %c0_5], %8 {strides = array<i32>} : memref<32x16x8xbf16, #tpu.memory_space<vmem>>, vector<32x16x8xbf16>,
    return
  }
  func.func @transform_0(%arg0: i32) -> (i32, i32, i32, i32) {
    %c0_i32 = arith.constant 0 : i32
    %c0_i32_0 = arith.constant 0 : i32
    %c0_i32_1 = arith.constant 0 : i32
    %c0_i32_2 = arith.constant 0 : i32
    return %arg0, %c0_i32, %c0_i32_0, %c0_i32_1 : i32, i32, i32, i32
  }
  func.func @transform_1(%arg0: i32) -> (i32, i32, i32) {
    %c0_i32 = arith.constant 0 : i32
    %c0_i32_0 = arith.constant 0 : i32
    %c0_i32_1 = arith.constant 0 : i32
    return %arg0, %c0_i32, %c0_i32_0 : i32, i32, i32
  }
}

module attributes {stable_mosaic.version = 11 : i64} {
  func.func @_conv_mm_1k_kernel(%arg0: i32, %arg1: i32, %arg2: i32, %arg3: memref<512x128xbf16, #tpu.memory_space<vmem>>, %arg4: memref<128x16xbf16, #tpu.memory_space<vmem>>, %arg5: memref<1x16xf32, #tpu.memory_space<vmem>>, %arg6: memref<512x16xbf16, #tpu.memory_space<vmem>>) attributes {dimension_semantics = [#tpu.dimension_semantics<parallel>, #tpu.dimension_semantics<parallel>, #tpu.dimension_semantics<arbitrary>], iteration_bounds = array<i64: 1, 1, 1>, scalar_prefetch = 0 : i64, scratch_operands = 0 : i64, tpu.core_type = #tpu.core_type<tc>, window_params = [{transform_indices = @transform_0, window_bounds = array<i64: 512, 128>}, {transform_indices = @transform_1, window_bounds = array<i64: 128, 16>}, {transform_indices = @transform_2, window_bounds = array<i64: 1, 16>}, {transform_indices = @transform_3, window_bounds = array<i64: 512, 16>}]} {
    %c0 = arith.constant 0 : index
    %c0_0 = arith.constant 0 : index
    %0 = vector.load %arg3[%c0, %c0_0] : memref<512x128xbf16, #tpu.memory_space<vmem>>, vector<512x128xbf16>
    %c0_1 = arith.constant 0 : index
    %c0_2 = arith.constant 0 : index
    %1 = vector.load %arg4[%c0_1, %c0_2] : memref<128x16xbf16, #tpu.memory_space<vmem>>, vector<128x16xbf16>
    %cst = arith.constant dense<0.000000e+00> : vector<512x16xf32>
    %2 = tpu.matmul %0, %1, %cst {dimension_numbers = #tpu.dot_dimension_numbers<[1], [0], [0], [1], [0, 0, 1, 1], [], []>} : vector<512x128xbf16>, vector<128x16xbf16>, vector<512x16xf32> -> vector<512x16xf32>
    %c0_3 = arith.constant 0 : index
    %c0_4 = arith.constant 0 : index
    %3 = vector.load %arg5[%c0_3, %c0_4] : memref<1x16xf32, #tpu.memory_space<vmem>>, vector<1x16xf32>
    %4 = vector.broadcast %3 : vector<1x16xf32> to vector<512x16xf32>
    %5 = arith.addf %2, %4 : vector<512x16xf32>
    %cst_5 = arith.constant 0.000000e+00 : f32
    %6 = vector.broadcast %cst_5 : f32 to vector<512x16xf32>
    %7 = arith.maximumf %5, %6 : vector<512x16xf32>
    %8 = arith.truncf %7 : vector<512x16xf32> to vector<512x16xbf16>
    %c0_6 = arith.constant 0 : index
    %c0_7 = arith.constant 0 : index
    %9 = vector.load %arg6[%c0_6, %c0_7] : memref<512x16xbf16, #tpu.memory_space<vmem>>, vector<512x16xbf16>
    tpu.vector_store %arg6[%c0_6, %c0_7], %8 {strides = array<i32>} : memref<512x16xbf16, #tpu.memory_space<vmem>>, vector<512x16xbf16>,
    return
  }
  func.func @transform_0(%arg0: i32, %arg1: i32, %arg2: i32) -> (i32, i32) {
    %c0_i32 = arith.constant 0 : i32
    return %arg0, %arg2 : i32, i32
  }
  func.func @transform_1(%arg0: i32, %arg1: i32, %arg2: i32) -> (i32, i32) {
    %c0_i32 = arith.constant 0 : i32
    return %arg2, %arg1 : i32, i32
  }
  func.func @transform_2(%arg0: i32, %arg1: i32, %arg2: i32) -> (i32, i32) {
    %c0_i32 = arith.constant 0 : i32
    %c0_i32_0 = arith.constant 0 : i32
    return %c0_i32, %arg1 : i32, i32
  }
  func.func @transform_3(%arg0: i32, %arg1: i32, %arg2: i32) -> (i32, i32) {
    %c0_i32 = arith.constant 0 : i32
    return %arg0, %arg1 : i32, i32
  }
}

module attributes {stable_mosaic.version = 11 : i64} {
  func.func @_conv_mm_1k_kernel(%arg0: i32, %arg1: i32, %arg2: i32, %arg3: memref<512x128xbf16, #tpu.memory_space<vmem>>, %arg4: memref<128x16xbf16, #tpu.memory_space<vmem>>, %arg5: memref<1x16xf32, #tpu.memory_space<vmem>>, %arg6: memref<512x16xbf16, #tpu.memory_space<vmem>>) attributes {dimension_semantics = [#tpu.dimension_semantics<parallel>, #tpu.dimension_semantics<parallel>, #tpu.dimension_semantics<arbitrary>], iteration_bounds = array<i64: 1, 1, 1>, scalar_prefetch = 0 : i64, scratch_operands = 0 : i64, tpu.core_type = #tpu.core_type<tc>, window_params = [{transform_indices = @transform_0, window_bounds = array<i64: 512, 128>}, {transform_indices = @transform_1, window_bounds = array<i64: 128, 16>}, {transform_indices = @transform_2, window_bounds = array<i64: 1, 16>}, {transform_indices = @transform_3, window_bounds = array<i64: 512, 16>}]} {
    %c0 = arith.constant 0 : index
    %c0_0 = arith.constant 0 : index
    %0 = vector.load %arg3[%c0, %c0_0] : memref<512x128xbf16, #tpu.memory_space<vmem>>, vector<512x128xbf16>
    %c0_1 = arith.constant 0 : index
    %c0_2 = arith.constant 0 : index
    %1 = vector.load %arg4[%c0_1, %c0_2] : memref<128x16xbf16, #tpu.memory_space<vmem>>, vector<128x16xbf16>
    %cst = arith.constant dense<0.000000e+00> : vector<512x16xf32>
    %2 = tpu.matmul %0, %1, %cst {dimension_numbers = #tpu.dot_dimension_numbers<[1], [0], [0], [1], [0, 0, 1, 1], [], []>} : vector<512x128xbf16>, vector<128x16xbf16>, vector<512x16xf32> -> vector<512x16xf32>
    %c0_3 = arith.constant 0 : index
    %c0_4 = arith.constant 0 : index
    %3 = vector.load %arg5[%c0_3, %c0_4] : memref<1x16xf32, #tpu.memory_space<vmem>>, vector<1x16xf32>
    %4 = vector.broadcast %3 : vector<1x16xf32> to vector<512x16xf32>
    %5 = arith.addf %2, %4 : vector<512x16xf32>
    %6 = arith.truncf %5 : vector<512x16xf32> to vector<512x16xbf16>
    %c0_5 = arith.constant 0 : index
    %c0_6 = arith.constant 0 : index
    %7 = vector.load %arg6[%c0_5, %c0_6] : memref<512x16xbf16, #tpu.memory_space<vmem>>, vector<512x16xbf16>
    tpu.vector_store %arg6[%c0_5, %c0_6], %6 {strides = array<i32>} : memref<512x16xbf16, #tpu.memory_space<vmem>>, vector<512x16xbf16>,
    return
  }
  func.func @transform_0(%arg0: i32, %arg1: i32, %arg2: i32) -> (i32, i32) {
    %c0_i32 = arith.constant 0 : i32
    return %arg0, %arg2 : i32, i32
  }
  func.func @transform_1(%arg0: i32, %arg1: i32, %arg2: i32) -> (i32, i32) {
    %c0_i32 = arith.constant 0 : i32
    return %arg2, %arg1 : i32, i32
  }
  func.func @transform_2(%arg0: i32, %arg1: i32, %arg2: i32) -> (i32, i32) {
    %c0_i32 = arith.constant 0 : i32
    %c0_i32_0 = arith.constant 0 : i32
    return %c0_i32, %arg1 : i32, i32
  }
  func.func @transform_3(%arg0: i32, %arg1: i32, %arg2: i32) -> (i32, i32) {
    %c0_i32 = arith.constant 0 : i32
    return %arg0, %arg1 : i32, i32
  }
}

module attributes {stable_mosaic.version = 11 : i64} {
  func.func @_conv_mm_1k_kernel(%arg0: i32, %arg1: i32, %arg2: i32, %arg3: memref<512x256xbf16, #tpu.memory_space<vmem>>, %arg4: memref<256x16xbf16, #tpu.memory_space<vmem>>, %arg5: memref<1x16xf32, #tpu.memory_space<vmem>>, %arg6: memref<512x16xbf16, #tpu.memory_space<vmem>>, %arg7: memref<512x16xbf16, #tpu.memory_space<vmem>>) attributes {dimension_semantics = [#tpu.dimension_semantics<parallel>, #tpu.dimension_semantics<parallel>, #tpu.dimension_semantics<arbitrary>], iteration_bounds = array<i64: 1, 1, 1>, scalar_prefetch = 0 : i64, scratch_operands = 0 : i64, tpu.core_type = #tpu.core_type<tc>, window_params = [{transform_indices = @transform_0, window_bounds = array<i64: 512, 256>}, {transform_indices = @transform_1, window_bounds = array<i64: 256, 16>}, {transform_indices = @transform_2, window_bounds = array<i64: 1, 16>}, {transform_indices = @transform_3, window_bounds = array<i64: 512, 16>}, {transform_indices = @transform_4, window_bounds = array<i64: 512, 16>}]} {
    %c0 = arith.constant 0 : index
    %c0_0 = arith.constant 0 : index
    %0 = vector.load %arg3[%c0, %c0_0] : memref<512x256xbf16, #tpu.memory_space<vmem>>, vector<512x256xbf16>
    %c0_1 = arith.constant 0 : index
    %c0_2 = arith.constant 0 : index
    %1 = vector.load %arg4[%c0_1, %c0_2] : memref<256x16xbf16, #tpu.memory_space<vmem>>, vector<256x16xbf16>
    %cst = arith.constant dense<0.000000e+00> : vector<512x16xf32>
    %2 = tpu.matmul %0, %1, %cst {dimension_numbers = #tpu.dot_dimension_numbers<[1], [0], [0], [1], [0, 0, 1, 1], [], []>} : vector<512x256xbf16>, vector<256x16xbf16>, vector<512x16xf32> -> vector<512x16xf32>
    %c0_3 = arith.constant 0 : index
    %c0_4 = arith.constant 0 : index
    %3 = vector.load %arg5[%c0_3, %c0_4] : memref<1x16xf32, #tpu.memory_space<vmem>>, vector<1x16xf32>
    %4 = vector.broadcast %3 : vector<1x16xf32> to vector<512x16xf32>
    %5 = arith.addf %2, %4 : vector<512x16xf32>
    %c0_5 = arith.constant 0 : index
    %c0_6 = arith.constant 0 : index
    %6 = vector.load %arg6[%c0_5, %c0_6] : memref<512x16xbf16, #tpu.memory_space<vmem>>, vector<512x16xbf16>
    %7 = arith.extf %6 : vector<512x16xbf16> to vector<512x16xf32>
    %8 = arith.addf %5, %7 : vector<512x16xf32>
    %cst_7 = arith.constant 0.000000e+00 : f32
    %9 = vector.broadcast %cst_7 : f32 to vector<512x16xf32>
    %10 = arith.maximumf %8, %9 : vector<512x16xf32>
    %11 = arith.truncf %10 : vector<512x16xf32> to vector<512x16xbf16>
    %c0_8 = arith.constant 0 : index
    %c0_9 = arith.constant 0 : index
    %12 = vector.load %arg7[%c0_8, %c0_9] : memref<512x16xbf16, #tpu.memory_space<vmem>>, vector<512x16xbf16>
    tpu.vector_store %arg7[%c0_8, %c0_9], %11 {strides = array<i32>} : memref<512x16xbf16, #tpu.memory_space<vmem>>, vector<512x16xbf16>,
    return
  }
  func.func @transform_0(%arg0: i32, %arg1: i32, %arg2: i32) -> (i32, i32) {
    %c0_i32 = arith.constant 0 : i32
    return %arg0, %arg2 : i32, i32
  }
  func.func @transform_1(%arg0: i32, %arg1: i32, %arg2: i32) -> (i32, i32) {
    %c0_i32 = arith.constant 0 : i32
    return %arg2, %arg1 : i32, i32
  }
  func.func @transform_2(%arg0: i32, %arg1: i32, %arg2: i32) -> (i32, i32) {
    %c0_i32 = arith.constant 0 : i32
    %c0_i32_0 = arith.constant 0 : i32
    return %c0_i32, %arg1 : i32, i32
  }
  func.func @transform_3(%arg0: i32, %arg1: i32, %arg2: i32) -> (i32, i32) {
    %c0_i32 = arith.constant 0 : i32
    return %arg0, %arg1 : i32, i32
  }
  func.func @transform_4(%arg0: i32, %arg1: i32, %arg2: i32) -> (i32, i32) {
    %c0_i32 = arith.constant 0 : i32
    return %arg0, %arg1 : i32, i32
  }
}

module attributes {stable_mosaic.version = 11 : i64} {
  func.func @_conv_mm_1k_kernel(%arg0: i32, %arg1: i32, %arg2: i32, %arg3: memref<512x256xbf16, #tpu.memory_space<vmem>>, %arg4: memref<256x16xbf16, #tpu.memory_space<vmem>>, %arg5: memref<1x16xf32, #tpu.memory_space<vmem>>, %arg6: memref<512x16xbf16, #tpu.memory_space<vmem>>) attributes {dimension_semantics = [#tpu.dimension_semantics<parallel>, #tpu.dimension_semantics<parallel>, #tpu.dimension_semantics<arbitrary>], iteration_bounds = array<i64: 1, 1, 1>, scalar_prefetch = 0 : i64, scratch_operands = 0 : i64, tpu.core_type = #tpu.core_type<tc>, window_params = [{transform_indices = @transform_0, window_bounds = array<i64: 512, 256>}, {transform_indices = @transform_1, window_bounds = array<i64: 256, 16>}, {transform_indices = @transform_2, window_bounds = array<i64: 1, 16>}, {transform_indices = @transform_3, window_bounds = array<i64: 512, 16>}]} {
    %c0 = arith.constant 0 : index
    %c0_0 = arith.constant 0 : index
    %0 = vector.load %arg3[%c0, %c0_0] : memref<512x256xbf16, #tpu.memory_space<vmem>>, vector<512x256xbf16>
    %c0_1 = arith.constant 0 : index
    %c0_2 = arith.constant 0 : index
    %1 = vector.load %arg4[%c0_1, %c0_2] : memref<256x16xbf16, #tpu.memory_space<vmem>>, vector<256x16xbf16>
    %cst = arith.constant dense<0.000000e+00> : vector<512x16xf32>
    %2 = tpu.matmul %0, %1, %cst {dimension_numbers = #tpu.dot_dimension_numbers<[1], [0], [0], [1], [0, 0, 1, 1], [], []>} : vector<512x256xbf16>, vector<256x16xbf16>, vector<512x16xf32> -> vector<512x16xf32>
    %c0_3 = arith.constant 0 : index
    %c0_4 = arith.constant 0 : index
    %3 = vector.load %arg5[%c0_3, %c0_4] : memref<1x16xf32, #tpu.memory_space<vmem>>, vector<1x16xf32>
    %4 = vector.broadcast %3 : vector<1x16xf32> to vector<512x16xf32>
    %5 = arith.addf %2, %4 : vector<512x16xf32>
    %cst_5 = arith.constant 0.000000e+00 : f32
    %6 = vector.broadcast %cst_5 : f32 to vector<512x16xf32>
    %7 = arith.maximumf %5, %6 : vector<512x16xf32>
    %8 = arith.truncf %7 : vector<512x16xf32> to vector<512x16xbf16>
    %c0_6 = arith.constant 0 : index
    %c0_7 = arith.constant 0 : index
    %9 = vector.load %arg6[%c0_6, %c0_7] : memref<512x16xbf16, #tpu.memory_space<vmem>>, vector<512x16xbf16>
    tpu.vector_store %arg6[%c0_6, %c0_7], %8 {strides = array<i32>} : memref<512x16xbf16, #tpu.memory_space<vmem>>, vector<512x16xbf16>,
    return
  }
  func.func @transform_0(%arg0: i32, %arg1: i32, %arg2: i32) -> (i32, i32) {
    %c0_i32 = arith.constant 0 : i32
    return %arg0, %arg2 : i32, i32
  }
  func.func @transform_1(%arg0: i32, %arg1: i32, %arg2: i32) -> (i32, i32) {
    %c0_i32 = arith.constant 0 : i32
    return %arg2, %arg1 : i32, i32
  }
  func.func @transform_2(%arg0: i32, %arg1: i32, %arg2: i32) -> (i32, i32) {
    %c0_i32 = arith.constant 0 : i32
    %c0_i32_0 = arith.constant 0 : i32
    return %c0_i32, %arg1 : i32, i32
  }
  func.func @transform_3(%arg0: i32, %arg1: i32, %arg2: i32) -> (i32, i32) {
    %c0_i32 = arith.constant 0 : i32
    return %arg0, %arg1 : i32, i32
  }
}

module attributes {stable_mosaic.version = 11 : i64} {
  func.func @_maxpool_s2_kernel(%arg0: i32, %arg1: memref<16x2x8x32xbf16, #tpu.memory_space<vmem>>, %arg2: memref<16x8x16xbf16, #tpu.memory_space<vmem>>) attributes {dimension_semantics = [#tpu.dimension_semantics<parallel>], iteration_bounds = array<i64: 1>, scalar_prefetch = 0 : i64, scratch_operands = 0 : i64, tpu.core_type = #tpu.core_type<tc>, window_params = [{transform_indices = @transform_0, window_bounds = array<i64: 16, 2, 8, 32>}, {transform_indices = @transform_1, window_bounds = array<i64: 16, 8, 16>}]} {
    %c0 = arith.constant 0 : index
    %c0_0 = arith.constant 0 : index
    %c0_1 = arith.constant 0 : index
    %c0_2 = arith.constant 0 : index
    %0 = vector.load %arg1[%c0, %c0_0, %c0_1, %c0_2] : memref<16x2x8x32xbf16, #tpu.memory_space<vmem>>, vector<16x2x8x32xbf16>
    %1 = vector.extract_strided_slice %0 {offsets = [0, 0, 0, 0], sizes = [16, 1, 8, 32], strides = [1, 1, 1, 1]} : vector<16x2x8x32xbf16> to vector<16x1x8x32xbf16>
    %2 = vector.shape_cast %1 : vector<16x1x8x32xbf16> to vector<16x8x32xbf16>
    %3 = vector.extract_strided_slice %0 {offsets = [0, 1, 0, 0], sizes = [16, 1, 8, 32], strides = [1, 1, 1, 1]} : vector<16x2x8x32xbf16> to vector<16x1x8x32xbf16>
    %4 = vector.shape_cast %3 : vector<16x1x8x32xbf16> to vector<16x8x32xbf16>
    %5 = arith.maximumf %2, %4 : vector<16x8x32xbf16>
    %6 = vector.extract_strided_slice %5 {offsets = [0, 0, 0], sizes = [16, 8, 16], strides = [1, 1, 1]} : vector<16x8x32xbf16> to vector<16x8x16xbf16>
    %7 = vector.extract_strided_slice %5 {offsets = [0, 0, 16], sizes = [16, 8, 16], strides = [1, 1, 1]} : vector<16x8x32xbf16> to vector<16x8x16xbf16>
    %8 = arith.maximumf %6, %7 : vector<16x8x16xbf16>
    %c0_3 = arith.constant 0 : index
    %c0_4 = arith.constant 0 : index
    %c0_5 = arith.constant 0 : index
    %9 = vector.load %arg2[%c0_3, %c0_4, %c0_5] : memref<16x8x16xbf16, #tpu.memory_space<vmem>>, vector<16x8x16xbf16>
    tpu.vector_store %arg2[%c0_3, %c0_4, %c0_5], %8 {strides = array<i32>} : memref<16x8x16xbf16, #tpu.memory_space<vmem>>, vector<16x8x16xbf16>,
    return
  }
  func.func @transform_0(%arg0: i32) -> (i32, i32, i32, i32) {
    %c0_i32 = arith.constant 0 : i32
    %c0_i32_0 = arith.constant 0 : i32
    %c0_i32_1 = arith.constant 0 : i32
    %c0_i32_2 = arith.constant 0 : i32
    return %arg0, %c0_i32, %c0_i32_0, %c0_i32_1 : i32, i32, i32, i32
  }
  func.func @transform_1(%arg0: i32) -> (i32, i32, i32) {
    %c0_i32 = arith.constant 0 : i32
    %c0_i32_0 = arith.constant 0 : i32
    %c0_i32_1 = arith.constant 0 : i32
    return %arg0, %c0_i32, %c0_i32_0 : i32, i32, i32
  }
}

module attributes {stable_mosaic.version = 11 : i64} {
  func.func @_conv_mm_1k_kernel(%arg0: i32, %arg1: i32, %arg2: i32, %arg3: memref<128x256xbf16, #tpu.memory_space<vmem>>, %arg4: memref<256x32xbf16, #tpu.memory_space<vmem>>, %arg5: memref<1x32xf32, #tpu.memory_space<vmem>>, %arg6: memref<128x32xbf16, #tpu.memory_space<vmem>>) attributes {dimension_semantics = [#tpu.dimension_semantics<parallel>, #tpu.dimension_semantics<parallel>, #tpu.dimension_semantics<arbitrary>], iteration_bounds = array<i64: 1, 1, 1>, scalar_prefetch = 0 : i64, scratch_operands = 0 : i64, tpu.core_type = #tpu.core_type<tc>, window_params = [{transform_indices = @transform_0, window_bounds = array<i64: 128, 256>}, {transform_indices = @transform_1, window_bounds = array<i64: 256, 32>}, {transform_indices = @transform_2, window_bounds = array<i64: 1, 32>}, {transform_indices = @transform_3, window_bounds = array<i64: 128, 32>}]} {
    %c0 = arith.constant 0 : index
    %c0_0 = arith.constant 0 : index
    %0 = vector.load %arg3[%c0, %c0_0] : memref<128x256xbf16, #tpu.memory_space<vmem>>, vector<128x256xbf16>
    %c0_1 = arith.constant 0 : index
    %c0_2 = arith.constant 0 : index
    %1 = vector.load %arg4[%c0_1, %c0_2] : memref<256x32xbf16, #tpu.memory_space<vmem>>, vector<256x32xbf16>
    %cst = arith.constant dense<0.000000e+00> : vector<128x32xf32>
    %2 = tpu.matmul %0, %1, %cst {dimension_numbers = #tpu.dot_dimension_numbers<[1], [0], [0], [1], [0, 0, 1, 1], [], []>} : vector<128x256xbf16>, vector<256x32xbf16>, vector<128x32xf32> -> vector<128x32xf32>
    %c0_3 = arith.constant 0 : index
    %c0_4 = arith.constant 0 : index
    %3 = vector.load %arg5[%c0_3, %c0_4] : memref<1x32xf32, #tpu.memory_space<vmem>>, vector<1x32xf32>
    %4 = vector.broadcast %3 : vector<1x32xf32> to vector<128x32xf32>
    %5 = arith.addf %2, %4 : vector<128x32xf32>
    %cst_5 = arith.constant 0.000000e+00 : f32
    %6 = vector.broadcast %cst_5 : f32 to vector<128x32xf32>
    %7 = arith.maximumf %5, %6 : vector<128x32xf32>
    %8 = arith.truncf %7 : vector<128x32xf32> to vector<128x32xbf16>
    %c0_6 = arith.constant 0 : index
    %c0_7 = arith.constant 0 : index
    %9 = vector.load %arg6[%c0_6, %c0_7] : memref<128x32xbf16, #tpu.memory_space<vmem>>, vector<128x32xbf16>
    tpu.vector_store %arg6[%c0_6, %c0_7], %8 {strides = array<i32>} : memref<128x32xbf16, #tpu.memory_space<vmem>>, vector<128x32xbf16>,
    return
  }
  func.func @transform_0(%arg0: i32, %arg1: i32, %arg2: i32) -> (i32, i32) {
    %c0_i32 = arith.constant 0 : i32
    return %arg0, %arg2 : i32, i32
  }
  func.func @transform_1(%arg0: i32, %arg1: i32, %arg2: i32) -> (i32, i32) {
    %c0_i32 = arith.constant 0 : i32
    return %arg2, %arg1 : i32, i32
  }
  func.func @transform_2(%arg0: i32, %arg1: i32, %arg2: i32) -> (i32, i32) {
    %c0_i32 = arith.constant 0 : i32
    %c0_i32_0 = arith.constant 0 : i32
    return %c0_i32, %arg1 : i32, i32
  }
  func.func @transform_3(%arg0: i32, %arg1: i32, %arg2: i32) -> (i32, i32) {
    %c0_i32 = arith.constant 0 : i32
    return %arg0, %arg1 : i32, i32
  }
}

module attributes {stable_mosaic.version = 11 : i64} {
  func.func @_conv_mm_1k_kernel(%arg0: i32, %arg1: i32, %arg2: i32, %arg3: memref<128x128xbf16, #tpu.memory_space<vmem>>, %arg4: memref<128x32xbf16, #tpu.memory_space<vmem>>, %arg5: memref<1x32xf32, #tpu.memory_space<vmem>>, %arg6: memref<128x32xbf16, #tpu.memory_space<vmem>>) attributes {dimension_semantics = [#tpu.dimension_semantics<parallel>, #tpu.dimension_semantics<parallel>, #tpu.dimension_semantics<arbitrary>], iteration_bounds = array<i64: 1, 1, 1>, scalar_prefetch = 0 : i64, scratch_operands = 0 : i64, tpu.core_type = #tpu.core_type<tc>, window_params = [{transform_indices = @transform_0, window_bounds = array<i64: 128, 128>}, {transform_indices = @transform_1, window_bounds = array<i64: 128, 32>}, {transform_indices = @transform_2, window_bounds = array<i64: 1, 32>}, {transform_indices = @transform_3, window_bounds = array<i64: 128, 32>}]} {
    %c0 = arith.constant 0 : index
    %c0_0 = arith.constant 0 : index
    %0 = vector.load %arg3[%c0, %c0_0] : memref<128x128xbf16, #tpu.memory_space<vmem>>, vector<128x128xbf16>
    %c0_1 = arith.constant 0 : index
    %c0_2 = arith.constant 0 : index
    %1 = vector.load %arg4[%c0_1, %c0_2] : memref<128x32xbf16, #tpu.memory_space<vmem>>, vector<128x32xbf16>
    %cst = arith.constant dense<0.000000e+00> : vector<128x32xf32>
    %2 = tpu.matmul %0, %1, %cst {dimension_numbers = #tpu.dot_dimension_numbers<[1], [0], [0], [1], [0, 0, 1, 1], [], []>} : vector<128x128xbf16>, vector<128x32xbf16>, vector<128x32xf32> -> vector<128x32xf32>
    %c0_3 = arith.constant 0 : index
    %c0_4 = arith.constant 0 : index
    %3 = vector.load %arg5[%c0_3, %c0_4] : memref<1x32xf32, #tpu.memory_space<vmem>>, vector<1x32xf32>
    %4 = vector.broadcast %3 : vector<1x32xf32> to vector<128x32xf32>
    %5 = arith.addf %2, %4 : vector<128x32xf32>
    %6 = arith.truncf %5 : vector<128x32xf32> to vector<128x32xbf16>
    %c0_5 = arith.constant 0 : index
    %c0_6 = arith.constant 0 : index
    %7 = vector.load %arg6[%c0_5, %c0_6] : memref<128x32xbf16, #tpu.memory_space<vmem>>, vector<128x32xbf16>
    tpu.vector_store %arg6[%c0_5, %c0_6], %6 {strides = array<i32>} : memref<128x32xbf16, #tpu.memory_space<vmem>>, vector<128x32xbf16>,
    return
  }
  func.func @transform_0(%arg0: i32, %arg1: i32, %arg2: i32) -> (i32, i32) {
    %c0_i32 = arith.constant 0 : i32
    return %arg0, %arg2 : i32, i32
  }
  func.func @transform_1(%arg0: i32, %arg1: i32, %arg2: i32) -> (i32, i32) {
    %c0_i32 = arith.constant 0 : i32
    return %arg2, %arg1 : i32, i32
  }
  func.func @transform_2(%arg0: i32, %arg1: i32, %arg2: i32) -> (i32, i32) {
    %c0_i32 = arith.constant 0 : i32
    %c0_i32_0 = arith.constant 0 : i32
    return %c0_i32, %arg1 : i32, i32
  }
  func.func @transform_3(%arg0: i32, %arg1: i32, %arg2: i32) -> (i32, i32) {
    %c0_i32 = arith.constant 0 : i32
    return %arg0, %arg1 : i32, i32
  }
}

module attributes {stable_mosaic.version = 11 : i64} {
  func.func @_conv_mm_1k_kernel(%arg0: i32, %arg1: i32, %arg2: i32, %arg3: memref<128x384xbf16, #tpu.memory_space<vmem>>, %arg4: memref<384x32xbf16, #tpu.memory_space<vmem>>, %arg5: memref<1x32xf32, #tpu.memory_space<vmem>>, %arg6: memref<128x32xbf16, #tpu.memory_space<vmem>>) attributes {dimension_semantics = [#tpu.dimension_semantics<parallel>, #tpu.dimension_semantics<parallel>, #tpu.dimension_semantics<arbitrary>], iteration_bounds = array<i64: 1, 1, 1>, scalar_prefetch = 0 : i64, scratch_operands = 0 : i64, tpu.core_type = #tpu.core_type<tc>, window_params = [{transform_indices = @transform_0, window_bounds = array<i64: 128, 384>}, {transform_indices = @transform_1, window_bounds = array<i64: 384, 32>}, {transform_indices = @transform_2, window_bounds = array<i64: 1, 32>}, {transform_indices = @transform_3, window_bounds = array<i64: 128, 32>}]} {
    %c0 = arith.constant 0 : index
    %c0_0 = arith.constant 0 : index
    %0 = vector.load %arg3[%c0, %c0_0] : memref<128x384xbf16, #tpu.memory_space<vmem>>, vector<128x384xbf16>
    %c0_1 = arith.constant 0 : index
    %c0_2 = arith.constant 0 : index
    %1 = vector.load %arg4[%c0_1, %c0_2] : memref<384x32xbf16, #tpu.memory_space<vmem>>, vector<384x32xbf16>
    %cst = arith.constant dense<0.000000e+00> : vector<128x32xf32>
    %2 = tpu.matmul %0, %1, %cst {dimension_numbers = #tpu.dot_dimension_numbers<[1], [0], [0], [1], [0, 0, 1, 1], [], []>} : vector<128x384xbf16>, vector<384x32xbf16>, vector<128x32xf32> -> vector<128x32xf32>
    %c0_3 = arith.constant 0 : index
    %c0_4 = arith.constant 0 : index
    %3 = vector.load %arg5[%c0_3, %c0_4] : memref<1x32xf32, #tpu.memory_space<vmem>>, vector<1x32xf32>
    %4 = vector.broadcast %3 : vector<1x32xf32> to vector<128x32xf32>
    %5 = arith.addf %2, %4 : vector<128x32xf32>
    %cst_5 = arith.constant 0.000000e+00 : f32
    %6 = vector.broadcast %cst_5 : f32 to vector<128x32xf32>
    %7 = arith.maximumf %5, %6 : vector<128x32xf32>
    %8 = arith.truncf %7 : vector<128x32xf32> to vector<128x32xbf16>
    %c0_6 = arith.constant 0 : index
    %c0_7 = arith.constant 0 : index
    %9 = vector.load %arg6[%c0_6, %c0_7] : memref<128x32xbf16, #tpu.memory_space<vmem>>, vector<128x32xbf16>
    tpu.vector_store %arg6[%c0_6, %c0_7], %8 {strides = array<i32>} : memref<128x32xbf16, #tpu.memory_space<vmem>>, vector<128x32xbf16>,
    return
  }
  func.func @transform_0(%arg0: i32, %arg1: i32, %arg2: i32) -> (i32, i32) {
    %c0_i32 = arith.constant 0 : i32
    return %arg0, %arg2 : i32, i32
  }
  func.func @transform_1(%arg0: i32, %arg1: i32, %arg2: i32) -> (i32, i32) {
    %c0_i32 = arith.constant 0 : i32
    return %arg2, %arg1 : i32, i32
  }
  func.func @transform_2(%arg0: i32, %arg1: i32, %arg2: i32) -> (i32, i32) {
    %c0_i32 = arith.constant 0 : i32
    %c0_i32_0 = arith.constant 0 : i32
    return %c0_i32, %arg1 : i32, i32
  }
  func.func @transform_3(%arg0: i32, %arg1: i32, %arg2: i32) -> (i32, i32) {
    %c0_i32 = arith.constant 0 : i32
    return %arg0, %arg1 : i32, i32
  }
}

module attributes {stable_mosaic.version = 11 : i64} {
  func.func @_conv_mm_1k_kernel(%arg0: i32, %arg1: i32, %arg2: i32, %arg3: memref<128x384xbf16, #tpu.memory_space<vmem>>, %arg4: memref<384x32xbf16, #tpu.memory_space<vmem>>, %arg5: memref<1x32xf32, #tpu.memory_space<vmem>>, %arg6: memref<128x32xbf16, #tpu.memory_space<vmem>>, %arg7: memref<128x32xbf16, #tpu.memory_space<vmem>>) attributes {dimension_semantics = [#tpu.dimension_semantics<parallel>, #tpu.dimension_semantics<parallel>, #tpu.dimension_semantics<arbitrary>], iteration_bounds = array<i64: 1, 1, 1>, scalar_prefetch = 0 : i64, scratch_operands = 0 : i64, tpu.core_type = #tpu.core_type<tc>, window_params = [{transform_indices = @transform_0, window_bounds = array<i64: 128, 384>}, {transform_indices = @transform_1, window_bounds = array<i64: 384, 32>}, {transform_indices = @transform_2, window_bounds = array<i64: 1, 32>}, {transform_indices = @transform_3, window_bounds = array<i64: 128, 32>}, {transform_indices = @transform_4, window_bounds = array<i64: 128, 32>}]} {
    %c0 = arith.constant 0 : index
    %c0_0 = arith.constant 0 : index
    %0 = vector.load %arg3[%c0, %c0_0] : memref<128x384xbf16, #tpu.memory_space<vmem>>, vector<128x384xbf16>
    %c0_1 = arith.constant 0 : index
    %c0_2 = arith.constant 0 : index
    %1 = vector.load %arg4[%c0_1, %c0_2] : memref<384x32xbf16, #tpu.memory_space<vmem>>, vector<384x32xbf16>
    %cst = arith.constant dense<0.000000e+00> : vector<128x32xf32>
    %2 = tpu.matmul %0, %1, %cst {dimension_numbers = #tpu.dot_dimension_numbers<[1], [0], [0], [1], [0, 0, 1, 1], [], []>} : vector<128x384xbf16>, vector<384x32xbf16>, vector<128x32xf32> -> vector<128x32xf32>
    %c0_3 = arith.constant 0 : index
    %c0_4 = arith.constant 0 : index
    %3 = vector.load %arg5[%c0_3, %c0_4] : memref<1x32xf32, #tpu.memory_space<vmem>>, vector<1x32xf32>
    %4 = vector.broadcast %3 : vector<1x32xf32> to vector<128x32xf32>
    %5 = arith.addf %2, %4 : vector<128x32xf32>
    %c0_5 = arith.constant 0 : index
    %c0_6 = arith.constant 0 : index
    %6 = vector.load %arg6[%c0_5, %c0_6] : memref<128x32xbf16, #tpu.memory_space<vmem>>, vector<128x32xbf16>
    %7 = arith.extf %6 : vector<128x32xbf16> to vector<128x32xf32>
    %8 = arith.addf %5, %7 : vector<128x32xf32>
    %cst_7 = arith.constant 0.000000e+00 : f32
    %9 = vector.broadcast %cst_7 : f32 to vector<128x32xf32>
    %10 = arith.maximumf %8, %9 : vector<128x32xf32>
    %11 = arith.truncf %10 : vector<128x32xf32> to vector<128x32xbf16>
    %c0_8 = arith.constant 0 : index
    %c0_9 = arith.constant 0 : index
    %12 = vector.load %arg7[%c0_8, %c0_9] : memref<128x32xbf16, #tpu.memory_space<vmem>>, vector<128x32xbf16>
    tpu.vector_store %arg7[%c0_8, %c0_9], %11 {strides = array<i32>} : memref<128x32xbf16, #tpu.memory_space<vmem>>, vector<128x32xbf16>,
    return
  }
  func.func @transform_0(%arg0: i32, %arg1: i32, %arg2: i32) -> (i32, i32) {
    %c0_i32 = arith.constant 0 : i32
    return %arg0, %arg2 : i32, i32
  }
  func.func @transform_1(%arg0: i32, %arg1: i32, %arg2: i32) -> (i32, i32) {
    %c0_i32 = arith.constant 0 : i32
    return %arg2, %arg1 : i32, i32
  }
  func.func @transform_2(%arg0: i32, %arg1: i32, %arg2: i32) -> (i32, i32) {
    %c0_i32 = arith.constant 0 : i32
    %c0_i32_0 = arith.constant 0 : i32
    return %c0_i32, %arg1 : i32, i32
  }
  func.func @transform_3(%arg0: i32, %arg1: i32, %arg2: i32) -> (i32, i32) {
    %c0_i32 = arith.constant 0 : i32
    return %arg0, %arg1 : i32, i32
  }
  func.func @transform_4(%arg0: i32, %arg1: i32, %arg2: i32) -> (i32, i32) {
    %c0_i32 = arith.constant 0 : i32
    return %arg0, %arg1 : i32, i32
  }
}

module attributes {stable_mosaic.version = 11 : i64} {
  func.func @_maxpool_s1w_kernel(%arg0: i32, %arg1: memref<8x2x10x32xbf16, #tpu.memory_space<vmem>>, %arg2: memref<8x9x32xbf16, #tpu.memory_space<vmem>>) attributes {dimension_semantics = [#tpu.dimension_semantics<parallel>], iteration_bounds = array<i64: 1>, scalar_prefetch = 0 : i64, scratch_operands = 0 : i64, tpu.core_type = #tpu.core_type<tc>, window_params = [{transform_indices = @transform_0, window_bounds = array<i64: 8, 2, 10, 32>}, {transform_indices = @transform_1, window_bounds = array<i64: 8, 9, 32>}]} {
    %c0 = arith.constant 0 : index
    %c0_0 = arith.constant 0 : index
    %c0_1 = arith.constant 0 : index
    %c0_2 = arith.constant 0 : index
    %0 = vector.load %arg1[%c0, %c0_0, %c0_1, %c0_2] : memref<8x2x10x32xbf16, #tpu.memory_space<vmem>>, vector<8x2x10x32xbf16>
    %1 = vector.extract_strided_slice %0 {offsets = [0, 0, 0, 0], sizes = [8, 1, 10, 32], strides = [1, 1, 1, 1]} : vector<8x2x10x32xbf16> to vector<8x1x10x32xbf16>
    %2 = vector.shape_cast %1 : vector<8x1x10x32xbf16> to vector<8x10x32xbf16>
    %3 = vector.extract_strided_slice %0 {offsets = [0, 1, 0, 0], sizes = [8, 1, 10, 32], strides = [1, 1, 1, 1]} : vector<8x2x10x32xbf16> to vector<8x1x10x32xbf16>
    %4 = vector.shape_cast %3 : vector<8x1x10x32xbf16> to vector<8x10x32xbf16>
    %5 = arith.maximumf %2, %4 : vector<8x10x32xbf16>
    %6 = vector.extract_strided_slice %5 {offsets = [0, 0, 0], sizes = [8, 9, 32], strides = [1, 1, 1]} : vector<8x10x32xbf16> to vector<8x9x32xbf16>
    %7 = vector.extract_strided_slice %5 {offsets = [0, 1, 0], sizes = [8, 9, 32], strides = [1, 1, 1]} : vector<8x10x32xbf16> to vector<8x9x32xbf16>
    %8 = arith.maximumf %6, %7 : vector<8x9x32xbf16>
    %c0_3 = arith.constant 0 : index
    %c0_4 = arith.constant 0 : index
    %c0_5 = arith.constant 0 : index
    %9 = vector.load %arg2[%c0_3, %c0_4, %c0_5] : memref<8x9x32xbf16, #tpu.memory_space<vmem>>, vector<8x9x32xbf16>
    tpu.vector_store %arg2[%c0_3, %c0_4, %c0_5], %8 {strides = array<i32>} : memref<8x9x32xbf16, #tpu.memory_space<vmem>>, vector<8x9x32xbf16>,
    return
  }
  func.func @transform_0(%arg0: i32) -> (i32, i32, i32, i32) {
    %c0_i32 = arith.constant 0 : i32
    %c0_i32_0 = arith.constant 0 : i32
    %c0_i32_1 = arith.constant 0 : i32
    %c0_i32_2 = arith.constant 0 : i32
    return %arg0, %c0_i32, %c0_i32_0, %c0_i32_1 : i32, i32, i32, i32
  }
  func.func @transform_1(%arg0: i32) -> (i32, i32, i32) {
    %c0_i32 = arith.constant 0 : i32
    %c0_i32_0 = arith.constant 0 : i32
    %c0_i32_1 = arith.constant 0 : i32
    return %arg0, %c0_i32, %c0_i32_0 : i32, i32, i32
  }
}

module attributes {stable_mosaic.version = 11 : i64} {
  func.func @_conv_mm_1k_kernel(%arg0: i32, %arg1: i32, %arg2: i32, %arg3: memref<72x384xbf16, #tpu.memory_space<vmem>>, %arg4: memref<384x64xbf16, #tpu.memory_space<vmem>>, %arg5: memref<1x64xf32, #tpu.memory_space<vmem>>, %arg6: memref<72x64xbf16, #tpu.memory_space<vmem>>) attributes {dimension_semantics = [#tpu.dimension_semantics<parallel>, #tpu.dimension_semantics<parallel>, #tpu.dimension_semantics<arbitrary>], iteration_bounds = array<i64: 1, 1, 1>, scalar_prefetch = 0 : i64, scratch_operands = 0 : i64, tpu.core_type = #tpu.core_type<tc>, window_params = [{transform_indices = @transform_0, window_bounds = array<i64: 72, 384>}, {transform_indices = @transform_1, window_bounds = array<i64: 384, 64>}, {transform_indices = @transform_2, window_bounds = array<i64: 1, 64>}, {transform_indices = @transform_3, window_bounds = array<i64: 72, 64>}]} {
    %c0 = arith.constant 0 : index
    %c0_0 = arith.constant 0 : index
    %0 = vector.load %arg3[%c0, %c0_0] : memref<72x384xbf16, #tpu.memory_space<vmem>>, vector<72x384xbf16>
    %c0_1 = arith.constant 0 : index
    %c0_2 = arith.constant 0 : index
    %1 = vector.load %arg4[%c0_1, %c0_2] : memref<384x64xbf16, #tpu.memory_space<vmem>>, vector<384x64xbf16>
    %cst = arith.constant dense<0.000000e+00> : vector<72x64xf32>
    %2 = tpu.matmul %0, %1, %cst {dimension_numbers = #tpu.dot_dimension_numbers<[1], [0], [0], [1], [0, 0, 1, 1], [], []>} : vector<72x384xbf16>, vector<384x64xbf16>, vector<72x64xf32> -> vector<72x64xf32>
    %c0_3 = arith.constant 0 : index
    %c0_4 = arith.constant 0 : index
    %3 = vector.load %arg5[%c0_3, %c0_4] : memref<1x64xf32, #tpu.memory_space<vmem>>, vector<1x64xf32>
    %4 = vector.broadcast %3 : vector<1x64xf32> to vector<72x64xf32>
    %5 = arith.addf %2, %4 : vector<72x64xf32>
    %cst_5 = arith.constant 0.000000e+00 : f32
    %6 = vector.broadcast %cst_5 : f32 to vector<72x64xf32>
    %7 = arith.maximumf %5, %6 : vector<72x64xf32>
    %8 = arith.truncf %7 : vector<72x64xf32> to vector<72x64xbf16>
    %c0_6 = arith.constant 0 : index
    %c0_7 = arith.constant 0 : index
    %9 = vector.load %arg6[%c0_6, %c0_7] : memref<72x64xbf16, #tpu.memory_space<vmem>>, vector<72x64xbf16>
    tpu.vector_store %arg6[%c0_6, %c0_7], %8 {strides = array<i32>} : memref<72x64xbf16, #tpu.memory_space<vmem>>, vector<72x64xbf16>,
    return
  }
  func.func @transform_0(%arg0: i32, %arg1: i32, %arg2: i32) -> (i32, i32) {
    %c0_i32 = arith.constant 0 : i32
    return %arg0, %arg2 : i32, i32
  }
  func.func @transform_1(%arg0: i32, %arg1: i32, %arg2: i32) -> (i32, i32) {
    %c0_i32 = arith.constant 0 : i32
    return %arg2, %arg1 : i32, i32
  }
  func.func @transform_2(%arg0: i32, %arg1: i32, %arg2: i32) -> (i32, i32) {
    %c0_i32 = arith.constant 0 : i32
    %c0_i32_0 = arith.constant 0 : i32
    return %c0_i32, %arg1 : i32, i32
  }
  func.func @transform_3(%arg0: i32, %arg1: i32, %arg2: i32) -> (i32, i32) {
    %c0_i32 = arith.constant 0 : i32
    return %arg0, %arg1 : i32, i32
  }
}

module attributes {stable_mosaic.version = 11 : i64} {
  func.func @_conv_mm_1k_kernel(%arg0: i32, %arg1: i32, %arg2: i32, %arg3: memref<72x128xbf16, #tpu.memory_space<vmem>>, %arg4: memref<128x64xbf16, #tpu.memory_space<vmem>>, %arg5: memref<1x64xf32, #tpu.memory_space<vmem>>, %arg6: memref<72x64xbf16, #tpu.memory_space<vmem>>) attributes {dimension_semantics = [#tpu.dimension_semantics<parallel>, #tpu.dimension_semantics<parallel>, #tpu.dimension_semantics<arbitrary>], iteration_bounds = array<i64: 1, 1, 1>, scalar_prefetch = 0 : i64, scratch_operands = 0 : i64, tpu.core_type = #tpu.core_type<tc>, window_params = [{transform_indices = @transform_0, window_bounds = array<i64: 72, 128>}, {transform_indices = @transform_1, window_bounds = array<i64: 128, 64>}, {transform_indices = @transform_2, window_bounds = array<i64: 1, 64>}, {transform_indices = @transform_3, window_bounds = array<i64: 72, 64>}]} {
    %c0 = arith.constant 0 : index
    %c0_0 = arith.constant 0 : index
    %0 = vector.load %arg3[%c0, %c0_0] : memref<72x128xbf16, #tpu.memory_space<vmem>>, vector<72x128xbf16>
    %c0_1 = arith.constant 0 : index
    %c0_2 = arith.constant 0 : index
    %1 = vector.load %arg4[%c0_1, %c0_2] : memref<128x64xbf16, #tpu.memory_space<vmem>>, vector<128x64xbf16>
    %cst = arith.constant dense<0.000000e+00> : vector<72x64xf32>
    %2 = tpu.matmul %0, %1, %cst {dimension_numbers = #tpu.dot_dimension_numbers<[1], [0], [0], [1], [0, 0, 1, 1], [], []>} : vector<72x128xbf16>, vector<128x64xbf16>, vector<72x64xf32> -> vector<72x64xf32>
    %c0_3 = arith.constant 0 : index
    %c0_4 = arith.constant 0 : index
    %3 = vector.load %arg5[%c0_3, %c0_4] : memref<1x64xf32, #tpu.memory_space<vmem>>, vector<1x64xf32>
    %4 = vector.broadcast %3 : vector<1x64xf32> to vector<72x64xf32>
    %5 = arith.addf %2, %4 : vector<72x64xf32>
    %6 = arith.truncf %5 : vector<72x64xf32> to vector<72x64xbf16>
    %c0_5 = arith.constant 0 : index
    %c0_6 = arith.constant 0 : index
    %7 = vector.load %arg6[%c0_5, %c0_6] : memref<72x64xbf16, #tpu.memory_space<vmem>>, vector<72x64xbf16>
    tpu.vector_store %arg6[%c0_5, %c0_6], %6 {strides = array<i32>} : memref<72x64xbf16, #tpu.memory_space<vmem>>, vector<72x64xbf16>,
    return
  }
  func.func @transform_0(%arg0: i32, %arg1: i32, %arg2: i32) -> (i32, i32) {
    %c0_i32 = arith.constant 0 : i32
    return %arg0, %arg2 : i32, i32
  }
  func.func @transform_1(%arg0: i32, %arg1: i32, %arg2: i32) -> (i32, i32) {
    %c0_i32 = arith.constant 0 : i32
    return %arg2, %arg1 : i32, i32
  }
  func.func @transform_2(%arg0: i32, %arg1: i32, %arg2: i32) -> (i32, i32) {
    %c0_i32 = arith.constant 0 : i32
    %c0_i32_0 = arith.constant 0 : i32
    return %c0_i32, %arg1 : i32, i32
  }
  func.func @transform_3(%arg0: i32, %arg1: i32, %arg2: i32) -> (i32, i32) {
    %c0_i32 = arith.constant 0 : i32
    return %arg0, %arg1 : i32, i32
  }
}

module attributes {stable_mosaic.version = 11 : i64} {
  func.func @_conv_mm_1k_kernel(%arg0: i32, %arg1: i32, %arg2: i32, %arg3: memref<72x640xbf16, #tpu.memory_space<vmem>>, %arg4: memref<640x64xbf16, #tpu.memory_space<vmem>>, %arg5: memref<1x64xf32, #tpu.memory_space<vmem>>, %arg6: memref<72x64xbf16, #tpu.memory_space<vmem>>) attributes {dimension_semantics = [#tpu.dimension_semantics<parallel>, #tpu.dimension_semantics<parallel>, #tpu.dimension_semantics<arbitrary>], iteration_bounds = array<i64: 1, 1, 1>, scalar_prefetch = 0 : i64, scratch_operands = 0 : i64, tpu.core_type = #tpu.core_type<tc>, window_params = [{transform_indices = @transform_0, window_bounds = array<i64: 72, 640>}, {transform_indices = @transform_1, window_bounds = array<i64: 640, 64>}, {transform_indices = @transform_2, window_bounds = array<i64: 1, 64>}, {transform_indices = @transform_3, window_bounds = array<i64: 72, 64>}]} {
    %c0 = arith.constant 0 : index
    %c0_0 = arith.constant 0 : index
    %0 = vector.load %arg3[%c0, %c0_0] : memref<72x640xbf16, #tpu.memory_space<vmem>>, vector<72x640xbf16>
    %c0_1 = arith.constant 0 : index
    %c0_2 = arith.constant 0 : index
    %1 = vector.load %arg4[%c0_1, %c0_2] : memref<640x64xbf16, #tpu.memory_space<vmem>>, vector<640x64xbf16>
    %cst = arith.constant dense<0.000000e+00> : vector<72x64xf32>
    %2 = tpu.matmul %0, %1, %cst {dimension_numbers = #tpu.dot_dimension_numbers<[1], [0], [0], [1], [0, 0, 1, 1], [], []>} : vector<72x640xbf16>, vector<640x64xbf16>, vector<72x64xf32> -> vector<72x64xf32>
    %c0_3 = arith.constant 0 : index
    %c0_4 = arith.constant 0 : index
    %3 = vector.load %arg5[%c0_3, %c0_4] : memref<1x64xf32, #tpu.memory_space<vmem>>, vector<1x64xf32>
    %4 = vector.broadcast %3 : vector<1x64xf32> to vector<72x64xf32>
    %5 = arith.addf %2, %4 : vector<72x64xf32>
    %cst_5 = arith.constant 0.000000e+00 : f32
    %6 = vector.broadcast %cst_5 : f32 to vector<72x64xf32>
    %7 = arith.maximumf %5, %6 : vector<72x64xf32>
    %8 = arith.truncf %7 : vector<72x64xf32> to vector<72x64xbf16>
    %c0_6 = arith.constant 0 : index
    %c0_7 = arith.constant 0 : index
    %9 = vector.load %arg6[%c0_6, %c0_7] : memref<72x64xbf16, #tpu.memory_space<vmem>>, vector<72x64xbf16>
    tpu.vector_store %arg6[%c0_6, %c0_7], %8 {strides = array<i32>} : memref<72x64xbf16, #tpu.memory_space<vmem>>, vector<72x64xbf16>,
    return
  }
  func.func @transform_0(%arg0: i32, %arg1: i32, %arg2: i32) -> (i32, i32) {
    %c0_i32 = arith.constant 0 : i32
    return %arg0, %arg2 : i32, i32
  }
  func.func @transform_1(%arg0: i32, %arg1: i32, %arg2: i32) -> (i32, i32) {
    %c0_i32 = arith.constant 0 : i32
    return %arg2, %arg1 : i32, i32
  }
  func.func @transform_2(%arg0: i32, %arg1: i32, %arg2: i32) -> (i32, i32) {
    %c0_i32 = arith.constant 0 : i32
    %c0_i32_0 = arith.constant 0 : i32
    return %c0_i32, %arg1 : i32, i32
  }
  func.func @transform_3(%arg0: i32, %arg1: i32, %arg2: i32) -> (i32, i32) {
    %c0_i32 = arith.constant 0 : i32
    return %arg0, %arg1 : i32, i32
  }
}

module attributes {stable_mosaic.version = 11 : i64} {
  func.func @_conv_mm_1k_kernel(%arg0: i32, %arg1: i32, %arg2: i32, %arg3: memref<72x640xbf16, #tpu.memory_space<vmem>>, %arg4: memref<640x64xbf16, #tpu.memory_space<vmem>>, %arg5: memref<1x64xf32, #tpu.memory_space<vmem>>, %arg6: memref<72x64xbf16, #tpu.memory_space<vmem>>, %arg7: memref<72x64xbf16, #tpu.memory_space<vmem>>) attributes {dimension_semantics = [#tpu.dimension_semantics<parallel>, #tpu.dimension_semantics<parallel>, #tpu.dimension_semantics<arbitrary>], iteration_bounds = array<i64: 1, 1, 1>, scalar_prefetch = 0 : i64, scratch_operands = 0 : i64, tpu.core_type = #tpu.core_type<tc>, window_params = [{transform_indices = @transform_0, window_bounds = array<i64: 72, 640>}, {transform_indices = @transform_1, window_bounds = array<i64: 640, 64>}, {transform_indices = @transform_2, window_bounds = array<i64: 1, 64>}, {transform_indices = @transform_3, window_bounds = array<i64: 72, 64>}, {transform_indices = @transform_4, window_bounds = array<i64: 72, 64>}]} {
    %c0 = arith.constant 0 : index
    %c0_0 = arith.constant 0 : index
    %0 = vector.load %arg3[%c0, %c0_0] : memref<72x640xbf16, #tpu.memory_space<vmem>>, vector<72x640xbf16>
    %c0_1 = arith.constant 0 : index
    %c0_2 = arith.constant 0 : index
    %1 = vector.load %arg4[%c0_1, %c0_2] : memref<640x64xbf16, #tpu.memory_space<vmem>>, vector<640x64xbf16>
    %cst = arith.constant dense<0.000000e+00> : vector<72x64xf32>
    %2 = tpu.matmul %0, %1, %cst {dimension_numbers = #tpu.dot_dimension_numbers<[1], [0], [0], [1], [0, 0, 1, 1], [], []>} : vector<72x640xbf16>, vector<640x64xbf16>, vector<72x64xf32> -> vector<72x64xf32>
    %c0_3 = arith.constant 0 : index
    %c0_4 = arith.constant 0 : index
    %3 = vector.load %arg5[%c0_3, %c0_4] : memref<1x64xf32, #tpu.memory_space<vmem>>, vector<1x64xf32>
    %4 = vector.broadcast %3 : vector<1x64xf32> to vector<72x64xf32>
    %5 = arith.addf %2, %4 : vector<72x64xf32>
    %c0_5 = arith.constant 0 : index
    %c0_6 = arith.constant 0 : index
    %6 = vector.load %arg6[%c0_5, %c0_6] : memref<72x64xbf16, #tpu.memory_space<vmem>>, vector<72x64xbf16>
    %7 = arith.extf %6 : vector<72x64xbf16> to vector<72x64xf32>
    %8 = arith.addf %5, %7 : vector<72x64xf32>
    %cst_7 = arith.constant 0.000000e+00 : f32
    %9 = vector.broadcast %cst_7 : f32 to vector<72x64xf32>
    %10 = arith.maximumf %8, %9 : vector<72x64xf32>
    %11 = arith.truncf %10 : vector<72x64xf32> to vector<72x64xbf16>
    %c0_8 = arith.constant 0 : index
    %c0_9 = arith.constant 0 : index
    %12 = vector.load %arg7[%c0_8, %c0_9] : memref<72x64xbf16, #tpu.memory_space<vmem>>, vector<72x64xbf16>
    tpu.vector_store %arg7[%c0_8, %c0_9], %11 {strides = array<i32>} : memref<72x64xbf16, #tpu.memory_space<vmem>>, vector<72x64xbf16>,
    return
  }
  func.func @transform_0(%arg0: i32, %arg1: i32, %arg2: i32) -> (i32, i32) {
    %c0_i32 = arith.constant 0 : i32
    return %arg0, %arg2 : i32, i32
  }
  func.func @transform_1(%arg0: i32, %arg1: i32, %arg2: i32) -> (i32, i32) {
    %c0_i32 = arith.constant 0 : i32
    return %arg2, %arg1 : i32, i32
  }
  func.func @transform_2(%arg0: i32, %arg1: i32, %arg2: i32) -> (i32, i32) {
    %c0_i32 = arith.constant 0 : i32
    %c0_i32_0 = arith.constant 0 : i32
    return %c0_i32, %arg1 : i32, i32
  }
  func.func @transform_3(%arg0: i32, %arg1: i32, %arg2: i32) -> (i32, i32) {
    %c0_i32 = arith.constant 0 : i32
    return %arg0, %arg1 : i32, i32
  }
  func.func @transform_4(%arg0: i32, %arg1: i32, %arg2: i32) -> (i32, i32) {
    %c0_i32 = arith.constant 0 : i32
    return %arg0, %arg1 : i32, i32
  }
}

module attributes {stable_mosaic.version = 11 : i64} {
  func.func @_conv_mm_1k_kernel(%arg0: i32, %arg1: i32, %arg2: i32, %arg3: memref<40x256xbf16, #tpu.memory_space<vmem>>, %arg4: memref<256x64xbf16, #tpu.memory_space<vmem>>, %arg5: memref<1x64xf32, #tpu.memory_space<vmem>>, %arg6: memref<40x64xbf16, #tpu.memory_space<vmem>>) attributes {dimension_semantics = [#tpu.dimension_semantics<parallel>, #tpu.dimension_semantics<parallel>, #tpu.dimension_semantics<arbitrary>], iteration_bounds = array<i64: 1, 1, 1>, scalar_prefetch = 0 : i64, scratch_operands = 0 : i64, tpu.core_type = #tpu.core_type<tc>, window_params = [{transform_indices = @transform_0, window_bounds = array<i64: 40, 256>}, {transform_indices = @transform_1, window_bounds = array<i64: 256, 64>}, {transform_indices = @transform_2, window_bounds = array<i64: 1, 64>}, {transform_indices = @transform_3, window_bounds = array<i64: 40, 64>}]} {
    %c0 = arith.constant 0 : index
    %c0_0 = arith.constant 0 : index
    %0 = vector.load %arg3[%c0, %c0_0] : memref<40x256xbf16, #tpu.memory_space<vmem>>, vector<40x256xbf16>
    %c0_1 = arith.constant 0 : index
    %c0_2 = arith.constant 0 : index
    %1 = vector.load %arg4[%c0_1, %c0_2] : memref<256x64xbf16, #tpu.memory_space<vmem>>, vector<256x64xbf16>
    %cst = arith.constant dense<0.000000e+00> : vector<40x64xf32>
    %2 = tpu.matmul %0, %1, %cst {dimension_numbers = #tpu.dot_dimension_numbers<[1], [0], [0], [1], [0, 0, 1, 1], [], []>} : vector<40x256xbf16>, vector<256x64xbf16>, vector<40x64xf32> -> vector<40x64xf32>
    %c0_3 = arith.constant 0 : index
    %c0_4 = arith.constant 0 : index
    %3 = vector.load %arg5[%c0_3, %c0_4] : memref<1x64xf32, #tpu.memory_space<vmem>>, vector<1x64xf32>
    %4 = vector.broadcast %3 : vector<1x64xf32> to vector<40x64xf32>
    %5 = arith.addf %2, %4 : vector<40x64xf32>
    %cst_5 = arith.constant 0.000000e+00 : f32
    %6 = vector.broadcast %cst_5 : f32 to vector<40x64xf32>
    %7 = arith.maximumf %5, %6 : vector<40x64xf32>
    %8 = arith.truncf %7 : vector<40x64xf32> to vector<40x64xbf16>
    %c0_6 = arith.constant 0 : index
    %c0_7 = arith.constant 0 : index
    %9 = vector.load %arg6[%c0_6, %c0_7] : memref<40x64xbf16, #tpu.memory_space<vmem>>, vector<40x64xbf16>
    tpu.vector_store %arg6[%c0_6, %c0_7], %8 {strides = array<i32>} : memref<40x64xbf16, #tpu.memory_space<vmem>>, vector<40x64xbf16>,
    return
  }
  func.func @transform_0(%arg0: i32, %arg1: i32, %arg2: i32) -> (i32, i32) {
    %c0_i32 = arith.constant 0 : i32
    return %arg0, %arg2 : i32, i32
  }
  func.func @transform_1(%arg0: i32, %arg1: i32, %arg2: i32) -> (i32, i32) {
    %c0_i32 = arith.constant 0 : i32
    return %arg2, %arg1 : i32, i32
  }
  func.func @transform_2(%arg0: i32, %arg1: i32, %arg2: i32) -> (i32, i32) {
    %c0_i32 = arith.constant 0 : i32
    %c0_i32_0 = arith.constant 0 : i32
    return %c0_i32, %arg1 : i32, i32
  }
  func.func @transform_3(%arg0: i32, %arg1: i32, %arg2: i32) -> (i32, i32) {
    %c0_i32 = arith.constant 0 : i32
    return %arg0, %arg1 : i32, i32
  }
}

module attributes {stable_mosaic.version = 11 : i64} {
  func.func @_conv_mm_1k_kernel(%arg0: i32, %arg1: i32, %arg2: i32, %arg3: memref<18x256xbf16, #tpu.memory_space<vmem>>, %arg4: memref<256x64xbf16, #tpu.memory_space<vmem>>, %arg5: memref<1x64xf32, #tpu.memory_space<vmem>>, %arg6: memref<18x64xbf16, #tpu.memory_space<vmem>>) attributes {dimension_semantics = [#tpu.dimension_semantics<parallel>, #tpu.dimension_semantics<parallel>, #tpu.dimension_semantics<arbitrary>], iteration_bounds = array<i64: 1, 1, 1>, scalar_prefetch = 0 : i64, scratch_operands = 0 : i64, tpu.core_type = #tpu.core_type<tc>, window_params = [{transform_indices = @transform_0, window_bounds = array<i64: 18, 256>}, {transform_indices = @transform_1, window_bounds = array<i64: 256, 64>}, {transform_indices = @transform_2, window_bounds = array<i64: 1, 64>}, {transform_indices = @transform_3, window_bounds = array<i64: 18, 64>}]} {
    %c0 = arith.constant 0 : index
    %c0_0 = arith.constant 0 : index
    %0 = vector.load %arg3[%c0, %c0_0] : memref<18x256xbf16, #tpu.memory_space<vmem>>, vector<18x256xbf16>
    %c0_1 = arith.constant 0 : index
    %c0_2 = arith.constant 0 : index
    %1 = vector.load %arg4[%c0_1, %c0_2] : memref<256x64xbf16, #tpu.memory_space<vmem>>, vector<256x64xbf16>
    %cst = arith.constant dense<0.000000e+00> : vector<18x64xf32>
    %2 = tpu.matmul %0, %1, %cst {dimension_numbers = #tpu.dot_dimension_numbers<[1], [0], [0], [1], [0, 0, 1, 1], [], []>} : vector<18x256xbf16>, vector<256x64xbf16>, vector<18x64xf32> -> vector<18x64xf32>
    %c0_3 = arith.constant 0 : index
    %c0_4 = arith.constant 0 : index
    %3 = vector.load %arg5[%c0_3, %c0_4] : memref<1x64xf32, #tpu.memory_space<vmem>>, vector<1x64xf32>
    %4 = vector.broadcast %3 : vector<1x64xf32> to vector<18x64xf32>
    %5 = arith.addf %2, %4 : vector<18x64xf32>
    %cst_5 = arith.constant 0.000000e+00 : f32
    %6 = vector.broadcast %cst_5 : f32 to vector<18x64xf32>
    %7 = arith.maximumf %5, %6 : vector<18x64xf32>
    %8 = arith.truncf %7 : vector<18x64xf32> to vector<18x64xbf16>
    %c0_6 = arith.constant 0 : index
    %c0_7 = arith.constant 0 : index
    %9 = vector.load %arg6[%c0_6, %c0_7] : memref<18x64xbf16, #tpu.memory_space<vmem>>, vector<18x64xbf16>
    tpu.vector_store %arg6[%c0_6, %c0_7], %8 {strides = array<i32>} : memref<18x64xbf16, #tpu.memory_space<vmem>>, vector<18x64xbf16>,
    return
  }
  func.func @transform_0(%arg0: i32, %arg1: i32, %arg2: i32) -> (i32, i32) {
    %c0_i32 = arith.constant 0 : i32
    return %arg0, %arg2 : i32, i32
  }
  func.func @transform_1(%arg0: i32, %arg1: i32, %arg2: i32) -> (i32, i32) {
    %c0_i32 = arith.constant 0 : i32
    return %arg2, %arg1 : i32, i32
  }
  func.func @transform_2(%arg0: i32, %arg1: i32, %arg2: i32) -> (i32, i32) {
    %c0_i32 = arith.constant 0 : i32
    %c0_i32_0 = arith.constant 0 : i32
    return %c0_i32, %arg1 : i32, i32
  }
  func.func @transform_3(%arg0: i32, %arg1: i32, %arg2: i32) -> (i32, i32) {
    %c0_i32 = arith.constant 0 : i32
    return %arg0, %arg1 : i32, i32
  }
}

</mosaic_0001>

<llo_original>
// kernel: resnet_forward.21
$region0: #{resnet_forward.21}
  #allocation0 [shape = 'u32[]', space=smem, size = 0x4, offset = 0x4, fixed_abs, tag = 'smem constant byte address 0x4 - core index']
  #allocation1 [shape = 'u32[72,128]{1,0:T(1,128)}', space=vmem, size = 0x9000, scoped, tag = 'internal scratch']
  %s0 = inlined_call_operand.vmem [shape: bf16[2048,128], index: 0, kind: input, shape index: {}]
  %s1 = inlined_call_operand.vmem [shape: bf16[128,4], index: 1, kind: input, shape index: {}]
  %s2 = inlined_call_operand.vmem [shape: f32[1,4], index: 2, kind: input, shape index: {}]
  %s3 = inlined_call_operand.vmem [shape: bf16[2048,4], index: 3, kind: output, shape index: {}]
  %s4 = sld [smem:[#allocation0]]
  $region45: #{resnet_forward.21} parent=0
    _
  %s6 = ssub.s32 1, %s4
  %s7 = scalar_select 0, %s6, %s4
  loop: start=0, step=1, limit=6
  $region2: #{resnet_forward.21} parent=0 // loop_pre_header
    _
  $region3: #{resnet_forward.21} parent=0 // loop_header
    %s9 = sphi 0, %s13
    %p10 = scmp.ge.s32.totalorder %s9, 6
    %s16 = sphi 0, %s35
    %s17 = sphi 0, %s31
    %s18 = sphi 0, %s27
    %s19 = sphi 0, %s16
    %s20 = sphi 0, %s17
    %s21 = sphi 0, %s18
    %s22 = sphi 0, %s19
    %s23 = sphi 0, %s20
    %s24 = sphi 0, %s21
    %s40 = sphi 0, %s42
    %s43 = sphi 0, %s40
    %s44 = sphi 0, %s43
    %s60 = sphi 0, %s44
    %s68 = sphi 0, %s70
    %s71 = sphi 0, %s68
    %s72 = sphi 0, %s71
    %s88 = sphi 0, %s72
    %s94 = sphi 0, %s96
    %s97 = sphi 0, %s94
    %s98 = sphi 0, %s97
    %s114 = sphi 0, %s98
    %s122 = sphi 0, %s124
    %s125 = sphi 0, %s122
    %s126 = sphi 0, %s125
    %s142 = sphi 0, %s126
  $region4: #{resnet_forward.21} parent=0 // loop_header_branch
    %12 = sbr.rel (%p10) target = $region8
  $region5: #{resnet_forward.21} parent=0 // loop_body
    %s14 = ssub.s32 %s9, 1
    %s15 = ssub.s32 %s9, 2
    %s25 = sadd.s32 1, %s18
    %p26 = scmp.ge.s32.totalorder %s25, 1
    %s27 = scalar_select %p26, 0, %s25
    %s28 = sadd.s32 1, %s17
    %s29 = scalar_select %p26, %s28, %s17
    %p30 = scmp.ge.s32.totalorder %s29, 1
    %s31 = scalar_select %p30, 0, %s29
    %s32 = sadd.s32 1, %s16
    %s33 = scalar_select %p30, %s32, %s16
    %p34 = scmp.ge.s32.totalorder %s33, 4
    %s35 = scalar_select %p34, 0, %s33
    %s36 = ssub.s32 %s16, %s35
    %s37 = ssub.s32 %s18, %s27
    %s38 = sor.u32 %s36, %s37
    %p39 = scmp.eq.s32.totalorder %s38, 0
    %s41 = sadd.s32 %s40, 1
    %s42 = scalar_select %p39, %s40, %s41
    %p45 = pneg %p39
    %p46 = scmp.eq.s32.totalorder %s9, 3
    %p47 = por %p45, %p46
    %p48 = scmp.ne.s32.totalorder %s40, %s43
    %p49 = scmp.eq.s32.totalorder %s9, 0
    %p50 = por %p48, %p49
    %p51 = scmp.ne.s32.totalorder %s40, %s43
    %p52 = scmp.eq.s32.totalorder %s14, 3
    %p53 = por %p51, %p52
    %p54 = scmp.ne.s32.totalorder %s43, %s44
    %p55 = scmp.eq.s32.totalorder %s14, 0
    %p56 = por %p54, %p55
    %p57 = scmp.ne.s32.totalorder %s43, %s44
    %p58 = scmp.eq.s32.totalorder %s15, 3
    %p59 = por %p57, %p58
    %p61 = scmp.ne.s32.totalorder %s44, %s60
    %p62 = scmp.eq.s32.totalorder %s15, 0
    %p63 = por %p61, %p62
    %s64 = ssub.s32 %s18, %s27
    %s65 = ssub.s32 %s17, %s31
    %s66 = sor.u32 %s64, %s65
    %p67 = scmp.eq.s32.totalorder %s66, 0
    %s69 = sadd.s32 %s68, 1
    %s70 = scalar_select %p67, %s68, %s69
    %p73 = pneg %p67
    %p74 = scmp.eq.s32.totalorder %s9, 3
    %p75 = por %p73, %p74
    %p76 = scmp.ne.s32.totalorder %s68, %s71
    %p77 = scmp.eq.s32.totalorder %s9, 0
    %p78 = por %p76, %p77
    %p79 = scmp.ne.s32.totalorder %s68, %s71
    %p80 = scmp.eq.s32.totalorder %s14, 3
    %p81 = por %p79, %p80
    %p82 = scmp.ne.s32.totalorder %s71, %s72
    %p83 = scmp.eq.s32.totalorder %s14, 0
    %p84 = por %p82, %p83
    %p85 = scmp.ne.s32.totalorder %s71, %s72
    %p86 = scmp.eq.s32.totalorder %s15, 3
    %p87 = por %p85, %p86
    %p89 = scmp.ne.s32.totalorder %s72, %s88
    %p90 = scmp.eq.s32.totalorder %s15, 0
    %p91 = por %p89, %p90
    %s92 = ssub.s32 %s17, %s31
    %p93 = scmp.eq.s32.totalorder %s92, 0
    %s95 = sadd.s32 %s94, 1
    %s96 = scalar_select %p93, %s94, %s95
    %p99 = pneg %p93
    %p100 = scmp.eq.s32.totalorder %s9, 3
    %p101 = por %p99, %p100
    %p102 = scmp.ne.s32.totalorder %s94, %s97
    %p103 = scmp.eq.s32.totalorder %s9, 0
    %p104 = por %p102, %p103
    %p105 = scmp.ne.s32.totalorder %s94, %s97
    %p106 = scmp.eq.s32.totalorder %s14, 3
    %p107 = por %p105, %p106
    %p108 = scmp.ne.s32.totalorder %s97, %s98
    %p109 = scmp.eq.s32.totalorder %s14, 0
    %p110 = por %p108, %p109
    %p111 = scmp.ne.s32.totalorder %s97, %s98
    %p112 = scmp.eq.s32.totalorder %s15, 3
    %p113 = por %p111, %p112
    %p115 = scmp.ne.s32.totalorder %s98, %s114
    %p116 = scmp.eq.s32.totalorder %s15, 0
    %p117 = por %p115, %p116
    %s118 = ssub.s32 %s16, %s35
    %s119 = ssub.s32 %s17, %s31
    %s120 = sor.u32 %s118, %s119
    %p121 = scmp.eq.s32.totalorder %s120, 0
    %s123 = sadd.s32 %s122, 1
    %s124 = scalar_select %p121, %s122, %s123
    %p127 = pneg %p121
    %p128 = scmp.eq.s32.totalorder %s9, 3
    %p129 = por %p127, %p128
    %p130 = scmp.ne.s32.totalorder %s122, %s125
    %p131 = scmp.eq.s32.totalorder %s9, 0
    %p132 = por %p130, %p131
    %p133 = scmp.ne.s32.totalorder %s122, %s125
    %p134 = scmp.eq.s32.totalorder %s14, 3
    %p135 = por %p133, %p134
    %p136 = scmp.ne.s32.totalorder %s125, %s126
    %p137 = scmp.eq.s32.totalorder %s14, 0
    %p138 = por %p136, %p137
    %p139 = scmp.ne.s32.totalorder %s125, %s126
    %p140 = scmp.eq.s32.totalorder %s15, 3
    %p141 = por %p139, %p140
    %p143 = scmp.ne.s32.totalorder %s126, %s142
    %p144 = scmp.eq.s32.totalorder %s15, 0
    %p145 = por %p143, %p144
    %p146 = scmp.le.s32.totalorder 1, %s9
    %p147 = scmp.lt.s32.totalorder %s9, 5
    %p148 = pnand %p146, %p147
    %p149 = pneg %p148
    // Predicated region
    $region9: #{resnet_forward.21} parent=5 // pred_check
      _
    $region10: #{resnet_forward.21} parent=5 // pred_check_branch
      %151 = sbr.rel (%p148) target = $region12
    $region11: #{resnet_forward.21} parent=5 // pred_region
      %s152 = ssub.s32 %s9, 1
      // Predicated region
      $region13: #{resnet_forward.21} parent=11 // pred_check
        %p153 = pneg %p84
      $region14: #{resnet_forward.21} parent=11 // pred_check_branch
        %155 = sbr.rel (%p153) target = $region16
      $region15: #{resnet_forward.21} parent=11 // pred_region
        %s156 = smul.u32 16, %s21
        %p157 = scmp.lt.s32.totalorder %s156, 15
        %s158 = scalar_select %p157, %s156, 15
        %p159 = scmp.lt.s32.totalorder %s20, 0
        %s160 = scalar_select %p159, %s20, 0
        %s161 = sadd.s32 %s160, %s158
        %s162 = smul.addr %s161, 4
        %s163 = scalar_lea.vmem %s1, %s162
        %s164 = smul.u32 16, %s21
      $region16: #{resnet_forward.21} parent=11 // pred_fallthru
        _
      // Predicated region
      $region17: #{resnet_forward.21} parent=11 // pred_check
        %p165 = pneg %p110
      $region18: #{resnet_forward.21} parent=11 // pred_check_branch
        %167 = sbr.rel (%p165) target = $region20
      $region19: #{resnet_forward.21} parent=11 // pred_region
        %p168 = scmp.lt.s32.totalorder %s20, 0
        %s169 = scalar_select %p168, %s20, 0
        %s170 = scalar_lea.vmem %s2, %s169
      $region20: #{resnet_forward.21} parent=11 // pred_fallthru
        _
    $region12: #{resnet_forward.21} parent=5 // pred_fallthru
      _
    %p171 = scmp.lt.s32.totalorder %s9, 4
    // Predicated region
    $region21: #{resnet_forward.21} parent=5 // pred_check
      %p172 = pneg %p171
    $region22: #{resnet_forward.21} parent=5 // pred_check_branch
      %174 = sbr.rel (%p172) target = $region24
    $region23: #{resnet_forward.21} parent=5 // pred_region
      // Predicated region
      $region25: #{resnet_forward.21} parent=23 // pred_check
        %p175 = pneg %p50
      $region26: #{resnet_forward.21} parent=23 // pred_check_branch
        %177 = sbr.rel (%p175) target = $region28
      $region27: #{resnet_forward.21} parent=23 // pred_region
        %s178 = smul.u32 64, %s16
        %p179 = scmp.lt.s32.totalorder %s178, 255
        %s180 = scalar_select %p179, %s178, 255
        %p181 = scmp.lt.s32.totalorder %s18, 0
        %s182 = scalar_select %p181, %s18, 0
        %s183 = sadd.s32 %s182, %s180
        %s184 = smul.addr %s183, 4
        %s185 = scalar_lea.vmem %s0, %s184
        %s186 = smul.u32 64, %s16
      $region28: #{resnet_forward.21} parent=23 // pred_fallthru
        _
    $region24: #{resnet_forward.21} parent=5 // pred_fallthru
      _
    %p187 = scmp.le.s32.totalorder 1, %s9
    %p188 = scmp.lt.s32.totalorder %s9, 5
    %p189 = pnand %p187, %p188
    %p190 = pneg %p189
    // Predicated region
    $region29: #{resnet_forward.21} parent=5 // pred_check
      _
    $region30: #{resnet_forward.21} parent=5 // pred_check_branch
      %192 = sbr.rel (%p189) target = $region32
    $region31: #{resnet_forward.21} parent=5 // pred_region
      %s193 = ssub.s32 %s9, 1
      %s194 = smul.u32 64, %s19
      %p195 = scmp.lt.s32.totalorder %s194, 255
      %s196 = scalar_select %p195, %s194, 255
      %p197 = scmp.lt.s32.totalorder %s21, 0
      %s198 = scalar_select %p197, %s21, 0
      %s199 = sadd.s32 %s198, %s196
      %s200 = smul.addr %s199, 4
      %s201 = scalar_lea.vmem %s0, %s200
      %p202 = pneg %p56
      %p203 = pneg %p53
      %s204 = smul.u32 16, %s21
      %p205 = scmp.lt.s32.totalorder %s204, 15
      %s206 = scalar_select %p205, %s204, 15
      %p207 = scmp.lt.s32.totalorder %s20, 0
      %s208 = scalar_select %p207, %s20, 0
      %s209 = sadd.s32 %s208, %s206
      %s210 = smul.addr %s209, 4
      %s211 = scalar_lea.vmem %s1, %s210
      %p212 = pneg %p84
      %p213 = pneg %p81
      %p214 = scmp.lt.s32.totalorder %s20, 0
      %s215 = scalar_select %p214, %s20, 0
      %s216 = scalar_lea.vmem %s2, %s215
      %p217 = pneg %p110
      %p218 = pneg %p107
      %p219 = pneg %p138
      %p220 = pneg %p135
      %s221 = smul.u32 64, %s19
      %p222 = scmp.lt.s32.totalorder %s221, 255
      %s223 = scalar_select %p222, %s221, 255
      %p224 = scmp.lt.s32.totalorder %s20, 0
      %s225 = scalar_select %p224, %s20, 0
      %s226 = sadd.s32 %s225, %s223
      %s227 = smul.addr %s226, 4
      %s228 = scalar_lea.vmem %s3, %s227
      %s229 = smul.u32 64, %s19
      %p230 = scmp.lt.s32.totalorder %s229, 255
      %s231 = scalar_select %p230, %s229, 255
      %p232 = scmp.lt.s32.totalorder %s21, 0
      %s233 = scalar_select %p232, %s21, 0
      %s234 = sadd.s32 %s233, %s231
      %s235 = smul.addr %s234, 4
      %s236 = scalar_lea.vmem %s0, %s235
      %s237 = smul.u32 64, %s19
      %s238 = smul.u32 16, %s21
      %p239 = scmp.lt.s32.totalorder %s238, 15
      %s240 = scalar_select %p239, %s238, 15
      %p241 = scmp.lt.s32.totalorder %s20, 0
      %s242 = scalar_select %p241, %s20, 0
      %s243 = sadd.s32 %s242, %s240
      %s244 = smul.addr %s243, 4
      %s245 = scalar_lea.vmem %s1, %s244
      %s246 = smul.u32 16, %s21
      %p247 = scmp.lt.s32.totalorder %s20, 0
      %s248 = scalar_select %p247, %s20, 0
      %s249 = scalar_lea.vmem %s2, %s248
      %s250 = smul.u32 64, %s19
      %p251 = scmp.lt.s32.totalorder %s250, 255
      %s252 = scalar_select %p251, %s250, 255
      %p253 = scmp.lt.s32.totalorder %s20, 0
      %s254 = scalar_select %p253, %s20, 0
      %s255 = sadd.s32 %s254, %s252
      %s256 = smul.addr %s255, 4
      %s257 = scalar_lea.vmem %s3, %s256
      %s258 = smul.u32 64, %s19
      %v259 = vld [vmem:[%s236] sm:$0xf]
      %v260 = vld [vmem:[%s236 + $0x4] sm:$0xf]
      %v261 = vld [vmem:[%s236 + $0x8] sm:$0xf]
      %v262 = vld [vmem:[%s236 + $0xc] sm:$0xf]
      %v263 = vld [vmem:[%s236 + $0x10] sm:$0xf]
      %v264 = vld [vmem:[%s236 + $0x14] sm:$0xf]
      %v265 = vld [vmem:[%s236 + $0x18] sm:$0xf]
      %v266 = vld [vmem:[%s236 + $0x1c] sm:$0xf]
      %v267 = vld [vmem:[%s236 + $0x20] sm:$0xf]
      %v268 = vld [vmem:[%s236 + $0x24] sm:$0xf]
      %v269 = vld [vmem:[%s236 + $0x28] sm:$0xf]
      %v270 = vld [vmem:[%s236 + $0x2c] sm:$0xf]
      %v271 = vld [vmem:[%s236 + $0x30] sm:$0xf]
      %v272 = vld [vmem:[%s236 + $0x34] sm:$0xf]
      %v273 = vld [vmem:[%s236 + $0x38] sm:$0xf]
      %v274 = vld [vmem:[%s236 + $0x3c] sm:$0xf]
      %v275 = vld [vmem:[%s236 + $0x40] sm:$0xf]
      %v276 = vld [vmem:[%s236 + $0x44] sm:$0xf]
      %v277 = vld [vmem:[%s236 + $0x48] sm:$0xf]
      %v278 = vld [vmem:[%s236 + $0x4c] sm:$0xf]
      %v279 = vld [vmem:[%s236 + $0x50] sm:$0xf]
      %v280 = vld [vmem:[%s236 + $0x54] sm:$0xf]
      %v281 = vld [vmem:[%s236 + $0x58] sm:$0xf]
      %v282 = vld [vmem:[%s236 + $0x5c] sm:$0xf]
      %v283 = vld [vmem:[%s236 + $0x60] sm:$0xf]
      %v284 = vld [vmem:[%s236 + $0x64] sm:$0xf]
      %v285 = vld [vmem:[%s236 + $0x68] sm:$0xf]
      %v286 = vld [vmem:[%s236 + $0x6c] sm:$0xf]
      %v287 = vld [vmem:[%s236 + $0x70] sm:$0xf]
      %v288 = vld [vmem:[%s236 + $0x74] sm:$0xf]
      %v289 = vld [vmem:[%s236 + $0x78] sm:$0xf]
      %v290 = vld [vmem:[%s236 + $0x7c] sm:$0xf]
      %v291 = vld [vmem:[%s236 + $0x80] sm:$0xf]
      %v292 = vld [vmem:[%s236 + $0x84] sm:$0xf]
      %v293 = vld [vmem:[%s236 + $0x88] sm:$0xf]
      %v294 = vld [vmem:[%s236 + $0x8c] sm:$0xf]
      %v295 = vld [vmem:[%s236 + $0x90] sm:$0xf]
      %v296 = vld [vmem:[%s236 + $0x94] sm:$0xf]
      %v297 = vld [vmem:[%s236 + $0x98] sm:$0xf]
      %v298 = vld [vmem:[%s236 + $0x9c] sm:$0xf]
      %v299 = vld [vmem:[%s236 + $0xa0] sm:$0xf]
      %v300 = vld [vmem:[%s236 + $0xa4] sm:$0xf]
      %v301 = vld [vmem:[%s236 + $0xa8] sm:$0xf]
      %v302 = vld [vmem:[%s236 + $0xac] sm:$0xf]
      %v303 = vld [vmem:[%s236 + $0xb0] sm:$0xf]
      %v304 = vld [vmem:[%s236 + $0xb4] sm:$0xf]
      %v305 = vld [vmem:[%s236 + $0xb8] sm:$0xf]
      %v306 = vld [vmem:[%s236 + $0xbc] sm:$0xf]
      %v307 = vld [vmem:[%s236 + $0xc0] sm:$0xf]
      %v308 = vld [vmem:[%s236 + $0xc4] sm:$0xf]
      %v309 = vld [vmem:[%s236 + $0xc8] sm:$0xf]
      %v310 = vld [vmem:[%s236 + $0xcc] sm:$0xf]
      %v311 = vld [vmem:[%s236 + $0xd0] sm:$0xf]
      %v312 = vld [vmem:[%s236 + $0xd4] sm:$0xf]
      %v313 = vld [vmem:[%s236 + $0xd8] sm:$0xf]
      %v314 = vld [vmem:[%s236 + $0xdc] sm:$0xf]
      %v315 = vld [vmem:[%s236 + $0xe0] sm:$0xf]
      %v316 = vld [vmem:[%s236 + $0xe4] sm:$0xf]
      %v317 = vld [vmem:[%s236 + $0xe8] sm:$0xf]
      %v318 = vld [vmem:[%s236 + $0xec] sm:$0xf]
      %v319 = vld [vmem:[%s236 + $0xf0] sm:$0xf]
      %v320 = vld [vmem:[%s236 + $0xf4] sm:$0xf]
      %v321 = vld [vmem:[%s236 + $0xf8] sm:$0xf]
      %v322 = vld [vmem:[%s236 + $0xfc] sm:$0xf]
      %v323 = vld [vmem:[%s245] sm:$0xf]
      %v324 = vld [vmem:[%s245 + $0x4] sm:$0xf]
      %v325 = vld [vmem:[%s245 + $0x8] sm:$0xf]
      %v326 = vld [vmem:[%s245 + $0xc] sm:$0xf]
      %v327 = vld [vmem:[%s245 + $0x10] sm:$0xf]
      %v328 = vld [vmem:[%s245 + $0x14] sm:$0xf]
      %v329 = vld [vmem:[%s245 + $0x18] sm:$0xf]
      %v330 = vld [vmem:[%s245 + $0x1c] sm:$0xf]
      %v331 = vld [vmem:[%s245 + $0x20] sm:$0xf]
      %v332 = vld [vmem:[%s245 + $0x24] sm:$0xf]
      %v333 = vld [vmem:[%s245 + $0x28] sm:$0xf]
      %v334 = vld [vmem:[%s245 + $0x2c] sm:$0xf]
      %v335 = vld [vmem:[%s245 + $0x30] sm:$0xf]
      %v336 = vld [vmem:[%s245 + $0x34] sm:$0xf]
      %v337 = vld [vmem:[%s245 + $0x38] sm:$0xf]
      %v338 = vld [vmem:[%s245 + $0x3c] sm:$0xf]
      %v339 = vld [vmem:[%s249] sm:$0x1]
      %v341 = vperm.slane %v339, 0
      %v407 = vunpack.c.l.b16 %v259
      %v408 = vunpack.c.l.b16 %v260
      %v409 = vunpack.c.l.b16 %v261
      %v410 = vunpack.c.l.b16 %v262
      %v411 = vunpack.c.l.b16 %v263
      %v412 = vunpack.c.l.b16 %v264
      %v413 = vunpack.c.l.b16 %v265
      %v414 = vunpack.c.l.b16 %v266
      %v415 = vunpack.c.l.b16 %v267
      %v416 = vunpack.c.l.b16 %v268
      %v417 = vunpack.c.l.b16 %v269
      %v418 = vunpack.c.l.b16 %v270
      %v419 = vunpack.c.l.b16 %v271
      %v420 = vunpack.c.l.b16 %v272
      %v421 = vunpack.c.l.b16 %v273
      %v422 = vunpack.c.l.b16 %v274
      %v423 = vunpack.c.l.b16 %v275
      %v424 = vunpack.c.l.b16 %v276
      %v425 = vunpack.c.l.b16 %v277
      %v426 = vunpack.c.l.b16 %v278
      %v427 = vunpack.c.l.b16 %v279
      %v428 = vunpack.c.l.b16 %v280
      %v429 = vunpack.c.l.b16 %v281
      %v430 = vunpack.c.l.b16 %v282
      %v431 = vunpack.c.l.b16 %v283
      %v432 = vunpack.c.l.b16 %v284
      %v433 = vunpack.c.l.b16 %v285
      %v434 = vunpack.c.l.b16 %v286
      %v435 = vunpack.c.l.b16 %v287
      %v436 = vunpack.c.l.b16 %v288
      %v437 = vunpack.c.l.b16 %v289
      %v438 = vunpack.c.l.b16 %v290
      %v439 = vunpack.c.l.b16 %v291
      %v440 = vunpack.c.l.b16 %v292
      %v441 = vunpack.c.l.b16 %v293
      %v442 = vunpack.c.l.b16 %v294
      %v443 = vunpack.c.l.b16 %v295
      %v444 = vunpack.c.l.b16 %v296
      %v445 = vunpack.c.l.b16 %v297
      %v446 = vunpack.c.l.b16 %v298
      %v447 = vunpack.c.l.b16 %v299
      %v448 = vunpack.c.l.b16 %v300
      %v449 = vunpack.c.l.b16 %v301
      %v450 = vunpack.c.l.b16 %v302
      %v451 = vunpack.c.l.b16 %v303
      %v452 = vunpack.c.l.b16 %v304
      %v453 = vunpack.c.l.b16 %v305
      %v454 = vunpack.c.l.b16 %v306
      %v455 = vunpack.c.l.b16 %v307
      %v456 = vunpack.c.l.b16 %v308
      %v457 = vunpack.c.l.b16 %v309
      %v458 = vunpack.c.l.b16 %v310
      %v459 = vunpack.c.l.b16 %v311
      %v460 = vunpack.c.l.b16 %v312
      %v461 = vunpack.c.l.b16 %v313
      %v462 = vunpack.c.l.b16 %v314
      %v463 = vunpack.c.l.b16 %v315
      %v464 = vunpack.c.l.b16 %v316
      %v465 = vunpack.c.l.b16 %v317
      %v466 = vunpack.c.l.b16 %v318
      %v467 = vunpack.c.l.b16 %v319
      %v468 = vunpack.c.l.b16 %v320
      %v469 = vunpack.c.l.b16 %v321
      %v470 = vunpack.c.l.b16 %v322
      %v471 = vpack.c.b16 %v408, %v407
      %v472 = vpack.c.b16 %v410, %v409
      %v473 = vpack.c.b16 %v412, %v411
      %v474 = vpack.c.b16 %v414, %v413
      %v475 = vpack.c.b16 %v416, %v415
      %v476 = vpack.c.b16 %v418, %v417
      %v477 = vpack.c.b16 %v420, %v419
      %v478 = vpack.c.b16 %v422, %v421
      %v479 = vpack.c.b16 %v424, %v423
      %v480 = vpack.c.b16 %v426, %v425
      %v481 = vpack.c.b16 %v428, %v427
      %v482 = vpack.c.b16 %v430, %v429
      %v483 = vpack.c.b16 %v432, %v431
      %v484 = vpack.c.b16 %v434, %v433
      %v485 = vpack.c.b16 %v436, %v435
      %v486 = vpack.c.b16 %v438, %v437
      %v487 = vpack.c.b16 %v440, %v439
      %v488 = vpack.c.b16 %v442, %v441
      %v489 = vpack.c.b16 %v444, %v443
      %v490 = vpack.c.b16 %v446, %v445
      %v491 = vpack.c.b16 %v448, %v447
      %v492 = vpack.c.b16 %v450, %v449
      %v493 = vpack.c.b16 %v452, %v451
      %v494 = vpack.c.b16 %v454, %v453
      %v495 = vpack.c.b16 %v456, %v455
      %v496 = vpack.c.b16 %v458, %v457
      %v497 = vpack.c.b16 %v460, %v459
      %v498 = vpack.c.b16 %v462, %v461
      %v499 = vpack.c.b16 %v464, %v463
      %v500 = vpack.c.b16 %v466, %v465
      %v501 = vpack.c.b16 %v468, %v467
      %v502 = vpack.c.b16 %v470, %v469
      %v551 = vunpack.c.l.b16 %v323
      %v552 = vunpack.c.l.b16 %v324
      %v553 = vunpack.c.l.b16 %v325
      %v554 = vunpack.c.l.b16 %v326
      %v555 = vunpack.c.l.b16 %v327
      %v556 = vunpack.c.l.b16 %v328
      %v557 = vunpack.c.l.b16 %v329
      %v558 = vunpack.c.l.b16 %v330
      %v559 = vunpack.c.l.b16 %v331
      %v560 = vunpack.c.l.b16 %v332
      %v561 = vunpack.c.l.b16 %v333
      %v562 = vunpack.c.l.b16 %v334
      %v563 = vunpack.c.l.b16 %v335
      %v564 = vunpack.c.l.b16 %v336
      %v565 = vunpack.c.l.b16 %v337
      %v566 = vunpack.c.l.b16 %v338
      %v567 = vpack.c.b16 %v552, %v551
      %v568 = vpack.c.b16 %v554, %v553
      %v569 = vpack.c.b16 %v556, %v555
      %v570 = vpack.c.b16 %v558, %v557
      %v571 = vpack.c.b16 %v560, %v559
      %v572 = vpack.c.b16 %v562, %v561
      %v573 = vpack.c.b16 %v564, %v563
      %v574 = vpack.c.b16 %v566, %v565
      %583 = vmatpush.bf16.msra.mxu0 %v574
      %584 = vmatpush.bf16.msra.mxu0 %v573
      %585 = vmatpush.bf16.msra.mxu0 %v572
      %586 = vmatpush.bf16.msra.mxu0 %v571
      %587 = vmatpush.bf16.msra.mxu0 %v570
      %588 = vmatpush.bf16.msra.mxu0 %v569
      %589 = vmatpush.bf16.msra.mxu0 %v568
      %590 = vmatpush.bf16.msra.mxu0 %v567
      %591 = vmatmul.bf16.gmra.mxu0 %v471
      %v592 = vpop.f32.mrf.mxu0
      %v593 = vadd.f32 %v341, %v592
      %v594 = vpop.f32.mrf.mxu0
      %v595 = vadd.f32 %v341, %v594
      %596 = vmatmul.bf16.gmra.mxu0 %v472
      %v597 = vpop.f32.mrf.mxu0
      %v598 = vadd.f32 %v341, %v597
      %v599 = vpop.f32.mrf.mxu0
      %v600 = vadd.f32 %v341, %v599
      %601 = vmatmul.bf16.gmra.mxu0 %v473
      %v602 = vpop.f32.mrf.mxu0
      %v603 = vadd.f32 %v341, %v602
      %v604 = vpop.f32.mrf.mxu0
      %v605 = vadd.f32 %v341, %v604
      %606 = vmatmul.bf16.gmra.mxu0 %v474
      %v607 = vpop.f32.mrf.mxu0
      %v608 = vadd.f32 %v341, %v607
      %v609 = vpop.f32.mrf.mxu0
      %v610 = vadd.f32 %v341, %v609
      %611 = vmatmul.bf16.gmra.mxu0 %v475
      %v612 = vpop.f32.mrf.mxu0
      %v613 = vadd.f32 %v341, %v612
      %v614 = vpop.f32.mrf.mxu0
      %v615 = vadd.f32 %v341, %v614
      %616 = vmatmul.bf16.gmra.mxu0 %v476
      %v617 = vpop.f32.mrf.mxu0
      %v618 = vadd.f32 %v341, %v617
      %v619 = vpop.f32.mrf.mxu0
      %v620 = vadd.f32 %v341, %v619
      %621 = vmatmul.bf16.gmra.mxu0 %v477
      %v622 = vpop.f32.mrf.mxu0
      %v623 = vadd.f32 %v341, %v622
      %v624 = vpop.f32.mrf.mxu0
      %v625 = vadd.f32 %v341, %v624
      %626 = vmatmul.bf16.gmra.mxu0 %v478
      %v627 = vpop.f32.mrf.mxu0
      %v628 = vadd.f32 %v341, %v627
      %v629 = vpop.f32.mrf.mxu0
      %v630 = vadd.f32 %v341, %v629
      %631 = vmatmul.bf16.gmra.mxu0 %v479
      %v632 = vpop.f32.mrf.mxu0
      %v633 = vadd.f32 %v341, %v632
      %v634 = vpop.f32.mrf.mxu0
      %v635 = vadd.f32 %v341, %v634
      %636 = vmatmul.bf16.gmra.mxu0 %v480
      %v637 = vpop.f32.mrf.mxu0
      %v638 = vadd.f32 %v341, %v637
      %v639 = vpop.f32.mrf.mxu0
      %v640 = vadd.f32 %v341, %v639
      %641 = vmatmul.bf16.gmra.mxu0 %v481
      %v642 = vpop.f32.mrf.mxu0
      %v643 = vadd.f32 %v341, %v642
      %v644 = vpop.f32.mrf.mxu0
      %v645 = vadd.f32 %v341, %v644
      %646 = vmatmul.bf16.gmra.mxu0 %v482
      %v647 = vpop.f32.mrf.mxu0
      %v648 = vadd.f32 %v341, %v647
      %v649 = vpop.f32.mrf.mxu0
      %v650 = vadd.f32 %v341, %v649
      %651 = vmatmul.bf16.gmra.mxu0 %v483
      %v652 = vpop.f32.mrf.mxu0
      %v653 = vadd.f32 %v341, %v652
      %v654 = vpop.f32.mrf.mxu0
      %v655 = vadd.f32 %v341, %v654
      %656 = vmatmul.bf16.gmra.mxu0 %v484
      %v657 = vpop.f32.mrf.mxu0
      %v658 = vadd.f32 %v341, %v657
      %v659 = vpop.f32.mrf.mxu0
      %v660 = vadd.f32 %v341, %v659
      %661 = vmatmul.bf16.gmra.mxu0 %v485
      %v662 = vpop.f32.mrf.mxu0
      %v663 = vadd.f32 %v341, %v662
      %v664 = vpop.f32.mrf.mxu0
      %v665 = vadd.f32 %v341, %v664
      %666 = vmatmul.bf16.gmra.mxu0 %v486
      %v667 = vpop.f32.mrf.mxu0
      %v668 = vadd.f32 %v341, %v667
      %v669 = vpop.f32.mrf.mxu0
      %v670 = vadd.f32 %v341, %v669
      %671 = vmatmul.bf16.gmra.mxu0 %v487
      %v672 = vpop.f32.mrf.mxu0
      %v673 = vadd.f32 %v341, %v672
      %v674 = vpop.f32.mrf.mxu0
      %v675 = vadd.f32 %v341, %v674
      %676 = vmatmul.bf16.gmra.mxu0 %v488
      %v677 = vpop.f32.mrf.mxu0
      %v678 = vadd.f32 %v341, %v677
      %v679 = vpop.f32.mrf.mxu0
      %v680 = vadd.f32 %v341, %v679
      %681 = vmatmul.bf16.gmra.mxu0 %v489
      %v682 = vpop.f32.mrf.mxu0
      %v683 = vadd.f32 %v341, %v682
      %v684 = vpop.f32.mrf.mxu0
      %v685 = vadd.f32 %v341, %v684
      %686 = vmatmul.bf16.gmra.mxu0 %v490
      %v687 = vpop.f32.mrf.mxu0
      %v688 = vadd.f32 %v341, %v687
      %v689 = vpop.f32.mrf.mxu0
      %v690 = vadd.f32 %v341, %v689
      %691 = vmatmul.bf16.gmra.mxu0 %v491
      %v692 = vpop.f32.mrf.mxu0
      %v693 = vadd.f32 %v341, %v692
      %v694 = vpop.f32.mrf.mxu0
      %v695 = vadd.f32 %v341, %v694
      %696 = vmatmul.bf16.gmra.mxu0 %v492
      %v697 = vpop.f32.mrf.mxu0
      %v698 = vadd.f32 %v341, %v697
      %v699 = vpop.f32.mrf.mxu0
      %v700 = vadd.f32 %v341, %v699
      %701 = vmatmul.bf16.gmra.mxu0 %v493
      %v702 = vpop.f32.mrf.mxu0
      %v703 = vadd.f32 %v341, %v702
      %v704 = vpop.f32.mrf.mxu0
      %v705 = vadd.f32 %v341, %v704
      %706 = vmatmul.bf16.gmra.mxu0 %v494
      %v707 = vpop.f32.mrf.mxu0
      %v708 = vadd.f32 %v341, %v707
      %v709 = vpop.f32.mrf.mxu0
      %v710 = vadd.f32 %v341, %v709
      %711 = vmatmul.bf16.gmra.mxu0 %v495
      %v712 = vpop.f32.mrf.mxu0
      %v713 = vadd.f32 %v341, %v712
      %v714 = vpop.f32.mrf.mxu0
      %v715 = vadd.f32 %v341, %v714
      %716 = vmatmul.bf16.gmra.mxu0 %v496
      %v717 = vpop.f32.mrf.mxu0
      %v718 = vadd.f32 %v341, %v717
      %v719 = vpop.f32.mrf.mxu0
      %v720 = vadd.f32 %v341, %v719
      %721 = vmatmul.bf16.gmra.mxu0 %v497
      %v722 = vpop.f32.mrf.mxu0
      %v723 = vadd.f32 %v341, %v722
      %v724 = vpop.f32.mrf.mxu0
      %v725 = vadd.f32 %v341, %v724
      %726 = vmatmul.bf16.gmra.mxu0 %v498
      %v727 = vpop.f32.mrf.mxu0
      %v728 = vadd.f32 %v341, %v727
      %v729 = vpop.f32.mrf.mxu0
      %v730 = vadd.f32 %v341, %v729
      %731 = vmatmul.bf16.gmra.mxu0 %v499
      %v732 = vpop.f32.mrf.mxu0
      %v733 = vadd.f32 %v341, %v732
      %v734 = vpop.f32.mrf.mxu0
      %v735 = vadd.f32 %v341, %v734
      %736 = vmatmul.bf16.gmra.mxu0 %v500
      %v737 = vpop.f32.mrf.mxu0
      %v738 = vadd.f32 %v341, %v737
      %v739 = vpop.f32.mrf.mxu0
      %v740 = vadd.f32 %v341, %v739
      %741 = vmatmul.bf16.gmra.mxu0 %v501
      %v742 = vpop.f32.mrf.mxu0
      %v743 = vadd.f32 %v341, %v742
      %v744 = vpop.f32.mrf.mxu0
      %v745 = vadd.f32 %v341, %v744
      %746 = vmatmul.bf16.gmra.mxu0 %v502
      %v747 = vpop.f32.mrf.mxu0
      %v748 = vadd.f32 %v341, %v747
      %v749 = vpop.f32.mrf.mxu0
      %v750 = vadd.f32 %v341, %v749
      %751 = vdwg.mxu0
      %v752 = vmax.f32 %v593, 0.0
      %v753 = vmax.f32 %v595, 0.0
      %v754 = vmax.f32 %v598, 0.0
      %v755 = vmax.f32 %v600, 0.0
      %v756 = vmax.f32 %v603, 0.0
      %v757 = vmax.f32 %v605, 0.0
      %v758 = vmax.f32 %v608, 0.0
      %v759 = vmax.f32 %v610, 0.0
      %v760 = vmax.f32 %v613, 0.0
      %v761 = vmax.f32 %v615, 0.0
      %v762 = vmax.f32 %v618, 0.0
      %v763 = vmax.f32 %v620, 0.0
      %v764 = vmax.f32 %v623, 0.0
      %v765 = vmax.f32 %v625, 0.0
      %v766 = vmax.f32 %v628, 0.0
      %v767 = vmax.f32 %v630, 0.0
      %v768 = vmax.f32 %v633, 0.0
      %v769 = vmax.f32 %v635, 0.0
      %v770 = vmax.f32 %v638, 0.0
      %v771 = vmax.f32 %v640, 0.0
      %v772 = vmax.f32 %v643, 0.0
      %v773 = vmax.f32 %v645, 0.0
      %v774 = vmax.f32 %v648, 0.0
      %v775 = vmax.f32 %v650, 0.0
      %v776 = vmax.f32 %v653, 0.0
      %v777 = vmax.f32 %v655, 0.0
      %v778 = vmax.f32 %v658, 0.0
      %v779 = vmax.f32 %v660, 0.0
      %v780 = vmax.f32 %v663, 0.0
      %v781 = vmax.f32 %v665, 0.0
      %v782 = vmax.f32 %v668, 0.0
      %v783 = vmax.f32 %v670, 0.0
      %v784 = vmax.f32 %v673, 0.0
      %v785 = vmax.f32 %v675, 0.0
      %v786 = vmax.f32 %v678, 0.0
      %v787 = vmax.f32 %v680, 0.0
      %v788 = vmax.f32 %v683, 0.0
      %v789 = vmax.f32 %v685, 0.0
      %v790 = vmax.f32 %v688, 0.0
      %v791 = vmax.f32 %v690, 0.0
      %v792 = vmax.f32 %v693, 0.0
      %v793 = vmax.f32 %v695, 0.0
      %v794 = vmax.f32 %v698, 0.0
      %v795 = vmax.f32 %v700, 0.0
      %v796 = vmax.f32 %v703, 0.0
      %v797 = vmax.f32 %v705, 0.0
      %v798 = vmax.f32 %v708, 0.0
      %v799 = vmax.f32 %v710, 0.0
      %v800 = vmax.f32 %v713, 0.0
      %v801 = vmax.f32 %v715, 0.0
      %v802 = vmax.f32 %v718, 0.0
      %v803 = vmax.f32 %v720, 0.0
      %v804 = vmax.f32 %v723, 0.0
      %v805 = vmax.f32 %v725, 0.0
      %v806 = vmax.f32 %v728, 0.0
      %v807 = vmax.f32 %v730, 0.0
      %v808 = vmax.f32 %v733, 0.0
      %v809 = vmax.f32 %v735, 0.0
      %v810 = vmax.f32 %v738, 0.0
      %v811 = vmax.f32 %v740, 0.0
      %v812 = vmax.f32 %v743, 0.0
      %v813 = vmax.f32 %v745, 0.0
      %v814 = vmax.f32 %v748, 0.0
      %v815 = vmax.f32 %v750, 0.0
      %v816 = vpack.c.bf16 %v752, %v752
      %v817 = vpack.c.bf16 %v753, %v753
      %v818 = vpack.c.bf16 %v754, %v754
      %v819 = vpack.c.bf16 %v755, %v755
      %v820 = vpack.c.bf16 %v756, %v756
      %v821 = vpack.c.bf16 %v757, %v757
      %v822 = vpack.c.bf16 %v758, %v758
      %v823 = vpack.c.bf16 %v759, %v759
      %v824 = vpack.c.bf16 %v760, %v760
      %v825 = vpack.c.bf16 %v761, %v761
      %v826 = vpack.c.bf16 %v762, %v762
      %v827 = vpack.c.bf16 %v763, %v763
      %v828 = vpack.c.bf16 %v764, %v764
      %v829 = vpack.c.bf16 %v765, %v765
      %v830 = vpack.c.bf16 %v766, %v766
      %v831 = vpack.c.bf16 %v767, %v767
      %v832 = vpack.c.bf16 %v768, %v768
      %v833 = vpack.c.bf16 %v769, %v769
      %v834 = vpack.c.bf16 %v770, %v770
      %v835 = vpack.c.bf16 %v771, %v771
      %v836 = vpack.c.bf16 %v772, %v772
      %v837 = vpack.c.bf16 %v773, %v773
      %v838 = vpack.c.bf16 %v774, %v774
      %v839 = vpack.c.bf16 %v775, %v775
      %v840 = vpack.c.bf16 %v776, %v776
      %v841 = vpack.c.bf16 %v777, %v777
      %v842 = vpack.c.bf16 %v778, %v778
      %v843 = vpack.c.bf16 %v779, %v779
      %v844 = vpack.c.bf16 %v780, %v780
      %v845 = vpack.c.bf16 %v781, %v781
      %v846 = vpack.c.bf16 %v782, %v782
      %v847 = vpack.c.bf16 %v783, %v783
      %v848 = vpack.c.bf16 %v784, %v784
      %v849 = vpack.c.bf16 %v785, %v785
      %v850 = vpack.c.bf16 %v786, %v786
      %v851 = vpack.c.bf16 %v787, %v787
      %v852 = vpack.c.bf16 %v788, %v788
      %v853 = vpack.c.bf16 %v789, %v789
      %v854 = vpack.c.bf16 %v790, %v790
      %v855 = vpack.c.bf16 %v791, %v791
      %v856 = vpack.c.bf16 %v792, %v792
      %v857 = vpack.c.bf16 %v793, %v793
      %v858 = vpack.c.bf16 %v794, %v794
      %v859 = vpack.c.bf16 %v795, %v795
      %v860 = vpack.c.bf16 %v796, %v796
      %v861 = vpack.c.bf16 %v797, %v797
      %v862 = vpack.c.bf16 %v798, %v798
      %v863 = vpack.c.bf16 %v799, %v799
      %v864 = vpack.c.bf16 %v800, %v800
      %v865 = vpack.c.bf16 %v801, %v801
      %v866 = vpack.c.bf16 %v802, %v802
      %v867 = vpack.c.bf16 %v803, %v803
      %v868 = vpack.c.bf16 %v804, %v804
      %v869 = vpack.c.bf16 %v805, %v805
      %v870 = vpack.c.bf16 %v806, %v806
      %v871 = vpack.c.bf16 %v807, %v807
      %v872 = vpack.c.bf16 %v808, %v808
      %v873 = vpack.c.bf16 %v809, %v809
      %v874 = vpack.c.bf16 %v810, %v810
      %v875 = vpack.c.bf16 %v811, %v811
      %v876 = vpack.c.bf16 %v812, %v812
      %v877 = vpack.c.bf16 %v813, %v813
      %v878 = vpack.c.bf16 %v814, %v814
      %v879 = vpack.c.bf16 %v815, %v815
      %vm880 = vcmask 27648
      %881 = vst.msk [vmem:[%s257] sm:$0xf] %vm880, %v816
      %882 = vst.msk [vmem:[%s257 + $0x4] sm:$0xf] %vm880, %v817
      %883 = vst.msk [vmem:[%s257 + $0x8] sm:$0xf] %vm880, %v818
      %884 = vst.msk [vmem:[%s257 + $0xc] sm:$0xf] %vm880, %v819
      %885 = vst.msk [vmem:[%s257 + $0x10] sm:$0xf] %vm880, %v820
      %886 = vst.msk [vmem:[%s257 + $0x14] sm:$0xf] %vm880, %v821
      %887 = vst.msk [vmem:[%s257 + $0x18] sm:$0xf] %vm880, %v822
      %888 = vst.msk [vmem:[%s257 + $0x1c] sm:$0xf] %vm880, %v823
      %889 = vst.msk [vmem:[%s257 + $0x20] sm:$0xf] %vm880, %v824
      %890 = vst.msk [vmem:[%s257 + $0x24] sm:$0xf] %vm880, %v825
      %891 = vst.msk [vmem:[%s257 + $0x28] sm:$0xf] %vm880, %v826
      %892 = vst.msk [vmem:[%s257 + $0x2c] sm:$0xf] %vm880, %v827
      %893 = vst.msk [vmem:[%s257 + $0x30] sm:$0xf] %vm880, %v828
      %894 = vst.msk [vmem:[%s257 + $0x34] sm:$0xf] %vm880, %v829
      %895 = vst.msk [vmem:[%s257 + $0x38] sm:$0xf] %vm880, %v830
      %896 = vst.msk [vmem:[%s257 + $0x3c] sm:$0xf] %vm880, %v831
      %897 = vst.msk [vmem:[%s257 + $0x40] sm:$0xf] %vm880, %v832
      %898 = vst.msk [vmem:[%s257 + $0x44] sm:$0xf] %vm880, %v833
      %899 = vst.msk [vmem:[%s257 + $0x48] sm:$0xf] %vm880, %v834
      %900 = vst.msk [vmem:[%s257 + $0x4c] sm:$0xf] %vm880, %v835
      %901 = vst.msk [vmem:[%s257 + $0x50] sm:$0xf] %vm880, %v836
      %902 = vst.msk [vmem:[%s257 + $0x54] sm:$0xf] %vm880, %v837
      %903 = vst.msk [vmem:[%s257 + $0x58] sm:$0xf] %vm880, %v838
      %904 = vst.msk [vmem:[%s257 + $0x5c] sm:$0xf] %vm880, %v839
      %905 = vst.msk [vmem:[%s257 + $0x60] sm:$0xf] %vm880, %v840
      %906 = vst.msk [vmem:[%s257 + $0x64] sm:$0xf] %vm880, %v841
      %907 = vst.msk [vmem:[%s257 + $0x68] sm:$0xf] %vm880, %v842
      %908 = vst.msk [vmem:[%s257 + $0x6c] sm:$0xf] %vm880, %v843
      %909 = vst.msk [vmem:[%s257 + $0x70] sm:$0xf] %vm880, %v844
      %910 = vst.msk [vmem:[%s257 + $0x74] sm:$0xf] %vm880, %v845
      %911 = vst.msk [vmem:[%s257 + $0x78] sm:$0xf] %vm880, %v846
      %912 = vst.msk [vmem:[%s257 + $0x7c] sm:$0xf] %vm880, %v847
      %913 = vst.msk [vmem:[%s257 + $0x80] sm:$0xf] %vm880, %v848
      %914 = vst.msk [vmem:[%s257 + $0x84] sm:$0xf] %vm880, %v849
      %915 = vst.msk [vmem:[%s257 + $0x88] sm:$0xf] %vm880, %v850
      %916 = vst.msk [vmem:[%s257 + $0x8c] sm:$0xf] %vm880, %v851
      %917 = vst.msk [vmem:[%s257 + $0x90] sm:$0xf] %vm880, %v852
      %918 = vst.msk [vmem:[%s257 + $0x94] sm:$0xf] %vm880, %v853
      %919 = vst.msk [vmem:[%s257 + $0x98] sm:$0xf] %vm880, %v854
      %920 = vst.msk [vmem:[%s257 + $0x9c] sm:$0xf] %vm880, %v855
      %921 = vst.msk [vmem:[%s257 + $0xa0] sm:$0xf] %vm880, %v856
      %922 = vst.msk [vmem:[%s257 + $0xa4] sm:$0xf] %vm880, %v857
      %923 = vst.msk [vmem:[%s257 + $0xa8] sm:$0xf] %vm880, %v858
      %924 = vst.msk [vmem:[%s257 + $0xac] sm:$0xf] %vm880, %v859
      %925 = vst.msk [vmem:[%s257 + $0xb0] sm:$0xf] %vm880, %v860
      %926 = vst.msk [vmem:[%s257 + $0xb4] sm:$0xf] %vm880, %v861
      %927 = vst.msk [vmem:[%s257 + $0xb8] sm:$0xf] %vm880, %v862
      %928 = vst.msk [vmem:[%s257 + $0xbc] sm:$0xf] %vm880, %v863
      %929 = vst.msk [vmem:[%s257 + $0xc0] sm:$0xf] %vm880, %v864
      %930 = vst.msk [vmem:[%s257 + $0xc4] sm:$0xf] %vm880, %v865
      %931 = vst.msk [vmem:[%s257 + $0xc8] sm:$0xf] %vm880, %v866
      %932 = vst.msk [vmem:[%s257 + $0xcc] sm:$0xf] %vm880, %v867
      %933 = vst.msk [vmem:[%s257 + $0xd0] sm:$0xf] %vm880, %v868
      %934 = vst.msk [vmem:[%s257 + $0xd4] sm:$0xf] %vm880, %v869
      %935 = vst.msk [vmem:[%s257 + $0xd8] sm:$0xf] %vm880, %v870
      %936 = vst.msk [vmem:[%s257 + $0xdc] sm:$0xf] %vm880, %v871
      %937 = vst.msk [vmem:[%s257 + $0xe0] sm:$0xf] %vm880, %v872
      %938 = vst.msk [vmem:[%s257 + $0xe4] sm:$0xf] %vm880, %v873
      %939 = vst.msk [vmem:[%s257 + $0xe8] sm:$0xf] %vm880, %v874
      %940 = vst.msk [vmem:[%s257 + $0xec] sm:$0xf] %vm880, %v875
      %941 = vst.msk [vmem:[%s257 + $0xf0] sm:$0xf] %vm880, %v876
      %942 = vst.msk [vmem:[%s257 + $0xf4] sm:$0xf] %vm880, %v877
      %943 = vst.msk [vmem:[%s257 + $0xf8] sm:$0xf] %vm880, %v878
      %944 = vst.msk [vmem:[%s257 + $0xfc] sm:$0xf] %vm880, %v879
      %s945 = smul.u32 64, %s19
      %p946 = scmp.lt.s32.totalorder %s945, 255
      %s947 = scalar_select %p946, %s945, 255
      %p948 = scmp.lt.s32.totalorder %s20, 0
      %s949 = scalar_select %p948, %s20, 0
      %s950 = sadd.s32 %s949, %s947
      %s951 = smul.addr %s950, 4
      %s952 = scalar_lea.vmem %s3, %s951
      // Predicated region
      $region33: #{resnet_forward.21} parent=31 // pred_check
        %p953 = pneg %p135
      $region34: #{resnet_forward.21} parent=31 // pred_check_branch
        %955 = sbr.rel (%p953) target = $region36
      $region35: #{resnet_forward.21} parent=31 // pred_region
        %s956 = smul.u32 64, %s19
      $region36: #{resnet_forward.21} parent=31 // pred_fallthru
        _
    $region32: #{resnet_forward.21} parent=5 // pred_fallthru
      _
    %p957 = scmp.le.s32.totalorder 2, %s9
    // Predicated region
    $region37: #{resnet_forward.21} parent=5 // pred_check
      %p958 = pneg %p957
    $region38: #{resnet_forward.21} parent=5 // pred_check_branch
      %960 = sbr.rel (%p958) target = $region40
    $region39: #{resnet_forward.21} parent=5 // pred_region
      %s961 = ssub.s32 %s9, 2
      // Predicated region
      $region41: #{resnet_forward.21} parent=39 // pred_check
        %p962 = pneg %p141
      $region42: #{resnet_forward.21} parent=39 // pred_check_branch
        %964 = sbr.rel (%p962) target = $region44
      $region43: #{resnet_forward.21} parent=39 // pred_region
        %s965 = smul.u32 64, %s22
        %p966 = scmp.lt.s32.totalorder %s965, 255
        %s967 = scalar_select %p966, %s965, 255
        %p968 = scmp.lt.s32.totalorder %s23, 0
        %s969 = scalar_select %p968, %s23, 0
        %s970 = sadd.s32 %s969, %s967
        %s971 = smul.addr %s970, 4
        %s972 = scalar_lea.vmem %s3, %s971
      $region44: #{resnet_forward.21} parent=39 // pred_fallthru
        _
    $region40: #{resnet_forward.21} parent=5 // pred_fallthru
      _
  $region6: #{resnet_forward.21} parent=0 // loop_footer
    %s13 = sadd.s32 1, %s9
  $region7: #{resnet_forward.21} parent=0 // loop_footer_branch
    %8 = sbr.rel target = $region3
  $region8: #{resnet_forward.21} parent=0 // loop_exit
    _

// kernel: resnet_forward.22
$region0: #{resnet_forward.22}
  #allocation0 [shape = 'u32[]', space=smem, size = 0x4, offset = 0x4, fixed_abs, tag = 'smem constant byte address 0x4 - core index']
  #allocation1 [shape = 'u32[72,128]{1,0:T(1,128)}', space=vmem, size = 0x9000, scoped, tag = 'internal scratch']
  %s0 = inlined_call_operand.vmem [shape: bf16[2048,128], index: 0, kind: input, shape index: {}]
  %s1 = inlined_call_operand.vmem [shape: bf16[128,8], index: 1, kind: input, shape index: {}]
  %s2 = inlined_call_operand.vmem [shape: f32[1,8], index: 2, kind: input, shape index: {}]
  %s3 = inlined_call_operand.vmem [shape: bf16[2048,8], index: 3, kind: output, shape index: {}]
  %s4 = sld [smem:[#allocation0]]
  $region45: #{resnet_forward.22} parent=0
    _
  %s6 = ssub.s32 1, %s4
  %s7 = scalar_select 0, %s6, %s4
  loop: start=0, step=1, limit=6
  $region2: #{resnet_forward.22} parent=0 // loop_pre_header
    _
  $region3: #{resnet_forward.22} parent=0 // loop_header
    %s9 = sphi 0, %s13
    %p10 = scmp.ge.s32.totalorder %s9, 6
    %s16 = sphi 0, %s35
    %s17 = sphi 0, %s31
    %s18 = sphi 0, %s27
    %s19 = sphi 0, %s16
    %s20 = sphi 0, %s17
    %s21 = sphi 0, %s18
    %s22 = sphi 0, %s19
    %s23 = sphi 0, %s20
    %s24 = sphi 0, %s21
    %s40 = sphi 0, %s42
    %s43 = sphi 0, %s40
    %s44 = sphi 0, %s43
    %s60 = sphi 0, %s44
    %s68 = sphi 0, %s70
    %s71 = sphi 0, %s68
    %s72 = sphi 0, %s71
    %s88 = sphi 0, %s72
    %s94 = sphi 0, %s96
    %s97 = sphi 0, %s94
    %s98 = sphi 0, %s97
    %s114 = sphi 0, %s98
    %s122 = sphi 0, %s124
    %s125 = sphi 0, %s122
    %s126 = sphi 0, %s125
    %s142 = sphi 0, %s126
  $region4: #{resnet_forward.22} parent=0 // loop_header_branch
    %12 = sbr.rel (%p10) target = $region8
  $region5: #{resnet_forward.22} parent=0 // loop_body
    %s14 = ssub.s32 %s9, 1
    %s15 = ssub.s32 %s9, 2
    %s25 = sadd.s32 1, %s18
    %p26 = scmp.ge.s32.totalorder %s25, 1
    %s27 = scalar_select %p26, 0, %s25
    %s28 = sadd.s32 1, %s17
    %s29 = scalar_select %p26, %s28, %s17
    %p30 = scmp.ge.s32.totalorder %s29, 1
    %s31 = scalar_select %p30, 0, %s29
    %s32 = sadd.s32 1, %s16
    %s33 = scalar_select %p30, %s32, %s16
    %p34 = scmp.ge.s32.totalorder %s33, 4
    %s35 = scalar_select %p34, 0, %s33
    %s36 = ssub.s32 %s16, %s35
    %s37 = ssub.s32 %s18, %s27
    %s38 = sor.u32 %s36, %s37
    %p39 = scmp.eq.s32.totalorder %s38, 0
    %s41 = sadd.s32 %s40, 1
    %s42 = scalar_select %p39, %s40, %s41
    %p45 = pneg %p39
    %p46 = scmp.eq.s32.totalorder %s9, 3
    %p47 = por %p45, %p46
    %p48 = scmp.ne.s32.totalorder %s40, %s43
    %p49 = scmp.eq.s32.totalorder %s9, 0
    %p50 = por %p48, %p49
    %p51 = scmp.ne.s32.totalorder %s40, %s43
    %p52 = scmp.eq.s32.totalorder %s14, 3
    %p53 = por %p51, %p52
    %p54 = scmp.ne.s32.totalorder %s43, %s44
    %p55 = scmp.eq.s32.totalorder %s14, 0
    %p56 = por %p54, %p55
    %p57 = scmp.ne.s32.totalorder %s43, %s44
    %p58 = scmp.eq.s32.totalorder %s15, 3
    %p59 = por %p57, %p58
    %p61 = scmp.ne.s32.totalorder %s44, %s60
    %p62 = scmp.eq.s32.totalorder %s15, 0
    %p63 = por %p61, %p62
    %s64 = ssub.s32 %s18, %s27
    %s65 = ssub.s32 %s17, %s31
    %s66 = sor.u32 %s64, %s65
    %p67 = scmp.eq.s32.totalorder %s66, 0
    %s69 = sadd.s32 %s68, 1
    %s70 = scalar_select %p67, %s68, %s69
    %p73 = pneg %p67
    %p74 = scmp.eq.s32.totalorder %s9, 3
    %p75 = por %p73, %p74
    %p76 = scmp.ne.s32.totalorder %s68, %s71
    %p77 = scmp.eq.s32.totalorder %s9, 0
    %p78 = por %p76, %p77
    %p79 = scmp.ne.s32.totalorder %s68, %s71
    %p80 = scmp.eq.s32.totalorder %s14, 3
    %p81 = por %p79, %p80
    %p82 = scmp.ne.s32.totalorder %s71, %s72
    %p83 = scmp.eq.s32.totalorder %s14, 0
    %p84 = por %p82, %p83
    %p85 = scmp.ne.s32.totalorder %s71, %s72
    %p86 = scmp.eq.s32.totalorder %s15, 3
    %p87 = por %p85, %p86
    %p89 = scmp.ne.s32.totalorder %s72, %s88
    %p90 = scmp.eq.s32.totalorder %s15, 0
    %p91 = por %p89, %p90
    %s92 = ssub.s32 %s17, %s31
    %p93 = scmp.eq.s32.totalorder %s92, 0
    %s95 = sadd.s32 %s94, 1
    %s96 = scalar_select %p93, %s94, %s95
    %p99 = pneg %p93
    %p100 = scmp.eq.s32.totalorder %s9, 3
    %p101 = por %p99, %p100
    %p102 = scmp.ne.s32.totalorder %s94, %s97
    %p103 = scmp.eq.s32.totalorder %s9, 0
    %p104 = por %p102, %p103
    %p105 = scmp.ne.s32.totalorder %s94, %s97
    %p106 = scmp.eq.s32.totalorder %s14, 3
    %p107 = por %p105, %p106
    %p108 = scmp.ne.s32.totalorder %s97, %s98
    %p109 = scmp.eq.s32.totalorder %s14, 0
    %p110 = por %p108, %p109
    %p111 = scmp.ne.s32.totalorder %s97, %s98
    %p112 = scmp.eq.s32.totalorder %s15, 3
    %p113 = por %p111, %p112
    %p115 = scmp.ne.s32.totalorder %s98, %s114
    %p116 = scmp.eq.s32.totalorder %s15, 0
    %p117 = por %p115, %p116
    %s118 = ssub.s32 %s16, %s35
    %s119 = ssub.s32 %s17, %s31
    %s120 = sor.u32 %s118, %s119
    %p121 = scmp.eq.s32.totalorder %s120, 0
    %s123 = sadd.s32 %s122, 1
    %s124 = scalar_select %p121, %s122, %s123
    %p127 = pneg %p121
    %p128 = scmp.eq.s32.totalorder %s9, 3
    %p129 = por %p127, %p128
    %p130 = scmp.ne.s32.totalorder %s122, %s125
    %p131 = scmp.eq.s32.totalorder %s9, 0
    %p132 = por %p130, %p131
    %p133 = scmp.ne.s32.totalorder %s122, %s125
    %p134 = scmp.eq.s32.totalorder %s14, 3
    %p135 = por %p133, %p134
    %p136 = scmp.ne.s32.totalorder %s125, %s126
    %p137 = scmp.eq.s32.totalorder %s14, 0
    %p138 = por %p136, %p137
    %p139 = scmp.ne.s32.totalorder %s125, %s126
    %p140 = scmp.eq.s32.totalorder %s15, 3
    %p141 = por %p139, %p140
    %p143 = scmp.ne.s32.totalorder %s126, %s142
    %p144 = scmp.eq.s32.totalorder %s15, 0
    %p145 = por %p143, %p144
    %p146 = scmp.le.s32.totalorder 1, %s9
    %p147 = scmp.lt.s32.totalorder %s9, 5
    %p148 = pnand %p146, %p147
    %p149 = pneg %p148
    // Predicated region
    $region9: #{resnet_forward.22} parent=5 // pred_check
      _
    $region10: #{resnet_forward.22} parent=5 // pred_check_branch
      %151 = sbr.rel (%p148) target = $region12
    $region11: #{resnet_forward.22} parent=5 // pred_region
      %s152 = ssub.s32 %s9, 1
      // Predicated region
      $region13: #{resnet_forward.22} parent=11 // pred_check
        %p153 = pneg %p84
      $region14: #{resnet_forward.22} parent=11 // pred_check_branch
        %155 = sbr.rel (%p153) target = $region16
      $region15: #{resnet_forward.22} parent=11 // pred_region
        %s156 = smul.u32 16, %s21
        %p157 = scmp.lt.s32.totalorder %s156, 15
        %s158 = scalar_select %p157, %s156, 15
        %p159 = scmp.lt.s32.totalorder %s20, 0
        %s160 = scalar_select %p159, %s20, 0
        %s161 = sadd.s32 %s160, %s158
        %s162 = smul.addr %s161, 4
        %s163 = scalar_lea.vmem %s1, %s162
        %s164 = smul.u32 16, %s21
      $region16: #{resnet_forward.22} parent=11 // pred_fallthru
        _
      // Predicated region
      $region17: #{resnet_forward.22} parent=11 // pred_check
        %p165 = pneg %p110
      $region18: #{resnet_forward.22} parent=11 // pred_check_branch
        %167 = sbr.rel (%p165) target = $region20
      $region19: #{resnet_forward.22} parent=11 // pred_region
        %p168 = scmp.lt.s32.totalorder %s20, 0
        %s169 = scalar_select %p168, %s20, 0
        %s170 = scalar_lea.vmem %s2, %s169
      $region20: #{resnet_forward.22} parent=11 // pred_fallthru
        _
    $region12: #{resnet_forward.22} parent=5 // pred_fallthru
      _
    %p171 = scmp.lt.s32.totalorder %s9, 4
    // Predicated region
    $region21: #{resnet_forward.22} parent=5 // pred_check
      %p172 = pneg %p171
    $region22: #{resnet_forward.22} parent=5 // pred_check_branch
      %174 = sbr.rel (%p172) target = $region24
    $region23: #{resnet_forward.22} parent=5 // pred_region
      // Predicated region
      $region25: #{resnet_forward.22} parent=23 // pred_check
        %p175 = pneg %p50
      $region26: #{resnet_forward.22} parent=23 // pred_check_branch
        %177 = sbr.rel (%p175) target = $region28
      $region27: #{resnet_forward.22} parent=23 // pred_region
        %s178 = smul.u32 64, %s16
        %p179 = scmp.lt.s32.totalorder %s178, 255
        %s180 = scalar_select %p179, %s178, 255
        %p181 = scmp.lt.s32.totalorder %s18, 0
        %s182 = scalar_select %p181, %s18, 0
        %s183 = sadd.s32 %s182, %s180
        %s184 = smul.addr %s183, 4
        %s185 = scalar_lea.vmem %s0, %s184
        %s186 = smul.u32 64, %s16
      $region28: #{resnet_forward.22} parent=23 // pred_fallthru
        _
    $region24: #{resnet_forward.22} parent=5 // pred_fallthru
      _
    %p187 = scmp.le.s32.totalorder 1, %s9
    %p188 = scmp.lt.s32.totalorder %s9, 5
    %p189 = pnand %p187, %p188
    %p190 = pneg %p189
    // Predicated region
    $region29: #{resnet_forward.22} parent=5 // pred_check
      _
    $region30: #{resnet_forward.22} parent=5 // pred_check_branch
      %192 = sbr.rel (%p189) target = $region32
    $region31: #{resnet_forward.22} parent=5 // pred_region
      %s193 = ssub.s32 %s9, 1
      %s194 = smul.u32 64, %s19
      %p195 = scmp.lt.s32.totalorder %s194, 255
      %s196 = scalar_select %p195, %s194, 255
      %p197 = scmp.lt.s32.totalorder %s21, 0
      %s198 = scalar_select %p197, %s21, 0
      %s199 = sadd.s32 %s198, %s196
      %s200 = smul.addr %s199, 4
      %s201 = scalar_lea.vmem %s0, %s200
      %p202 = pneg %p56
      %p203 = pneg %p53
      %s204 = smul.u32 16, %s21
      %p205 = scmp.lt.s32.totalorder %s204, 15
      %s206 = scalar_select %p205, %s204, 15
      %p207 = scmp.lt.s32.totalorder %s20, 0
      %s208 = scalar_select %p207, %s20, 0
      %s209 = sadd.s32 %s208, %s206
      %s210 = smul.addr %s209, 4
      %s211 = scalar_lea.vmem %s1, %s210
      %p212 = pneg %p84
      %p213 = pneg %p81
      %p214 = scmp.lt.s32.totalorder %s20, 0
      %s215 = scalar_select %p214, %s20, 0
      %s216 = scalar_lea.vmem %s2, %s215
      %p217 = pneg %p110
      %p218 = pneg %p107
      %p219 = pneg %p138
      %p220 = pneg %p135
      %s221 = smul.u32 64, %s19
      %p222 = scmp.lt.s32.totalorder %s221, 255
      %s223 = scalar_select %p222, %s221, 255
      %p224 = scmp.lt.s32.totalorder %s20, 0
      %s225 = scalar_select %p224, %s20, 0
      %s226 = sadd.s32 %s225, %s223
      %s227 = smul.addr %s226, 4
      %s228 = scalar_lea.vmem %s3, %s227
      %s229 = smul.u32 64, %s19
      %p230 = scmp.lt.s32.totalorder %s229, 255
      %s231 = scalar_select %p230, %s229, 255
      %p232 = scmp.lt.s32.totalorder %s21, 0
      %s233 = scalar_select %p232, %s21, 0
      %s234 = sadd.s32 %s233, %s231
      %s235 = smul.addr %s234, 4
      %s236 = scalar_lea.vmem %s0, %s235
      %s237 = smul.u32 64, %s19
      %s238 = smul.u32 16, %s21
      %p239 = scmp.lt.s32.totalorder %s238, 15
      %s240 = scalar_select %p239, %s238, 15
      %p241 = scmp.lt.s32.totalorder %s20, 0
      %s242 = scalar_select %p241, %s20, 0
      %s243 = sadd.s32 %s242, %s240
      %s244 = smul.addr %s243, 4
      %s245 = scalar_lea.vmem %s1, %s244
      %s246 = smul.u32 16, %s21
      %p247 = scmp.lt.s32.totalorder %s20, 0
      %s248 = scalar_select %p247, %s20, 0
      %s249 = scalar_lea.vmem %s2, %s248
      %s250 = smul.u32 64, %s19
      %p251 = scmp.lt.s32.totalorder %s250, 255
      %s252 = scalar_select %p251, %s250, 255
      %p253 = scmp.lt.s32.totalorder %s20, 0
      %s254 = scalar_select %p253, %s20, 0
      %s255 = sadd.s32 %s254, %s252
      %s256 = smul.addr %s255, 4
      %s257 = scalar_lea.vmem %s3, %s256
      %s258 = smul.u32 64, %s19
      %v259 = vld [vmem:[%s236] sm:$0xf]
      %v260 = vld [vmem:[%s236 + $0x4] sm:$0xf]
      %v261 = vld [vmem:[%s236 + $0x8] sm:$0xf]
      %v262 = vld [vmem:[%s236 + $0xc] sm:$0xf]
      %v263 = vld [vmem:[%s236 + $0x10] sm:$0xf]
      %v264 = vld [vmem:[%s236 + $0x14] sm:$0xf]
      %v265 = vld [vmem:[%s236 + $0x18] sm:$0xf]
      %v266 = vld [vmem:[%s236 + $0x1c] sm:$0xf]
      %v267 = vld [vmem:[%s236 + $0x20] sm:$0xf]
      %v268 = vld [vmem:[%s236 + $0x24] sm:$0xf]
      %v269 = vld [vmem:[%s236 + $0x28] sm:$0xf]
      %v270 = vld [vmem:[%s236 + $0x2c] sm:$0xf]
      %v271 = vld [vmem:[%s236 + $0x30] sm:$0xf]
      %v272 = vld [vmem:[%s236 + $0x34] sm:$0xf]
      %v273 = vld [vmem:[%s236 + $0x38] sm:$0xf]
      %v274 = vld [vmem:[%s236 + $0x3c] sm:$0xf]
      %v275 = vld [vmem:[%s236 + $0x40] sm:$0xf]
      %v276 = vld [vmem:[%s236 + $0x44] sm:$0xf]
      %v277 = vld [vmem:[%s236 + $0x48] sm:$0xf]
      %v278 = vld [vmem:[%s236 + $0x4c] sm:$0xf]
      %v279 = vld [vmem:[%s236 + $0x50] sm:$0xf]
      %v280 = vld [vmem:[%s236 + $0x54] sm:$0xf]
      %v281 = vld [vmem:[%s236 + $0x58] sm:$0xf]
      %v282 = vld [vmem:[%s236 + $0x5c] sm:$0xf]
      %v283 = vld [vmem:[%s236 + $0x60] sm:$0xf]
      %v284 = vld [vmem:[%s236 + $0x64] sm:$0xf]
      %v285 = vld [vmem:[%s236 + $0x68] sm:$0xf]
      %v286 = vld [vmem:[%s236 + $0x6c] sm:$0xf]
      %v287 = vld [vmem:[%s236 + $0x70] sm:$0xf]
      %v288 = vld [vmem:[%s236 + $0x74] sm:$0xf]
      %v289 = vld [vmem:[%s236 + $0x78] sm:$0xf]
      %v290 = vld [vmem:[%s236 + $0x7c] sm:$0xf]
      %v291 = vld [vmem:[%s236 + $0x80] sm:$0xf]
      %v292 = vld [vmem:[%s236 + $0x84] sm:$0xf]
      %v293 = vld [vmem:[%s236 + $0x88] sm:$0xf]
      %v294 = vld [vmem:[%s236 + $0x8c] sm:$0xf]
      %v295 = vld [vmem:[%s236 + $0x90] sm:$0xf]
      %v296 = vld [vmem:[%s236 + $0x94] sm:$0xf]
      %v297 = vld [vmem:[%s236 + $0x98] sm:$0xf]
      %v298 = vld [vmem:[%s236 + $0x9c] sm:$0xf]
      %v299 = vld [vmem:[%s236 + $0xa0] sm:$0xf]
      %v300 = vld [vmem:[%s236 + $0xa4] sm:$0xf]
      %v301 = vld [vmem:[%s236 + $0xa8] sm:$0xf]
      %v302 = vld [vmem:[%s236 + $0xac] sm:$0xf]
      %v303 = vld [vmem:[%s236 + $0xb0] sm:$0xf]
      %v304 = vld [vmem:[%s236 + $0xb4] sm:$0xf]
      %v305 = vld [vmem:[%s236 + $0xb8] sm:$0xf]
      %v306 = vld [vmem:[%s236 + $0xbc] sm:$0xf]
      %v307 = vld [vmem:[%s236 + $0xc0] sm:$0xf]
      %v308 = vld [vmem:[%s236 + $0xc4] sm:$0xf]
      %v309 = vld [vmem:[%s236 + $0xc8] sm:$0xf]
      %v310 = vld [vmem:[%s236 + $0xcc] sm:$0xf]
      %v311 = vld [vmem:[%s236 + $0xd0] sm:$0xf]
      %v312 = vld [vmem:[%s236 + $0xd4] sm:$0xf]
      %v313 = vld [vmem:[%s236 + $0xd8] sm:$0xf]
      %v314 = vld [vmem:[%s236 + $0xdc] sm:$0xf]
      %v315 = vld [vmem:[%s236 + $0xe0] sm:$0xf]
      %v316 = vld [vmem:[%s236 + $0xe4] sm:$0xf]
      %v317 = vld [vmem:[%s236 + $0xe8] sm:$0xf]
      %v318 = vld [vmem:[%s236 + $0xec] sm:$0xf]
      %v319 = vld [vmem:[%s236 + $0xf0] sm:$0xf]
      %v320 = vld [vmem:[%s236 + $0xf4] sm:$0xf]
      %v321 = vld [vmem:[%s236 + $0xf8] sm:$0xf]
      %v322 = vld [vmem:[%s236 + $0xfc] sm:$0xf]
      %v323 = vld [vmem:[%s245] sm:$0xf]
      %v324 = vld [vmem:[%s245 + $0x4] sm:$0xf]
      %v325 = vld [vmem:[%s245 + $0x8] sm:$0xf]
      %v326 = vld [vmem:[%s245 + $0xc] sm:$0xf]
      %v327 = vld [vmem:[%s245 + $0x10] sm:$0xf]
      %v328 = vld [vmem:[%s245 + $0x14] sm:$0xf]
      %v329 = vld [vmem:[%s245 + $0x18] sm:$0xf]
      %v330 = vld [vmem:[%s245 + $0x1c] sm:$0xf]
      %v331 = vld [vmem:[%s245 + $0x20] sm:$0xf]
      %v332 = vld [vmem:[%s245 + $0x24] sm:$0xf]
      %v333 = vld [vmem:[%s245 + $0x28] sm:$0xf]
      %v334 = vld [vmem:[%s245 + $0x2c] sm:$0xf]
      %v335 = vld [vmem:[%s245 + $0x30] sm:$0xf]
      %v336 = vld [vmem:[%s245 + $0x34] sm:$0xf]
      %v337 = vld [vmem:[%s245 + $0x38] sm:$0xf]
      %v338 = vld [vmem:[%s245 + $0x3c] sm:$0xf]
      %v339 = vld [vmem:[%s249] sm:$0x1]
      %v341 = vperm.slane %v339, 0
      %v407 = vunpack.c.l.b16 %v259
      %v408 = vunpack.c.l.b16 %v260
      %v409 = vunpack.c.l.b16 %v261
      %v410 = vunpack.c.l.b16 %v262
      %v411 = vunpack.c.l.b16 %v263
      %v412 = vunpack.c.l.b16 %v264
      %v413 = vunpack.c.l.b16 %v265
      %v414 = vunpack.c.l.b16 %v266
      %v415 = vunpack.c.l.b16 %v267
      %v416 = vunpack.c.l.b16 %v268
      %v417 = vunpack.c.l.b16 %v269
      %v418 = vunpack.c.l.b16 %v270
      %v419 = vunpack.c.l.b16 %v271
      %v420 = vunpack.c.l.b16 %v272
      %v421 = vunpack.c.l.b16 %v273
      %v422 = vunpack.c.l.b16 %v274
      %v423 = vunpack.c.l.b16 %v275
      %v424 = vunpack.c.l.b16 %v276
      %v425 = vunpack.c.l.b16 %v277
      %v426 = vunpack.c.l.b16 %v278
      %v427 = vunpack.c.l.b16 %v279
      %v428 = vunpack.c.l.b16 %v280
      %v429 = vunpack.c.l.b16 %v281
      %v430 = vunpack.c.l.b16 %v282
      %v431 = vunpack.c.l.b16 %v283
      %v432 = vunpack.c.l.b16 %v284
      %v433 = vunpack.c.l.b16 %v285
      %v434 = vunpack.c.l.b16 %v286
      %v435 = vunpack.c.l.b16 %v287
      %v436 = vunpack.c.l.b16 %v288
      %v437 = vunpack.c.l.b16 %v289
      %v438 = vunpack.c.l.b16 %v290
      %v439 = vunpack.c.l.b16 %v291
      %v440 = vunpack.c.l.b16 %v292
      %v441 = vunpack.c.l.b16 %v293
      %v442 = vunpack.c.l.b16 %v294
      %v443 = vunpack.c.l.b16 %v295
      %v444 = vunpack.c.l.b16 %v296
      %v445 = vunpack.c.l.b16 %v297
      %v446 = vunpack.c.l.b16 %v298
      %v447 = vunpack.c.l.b16 %v299
      %v448 = vunpack.c.l.b16 %v300
      %v449 = vunpack.c.l.b16 %v301
      %v450 = vunpack.c.l.b16 %v302
      %v451 = vunpack.c.l.b16 %v303
      %v452 = vunpack.c.l.b16 %v304
      %v453 = vunpack.c.l.b16 %v305
      %v454 = vunpack.c.l.b16 %v306
      %v455 = vunpack.c.l.b16 %v307
      %v456 = vunpack.c.l.b16 %v308
      %v457 = vunpack.c.l.b16 %v309
      %v458 = vunpack.c.l.b16 %v310
      %v459 = vunpack.c.l.b16 %v311
      %v460 = vunpack.c.l.b16 %v312
      %v461 = vunpack.c.l.b16 %v313
      %v462 = vunpack.c.l.b16 %v314
      %v463 = vunpack.c.l.b16 %v315
      %v464 = vunpack.c.l.b16 %v316
      %v465 = vunpack.c.l.b16 %v317
      %v466 = vunpack.c.l.b16 %v318
      %v467 = vunpack.c.l.b16 %v319
      %v468 = vunpack.c.l.b16 %v320
      %v469 = vunpack.c.l.b16 %v321
      %v470 = vunpack.c.l.b16 %v322
      %v471 = vpack.c.b16 %v408, %v407
      %v472 = vpack.c.b16 %v410, %v409
      %v473 = vpack.c.b16 %v412, %v411
      %v474 = vpack.c.b16 %v414, %v413
      %v475 = vpack.c.b16 %v416, %v415
      %v476 = vpack.c.b16 %v418, %v417
      %v477 = vpack.c.b16 %v420, %v419
      %v478 = vpack.c.b16 %v422, %v421
      %v479 = vpack.c.b16 %v424, %v423
      %v480 = vpack.c.b16 %v426, %v425
      %v481 = vpack.c.b16 %v428, %v427
      %v482 = vpack.c.b16 %v430, %v429
      %v483 = vpack.c.b16 %v432, %v431
      %v484 = vpack.c.b16 %v434, %v433
      %v485 = vpack.c.b16 %v436, %v435
      %v486 = vpack.c.b16 %v438, %v437
      %v487 = vpack.c.b16 %v440, %v439
      %v488 = vpack.c.b16 %v442, %v441
      %v489 = vpack.c.b16 %v444, %v443
      %v490 = vpack.c.b16 %v446, %v445
      %v491 = vpack.c.b16 %v448, %v447
      %v492 = vpack.c.b16 %v450, %v449
      %v493 = vpack.c.b16 %v452, %v451
      %v494 = vpack.c.b16 %v454, %v453
      %v495 = vpack.c.b16 %v456, %v455
      %v496 = vpack.c.b16 %v458, %v457
      %v497 = vpack.c.b16 %v460, %v459
      %v498 = vpack.c.b16 %v462, %v461
      %v499 = vpack.c.b16 %v464, %v463
      %v500 = vpack.c.b16 %v466, %v465
      %v501 = vpack.c.b16 %v468, %v467
      %v502 = vpack.c.b16 %v470, %v469
      %v551 = vunpack.c.l.b16 %v323
      %v552 = vunpack.c.l.b16 %v324
      %v553 = vunpack.c.l.b16 %v325
      %v554 = vunpack.c.l.b16 %v326
      %v555 = vunpack.c.l.b16 %v327
      %v556 = vunpack.c.l.b16 %v328
      %v557 = vunpack.c.l.b16 %v329
      %v558 = vunpack.c.l.b16 %v330
      %v559 = vunpack.c.l.b16 %v331
      %v560 = vunpack.c.l.b16 %v332
      %v561 = vunpack.c.l.b16 %v333
      %v562 = vunpack.c.l.b16 %v334
      %v563 = vunpack.c.l.b16 %v335
      %v564 = vunpack.c.l.b16 %v336
      %v565 = vunpack.c.l.b16 %v337
      %v566 = vunpack.c.l.b16 %v338
      %v567 = vpack.c.b16 %v552, %v551
      %v568 = vpack.c.b16 %v554, %v553
      %v569 = vpack.c.b16 %v556, %v555
      %v570 = vpack.c.b16 %v558, %v557
      %v571 = vpack.c.b16 %v560, %v559
      %v572 = vpack.c.b16 %v562, %v561
      %v573 = vpack.c.b16 %v564, %v563
      %v574 = vpack.c.b16 %v566, %v565
      %583 = vmatpush.bf16.msra.mxu0 %v574
      %584 = vmatpush.bf16.msra.mxu0 %v573
      %585 = vmatpush.bf16.msra.mxu0 %v572
      %586 = vmatpush.bf16.msra.mxu0 %v571
      %587 = vmatpush.bf16.msra.mxu0 %v570
      %588 = vmatpush.bf16.msra.mxu0 %v569
      %589 = vmatpush.bf16.msra.mxu0 %v568
      %590 = vmatpush.bf16.msra.mxu0 %v567
      %591 = vmatmul.bf16.gmra.mxu0 %v471
      %v592 = vpop.f32.mrf.mxu0
      %v593 = vadd.f32 %v341, %v592
      %v594 = vpop.f32.mrf.mxu0
      %v595 = vadd.f32 %v341, %v594
      %596 = vmatmul.bf16.gmra.mxu0 %v472
      %v597 = vpop.f32.mrf.mxu0
      %v598 = vadd.f32 %v341, %v597
      %v599 = vpop.f32.mrf.mxu0
      %v600 = vadd.f32 %v341, %v599
      %601 = vmatmul.bf16.gmra.mxu0 %v473
      %v602 = vpop.f32.mrf.mxu0
      %v603 = vadd.f32 %v341, %v602
      %v604 = vpop.f32.mrf.mxu0
      %v605 = vadd.f32 %v341, %v604
      %606 = vmatmul.bf16.gmra.mxu0 %v474
      %v607 = vpop.f32.mrf.mxu0
      %v608 = vadd.f32 %v341, %v607
      %v609 = vpop.f32.mrf.mxu0
      %v610 = vadd.f32 %v341, %v609
      %611 = vmatmul.bf16.gmra.mxu0 %v475
      %v612 = vpop.f32.mrf.mxu0
      %v613 = vadd.f32 %v341, %v612
      %v614 = vpop.f32.mrf.mxu0
      %v615 = vadd.f32 %v341, %v614
      %616 = vmatmul.bf16.gmra.mxu0 %v476
      %v617 = vpop.f32.mrf.mxu0
      %v618 = vadd.f32 %v341, %v617
      %v619 = vpop.f32.mrf.mxu0
      %v620 = vadd.f32 %v341, %v619
      %621 = vmatmul.bf16.gmra.mxu0 %v477
      %v622 = vpop.f32.mrf.mxu0
      %v623 = vadd.f32 %v341, %v622
      %v624 = vpop.f32.mrf.mxu0
      %v625 = vadd.f32 %v341, %v624
      %626 = vmatmul.bf16.gmra.mxu0 %v478
      %v627 = vpop.f32.mrf.mxu0
      %v628 = vadd.f32 %v341, %v627
      %v629 = vpop.f32.mrf.mxu0
      %v630 = vadd.f32 %v341, %v629
      %631 = vmatmul.bf16.gmra.mxu0 %v479
      %v632 = vpop.f32.mrf.mxu0
      %v633 = vadd.f32 %v341, %v632
      %v634 = vpop.f32.mrf.mxu0
      %v635 = vadd.f32 %v341, %v634
      %636 = vmatmul.bf16.gmra.mxu0 %v480
      %v637 = vpop.f32.mrf.mxu0
      %v638 = vadd.f32 %v341, %v637
      %v639 = vpop.f32.mrf.mxu0
      %v640 = vadd.f32 %v341, %v639
      %641 = vmatmul.bf16.gmra.mxu0 %v481
      %v642 = vpop.f32.mrf.mxu0
      %v643 = vadd.f32 %v341, %v642
      %v644 = vpop.f32.mrf.mxu0
      %v645 = vadd.f32 %v341, %v644
      %646 = vmatmul.bf16.gmra.mxu0 %v482
      %v647 = vpop.f32.mrf.mxu0
      %v648 = vadd.f32 %v341, %v647
      %v649 = vpop.f32.mrf.mxu0
      %v650 = vadd.f32 %v341, %v649
      %651 = vmatmul.bf16.gmra.mxu0 %v483
      %v652 = vpop.f32.mrf.mxu0
      %v653 = vadd.f32 %v341, %v652
      %v654 = vpop.f32.mrf.mxu0
      %v655 = vadd.f32 %v341, %v654
      %656 = vmatmul.bf16.gmra.mxu0 %v484
      %v657 = vpop.f32.mrf.mxu0
      %v658 = vadd.f32 %v341, %v657
      %v659 = vpop.f32.mrf.mxu0
      %v660 = vadd.f32 %v341, %v659
      %661 = vmatmul.bf16.gmra.mxu0 %v485
      %v662 = vpop.f32.mrf.mxu0
      %v663 = vadd.f32 %v341, %v662
      %v664 = vpop.f32.mrf.mxu0
      %v665 = vadd.f32 %v341, %v664
      %666 = vmatmul.bf16.gmra.mxu0 %v486
      %v667 = vpop.f32.mrf.mxu0
      %v668 = vadd.f32 %v341, %v667
      %v669 = vpop.f32.mrf.mxu0
      %v670 = vadd.f32 %v341, %v669
      %671 = vmatmul.bf16.gmra.mxu0 %v487
      %v672 = vpop.f32.mrf.mxu0
      %v673 = vadd.f32 %v341, %v672
      %v674 = vpop.f32.mrf.mxu0
      %v675 = vadd.f32 %v341, %v674
      %676 = vmatmul.bf16.gmra.mxu0 %v488
      %v677 = vpop.f32.mrf.mxu0
      %v678 = vadd.f32 %v341, %v677
      %v679 = vpop.f32.mrf.mxu0
      %v680 = vadd.f32 %v341, %v679
      %681 = vmatmul.bf16.gmra.mxu0 %v489
      %v682 = vpop.f32.mrf.mxu0
      %v683 = vadd.f32 %v341, %v682
      %v684 = vpop.f32.mrf.mxu0
      %v685 = vadd.f32 %v341, %v684
      %686 = vmatmul.bf16.gmra.mxu0 %v490
      %v687 = vpop.f32.mrf.mxu0
      %v688 = vadd.f32 %v341, %v687
      %v689 = vpop.f32.mrf.mxu0
      %v690 = vadd.f32 %v341, %v689
      %691 = vmatmul.bf16.gmra.mxu0 %v491
      %v692 = vpop.f32.mrf.mxu0
      %v693 = vadd.f32 %v341, %v692
      %v694 = vpop.f32.mrf.mxu0
      %v695 = vadd.f32 %v341, %v694
      %696 = vmatmul.bf16.gmra.mxu0 %v492
      %v697 = vpop.f32.mrf.mxu0
      %v698 = vadd.f32 %v341, %v697
      %v699 = vpop.f32.mrf.mxu0
      %v700 = vadd.f32 %v341, %v699
      %701 = vmatmul.bf16.gmra.mxu0 %v493
      %v702 = vpop.f32.mrf.mxu0
      %v703 = vadd.f32 %v341, %v702
      %v704 = vpop.f32.mrf.mxu0
      %v705 = vadd.f32 %v341, %v704
      %706 = vmatmul.bf16.gmra.mxu0 %v494
      %v707 = vpop.f32.mrf.mxu0
      %v708 = vadd.f32 %v341, %v707
      %v709 = vpop.f32.mrf.mxu0
      %v710 = vadd.f32 %v341, %v709
      %711 = vmatmul.bf16.gmra.mxu0 %v495
      %v712 = vpop.f32.mrf.mxu0
      %v713 = vadd.f32 %v341, %v712
      %v714 = vpop.f32.mrf.mxu0
      %v715 = vadd.f32 %v341, %v714
      %716 = vmatmul.bf16.gmra.mxu0 %v496
      %v717 = vpop.f32.mrf.mxu0
      %v718 = vadd.f32 %v341, %v717
      %v719 = vpop.f32.mrf.mxu0
      %v720 = vadd.f32 %v341, %v719
      %721 = vmatmul.bf16.gmra.mxu0 %v497
      %v722 = vpop.f32.mrf.mxu0
      %v723 = vadd.f32 %v341, %v722
      %v724 = vpop.f32.mrf.mxu0
      %v725 = vadd.f32 %v341, %v724
      %726 = vmatmul.bf16.gmra.mxu0 %v498
      %v727 = vpop.f32.mrf.mxu0
      %v728 = vadd.f32 %v341, %v727
      %v729 = vpop.f32.mrf.mxu0
      %v730 = vadd.f32 %v341, %v729
      %731 = vmatmul.bf16.gmra.mxu0 %v499
      %v732 = vpop.f32.mrf.mxu0
      %v733 = vadd.f32 %v341, %v732
      %v734 = vpop.f32.mrf.mxu0
      %v735 = vadd.f32 %v341, %v734
      %736 = vmatmul.bf16.gmra.mxu0 %v500
      %v737 = vpop.f32.mrf.mxu0
      %v738 = vadd.f32 %v341, %v737
      %v739 = vpop.f32.mrf.mxu0
      %v740 = vadd.f32 %v341, %v739
      %741 = vmatmul.bf16.gmra.mxu0 %v501
      %v742 = vpop.f32.mrf.mxu0
      %v743 = vadd.f32 %v341, %v742
      %v744 = vpop.f32.mrf.mxu0
      %v745 = vadd.f32 %v341, %v744
      %746 = vmatmul.bf16.gmra.mxu0 %v502
      %v747 = vpop.f32.mrf.mxu0
      %v748 = vadd.f32 %v341, %v747
      %v749 = vpop.f32.mrf.mxu0
      %v750 = vadd.f32 %v341, %v749
      %751 = vdwg.mxu0
      %v752 = vmax.f32 %v593, 0.0
      %v753 = vmax.f32 %v595, 0.0
      %v754 = vmax.f32 %v598, 0.0
      %v755 = vmax.f32 %v600, 0.0
      %v756 = vmax.f32 %v603, 0.0
      %v757 = vmax.f32 %v605, 0.0
      %v758 = vmax.f32 %v608, 0.0
      %v759 = vmax.f32 %v610, 0.0
      %v760 = vmax.f32 %v613, 0.0
      %v761 = vmax.f32 %v615, 0.0
      %v762 = vmax.f32 %v618, 0.0
      %v763 = vmax.f32 %v620, 0.0
      %v764 = vmax.f32 %v623, 0.0
      %v765 = vmax.f32 %v625, 0.0
      %v766 = vmax.f32 %v628, 0.0
      %v767 = vmax.f32 %v630, 0.0
      %v768 = vmax.f32 %v633, 0.0
      %v769 = vmax.f32 %v635, 0.0
      %v770 = vmax.f32 %v638, 0.0
      %v771 = vmax.f32 %v640, 0.0
      %v772 = vmax.f32 %v643, 0.0
      %v773 = vmax.f32 %v645, 0.0
      %v774 = vmax.f32 %v648, 0.0
      %v775 = vmax.f32 %v650, 0.0
      %v776 = vmax.f32 %v653, 0.0
      %v777 = vmax.f32 %v655, 0.0
      %v778 = vmax.f32 %v658, 0.0
      %v779 = vmax.f32 %v660, 0.0
      %v780 = vmax.f32 %v663, 0.0
      %v781 = vmax.f32 %v665, 0.0
      %v782 = vmax.f32 %v668, 0.0
      %v783 = vmax.f32 %v670, 0.0
      %v784 = vmax.f32 %v673, 0.0
      %v785 = vmax.f32 %v675, 0.0
      %v786 = vmax.f32 %v678, 0.0
      %v787 = vmax.f32 %v680, 0.0
      %v788 = vmax.f32 %v683, 0.0
      %v789 = vmax.f32 %v685, 0.0
      %v790 = vmax.f32 %v688, 0.0
      %v791 = vmax.f32 %v690, 0.0
      %v792 = vmax.f32 %v693, 0.0
      %v793 = vmax.f32 %v695, 0.0
      %v794 = vmax.f32 %v698, 0.0
      %v795 = vmax.f32 %v700, 0.0
      %v796 = vmax.f32 %v703, 0.0
      %v797 = vmax.f32 %v705, 0.0
      %v798 = vmax.f32 %v708, 0.0
      %v799 = vmax.f32 %v710, 0.0
      %v800 = vmax.f32 %v713, 0.0
      %v801 = vmax.f32 %v715, 0.0
      %v802 = vmax.f32 %v718, 0.0
      %v803 = vmax.f32 %v720, 0.0
      %v804 = vmax.f32 %v723, 0.0
      %v805 = vmax.f32 %v725, 0.0
      %v806 = vmax.f32 %v728, 0.0
      %v807 = vmax.f32 %v730, 0.0
      %v808 = vmax.f32 %v733, 0.0
      %v809 = vmax.f32 %v735, 0.0
      %v810 = vmax.f32 %v738, 0.0
      %v811 = vmax.f32 %v740, 0.0
      %v812 = vmax.f32 %v743, 0.0
      %v813 = vmax.f32 %v745, 0.0
      %v814 = vmax.f32 %v748, 0.0
      %v815 = vmax.f32 %v750, 0.0
      %v816 = vpack.c.bf16 %v752, %v752
      %v817 = vpack.c.bf16 %v753, %v753
      %v818 = vpack.c.bf16 %v754, %v754
      %v819 = vpack.c.bf16 %v755, %v755
      %v820 = vpack.c.bf16 %v756, %v756
      %v821 = vpack.c.bf16 %v757, %v757
      %v822 = vpack.c.bf16 %v758, %v758
      %v823 = vpack.c.bf16 %v759, %v759
      %v824 = vpack.c.bf16 %v760, %v760
      %v825 = vpack.c.bf16 %v761, %v761
      %v826 = vpack.c.bf16 %v762, %v762
      %v827 = vpack.c.bf16 %v763, %v763
      %v828 = vpack.c.bf16 %v764, %v764
      %v829 = vpack.c.bf16 %v765, %v765
      %v830 = vpack.c.bf16 %v766, %v766
      %v831 = vpack.c.bf16 %v767, %v767
      %v832 = vpack.c.bf16 %v768, %v768
      %v833 = vpack.c.bf16 %v769, %v769
      %v834 = vpack.c.bf16 %v770, %v770
      %v835 = vpack.c.bf16 %v771, %v771
      %v836 = vpack.c.bf16 %v772, %v772
      %v837 = vpack.c.bf16 %v773, %v773
      %v838 = vpack.c.bf16 %v774, %v774
      %v839 = vpack.c.bf16 %v775, %v775
      %v840 = vpack.c.bf16 %v776, %v776
      %v841 = vpack.c.bf16 %v777, %v777
      %v842 = vpack.c.bf16 %v778, %v778
      %v843 = vpack.c.bf16 %v779, %v779
      %v844 = vpack.c.bf16 %v780, %v780
      %v845 = vpack.c.bf16 %v781, %v781
      %v846 = vpack.c.bf16 %v782, %v782
      %v847 = vpack.c.bf16 %v783, %v783
      %v848 = vpack.c.bf16 %v784, %v784
      %v849 = vpack.c.bf16 %v785, %v785
      %v850 = vpack.c.bf16 %v786, %v786
      %v851 = vpack.c.bf16 %v787, %v787
      %v852 = vpack.c.bf16 %v788, %v788
      %v853 = vpack.c.bf16 %v789, %v789
      %v854 = vpack.c.bf16 %v790, %v790
      %v855 = vpack.c.bf16 %v791, %v791
      %v856 = vpack.c.bf16 %v792, %v792
      %v857 = vpack.c.bf16 %v793, %v793
      %v858 = vpack.c.bf16 %v794, %v794
      %v859 = vpack.c.bf16 %v795, %v795
      %v860 = vpack.c.bf16 %v796, %v796
      %v861 = vpack.c.bf16 %v797, %v797
      %v862 = vpack.c.bf16 %v798, %v798
      %v863 = vpack.c.bf16 %v799, %v799
      %v864 = vpack.c.bf16 %v800, %v800
      %v865 = vpack.c.bf16 %v801, %v801
      %v866 = vpack.c.bf16 %v802, %v802
      %v867 = vpack.c.bf16 %v803, %v803
      %v868 = vpack.c.bf16 %v804, %v804
      %v869 = vpack.c.bf16 %v805, %v805
      %v870 = vpack.c.bf16 %v806, %v806
      %v871 = vpack.c.bf16 %v807, %v807
      %v872 = vpack.c.bf16 %v808, %v808
      %v873 = vpack.c.bf16 %v809, %v809
      %v874 = vpack.c.bf16 %v810, %v810
      %v875 = vpack.c.bf16 %v811, %v811
      %v876 = vpack.c.bf16 %v812, %v812
      %v877 = vpack.c.bf16 %v813, %v813
      %v878 = vpack.c.bf16 %v814, %v814
      %v879 = vpack.c.bf16 %v815, %v815
      %vm880 = vcmask 60416
      %881 = vst.msk [vmem:[%s257] sm:$0xf] %vm880, %v816
      %882 = vst.msk [vmem:[%s257 + $0x4] sm:$0xf] %vm880, %v817
      %883 = vst.msk [vmem:[%s257 + $0x8] sm:$0xf] %vm880, %v818
      %884 = vst.msk [vmem:[%s257 + $0xc] sm:$0xf] %vm880, %v819
      %885 = vst.msk [vmem:[%s257 + $0x10] sm:$0xf] %vm880, %v820
      %886 = vst.msk [vmem:[%s257 + $0x14] sm:$0xf] %vm880, %v821
      %887 = vst.msk [vmem:[%s257 + $0x18] sm:$0xf] %vm880, %v822
      %888 = vst.msk [vmem:[%s257 + $0x1c] sm:$0xf] %vm880, %v823
      %889 = vst.msk [vmem:[%s257 + $0x20] sm:$0xf] %vm880, %v824
      %890 = vst.msk [vmem:[%s257 + $0x24] sm:$0xf] %vm880, %v825
      %891 = vst.msk [vmem:[%s257 + $0x28] sm:$0xf] %vm880, %v826
      %892 = vst.msk [vmem:[%s257 + $0x2c] sm:$0xf] %vm880, %v827
      %893 = vst.msk [vmem:[%s257 + $0x30] sm:$0xf] %vm880, %v828
      %894 = vst.msk [vmem:[%s257 + $0x34] sm:$0xf] %vm880, %v829
      %895 = vst.msk [vmem:[%s257 + $0x38] sm:$0xf] %vm880, %v830
      %896 = vst.msk [vmem:[%s257 + $0x3c] sm:$0xf] %vm880, %v831
      %897 = vst.msk [vmem:[%s257 + $0x40] sm:$0xf] %vm880, %v832
      %898 = vst.msk [vmem:[%s257 + $0x44] sm:$0xf] %vm880, %v833
      %899 = vst.msk [vmem:[%s257 + $0x48] sm:$0xf] %vm880, %v834
      %900 = vst.msk [vmem:[%s257 + $0x4c] sm:$0xf] %vm880, %v835
      %901 = vst.msk [vmem:[%s257 + $0x50] sm:$0xf] %vm880, %v836
      %902 = vst.msk [vmem:[%s257 + $0x54] sm:$0xf] %vm880, %v837
      %903 = vst.msk [vmem:[%s257 + $0x58] sm:$0xf] %vm880, %v838
      %904 = vst.msk [vmem:[%s257 + $0x5c] sm:$0xf] %vm880, %v839
      %905 = vst.msk [vmem:[%s257 + $0x60] sm:$0xf] %vm880, %v840
      %906 = vst.msk [vmem:[%s257 + $0x64] sm:$0xf] %vm880, %v841
      %907 = vst.msk [vmem:[%s257 + $0x68] sm:$0xf] %vm880, %v842
      %908 = vst.msk [vmem:[%s257 + $0x6c] sm:$0xf] %vm880, %v843
      %909 = vst.msk [vmem:[%s257 + $0x70] sm:$0xf] %vm880, %v844
      %910 = vst.msk [vmem:[%s257 + $0x74] sm:$0xf] %vm880, %v845
      %911 = vst.msk [vmem:[%s257 + $0x78] sm:$0xf] %vm880, %v846
      %912 = vst.msk [vmem:[%s257 + $0x7c] sm:$0xf] %vm880, %v847
      %913 = vst.msk [vmem:[%s257 + $0x80] sm:$0xf] %vm880, %v848
      %914 = vst.msk [vmem:[%s257 + $0x84] sm:$0xf] %vm880, %v849
      %915 = vst.msk [vmem:[%s257 + $0x88] sm:$0xf] %vm880, %v850
      %916 = vst.msk [vmem:[%s257 + $0x8c] sm:$0xf] %vm880, %v851
      %917 = vst.msk [vmem:[%s257 + $0x90] sm:$0xf] %vm880, %v852
      %918 = vst.msk [vmem:[%s257 + $0x94] sm:$0xf] %vm880, %v853
      %919 = vst.msk [vmem:[%s257 + $0x98] sm:$0xf] %vm880, %v854
      %920 = vst.msk [vmem:[%s257 + $0x9c] sm:$0xf] %vm880, %v855
      %921 = vst.msk [vmem:[%s257 + $0xa0] sm:$0xf] %vm880, %v856
      %922 = vst.msk [vmem:[%s257 + $0xa4] sm:$0xf] %vm880, %v857
      %923 = vst.msk [vmem:[%s257 + $0xa8] sm:$0xf] %vm880, %v858
      %924 = vst.msk [vmem:[%s257 + $0xac] sm:$0xf] %vm880, %v859
      %925 = vst.msk [vmem:[%s257 + $0xb0] sm:$0xf] %vm880, %v860
      %926 = vst.msk [vmem:[%s257 + $0xb4] sm:$0xf] %vm880, %v861
      %927 = vst.msk [vmem:[%s257 + $0xb8] sm:$0xf] %vm880, %v862
      %928 = vst.msk [vmem:[%s257 + $0xbc] sm:$0xf] %vm880, %v863
      %929 = vst.msk [vmem:[%s257 + $0xc0] sm:$0xf] %vm880, %v864
      %930 = vst.msk [vmem:[%s257 + $0xc4] sm:$0xf] %vm880, %v865
      %931 = vst.msk [vmem:[%s257 + $0xc8] sm:$0xf] %vm880, %v866
      %932 = vst.msk [vmem:[%s257 + $0xcc] sm:$0xf] %vm880, %v867
      %933 = vst.msk [vmem:[%s257 + $0xd0] sm:$0xf] %vm880, %v868
      %934 = vst.msk [vmem:[%s257 + $0xd4] sm:$0xf] %vm880, %v869
      %935 = vst.msk [vmem:[%s257 + $0xd8] sm:$0xf] %vm880, %v870
      %936 = vst.msk [vmem:[%s257 + $0xdc] sm:$0xf] %vm880, %v871
      %937 = vst.msk [vmem:[%s257 + $0xe0] sm:$0xf] %vm880, %v872
      %938 = vst.msk [vmem:[%s257 + $0xe4] sm:$0xf] %vm880, %v873
      %939 = vst.msk [vmem:[%s257 + $0xe8] sm:$0xf] %vm880, %v874
      %940 = vst.msk [vmem:[%s257 + $0xec] sm:$0xf] %vm880, %v875
      %941 = vst.msk [vmem:[%s257 + $0xf0] sm:$0xf] %vm880, %v876
      %942 = vst.msk [vmem:[%s257 + $0xf4] sm:$0xf] %vm880, %v877
      %943 = vst.msk [vmem:[%s257 + $0xf8] sm:$0xf] %vm880, %v878
      %944 = vst.msk [vmem:[%s257 + $0xfc] sm:$0xf] %vm880, %v879
      %s945 = smul.u32 64, %s19
      %p946 = scmp.lt.s32.totalorder %s945, 255
      %s947 = scalar_select %p946, %s945, 255
      %p948 = scmp.lt.s32.totalorder %s20, 0
      %s949 = scalar_select %p948, %s20, 0
      %s950 = sadd.s32 %s949, %s947
      %s951 = smul.addr %s950, 4
      %s952 = scalar_lea.vmem %s3, %s951
      // Predicated region
      $region33: #{resnet_forward.22} parent=31 // pred_check
        %p953 = pneg %p135
      $region34: #{resnet_forward.22} parent=31 // pred_check_branch
        %955 = sbr.rel (%p953) target = $region36
      $region35: #{resnet_forward.22} parent=31 // pred_region
        %s956 = smul.u32 64, %s19
      $region36: #{resnet_forward.22} parent=31 // pred_fallthru
        _
    $region32: #{resnet_forward.22} parent=5 // pred_fallthru
      _
    %p957 = scmp.le.s32.totalorder 2, %s9
    // Predicated region
    $region37: #{resnet_forward.22} parent=5 // pred_check
      %p958 = pneg %p957
    $region38: #{resnet_forward.22} parent=5 // pred_check_branch
      %960 = sbr.rel (%p958) target = $region40
    $region39: #{resnet_forward.22} parent=5 // pred_region
      %s961 = ssub.s32 %s9, 2
      // Predicated region
      $region41: #{resnet_forward.22} parent=39 // pred_check
        %p962 = pneg %p141
      $region42: #{resnet_forward.22} parent=39 // pred_check_branch
        %964 = sbr.rel (%p962) target = $region44
      $region43: #{resnet_forward.22} parent=39 // pred_region
        %s965 = smul.u32 64, %s22
        %p966 = scmp.lt.s32.totalorder %s965, 255
        %s967 = scalar_select %p966, %s965, 255
        %p968 = scmp.lt.s32.totalorder %s23, 0
        %s969 = scalar_select %p968, %s23, 0
        %s970 = sadd.s32 %s969, %s967
        %s971 = smul.addr %s970, 4
        %s972 = scalar_lea.vmem %s3, %s971
      $region44: #{resnet_forward.22} parent=39 // pred_fallthru
        _
    $region40: #{resnet_forward.22} parent=5 // pred_fallthru
      _
  $region6: #{resnet_forward.22} parent=0 // loop_footer
    %s13 = sadd.s32 1, %s9
  $region7: #{resnet_forward.22} parent=0 // loop_footer_branch
    %8 = sbr.rel target = $region3
  $region8: #{resnet_forward.22} parent=0 // loop_exit
    _

// kernel: resnet_forward.23
$region0: #{resnet_forward.23}
  #allocation0 [shape = 'u32[]', space=smem, size = 0x4, offset = 0x4, fixed_abs, tag = 'smem constant byte address 0x4 - core index']
  #allocation1 [shape = 'u32[72,128]{1,0:T(1,128)}', space=vmem, size = 0x9000, scoped, tag = 'internal scratch']
  %s0 = inlined_call_operand.vmem [shape: bf16[32,2,16,16], index: 0, kind: input, shape index: {}]
  %s1 = inlined_call_operand.vmem [shape: bf16[32,16,8], index: 1, kind: output, shape index: {}]
  %s2 = sld [smem:[#allocation0]]
  $region14: #{resnet_forward.23} parent=0
    _
  %s4 = ssub.s32 1, %s2
  %s5 = scalar_select 0, %s4, %s2
  // Predicated region
  $region2: #{resnet_forward.23} parent=0 // pred_check
    _
  $region3: #{resnet_forward.23} parent=0 // pred_check_branch
    %7 = sbr.rel (0) target = $region5
  $region4: #{resnet_forward.23} parent=0 // pred_region
    _
  $region5: #{resnet_forward.23} parent=0 // pred_fallthru
    _
  %v8 = vld [vmem:[%s0] sm:$0xf]
  %v9 = vld [vmem:[%s0 + $0x4] sm:$0xf]
  %v10 = vld [vmem:[%s0 + $0x8] sm:$0xf]
  %v11 = vld [vmem:[%s0 + $0xc] sm:$0xf]
  %v12 = vld [vmem:[%s0 + $0x10] sm:$0xf]
  %v13 = vld [vmem:[%s0 + $0x14] sm:$0xf]
  %v14 = vld [vmem:[%s0 + $0x18] sm:$0xf]
  %v15 = vld [vmem:[%s0 + $0x1c] sm:$0xf]
  %v16 = vld [vmem:[%s0 + $0x20] sm:$0xf]
  %v17 = vld [vmem:[%s0 + $0x24] sm:$0xf]
  %v18 = vld [vmem:[%s0 + $0x28] sm:$0xf]
  %v19 = vld [vmem:[%s0 + $0x2c] sm:$0xf]
  %v20 = vld [vmem:[%s0 + $0x30] sm:$0xf]
  %v21 = vld [vmem:[%s0 + $0x34] sm:$0xf]
  %v22 = vld [vmem:[%s0 + $0x38] sm:$0xf]
  %v23 = vld [vmem:[%s0 + $0x3c] sm:$0xf]
  %v24 = vld [vmem:[%s0 + $0x40] sm:$0xf]
  %v25 = vld [vmem:[%s0 + $0x44] sm:$0xf]
  %v26 = vld [vmem:[%s0 + $0x48] sm:$0xf]
  %v27 = vld [vmem:[%s0 + $0x4c] sm:$0xf]
  %v28 = vld [vmem:[%s0 + $0x50] sm:$0xf]
  %v29 = vld [vmem:[%s0 + $0x54] sm:$0xf]
  %v30 = vld [vmem:[%s0 + $0x58] sm:$0xf]
  %v31 = vld [vmem:[%s0 + $0x5c] sm:$0xf]
  %v32 = vld [vmem:[%s0 + $0x60] sm:$0xf]
  %v33 = vld [vmem:[%s0 + $0x64] sm:$0xf]
  %v34 = vld [vmem:[%s0 + $0x68] sm:$0xf]
  %v35 = vld [vmem:[%s0 + $0x6c] sm:$0xf]
  %v36 = vld [vmem:[%s0 + $0x70] sm:$0xf]
  %v37 = vld [vmem:[%s0 + $0x74] sm:$0xf]
  %v38 = vld [vmem:[%s0 + $0x78] sm:$0xf]
  %v39 = vld [vmem:[%s0 + $0x7c] sm:$0xf]
  %v40 = vld [vmem:[%s0 + $0x80] sm:$0xf]
  %v41 = vld [vmem:[%s0 + $0x84] sm:$0xf]
  %v42 = vld [vmem:[%s0 + $0x88] sm:$0xf]
  %v43 = vld [vmem:[%s0 + $0x8c] sm:$0xf]
  %v44 = vld [vmem:[%s0 + $0x90] sm:$0xf]
  %v45 = vld [vmem:[%s0 + $0x94] sm:$0xf]
  %v46 = vld [vmem:[%s0 + $0x98] sm:$0xf]
  %v47 = vld [vmem:[%s0 + $0x9c] sm:$0xf]
  %v48 = vld [vmem:[%s0 + $0xa0] sm:$0xf]
  %v49 = vld [vmem:[%s0 + $0xa4] sm:$0xf]
  %v50 = vld [vmem:[%s0 + $0xa8] sm:$0xf]
  %v51 = vld [vmem:[%s0 + $0xac] sm:$0xf]
  %v52 = vld [vmem:[%s0 + $0xb0] sm:$0xf]
  %v53 = vld [vmem:[%s0 + $0xb4] sm:$0xf]
  %v54 = vld [vmem:[%s0 + $0xb8] sm:$0xf]
  %v55 = vld [vmem:[%s0 + $0xbc] sm:$0xf]
  %v56 = vld [vmem:[%s0 + $0xc0] sm:$0xf]
  %v57 = vld [vmem:[%s0 + $0xc4] sm:$0xf]
  %v58 = vld [vmem:[%s0 + $0xc8] sm:$0xf]
  %v59 = vld [vmem:[%s0 + $0xcc] sm:$0xf]
  %v60 = vld [vmem:[%s0 + $0xd0] sm:$0xf]
  %v61 = vld [vmem:[%s0 + $0xd4] sm:$0xf]
  %v62 = vld [vmem:[%s0 + $0xd8] sm:$0xf]
  %v63 = vld [vmem:[%s0 + $0xdc] sm:$0xf]
  %v64 = vld [vmem:[%s0 + $0xe0] sm:$0xf]
  %v65 = vld [vmem:[%s0 + $0xe4] sm:$0xf]
  %v66 = vld [vmem:[%s0 + $0xe8] sm:$0xf]
  %v67 = vld [vmem:[%s0 + $0xec] sm:$0xf]
  %v68 = vld [vmem:[%s0 + $0xf0] sm:$0xf]
  %v69 = vld [vmem:[%s0 + $0xf4] sm:$0xf]
  %v70 = vld [vmem:[%s0 + $0xf8] sm:$0xf]
  %v71 = vld [vmem:[%s0 + $0xfc] sm:$0xf]
  %v72 = vld [vmem:[%s0 + $0x100] sm:$0xf]
  %v73 = vld [vmem:[%s0 + $0x104] sm:$0xf]
  %v74 = vld [vmem:[%s0 + $0x108] sm:$0xf]
  %v75 = vld [vmem:[%s0 + $0x10c] sm:$0xf]
  %v76 = vld [vmem:[%s0 + $0x110] sm:$0xf]
  %v77 = vld [vmem:[%s0 + $0x114] sm:$0xf]
  %v78 = vld [vmem:[%s0 + $0x118] sm:$0xf]
  %v79 = vld [vmem:[%s0 + $0x11c] sm:$0xf]
  %v80 = vld [vmem:[%s0 + $0x120] sm:$0xf]
  %v81 = vld [vmem:[%s0 + $0x124] sm:$0xf]
  %v82 = vld [vmem:[%s0 + $0x128] sm:$0xf]
  %v83 = vld [vmem:[%s0 + $0x12c] sm:$0xf]
  %v84 = vld [vmem:[%s0 + $0x130] sm:$0xf]
  %v85 = vld [vmem:[%s0 + $0x134] sm:$0xf]
  %v86 = vld [vmem:[%s0 + $0x138] sm:$0xf]
  %v87 = vld [vmem:[%s0 + $0x13c] sm:$0xf]
  %v88 = vld [vmem:[%s0 + $0x140] sm:$0xf]
  %v89 = vld [vmem:[%s0 + $0x144] sm:$0xf]
  %v90 = vld [vmem:[%s0 + $0x148] sm:$0xf]
  %v91 = vld [vmem:[%s0 + $0x14c] sm:$0xf]
  %v92 = vld [vmem:[%s0 + $0x150] sm:$0xf]
  %v93 = vld [vmem:[%s0 + $0x154] sm:$0xf]
  %v94 = vld [vmem:[%s0 + $0x158] sm:$0xf]
  %v95 = vld [vmem:[%s0 + $0x15c] sm:$0xf]
  %v96 = vld [vmem:[%s0 + $0x160] sm:$0xf]
  %v97 = vld [vmem:[%s0 + $0x164] sm:$0xf]
  %v98 = vld [vmem:[%s0 + $0x168] sm:$0xf]
  %v99 = vld [vmem:[%s0 + $0x16c] sm:$0xf]
  %v100 = vld [vmem:[%s0 + $0x170] sm:$0xf]
  %v101 = vld [vmem:[%s0 + $0x174] sm:$0xf]
  %v102 = vld [vmem:[%s0 + $0x178] sm:$0xf]
  %v103 = vld [vmem:[%s0 + $0x17c] sm:$0xf]
  %v104 = vld [vmem:[%s0 + $0x180] sm:$0xf]
  %v105 = vld [vmem:[%s0 + $0x184] sm:$0xf]
  %v106 = vld [vmem:[%s0 + $0x188] sm:$0xf]
  %v107 = vld [vmem:[%s0 + $0x18c] sm:$0xf]
  %v108 = vld [vmem:[%s0 + $0x190] sm:$0xf]
  %v109 = vld [vmem:[%s0 + $0x194] sm:$0xf]
  %v110 = vld [vmem:[%s0 + $0x198] sm:$0xf]
  %v111 = vld [vmem:[%s0 + $0x19c] sm:$0xf]
  %v112 = vld [vmem:[%s0 + $0x1a0] sm:$0xf]
  %v113 = vld [vmem:[%s0 + $0x1a4] sm:$0xf]
  %v114 = vld [vmem:[%s0 + $0x1a8] sm:$0xf]
  %v115 = vld [vmem:[%s0 + $0x1ac] sm:$0xf]
  %v116 = vld [vmem:[%s0 + $0x1b0] sm:$0xf]
  %v117 = vld [vmem:[%s0 + $0x1b4] sm:$0xf]
  %v118 = vld [vmem:[%s0 + $0x1b8] sm:$0xf]
  %v119 = vld [vmem:[%s0 + $0x1bc] sm:$0xf]
  %v120 = vld [vmem:[%s0 + $0x1c0] sm:$0xf]
  %v121 = vld [vmem:[%s0 + $0x1c4] sm:$0xf]
  %v122 = vld [vmem:[%s0 + $0x1c8] sm:$0xf]
  %v123 = vld [vmem:[%s0 + $0x1cc] sm:$0xf]
  %v124 = vld [vmem:[%s0 + $0x1d0] sm:$0xf]
  %v125 = vld [vmem:[%s0 + $0x1d4] sm:$0xf]
  %v126 = vld [vmem:[%s0 + $0x1d8] sm:$0xf]
  %v127 = vld [vmem:[%s0 + $0x1dc] sm:$0xf]
  %v128 = vld [vmem:[%s0 + $0x1e0] sm:$0xf]
  %v129 = vld [vmem:[%s0 + $0x1e4] sm:$0xf]
  %v130 = vld [vmem:[%s0 + $0x1e8] sm:$0xf]
  %v131 = vld [vmem:[%s0 + $0x1ec] sm:$0xf]
  %v132 = vld [vmem:[%s0 + $0x1f0] sm:$0xf]
  %v133 = vld [vmem:[%s0 + $0x1f4] sm:$0xf]
  %v134 = vld [vmem:[%s0 + $0x1f8] sm:$0xf]
  %v135 = vld [vmem:[%s0 + $0x1fc] sm:$0xf]
  %v136 = vunpack.c.l.bf16 %v8
  %v137 = vunpack.c.l.bf16 %v9
  %v138 = vunpack.c.l.bf16 %v12
  %v139 = vunpack.c.l.bf16 %v13
  %v140 = vunpack.c.l.bf16 %v16
  %v141 = vunpack.c.l.bf16 %v17
  %v142 = vunpack.c.l.bf16 %v20
  %v143 = vunpack.c.l.bf16 %v21
  %v144 = vunpack.c.l.bf16 %v24
  %v145 = vunpack.c.l.bf16 %v25
  %v146 = vunpack.c.l.bf16 %v28
  %v147 = vunpack.c.l.bf16 %v29
  %v148 = vunpack.c.l.bf16 %v32
  %v149 = vunpack.c.l.bf16 %v33
  %v150 = vunpack.c.l.bf16 %v36
  %v151 = vunpack.c.l.bf16 %v37
  %v152 = vunpack.c.l.bf16 %v40
  %v153 = vunpack.c.l.bf16 %v41
  %v154 = vunpack.c.l.bf16 %v44
  %v155 = vunpack.c.l.bf16 %v45
  %v156 = vunpack.c.l.bf16 %v48
  %v157 = vunpack.c.l.bf16 %v49
  %v158 = vunpack.c.l.bf16 %v52
  %v159 = vunpack.c.l.bf16 %v53
  %v160 = vunpack.c.l.bf16 %v56
  %v161 = vunpack.c.l.bf16 %v57
  %v162 = vunpack.c.l.bf16 %v60
  %v163 = vunpack.c.l.bf16 %v61
  %v164 = vunpack.c.l.bf16 %v64
  %v165 = vunpack.c.l.bf16 %v65
  %v166 = vunpack.c.l.bf16 %v68
  %v167 = vunpack.c.l.bf16 %v69
  %v168 = vunpack.c.l.bf16 %v72
  %v169 = vunpack.c.l.bf16 %v73
  %v170 = vunpack.c.l.bf16 %v76
  %v171 = vunpack.c.l.bf16 %v77
  %v172 = vunpack.c.l.bf16 %v80
  %v173 = vunpack.c.l.bf16 %v81
  %v174 = vunpack.c.l.bf16 %v84
  %v175 = vunpack.c.l.bf16 %v85
  %v176 = vunpack.c.l.bf16 %v88
  %v177 = vunpack.c.l.bf16 %v89
  %v178 = vunpack.c.l.bf16 %v92
  %v179 = vunpack.c.l.bf16 %v93
  %v180 = vunpack.c.l.bf16 %v96
  %v181 = vunpack.c.l.bf16 %v97
  %v182 = vunpack.c.l.bf16 %v100
  %v183 = vunpack.c.l.bf16 %v101
  %v184 = vunpack.c.l.bf16 %v104
  %v185 = vunpack.c.l.bf16 %v105
  %v186 = vunpack.c.l.bf16 %v108
  %v187 = vunpack.c.l.bf16 %v109
  %v188 = vunpack.c.l.bf16 %v112
  %v189 = vunpack.c.l.bf16 %v113
  %v190 = vunpack.c.l.bf16 %v116
  %v191 = vunpack.c.l.bf16 %v117
  %v192 = vunpack.c.l.bf16 %v120
  %v193 = vunpack.c.l.bf16 %v121
  %v194 = vunpack.c.l.bf16 %v124
  %v195 = vunpack.c.l.bf16 %v125
  %v196 = vunpack.c.l.bf16 %v128
  %v197 = vunpack.c.l.bf16 %v129
  %v198 = vunpack.c.l.bf16 %v132
  %v199 = vunpack.c.l.bf16 %v133
  %v200 = vunpack.c.l.bf16 %v10
  %v201 = vunpack.c.l.bf16 %v11
  %v202 = vunpack.c.l.bf16 %v14
  %v203 = vunpack.c.l.bf16 %v15
  %v204 = vunpack.c.l.bf16 %v18
  %v205 = vunpack.c.l.bf16 %v19
  %v206 = vunpack.c.l.bf16 %v22
  %v207 = vunpack.c.l.bf16 %v23
  %v208 = vunpack.c.l.bf16 %v26
  %v209 = vunpack.c.l.bf16 %v27
  %v210 = vunpack.c.l.bf16 %v30
  %v211 = vunpack.c.l.bf16 %v31
  %v212 = vunpack.c.l.bf16 %v34
  %v213 = vunpack.c.l.bf16 %v35
  %v214 = vunpack.c.l.bf16 %v38
  %v215 = vunpack.c.l.bf16 %v39
  %v216 = vunpack.c.l.bf16 %v42
  %v217 = vunpack.c.l.bf16 %v43
  %v218 = vunpack.c.l.bf16 %v46
  %v219 = vunpack.c.l.bf16 %v47
  %v220 = vunpack.c.l.bf16 %v50
  %v221 = vunpack.c.l.bf16 %v51
  %v222 = vunpack.c.l.bf16 %v54
  %v223 = vunpack.c.l.bf16 %v55
  %v224 = vunpack.c.l.bf16 %v58
  %v225 = vunpack.c.l.bf16 %v59
  %v226 = vunpack.c.l.bf16 %v62
  %v227 = vunpack.c.l.bf16 %v63
  %v228 = vunpack.c.l.bf16 %v66
  %v229 = vunpack.c.l.bf16 %v67
  %v230 = vunpack.c.l.bf16 %v70
  %v231 = vunpack.c.l.bf16 %v71
  %v232 = vunpack.c.l.bf16 %v74
  %v233 = vunpack.c.l.bf16 %v75
  %v234 = vunpack.c.l.bf16 %v78
  %v235 = vunpack.c.l.bf16 %v79
  %v236 = vunpack.c.l.bf16 %v82
  %v237 = vunpack.c.l.bf16 %v83
  %v238 = vunpack.c.l.bf16 %v86
  %v239 = vunpack.c.l.bf16 %v87
  %v240 = vunpack.c.l.bf16 %v90
  %v241 = vunpack.c.l.bf16 %v91
  %v242 = vunpack.c.l.bf16 %v94
  %v243 = vunpack.c.l.bf16 %v95
  %v244 = vunpack.c.l.bf16 %v98
  %v245 = vunpack.c.l.bf16 %v99
  %v246 = vunpack.c.l.bf16 %v102
  %v247 = vunpack.c.l.bf16 %v103
  %v248 = vunpack.c.l.bf16 %v106
  %v249 = vunpack.c.l.bf16 %v107
  %v250 = vunpack.c.l.bf16 %v110
  %v251 = vunpack.c.l.bf16 %v111
  %v252 = vunpack.c.l.bf16 %v114
  %v253 = vunpack.c.l.bf16 %v115
  %v254 = vunpack.c.l.bf16 %v118
  %v255 = vunpack.c.l.bf16 %v119
  %v256 = vunpack.c.l.bf16 %v122
  %v257 = vunpack.c.l.bf16 %v123
  %v258 = vunpack.c.l.bf16 %v126
  %v259 = vunpack.c.l.bf16 %v127
  %v260 = vunpack.c.l.bf16 %v130
  %v261 = vunpack.c.l.bf16 %v131
  %v262 = vunpack.c.l.bf16 %v134
  %v263 = vunpack.c.l.bf16 %v135
  %v264 = vmax.f32 %v136, %v200
  %v265 = vmax.f32 %v137, %v201
  %v266 = vmax.f32 %v138, %v202
  %v267 = vmax.f32 %v139, %v203
  %v268 = vmax.f32 %v140, %v204
  %v269 = vmax.f32 %v141, %v205
  %v270 = vmax.f32 %v142, %v206
  %v271 = vmax.f32 %v143, %v207
  %v272 = vmax.f32 %v144, %v208
  %v273 = vmax.f32 %v145, %v209
  %v274 = vmax.f32 %v146, %v210
  %v275 = vmax.f32 %v147, %v211
  %v276 = vmax.f32 %v148, %v212
  %v277 = vmax.f32 %v149, %v213
  %v278 = vmax.f32 %v150, %v214
  %v279 = vmax.f32 %v151, %v215
  %v280 = vmax.f32 %v152, %v216
  %v281 = vmax.f32 %v153, %v217
  %v282 = vmax.f32 %v154, %v218
  %v283 = vmax.f32 %v155, %v219
  %v284 = vmax.f32 %v156, %v220
  %v285 = vmax.f32 %v157, %v221
  %v286 = vmax.f32 %v158, %v222
  %v287 = vmax.f32 %v159, %v223
  %v288 = vmax.f32 %v160, %v224
  %v289 = vmax.f32 %v161, %v225
  %v290 = vmax.f32 %v162, %v226
  %v291 = vmax.f32 %v163, %v227
  %v292 = vmax.f32 %v164, %v228
  %v293 = vmax.f32 %v165, %v229
  %v294 = vmax.f32 %v166, %v230
  %v295 = vmax.f32 %v167, %v231
  %v296 = vmax.f32 %v168, %v232
  %v297 = vmax.f32 %v169, %v233
  %v298 = vmax.f32 %v170, %v234
  %v299 = vmax.f32 %v171, %v235
  %v300 = vmax.f32 %v172, %v236
  %v301 = vmax.f32 %v173, %v237
  %v302 = vmax.f32 %v174, %v238
  %v303 = vmax.f32 %v175, %v239
  %v304 = vmax.f32 %v176, %v240
  %v305 = vmax.f32 %v177, %v241
  %v306 = vmax.f32 %v178, %v242
  %v307 = vmax.f32 %v179, %v243
  %v308 = vmax.f32 %v180, %v244
  %v309 = vmax.f32 %v181, %v245
  %v310 = vmax.f32 %v182, %v246
  %v311 = vmax.f32 %v183, %v247
  %v312 = vmax.f32 %v184, %v248
  %v313 = vmax.f32 %v185, %v249
  %v314 = vmax.f32 %v186, %v250
  %v315 = vmax.f32 %v187, %v251
  %v316 = vmax.f32 %v188, %v252
  %v317 = vmax.f32 %v189, %v253
  %v318 = vmax.f32 %v190, %v254
  %v319 = vmax.f32 %v191, %v255
  %v320 = vmax.f32 %v192, %v256
  %v321 = vmax.f32 %v193, %v257
  %v322 = vmax.f32 %v194, %v258
  %v323 = vmax.f32 %v195, %v259
  %v324 = vmax.f32 %v196, %v260
  %v325 = vmax.f32 %v197, %v261
  %v326 = vmax.f32 %v198, %v262
  %v327 = vmax.f32 %v199, %v263
  %v328 = vpack.c.bf16 %v264, %v264
  %v329 = vpack.c.bf16 %v265, %v265
  %v330 = vpack.c.bf16 %v266, %v266
  %v331 = vpack.c.bf16 %v267, %v267
  %v332 = vpack.c.bf16 %v268, %v268
  %v333 = vpack.c.bf16 %v269, %v269
  %v334 = vpack.c.bf16 %v270, %v270
  %v335 = vpack.c.bf16 %v271, %v271
  %v336 = vpack.c.bf16 %v272, %v272
  %v337 = vpack.c.bf16 %v273, %v273
  %v338 = vpack.c.bf16 %v274, %v274
  %v339 = vpack.c.bf16 %v275, %v275
  %v340 = vpack.c.bf16 %v276, %v276
  %v341 = vpack.c.bf16 %v277, %v277
  %v342 = vpack.c.bf16 %v278, %v278
  %v343 = vpack.c.bf16 %v279, %v279
  %v344 = vpack.c.bf16 %v280, %v280
  %v345 = vpack.c.bf16 %v281, %v281
  %v346 = vpack.c.bf16 %v282, %v282
  %v347 = vpack.c.bf16 %v283, %v283
  %v348 = vpack.c.bf16 %v284, %v284
  %v349 = vpack.c.bf16 %v285, %v285
  %v350 = vpack.c.bf16 %v286, %v286
  %v351 = vpack.c.bf16 %v287, %v287
  %v352 = vpack.c.bf16 %v288, %v288
  %v353 = vpack.c.bf16 %v289, %v289
  %v354 = vpack.c.bf16 %v290, %v290
  %v355 = vpack.c.bf16 %v291, %v291
  %v356 = vpack.c.bf16 %v292, %v292
  %v357 = vpack.c.bf16 %v293, %v293
  %v358 = vpack.c.bf16 %v294, %v294
  %v359 = vpack.c.bf16 %v295, %v295
  %v360 = vpack.c.bf16 %v296, %v296
  %v361 = vpack.c.bf16 %v297, %v297
  %v362 = vpack.c.bf16 %v298, %v298
  %v363 = vpack.c.bf16 %v299, %v299
  %v364 = vpack.c.bf16 %v300, %v300
  %v365 = vpack.c.bf16 %v301, %v301
  %v366 = vpack.c.bf16 %v302, %v302
  %v367 = vpack.c.bf16 %v303, %v303
  %v368 = vpack.c.bf16 %v304, %v304
  %v369 = vpack.c.bf16 %v305, %v305
  %v370 = vpack.c.bf16 %v306, %v306
  %v371 = vpack.c.bf16 %v307, %v307
  %v372 = vpack.c.bf16 %v308, %v308
  %v373 = vpack.c.bf16 %v309, %v309
  %v374 = vpack.c.bf16 %v310, %v310
  %v375 = vpack.c.bf16 %v311, %v311
  %v376 = vpack.c.bf16 %v312, %v312
  %v377 = vpack.c.bf16 %v313, %v313
  %v378 = vpack.c.bf16 %v314, %v314
  %v379 = vpack.c.bf16 %v315, %v315
  %v380 = vpack.c.bf16 %v316, %v316
  %v381 = vpack.c.bf16 %v317, %v317
  %v382 = vpack.c.bf16 %v318, %v318
  %v383 = vpack.c.bf16 %v319, %v319
  %v384 = vpack.c.bf16 %v320, %v320
  %v385 = vpack.c.bf16 %v321, %v321
  %v386 = vpack.c.bf16 %v322, %v322
  %v387 = vpack.c.bf16 %v323, %v323
  %v388 = vpack.c.bf16 %v324, %v324
  %v389 = vpack.c.bf16 %v325, %v325
  %v390 = vpack.c.bf16 %v326, %v326
  %v391 = vpack.c.bf16 %v327, %v327
  %v392 = vunpack.c.l.bf16 %v328
  %v393 = vunpack.c.l.bf16 %v329
  %v394 = vunpack.c.l.bf16 %v330
  %v395 = vunpack.c.l.bf16 %v331
  %v396 = vunpack.c.l.bf16 %v332
  %v397 = vunpack.c.l.bf16 %v333
  %v398 = vunpack.c.l.bf16 %v334
  %v399 = vunpack.c.l.bf16 %v335
  %v400 = vunpack.c.l.bf16 %v336
  %v401 = vunpack.c.l.bf16 %v337
  %v402 = vunpack.c.l.bf16 %v338
  %v403 = vunpack.c.l.bf16 %v339
  %v404 = vunpack.c.l.bf16 %v340
  %v405 = vunpack.c.l.bf16 %v341
  %v406 = vunpack.c.l.bf16 %v342
  %v407 = vunpack.c.l.bf16 %v343
  %v408 = vunpack.c.l.bf16 %v344
  %v409 = vunpack.c.l.bf16 %v345
  %v410 = vunpack.c.l.bf16 %v346
  %v411 = vunpack.c.l.bf16 %v347
  %v412 = vunpack.c.l.bf16 %v348
  %v413 = vunpack.c.l.bf16 %v349
  %v414 = vunpack.c.l.bf16 %v350
  %v415 = vunpack.c.l.bf16 %v351
  %v416 = vunpack.c.l.bf16 %v352
  %v417 = vunpack.c.l.bf16 %v353
  %v418 = vunpack.c.l.bf16 %v354
  %v419 = vunpack.c.l.bf16 %v355
  %v420 = vunpack.c.l.bf16 %v356
  %v421 = vunpack.c.l.bf16 %v357
  %v422 = vunpack.c.l.bf16 %v358
  %v423 = vunpack.c.l.bf16 %v359
  %v424 = vunpack.c.l.bf16 %v360
  %v425 = vunpack.c.l.bf16 %v361
  %v426 = vunpack.c.l.bf16 %v362
  %v427 = vunpack.c.l.bf16 %v363
  %v428 = vunpack.c.l.bf16 %v364
  %v429 = vunpack.c.l.bf16 %v365
  %v430 = vunpack.c.l.bf16 %v366
  %v431 = vunpack.c.l.bf16 %v367
  %v432 = vunpack.c.l.bf16 %v368
  %v433 = vunpack.c.l.bf16 %v369
  %v434 = vunpack.c.l.bf16 %v370
  %v435 = vunpack.c.l.bf16 %v371
  %v436 = vunpack.c.l.bf16 %v372
  %v437 = vunpack.c.l.bf16 %v373
  %v438 = vunpack.c.l.bf16 %v374
  %v439 = vunpack.c.l.bf16 %v375
  %v440 = vunpack.c.l.bf16 %v376
  %v441 = vunpack.c.l.bf16 %v377
  %v442 = vunpack.c.l.bf16 %v378
  %v443 = vunpack.c.l.bf16 %v379
  %v444 = vunpack.c.l.bf16 %v380
  %v445 = vunpack.c.l.bf16 %v381
  %v446 = vunpack.c.l.bf16 %v382
  %v447 = vunpack.c.l.bf16 %v383
  %v448 = vunpack.c.l.bf16 %v384
  %v449 = vunpack.c.l.bf16 %v385
  %v450 = vunpack.c.l.bf16 %v386
  %v451 = vunpack.c.l.bf16 %v387
  %v452 = vunpack.c.l.bf16 %v388
  %v453 = vunpack.c.l.bf16 %v389
  %v454 = vunpack.c.l.bf16 %v390
  %v455 = vunpack.c.l.bf16 %v391
  %520 = vrot.lane.b32.xlu0 %v392, 120
  %v521 = vpop.permute.xlu0 %520
  %522 = vrot.lane.b32.xlu0 %v393, 120
  %v523 = vpop.permute.xlu0 %522
  %524 = vrot.lane.b32.xlu0 %v394, 120
  %v525 = vpop.permute.xlu0 %524
  %526 = vrot.lane.b32.xlu0 %v395, 120
  %v527 = vpop.permute.xlu0 %526
  %528 = vrot.lane.b32.xlu0 %v396, 120
  %v529 = vpop.permute.xlu0 %528
  %530 = vrot.lane.b32.xlu0 %v397, 120
  %v531 = vpop.permute.xlu0 %530
  %532 = vrot.lane.b32.xlu0 %v398, 120
  %v533 = vpop.permute.xlu0 %532
  %534 = vrot.lane.b32.xlu0 %v399, 120
  %v535 = vpop.permute.xlu0 %534
  %536 = vrot.lane.b32.xlu0 %v400, 120
  %v537 = vpop.permute.xlu0 %536
  %538 = vrot.lane.b32.xlu0 %v401, 120
  %v539 = vpop.permute.xlu0 %538
  %540 = vrot.lane.b32.xlu0 %v402, 120
  %v541 = vpop.permute.xlu0 %540
  %542 = vrot.lane.b32.xlu0 %v403, 120
  %v543 = vpop.permute.xlu0 %542
  %544 = vrot.lane.b32.xlu0 %v404, 120
  %v545 = vpop.permute.xlu0 %544
  %546 = vrot.lane.b32.xlu0 %v405, 120
  %v547 = vpop.permute.xlu0 %546
  %548 = vrot.lane.b32.xlu0 %v406, 120
  %v549 = vpop.permute.xlu0 %548
  %550 = vrot.lane.b32.xlu0 %v407, 120
  %v551 = vpop.permute.xlu0 %550
  %552 = vrot.lane.b32.xlu0 %v408, 120
  %v553 = vpop.permute.xlu0 %552
  %554 = vrot.lane.b32.xlu0 %v409, 120
  %v555 = vpop.permute.xlu0 %554
  %556 = vrot.lane.b32.xlu0 %v410, 120
  %v557 = vpop.permute.xlu0 %556
  %558 = vrot.lane.b32.xlu0 %v411, 120
  %v559 = vpop.permute.xlu0 %558
  %560 = vrot.lane.b32.xlu0 %v412, 120
  %v561 = vpop.permute.xlu0 %560
  %562 = vrot.lane.b32.xlu0 %v413, 120
  %v563 = vpop.permute.xlu0 %562
  %564 = vrot.lane.b32.xlu0 %v414, 120
  %v565 = vpop.permute.xlu0 %564
  %566 = vrot.lane.b32.xlu0 %v415, 120
  %v567 = vpop.permute.xlu0 %566
  %568 = vrot.lane.b32.xlu0 %v416, 120
  %v569 = vpop.permute.xlu0 %568
  %570 = vrot.lane.b32.xlu0 %v417, 120
  %v571 = vpop.permute.xlu0 %570
  %572 = vrot.lane.b32.xlu0 %v418, 120
  %v573 = vpop.permute.xlu0 %572
  %574 = vrot.lane.b32.xlu0 %v419, 120
  %v575 = vpop.permute.xlu0 %574
  %576 = vrot.lane.b32.xlu0 %v420, 120
  %v577 = vpop.permute.xlu0 %576
  %578 = vrot.lane.b32.xlu0 %v421, 120
  %v579 = vpop.permute.xlu0 %578
  %580 = vrot.lane.b32.xlu0 %v422, 120
  %v581 = vpop.permute.xlu0 %580
  %582 = vrot.lane.b32.xlu0 %v423, 120
  %v583 = vpop.permute.xlu0 %582
  %584 = vrot.lane.b32.xlu0 %v424, 120
  %v585 = vpop.permute.xlu0 %584
  %586 = vrot.lane.b32.xlu0 %v425, 120
  %v587 = vpop.permute.xlu0 %586
  %588 = vrot.lane.b32.xlu0 %v426, 120
  %v589 = vpop.permute.xlu0 %588
  %590 = vrot.lane.b32.xlu0 %v427, 120
  %v591 = vpop.permute.xlu0 %590
  %592 = vrot.lane.b32.xlu0 %v428, 120
  %v593 = vpop.permute.xlu0 %592
  %594 = vrot.lane.b32.xlu0 %v429, 120
  %v595 = vpop.permute.xlu0 %594
  %596 = vrot.lane.b32.xlu0 %v430, 120
  %v597 = vpop.permute.xlu0 %596
  %598 = vrot.lane.b32.xlu0 %v431, 120
  %v599 = vpop.permute.xlu0 %598
  %600 = vrot.lane.b32.xlu0 %v432, 120
  %v601 = vpop.permute.xlu0 %600
  %602 = vrot.lane.b32.xlu0 %v433, 120
  %v603 = vpop.permute.xlu0 %602
  %604 = vrot.lane.b32.xlu0 %v434, 120
  %v605 = vpop.permute.xlu0 %604
  %606 = vrot.lane.b32.xlu0 %v435, 120
  %v607 = vpop.permute.xlu0 %606
  %608 = vrot.lane.b32.xlu0 %v436, 120
  %v609 = vpop.permute.xlu0 %608
  %610 = vrot.lane.b32.xlu0 %v437, 120
  %v611 = vpop.permute.xlu0 %610
  %612 = vrot.lane.b32.xlu0 %v438, 120
  %v613 = vpop.permute.xlu0 %612
  %614 = vrot.lane.b32.xlu0 %v439, 120
  %v615 = vpop.permute.xlu0 %614
  %616 = vrot.lane.b32.xlu0 %v440, 120
  %v617 = vpop.permute.xlu0 %616
  %618 = vrot.lane.b32.xlu0 %v441, 120
  %v619 = vpop.permute.xlu0 %618
  %620 = vrot.lane.b32.xlu0 %v442, 120
  %v621 = vpop.permute.xlu0 %620
  %622 = vrot.lane.b32.xlu0 %v443, 120
  %v623 = vpop.permute.xlu0 %622
  %624 = vrot.lane.b32.xlu0 %v444, 120
  %v625 = vpop.permute.xlu0 %624
  %626 = vrot.lane.b32.xlu0 %v445, 120
  %v627 = vpop.permute.xlu0 %626
  %628 = vrot.lane.b32.xlu0 %v446, 120
  %v629 = vpop.permute.xlu0 %628
  %630 = vrot.lane.b32.xlu0 %v447, 120
  %v631 = vpop.permute.xlu0 %630
  %632 = vrot.lane.b32.xlu0 %v448, 120
  %v633 = vpop.permute.xlu0 %632
  %634 = vrot.lane.b32.xlu0 %v449, 120
  %v635 = vpop.permute.xlu0 %634
  %636 = vrot.lane.b32.xlu0 %v450, 120
  %v637 = vpop.permute.xlu0 %636
  %638 = vrot.lane.b32.xlu0 %v451, 120
  %v639 = vpop.permute.xlu0 %638
  %640 = vrot.lane.b32.xlu0 %v452, 120
  %v641 = vpop.permute.xlu0 %640
  %642 = vrot.lane.b32.xlu0 %v453, 120
  %v643 = vpop.permute.xlu0 %642
  %644 = vrot.lane.b32.xlu0 %v454, 120
  %v645 = vpop.permute.xlu0 %644
  %646 = vrot.lane.b32.xlu0 %v455, 120
  %v647 = vpop.permute.xlu0 %646
  %v712 = vmax.f32 %v392, %v521
  %v713 = vmax.f32 %v393, %v523
  %v714 = vmax.f32 %v394, %v525
  %v715 = vmax.f32 %v395, %v527
  %v716 = vmax.f32 %v396, %v529
  %v717 = vmax.f32 %v397, %v531
  %v718 = vmax.f32 %v398, %v533
  %v719 = vmax.f32 %v399, %v535
  %v720 = vmax.f32 %v400, %v537
  %v721 = vmax.f32 %v401, %v539
  %v722 = vmax.f32 %v402, %v541
  %v723 = vmax.f32 %v403, %v543
  %v724 = vmax.f32 %v404, %v545
  %v725 = vmax.f32 %v405, %v547
  %v726 = vmax.f32 %v406, %v549
  %v727 = vmax.f32 %v407, %v551
  %v728 = vmax.f32 %v408, %v553
  %v729 = vmax.f32 %v409, %v555
  %v730 = vmax.f32 %v410, %v557
  %v731 = vmax.f32 %v411, %v559
  %v732 = vmax.f32 %v412, %v561
  %v733 = vmax.f32 %v413, %v563
  %v734 = vmax.f32 %v414, %v565
  %v735 = vmax.f32 %v415, %v567
  %v736 = vmax.f32 %v416, %v569
  %v737 = vmax.f32 %v417, %v571
  %v738 = vmax.f32 %v418, %v573
  %v739 = vmax.f32 %v419, %v575
  %v740 = vmax.f32 %v420, %v577
  %v741 = vmax.f32 %v421, %v579
  %v742 = vmax.f32 %v422, %v581
  %v743 = vmax.f32 %v423, %v583
  %v744 = vmax.f32 %v424, %v585
  %v745 = vmax.f32 %v425, %v587
  %v746 = vmax.f32 %v426, %v589
  %v747 = vmax.f32 %v427, %v591
  %v748 = vmax.f32 %v428, %v593
  %v749 = vmax.f32 %v429, %v595
  %v750 = vmax.f32 %v430, %v597
  %v751 = vmax.f32 %v431, %v599
  %v752 = vmax.f32 %v432, %v601
  %v753 = vmax.f32 %v433, %v603
  %v754 = vmax.f32 %v434, %v605
  %v755 = vmax.f32 %v435, %v607
  %v756 = vmax.f32 %v436, %v609
  %v757 = vmax.f32 %v437, %v611
  %v758 = vmax.f32 %v438, %v613
  %v759 = vmax.f32 %v439, %v615
  %v760 = vmax.f32 %v440, %v617
  %v761 = vmax.f32 %v441, %v619
  %v762 = vmax.f32 %v442, %v621
  %v763 = vmax.f32 %v443, %v623
  %v764 = vmax.f32 %v444, %v625
  %v765 = vmax.f32 %v445, %v627
  %v766 = vmax.f32 %v446, %v629
  %v767 = vmax.f32 %v447, %v631
  %v768 = vmax.f32 %v448, %v633
  %v769 = vmax.f32 %v449, %v635
  %v770 = vmax.f32 %v450, %v637
  %v771 = vmax.f32 %v451, %v639
  %v772 = vmax.f32 %v452, %v641
  %v773 = vmax.f32 %v453, %v643
  %v774 = vmax.f32 %v454, %v645
  %v775 = vmax.f32 %v455, %v647
  %v776 = vpack.c.bf16 %v712, %v712
  %v777 = vpack.c.bf16 %v713, %v713
  %v778 = vpack.c.bf16 %v714, %v714
  %v779 = vpack.c.bf16 %v715, %v715
  %v780 = vpack.c.bf16 %v716, %v716
  %v781 = vpack.c.bf16 %v717, %v717
  %v782 = vpack.c.bf16 %v718, %v718
  %v783 = vpack.c.bf16 %v719, %v719
  %v784 = vpack.c.bf16 %v720, %v720
  %v785 = vpack.c.bf16 %v721, %v721
  %v786 = vpack.c.bf16 %v722, %v722
  %v787 = vpack.c.bf16 %v723, %v723
  %v788 = vpack.c.bf16 %v724, %v724
  %v789 = vpack.c.bf16 %v725, %v725
  %v790 = vpack.c.bf16 %v726, %v726
  %v791 = vpack.c.bf16 %v727, %v727
  %v792 = vpack.c.bf16 %v728, %v728
  %v793 = vpack.c.bf16 %v729, %v729
  %v794 = vpack.c.bf16 %v730, %v730
  %v795 = vpack.c.bf16 %v731, %v731
  %v796 = vpack.c.bf16 %v732, %v732
  %v797 = vpack.c.bf16 %v733, %v733
  %v798 = vpack.c.bf16 %v734, %v734
  %v799 = vpack.c.bf16 %v735, %v735
  %v800 = vpack.c.bf16 %v736, %v736
  %v801 = vpack.c.bf16 %v737, %v737
  %v802 = vpack.c.bf16 %v738, %v738
  %v803 = vpack.c.bf16 %v739, %v739
  %v804 = vpack.c.bf16 %v740, %v740
  %v805 = vpack.c.bf16 %v741, %v741
  %v806 = vpack.c.bf16 %v742, %v742
  %v807 = vpack.c.bf16 %v743, %v743
  %v808 = vpack.c.bf16 %v744, %v744
  %v809 = vpack.c.bf16 %v745, %v745
  %v810 = vpack.c.bf16 %v746, %v746
  %v811 = vpack.c.bf16 %v747, %v747
  %v812 = vpack.c.bf16 %v748, %v748
  %v813 = vpack.c.bf16 %v749, %v749
  %v814 = vpack.c.bf16 %v750, %v750
  %v815 = vpack.c.bf16 %v751, %v751
  %v816 = vpack.c.bf16 %v752, %v752
  %v817 = vpack.c.bf16 %v753, %v753
  %v818 = vpack.c.bf16 %v754, %v754
  %v819 = vpack.c.bf16 %v755, %v755
  %v820 = vpack.c.bf16 %v756, %v756
  %v821 = vpack.c.bf16 %v757, %v757
  %v822 = vpack.c.bf16 %v758, %v758
  %v823 = vpack.c.bf16 %v759, %v759
  %v824 = vpack.c.bf16 %v760, %v760
  %v825 = vpack.c.bf16 %v761, %v761
  %v826 = vpack.c.bf16 %v762, %v762
  %v827 = vpack.c.bf16 %v763, %v763
  %v828 = vpack.c.bf16 %v764, %v764
  %v829 = vpack.c.bf16 %v765, %v765
  %v830 = vpack.c.bf16 %v766, %v766
  %v831 = vpack.c.bf16 %v767, %v767
  %v832 = vpack.c.bf16 %v768, %v768
  %v833 = vpack.c.bf16 %v769, %v769
  %v834 = vpack.c.bf16 %v770, %v770
  %v835 = vpack.c.bf16 %v771, %v771
  %v836 = vpack.c.bf16 %v772, %v772
  %v837 = vpack.c.bf16 %v773, %v773
  %v838 = vpack.c.bf16 %v774, %v774
  %v839 = vpack.c.bf16 %v775, %v775
  %vm840 = vcmask 60416
  %841 = vst.msk [vmem:[%s1] sm:$0xf] %vm840, %v776
  %842 = vst.msk [vmem:[%s1 + $0x4] sm:$0xf] %vm840, %v777
  %843 = vst.msk [vmem:[%s1 + $0x8] sm:$0xf] %vm840, %v778
  %844 = vst.msk [vmem:[%s1 + $0xc] sm:$0xf] %vm840, %v779
  %845 = vst.msk [vmem:[%s1 + $0x10] sm:$0xf] %vm840, %v780
  %846 = vst.msk [vmem:[%s1 + $0x14] sm:$0xf] %vm840, %v781
  %847 = vst.msk [vmem:[%s1 + $0x18] sm:$0xf] %vm840, %v782
  %848 = vst.msk [vmem:[%s1 + $0x1c] sm:$0xf] %vm840, %v783
  %849 = vst.msk [vmem:[%s1 + $0x20] sm:$0xf] %vm840, %v784
  %850 = vst.msk [vmem:[%s1 + $0x24] sm:$0xf] %vm840, %v785
  %851 = vst.msk [vmem:[%s1 + $0x28] sm:$0xf] %vm840, %v786
  %852 = vst.msk [vmem:[%s1 + $0x2c] sm:$0xf] %vm840, %v787
  %853 = vst.msk [vmem:[%s1 + $0x30] sm:$0xf] %vm840, %v788
  %854 = vst.msk [vmem:[%s1 + $0x34] sm:$0xf] %vm840, %v789
  %855 = vst.msk [vmem:[%s1 + $0x38] sm:$0xf] %vm840, %v790
  %856 = vst.msk [vmem:[%s1 + $0x3c] sm:$0xf] %vm840, %v791
  %857 = vst.msk [vmem:[%s1 + $0x40] sm:$0xf] %vm840, %v792
  %858 = vst.msk [vmem:[%s1 + $0x44] sm:$0xf] %vm840, %v793
  %859 = vst.msk [vmem:[%s1 + $0x48] sm:$0xf] %vm840, %v794
  %860 = vst.msk [vmem:[%s1 + $0x4c] sm:$0xf] %vm840, %v795
  %861 = vst.msk [vmem:[%s1 + $0x50] sm:$0xf] %vm840, %v796
  %862 = vst.msk [vmem:[%s1 + $0x54] sm:$0xf] %vm840, %v797
  %863 = vst.msk [vmem:[%s1 + $0x58] sm:$0xf] %vm840, %v798
  %864 = vst.msk [vmem:[%s1 + $0x5c] sm:$0xf] %vm840, %v799
  %865 = vst.msk [vmem:[%s1 + $0x60] sm:$0xf] %vm840, %v800
  %866 = vst.msk [vmem:[%s1 + $0x64] sm:$0xf] %vm840, %v801
  %867 = vst.msk [vmem:[%s1 + $0x68] sm:$0xf] %vm840, %v802
  %868 = vst.msk [vmem:[%s1 + $0x6c] sm:$0xf] %vm840, %v803
  %869 = vst.msk [vmem:[%s1 + $0x70] sm:$0xf] %vm840, %v804
  %870 = vst.msk [vmem:[%s1 + $0x74] sm:$0xf] %vm840, %v805
  %871 = vst.msk [vmem:[%s1 + $0x78] sm:$0xf] %vm840, %v806
  %872 = vst.msk [vmem:[%s1 + $0x7c] sm:$0xf] %vm840, %v807
  %873 = vst.msk [vmem:[%s1 + $0x80] sm:$0xf] %vm840, %v808
  %874 = vst.msk [vmem:[%s1 + $0x84] sm:$0xf] %vm840, %v809
  %875 = vst.msk [vmem:[%s1 + $0x88] sm:$0xf] %vm840, %v810
  %876 = vst.msk [vmem:[%s1 + $0x8c] sm:$0xf] %vm840, %v811
  %877 = vst.msk [vmem:[%s1 + $0x90] sm:$0xf] %vm840, %v812
  %878 = vst.msk [vmem:[%s1 + $0x94] sm:$0xf] %vm840, %v813
  %879 = vst.msk [vmem:[%s1 + $0x98] sm:$0xf] %vm840, %v814
  %880 = vst.msk [vmem:[%s1 + $0x9c] sm:$0xf] %vm840, %v815
  %881 = vst.msk [vmem:[%s1 + $0xa0] sm:$0xf] %vm840, %v816
  %882 = vst.msk [vmem:[%s1 + $0xa4] sm:$0xf] %vm840, %v817
  %883 = vst.msk [vmem:[%s1 + $0xa8] sm:$0xf] %vm840, %v818
  %884 = vst.msk [vmem:[%s1 + $0xac] sm:$0xf] %vm840, %v819
  %885 = vst.msk [vmem:[%s1 + $0xb0] sm:$0xf] %vm840, %v820
  %886 = vst.msk [vmem:[%s1 + $0xb4] sm:$0xf] %vm840, %v821
  %887 = vst.msk [vmem:[%s1 + $0xb8] sm:$0xf] %vm840, %v822
  %888 = vst.msk [vmem:[%s1 + $0xbc] sm:$0xf] %vm840, %v823
  %889 = vst.msk [vmem:[%s1 + $0xc0] sm:$0xf] %vm840, %v824
  %890 = vst.msk [vmem:[%s1 + $0xc4] sm:$0xf] %vm840, %v825
  %891 = vst.msk [vmem:[%s1 + $0xc8] sm:$0xf] %vm840, %v826
  %892 = vst.msk [vmem:[%s1 + $0xcc] sm:$0xf] %vm840, %v827
  %893 = vst.msk [vmem:[%s1 + $0xd0] sm:$0xf] %vm840, %v828
  %894 = vst.msk [vmem:[%s1 + $0xd4] sm:$0xf] %vm840, %v829
  %895 = vst.msk [vmem:[%s1 + $0xd8] sm:$0xf] %vm840, %v830
  %896 = vst.msk [vmem:[%s1 + $0xdc] sm:$0xf] %vm840, %v831
  %897 = vst.msk [vmem:[%s1 + $0xe0] sm:$0xf] %vm840, %v832
  %898 = vst.msk [vmem:[%s1 + $0xe4] sm:$0xf] %vm840, %v833
  %899 = vst.msk [vmem:[%s1 + $0xe8] sm:$0xf] %vm840, %v834
  %900 = vst.msk [vmem:[%s1 + $0xec] sm:$0xf] %vm840, %v835
  %901 = vst.msk [vmem:[%s1 + $0xf0] sm:$0xf] %vm840, %v836
  %902 = vst.msk [vmem:[%s1 + $0xf4] sm:$0xf] %vm840, %v837
  %903 = vst.msk [vmem:[%s1 + $0xf8] sm:$0xf] %vm840, %v838
  %904 = vst.msk [vmem:[%s1 + $0xfc] sm:$0xf] %vm840, %v839
  // Predicated region
  $region6: #{resnet_forward.23} parent=0 // pred_check
    _
  $region7: #{resnet_forward.23} parent=0 // pred_check_branch
    %906 = sbr.rel (0) target = $region9
  $region8: #{resnet_forward.23} parent=0 // pred_region
    _
  $region9: #{resnet_forward.23} parent=0 // pred_fallthru
    _
  // Predicated region
  $region10: #{resnet_forward.23} parent=0 // pred_check
    _
  $region11: #{resnet_forward.23} parent=0 // pred_check_branch
    %908 = sbr.rel (0) target = $region13
  $region12: #{resnet_forward.23} parent=0 // pred_region
    _
  $region13: #{resnet_forward.23} parent=0 // pred_fallthru
    _

// kernel: resnet_forward.25
$region0: #{resnet_forward.25}
  #allocation0 [shape = 'u32[]', space=smem, size = 0x4, offset = 0x4, fixed_abs, tag = 'smem constant byte address 0x4 - core index']
  #allocation1 [shape = 'u32[72,128]{1,0:T(1,128)}', space=vmem, size = 0x9000, scoped, tag = 'internal scratch']
  %s0 = inlined_call_operand.vmem [shape: bf16[512,128], index: 0, kind: input, shape index: {}]
  %s1 = inlined_call_operand.vmem [shape: bf16[128,16], index: 1, kind: input, shape index: {}]
  %s2 = inlined_call_operand.vmem [shape: f32[1,16], index: 2, kind: input, shape index: {}]
  %s3 = inlined_call_operand.vmem [shape: bf16[512,16], index: 3, kind: output, shape index: {}]
  %s4 = sld [smem:[#allocation0]]
  $region22: #{resnet_forward.25} parent=0
    _
  %s6 = ssub.s32 1, %s4
  %s7 = scalar_select 0, %s6, %s4
  // Predicated region
  $region2: #{resnet_forward.25} parent=0 // pred_check
    _
  $region3: #{resnet_forward.25} parent=0 // pred_check_branch
    %9 = sbr.rel (0) target = $region5
  $region4: #{resnet_forward.25} parent=0 // pred_region
    _
  $region5: #{resnet_forward.25} parent=0 // pred_fallthru
    _
  // Predicated region
  $region6: #{resnet_forward.25} parent=0 // pred_check
    _
  $region7: #{resnet_forward.25} parent=0 // pred_check_branch
    %11 = sbr.rel (0) target = $region9
  $region8: #{resnet_forward.25} parent=0 // pred_region
    _
  $region9: #{resnet_forward.25} parent=0 // pred_fallthru
    _
  // Predicated region
  $region10: #{resnet_forward.25} parent=0 // pred_check
    _
  $region11: #{resnet_forward.25} parent=0 // pred_check_branch
    %13 = sbr.rel (0) target = $region13
  $region12: #{resnet_forward.25} parent=0 // pred_region
    _
  $region13: #{resnet_forward.25} parent=0 // pred_fallthru
    _
  %v14 = vld [vmem:[%s0] sm:$0xf]
  %v15 = vld [vmem:[%s0 + $0x4] sm:$0xf]
  %v16 = vld [vmem:[%s0 + $0x8] sm:$0xf]
  %v17 = vld [vmem:[%s0 + $0xc] sm:$0xf]
  %v18 = vld [vmem:[%s0 + $0x10] sm:$0xf]
  %v19 = vld [vmem:[%s0 + $0x14] sm:$0xf]
  %v20 = vld [vmem:[%s0 + $0x18] sm:$0xf]
  %v21 = vld [vmem:[%s0 + $0x1c] sm:$0xf]
  %v22 = vld [vmem:[%s0 + $0x20] sm:$0xf]
  %v23 = vld [vmem:[%s0 + $0x24] sm:$0xf]
  %v24 = vld [vmem:[%s0 + $0x28] sm:$0xf]
  %v25 = vld [vmem:[%s0 + $0x2c] sm:$0xf]
  %v26 = vld [vmem:[%s0 + $0x30] sm:$0xf]
  %v27 = vld [vmem:[%s0 + $0x34] sm:$0xf]
  %v28 = vld [vmem:[%s0 + $0x38] sm:$0xf]
  %v29 = vld [vmem:[%s0 + $0x3c] sm:$0xf]
  %v30 = vld [vmem:[%s0 + $0x40] sm:$0xf]
  %v31 = vld [vmem:[%s0 + $0x44] sm:$0xf]
  %v32 = vld [vmem:[%s0 + $0x48] sm:$0xf]
  %v33 = vld [vmem:[%s0 + $0x4c] sm:$0xf]
  %v34 = vld [vmem:[%s0 + $0x50] sm:$0xf]
  %v35 = vld [vmem:[%s0 + $0x54] sm:$0xf]
  %v36 = vld [vmem:[%s0 + $0x58] sm:$0xf]
  %v37 = vld [vmem:[%s0 + $0x5c] sm:$0xf]
  %v38 = vld [vmem:[%s0 + $0x60] sm:$0xf]
  %v39 = vld [vmem:[%s0 + $0x64] sm:$0xf]
  %v40 = vld [vmem:[%s0 + $0x68] sm:$0xf]
  %v41 = vld [vmem:[%s0 + $0x6c] sm:$0xf]
  %v42 = vld [vmem:[%s0 + $0x70] sm:$0xf]
  %v43 = vld [vmem:[%s0 + $0x74] sm:$0xf]
  %v44 = vld [vmem:[%s0 + $0x78] sm:$0xf]
  %v45 = vld [vmem:[%s0 + $0x7c] sm:$0xf]
  %v46 = vld [vmem:[%s0 + $0x80] sm:$0xf]
  %v47 = vld [vmem:[%s0 + $0x84] sm:$0xf]
  %v48 = vld [vmem:[%s0 + $0x88] sm:$0xf]
  %v49 = vld [vmem:[%s0 + $0x8c] sm:$0xf]
  %v50 = vld [vmem:[%s0 + $0x90] sm:$0xf]
  %v51 = vld [vmem:[%s0 + $0x94] sm:$0xf]
  %v52 = vld [vmem:[%s0 + $0x98] sm:$0xf]
  %v53 = vld [vmem:[%s0 + $0x9c] sm:$0xf]
  %v54 = vld [vmem:[%s0 + $0xa0] sm:$0xf]
  %v55 = vld [vmem:[%s0 + $0xa4] sm:$0xf]
  %v56 = vld [vmem:[%s0 + $0xa8] sm:$0xf]
  %v57 = vld [vmem:[%s0 + $0xac] sm:$0xf]
  %v58 = vld [vmem:[%s0 + $0xb0] sm:$0xf]
  %v59 = vld [vmem:[%s0 + $0xb4] sm:$0xf]
  %v60 = vld [vmem:[%s0 + $0xb8] sm:$0xf]
  %v61 = vld [vmem:[%s0 + $0xbc] sm:$0xf]
  %v62 = vld [vmem:[%s0 + $0xc0] sm:$0xf]
  %v63 = vld [vmem:[%s0 + $0xc4] sm:$0xf]
  %v64 = vld [vmem:[%s0 + $0xc8] sm:$0xf]
  %v65 = vld [vmem:[%s0 + $0xcc] sm:$0xf]
  %v66 = vld [vmem:[%s0 + $0xd0] sm:$0xf]
  %v67 = vld [vmem:[%s0 + $0xd4] sm:$0xf]
  %v68 = vld [vmem:[%s0 + $0xd8] sm:$0xf]
  %v69 = vld [vmem:[%s0 + $0xdc] sm:$0xf]
  %v70 = vld [vmem:[%s0 + $0xe0] sm:$0xf]
  %v71 = vld [vmem:[%s0 + $0xe4] sm:$0xf]
  %v72 = vld [vmem:[%s0 + $0xe8] sm:$0xf]
  %v73 = vld [vmem:[%s0 + $0xec] sm:$0xf]
  %v74 = vld [vmem:[%s0 + $0xf0] sm:$0xf]
  %v75 = vld [vmem:[%s0 + $0xf4] sm:$0xf]
  %v76 = vld [vmem:[%s0 + $0xf8] sm:$0xf]
  %v77 = vld [vmem:[%s0 + $0xfc] sm:$0xf]
  %v78 = vld [vmem:[%s1] sm:$0xf]
  %v79 = vld [vmem:[%s1 + $0x4] sm:$0xf]
  %v80 = vld [vmem:[%s1 + $0x8] sm:$0xf]
  %v81 = vld [vmem:[%s1 + $0xc] sm:$0xf]
  %v82 = vld [vmem:[%s1 + $0x10] sm:$0xf]
  %v83 = vld [vmem:[%s1 + $0x14] sm:$0xf]
  %v84 = vld [vmem:[%s1 + $0x18] sm:$0xf]
  %v85 = vld [vmem:[%s1 + $0x1c] sm:$0xf]
  %v86 = vld [vmem:[%s1 + $0x20] sm:$0xf]
  %v87 = vld [vmem:[%s1 + $0x24] sm:$0xf]
  %v88 = vld [vmem:[%s1 + $0x28] sm:$0xf]
  %v89 = vld [vmem:[%s1 + $0x2c] sm:$0xf]
  %v90 = vld [vmem:[%s1 + $0x30] sm:$0xf]
  %v91 = vld [vmem:[%s1 + $0x34] sm:$0xf]
  %v92 = vld [vmem:[%s1 + $0x38] sm:$0xf]
  %v93 = vld [vmem:[%s1 + $0x3c] sm:$0xf]
  %v94 = vld [vmem:[%s2] sm:$0x1]
  %v96 = vperm.slane %v94, 0
  %v162 = vunpack.c.l.b16 %v14
  %v163 = vunpack.c.l.b16 %v15
  %v164 = vunpack.c.l.b16 %v16
  %v165 = vunpack.c.l.b16 %v17
  %v166 = vunpack.c.l.b16 %v18
  %v167 = vunpack.c.l.b16 %v19
  %v168 = vunpack.c.l.b16 %v20
  %v169 = vunpack.c.l.b16 %v21
  %v170 = vunpack.c.l.b16 %v22
  %v171 = vunpack.c.l.b16 %v23
  %v172 = vunpack.c.l.b16 %v24
  %v173 = vunpack.c.l.b16 %v25
  %v174 = vunpack.c.l.b16 %v26
  %v175 = vunpack.c.l.b16 %v27
  %v176 = vunpack.c.l.b16 %v28
  %v177 = vunpack.c.l.b16 %v29
  %v178 = vunpack.c.l.b16 %v30
  %v179 = vunpack.c.l.b16 %v31
  %v180 = vunpack.c.l.b16 %v32
  %v181 = vunpack.c.l.b16 %v33
  %v182 = vunpack.c.l.b16 %v34
  %v183 = vunpack.c.l.b16 %v35
  %v184 = vunpack.c.l.b16 %v36
  %v185 = vunpack.c.l.b16 %v37
  %v186 = vunpack.c.l.b16 %v38
  %v187 = vunpack.c.l.b16 %v39
  %v188 = vunpack.c.l.b16 %v40
  %v189 = vunpack.c.l.b16 %v41
  %v190 = vunpack.c.l.b16 %v42
  %v191 = vunpack.c.l.b16 %v43
  %v192 = vunpack.c.l.b16 %v44
  %v193 = vunpack.c.l.b16 %v45
  %v194 = vunpack.c.l.b16 %v46
  %v195 = vunpack.c.l.b16 %v47
  %v196 = vunpack.c.l.b16 %v48
  %v197 = vunpack.c.l.b16 %v49
  %v198 = vunpack.c.l.b16 %v50
  %v199 = vunpack.c.l.b16 %v51
  %v200 = vunpack.c.l.b16 %v52
  %v201 = vunpack.c.l.b16 %v53
  %v202 = vunpack.c.l.b16 %v54
  %v203 = vunpack.c.l.b16 %v55
  %v204 = vunpack.c.l.b16 %v56
  %v205 = vunpack.c.l.b16 %v57
  %v206 = vunpack.c.l.b16 %v58
  %v207 = vunpack.c.l.b16 %v59
  %v208 = vunpack.c.l.b16 %v60
  %v209 = vunpack.c.l.b16 %v61
  %v210 = vunpack.c.l.b16 %v62
  %v211 = vunpack.c.l.b16 %v63
  %v212 = vunpack.c.l.b16 %v64
  %v213 = vunpack.c.l.b16 %v65
  %v214 = vunpack.c.l.b16 %v66
  %v215 = vunpack.c.l.b16 %v67
  %v216 = vunpack.c.l.b16 %v68
  %v217 = vunpack.c.l.b16 %v69
  %v218 = vunpack.c.l.b16 %v70
  %v219 = vunpack.c.l.b16 %v71
  %v220 = vunpack.c.l.b16 %v72
  %v221 = vunpack.c.l.b16 %v73
  %v222 = vunpack.c.l.b16 %v74
  %v223 = vunpack.c.l.b16 %v75
  %v224 = vunpack.c.l.b16 %v76
  %v225 = vunpack.c.l.b16 %v77
  %v226 = vpack.c.b16 %v163, %v162
  %v227 = vpack.c.b16 %v165, %v164
  %v228 = vpack.c.b16 %v167, %v166
  %v229 = vpack.c.b16 %v169, %v168
  %v230 = vpack.c.b16 %v171, %v170
  %v231 = vpack.c.b16 %v173, %v172
  %v232 = vpack.c.b16 %v175, %v174
  %v233 = vpack.c.b16 %v177, %v176
  %v234 = vpack.c.b16 %v179, %v178
  %v235 = vpack.c.b16 %v181, %v180
  %v236 = vpack.c.b16 %v183, %v182
  %v237 = vpack.c.b16 %v185, %v184
  %v238 = vpack.c.b16 %v187, %v186
  %v239 = vpack.c.b16 %v189, %v188
  %v240 = vpack.c.b16 %v191, %v190
  %v241 = vpack.c.b16 %v193, %v192
  %v242 = vpack.c.b16 %v195, %v194
  %v243 = vpack.c.b16 %v197, %v196
  %v244 = vpack.c.b16 %v199, %v198
  %v245 = vpack.c.b16 %v201, %v200
  %v246 = vpack.c.b16 %v203, %v202
  %v247 = vpack.c.b16 %v205, %v204
  %v248 = vpack.c.b16 %v207, %v206
  %v249 = vpack.c.b16 %v209, %v208
  %v250 = vpack.c.b16 %v211, %v210
  %v251 = vpack.c.b16 %v213, %v212
  %v252 = vpack.c.b16 %v215, %v214
  %v253 = vpack.c.b16 %v217, %v216
  %v254 = vpack.c.b16 %v219, %v218
  %v255 = vpack.c.b16 %v221, %v220
  %v256 = vpack.c.b16 %v223, %v222
  %v257 = vpack.c.b16 %v225, %v224
  %v306 = vunpack.c.l.b16 %v78
  %v307 = vunpack.c.l.b16 %v79
  %v308 = vunpack.c.l.b16 %v80
  %v309 = vunpack.c.l.b16 %v81
  %v310 = vunpack.c.l.b16 %v82
  %v311 = vunpack.c.l.b16 %v83
  %v312 = vunpack.c.l.b16 %v84
  %v313 = vunpack.c.l.b16 %v85
  %v314 = vunpack.c.l.b16 %v86
  %v315 = vunpack.c.l.b16 %v87
  %v316 = vunpack.c.l.b16 %v88
  %v317 = vunpack.c.l.b16 %v89
  %v318 = vunpack.c.l.b16 %v90
  %v319 = vunpack.c.l.b16 %v91
  %v320 = vunpack.c.l.b16 %v92
  %v321 = vunpack.c.l.b16 %v93
  %v322 = vpack.c.b16 %v307, %v306
  %v323 = vpack.c.b16 %v309, %v308
  %v324 = vpack.c.b16 %v311, %v310
  %v325 = vpack.c.b16 %v313, %v312
  %v326 = vpack.c.b16 %v315, %v314
  %v327 = vpack.c.b16 %v317, %v316
  %v328 = vpack.c.b16 %v319, %v318
  %v329 = vpack.c.b16 %v321, %v320
  %338 = vmatpush.bf16.msra.mxu0 %v329
  %339 = vmatpush.bf16.msra.mxu0 %v328
  %340 = vmatpush.bf16.msra.mxu0 %v327
  %341 = vmatpush.bf16.msra.mxu0 %v326
  %342 = vmatpush.bf16.msra.mxu0 %v325
  %343 = vmatpush.bf16.msra.mxu0 %v324
  %344 = vmatpush.bf16.msra.mxu0 %v323
  %345 = vmatpush.bf16.msra.mxu0 %v322
  %346 = vmatmul.bf16.gmra.mxu0 %v226
  %v347 = vpop.f32.mrf.mxu0
  %v348 = vadd.f32 %v96, %v347
  %v349 = vpop.f32.mrf.mxu0
  %v350 = vadd.f32 %v96, %v349
  %351 = vmatmul.bf16.gmra.mxu0 %v227
  %v352 = vpop.f32.mrf.mxu0
  %v353 = vadd.f32 %v96, %v352
  %v354 = vpop.f32.mrf.mxu0
  %v355 = vadd.f32 %v96, %v354
  %356 = vmatmul.bf16.gmra.mxu0 %v228
  %v357 = vpop.f32.mrf.mxu0
  %v358 = vadd.f32 %v96, %v357
  %v359 = vpop.f32.mrf.mxu0
  %v360 = vadd.f32 %v96, %v359
  %361 = vmatmul.bf16.gmra.mxu0 %v229
  %v362 = vpop.f32.mrf.mxu0
  %v363 = vadd.f32 %v96, %v362
  %v364 = vpop.f32.mrf.mxu0
  %v365 = vadd.f32 %v96, %v364
  %366 = vmatmul.bf16.gmra.mxu0 %v230
  %v367 = vpop.f32.mrf.mxu0
  %v368 = vadd.f32 %v96, %v367
  %v369 = vpop.f32.mrf.mxu0
  %v370 = vadd.f32 %v96, %v369
  %371 = vmatmul.bf16.gmra.mxu0 %v231
  %v372 = vpop.f32.mrf.mxu0
  %v373 = vadd.f32 %v96, %v372
  %v374 = vpop.f32.mrf.mxu0
  %v375 = vadd.f32 %v96, %v374
  %376 = vmatmul.bf16.gmra.mxu0 %v232
  %v377 = vpop.f32.mrf.mxu0
  %v378 = vadd.f32 %v96, %v377
  %v379 = vpop.f32.mrf.mxu0
  %v380 = vadd.f32 %v96, %v379
  %381 = vmatmul.bf16.gmra.mxu0 %v233
  %v382 = vpop.f32.mrf.mxu0
  %v383 = vadd.f32 %v96, %v382
  %v384 = vpop.f32.mrf.mxu0
  %v385 = vadd.f32 %v96, %v384
  %386 = vmatmul.bf16.gmra.mxu0 %v234
  %v387 = vpop.f32.mrf.mxu0
  %v388 = vadd.f32 %v96, %v387
  %v389 = vpop.f32.mrf.mxu0
  %v390 = vadd.f32 %v96, %v389
  %391 = vmatmul.bf16.gmra.mxu0 %v235
  %v392 = vpop.f32.mrf.mxu0
  %v393 = vadd.f32 %v96, %v392
  %v394 = vpop.f32.mrf.mxu0
  %v395 = vadd.f32 %v96, %v394
  %396 = vmatmul.bf16.gmra.mxu0 %v236
  %v397 = vpop.f32.mrf.mxu0
  %v398 = vadd.f32 %v96, %v397
  %v399 = vpop.f32.mrf.mxu0
  %v400 = vadd.f32 %v96, %v399
  %401 = vmatmul.bf16.gmra.mxu0 %v237
  %v402 = vpop.f32.mrf.mxu0
  %v403 = vadd.f32 %v96, %v402
  %v404 = vpop.f32.mrf.mxu0
  %v405 = vadd.f32 %v96, %v404
  %406 = vmatmul.bf16.gmra.mxu0 %v238
  %v407 = vpop.f32.mrf.mxu0
  %v408 = vadd.f32 %v96, %v407
  %v409 = vpop.f32.mrf.mxu0
  %v410 = vadd.f32 %v96, %v409
  %411 = vmatmul.bf16.gmra.mxu0 %v239
  %v412 = vpop.f32.mrf.mxu0
  %v413 = vadd.f32 %v96, %v412
  %v414 = vpop.f32.mrf.mxu0
  %v415 = vadd.f32 %v96, %v414
  %416 = vmatmul.bf16.gmra.mxu0 %v240
  %v417 = vpop.f32.mrf.mxu0
  %v418 = vadd.f32 %v96, %v417
  %v419 = vpop.f32.mrf.mxu0
  %v420 = vadd.f32 %v96, %v419
  %421 = vmatmul.bf16.gmra.mxu0 %v241
  %v422 = vpop.f32.mrf.mxu0
  %v423 = vadd.f32 %v96, %v422
  %v424 = vpop.f32.mrf.mxu0
  %v425 = vadd.f32 %v96, %v424
  %426 = vmatmul.bf16.gmra.mxu0 %v242
  %v427 = vpop.f32.mrf.mxu0
  %v428 = vadd.f32 %v96, %v427
  %v429 = vpop.f32.mrf.mxu0
  %v430 = vadd.f32 %v96, %v429
  %431 = vmatmul.bf16.gmra.mxu0 %v243
  %v432 = vpop.f32.mrf.mxu0
  %v433 = vadd.f32 %v96, %v432
  %v434 = vpop.f32.mrf.mxu0
  %v435 = vadd.f32 %v96, %v434
  %436 = vmatmul.bf16.gmra.mxu0 %v244
  %v437 = vpop.f32.mrf.mxu0
  %v438 = vadd.f32 %v96, %v437
  %v439 = vpop.f32.mrf.mxu0
  %v440 = vadd.f32 %v96, %v439
  %441 = vmatmul.bf16.gmra.mxu0 %v245
  %v442 = vpop.f32.mrf.mxu0
  %v443 = vadd.f32 %v96, %v442
  %v444 = vpop.f32.mrf.mxu0
  %v445 = vadd.f32 %v96, %v444
  %446 = vmatmul.bf16.gmra.mxu0 %v246
  %v447 = vpop.f32.mrf.mxu0
  %v448 = vadd.f32 %v96, %v447
  %v449 = vpop.f32.mrf.mxu0
  %v450 = vadd.f32 %v96, %v449
  %451 = vmatmul.bf16.gmra.mxu0 %v247
  %v452 = vpop.f32.mrf.mxu0
  %v453 = vadd.f32 %v96, %v452
  %v454 = vpop.f32.mrf.mxu0
  %v455 = vadd.f32 %v96, %v454
  %456 = vmatmul.bf16.gmra.mxu0 %v248
  %v457 = vpop.f32.mrf.mxu0
  %v458 = vadd.f32 %v96, %v457
  %v459 = vpop.f32.mrf.mxu0
  %v460 = vadd.f32 %v96, %v459
  %461 = vmatmul.bf16.gmra.mxu0 %v249
  %v462 = vpop.f32.mrf.mxu0
  %v463 = vadd.f32 %v96, %v462
  %v464 = vpop.f32.mrf.mxu0
  %v465 = vadd.f32 %v96, %v464
  %466 = vmatmul.bf16.gmra.mxu0 %v250
  %v467 = vpop.f32.mrf.mxu0
  %v468 = vadd.f32 %v96, %v467
  %v469 = vpop.f32.mrf.mxu0
  %v470 = vadd.f32 %v96, %v469
  %471 = vmatmul.bf16.gmra.mxu0 %v251
  %v472 = vpop.f32.mrf.mxu0
  %v473 = vadd.f32 %v96, %v472
  %v474 = vpop.f32.mrf.mxu0
  %v475 = vadd.f32 %v96, %v474
  %476 = vmatmul.bf16.gmra.mxu0 %v252
  %v477 = vpop.f32.mrf.mxu0
  %v478 = vadd.f32 %v96, %v477
  %v479 = vpop.f32.mrf.mxu0
  %v480 = vadd.f32 %v96, %v479
  %481 = vmatmul.bf16.gmra.mxu0 %v253
  %v482 = vpop.f32.mrf.mxu0
  %v483 = vadd.f32 %v96, %v482
  %v484 = vpop.f32.mrf.mxu0
  %v485 = vadd.f32 %v96, %v484
  %486 = vmatmul.bf16.gmra.mxu0 %v254
  %v487 = vpop.f32.mrf.mxu0
  %v488 = vadd.f32 %v96, %v487
  %v489 = vpop.f32.mrf.mxu0
  %v490 = vadd.f32 %v96, %v489
  %491 = vmatmul.bf16.gmra.mxu0 %v255
  %v492 = vpop.f32.mrf.mxu0
  %v493 = vadd.f32 %v96, %v492
  %v494 = vpop.f32.mrf.mxu0
  %v495 = vadd.f32 %v96, %v494
  %496 = vmatmul.bf16.gmra.mxu0 %v256
  %v497 = vpop.f32.mrf.mxu0
  %v498 = vadd.f32 %v96, %v497
  %v499 = vpop.f32.mrf.mxu0
  %v500 = vadd.f32 %v96, %v499
  %501 = vmatmul.bf16.gmra.mxu0 %v257
  %v502 = vpop.f32.mrf.mxu0
  %v503 = vadd.f32 %v96, %v502
  %v504 = vpop.f32.mrf.mxu0
  %v505 = vadd.f32 %v96, %v504
  %506 = vdwg.mxu0
  %v507 = vmax.f32 %v348, 0.0
  %v508 = vmax.f32 %v350, 0.0
  %v509 = vmax.f32 %v353, 0.0
  %v510 = vmax.f32 %v355, 0.0
  %v511 = vmax.f32 %v358, 0.0
  %v512 = vmax.f32 %v360, 0.0
  %v513 = vmax.f32 %v363, 0.0
  %v514 = vmax.f32 %v365, 0.0
  %v515 = vmax.f32 %v368, 0.0
  %v516 = vmax.f32 %v370, 0.0
  %v517 = vmax.f32 %v373, 0.0
  %v518 = vmax.f32 %v375, 0.0
  %v519 = vmax.f32 %v378, 0.0
  %v520 = vmax.f32 %v380, 0.0
  %v521 = vmax.f32 %v383, 0.0
  %v522 = vmax.f32 %v385, 0.0
  %v523 = vmax.f32 %v388, 0.0
  %v524 = vmax.f32 %v390, 0.0
  %v525 = vmax.f32 %v393, 0.0
  %v526 = vmax.f32 %v395, 0.0
  %v527 = vmax.f32 %v398, 0.0
  %v528 = vmax.f32 %v400, 0.0
  %v529 = vmax.f32 %v403, 0.0
  %v530 = vmax.f32 %v405, 0.0
  %v531 = vmax.f32 %v408, 0.0
  %v532 = vmax.f32 %v410, 0.0
  %v533 = vmax.f32 %v413, 0.0
  %v534 = vmax.f32 %v415, 0.0
  %v535 = vmax.f32 %v418, 0.0
  %v536 = vmax.f32 %v420, 0.0
  %v537 = vmax.f32 %v423, 0.0
  %v538 = vmax.f32 %v425, 0.0
  %v539 = vmax.f32 %v428, 0.0
  %v540 = vmax.f32 %v430, 0.0
  %v541 = vmax.f32 %v433, 0.0
  %v542 = vmax.f32 %v435, 0.0
  %v543 = vmax.f32 %v438, 0.0
  %v544 = vmax.f32 %v440, 0.0
  %v545 = vmax.f32 %v443, 0.0
  %v546 = vmax.f32 %v445, 0.0
  %v547 = vmax.f32 %v448, 0.0
  %v548 = vmax.f32 %v450, 0.0
  %v549 = vmax.f32 %v453, 0.0
  %v550 = vmax.f32 %v455, 0.0
  %v551 = vmax.f32 %v458, 0.0
  %v552 = vmax.f32 %v460, 0.0
  %v553 = vmax.f32 %v463, 0.0
  %v554 = vmax.f32 %v465, 0.0
  %v555 = vmax.f32 %v468, 0.0
  %v556 = vmax.f32 %v470, 0.0
  %v557 = vmax.f32 %v473, 0.0
  %v558 = vmax.f32 %v475, 0.0
  %v559 = vmax.f32 %v478, 0.0
  %v560 = vmax.f32 %v480, 0.0
  %v561 = vmax.f32 %v483, 0.0
  %v562 = vmax.f32 %v485, 0.0
  %v563 = vmax.f32 %v488, 0.0
  %v564 = vmax.f32 %v490, 0.0
  %v565 = vmax.f32 %v493, 0.0
  %v566 = vmax.f32 %v495, 0.0
  %v567 = vmax.f32 %v498, 0.0
  %v568 = vmax.f32 %v500, 0.0
  %v569 = vmax.f32 %v503, 0.0
  %v570 = vmax.f32 %v505, 0.0
  %v571 = vpack.c.bf16 %v507, %v507
  %v572 = vpack.c.bf16 %v508, %v508
  %v573 = vpack.c.bf16 %v509, %v509
  %v574 = vpack.c.bf16 %v510, %v510
  %v575 = vpack.c.bf16 %v511, %v511
  %v576 = vpack.c.bf16 %v512, %v512
  %v577 = vpack.c.bf16 %v513, %v513
  %v578 = vpack.c.bf16 %v514, %v514
  %v579 = vpack.c.bf16 %v515, %v515
  %v580 = vpack.c.bf16 %v516, %v516
  %v581 = vpack.c.bf16 %v517, %v517
  %v582 = vpack.c.bf16 %v518, %v518
  %v583 = vpack.c.bf16 %v519, %v519
  %v584 = vpack.c.bf16 %v520, %v520
  %v585 = vpack.c.bf16 %v521, %v521
  %v586 = vpack.c.bf16 %v522, %v522
  %v587 = vpack.c.bf16 %v523, %v523
  %v588 = vpack.c.bf16 %v524, %v524
  %v589 = vpack.c.bf16 %v525, %v525
  %v590 = vpack.c.bf16 %v526, %v526
  %v591 = vpack.c.bf16 %v527, %v527
  %v592 = vpack.c.bf16 %v528, %v528
  %v593 = vpack.c.bf16 %v529, %v529
  %v594 = vpack.c.bf16 %v530, %v530
  %v595 = vpack.c.bf16 %v531, %v531
  %v596 = vpack.c.bf16 %v532, %v532
  %v597 = vpack.c.bf16 %v533, %v533
  %v598 = vpack.c.bf16 %v534, %v534
  %v599 = vpack.c.bf16 %v535, %v535
  %v600 = vpack.c.bf16 %v536, %v536
  %v601 = vpack.c.bf16 %v537, %v537
  %v602 = vpack.c.bf16 %v538, %v538
  %v603 = vpack.c.bf16 %v539, %v539
  %v604 = vpack.c.bf16 %v540, %v540
  %v605 = vpack.c.bf16 %v541, %v541
  %v606 = vpack.c.bf16 %v542, %v542
  %v607 = vpack.c.bf16 %v543, %v543
  %v608 = vpack.c.bf16 %v544, %v544
  %v609 = vpack.c.bf16 %v545, %v545
  %v610 = vpack.c.bf16 %v546, %v546
  %v611 = vpack.c.bf16 %v547, %v547
  %v612 = vpack.c.bf16 %v548, %v548
  %v613 = vpack.c.bf16 %v549, %v549
  %v614 = vpack.c.bf16 %v550, %v550
  %v615 = vpack.c.bf16 %v551, %v551
  %v616 = vpack.c.bf16 %v552, %v552
  %v617 = vpack.c.bf16 %v553, %v553
  %v618 = vpack.c.bf16 %v554, %v554
  %v619 = vpack.c.bf16 %v555, %v555
  %v620 = vpack.c.bf16 %v556, %v556
  %v621 = vpack.c.bf16 %v557, %v557
  %v622 = vpack.c.bf16 %v558, %v558
  %v623 = vpack.c.bf16 %v559, %v559
  %v624 = vpack.c.bf16 %v560, %v560
  %v625 = vpack.c.bf16 %v561, %v561
  %v626 = vpack.c.bf16 %v562, %v562
  %v627 = vpack.c.bf16 %v563, %v563
  %v628 = vpack.c.bf16 %v564, %v564
  %v629 = vpack.c.bf16 %v565, %v565
  %v630 = vpack.c.bf16 %v566, %v566
  %v631 = vpack.c.bf16 %v567, %v567
  %v632 = vpack.c.bf16 %v568, %v568
  %v633 = vpack.c.bf16 %v569, %v569
  %v634 = vpack.c.bf16 %v570, %v570
  %vm635 = vcmask 125952
  %636 = vst.msk [vmem:[%s3] sm:$0xf] %vm635, %v571
  %637 = vst.msk [vmem:[%s3 + $0x4] sm:$0xf] %vm635, %v572
  %638 = vst.msk [vmem:[%s3 + $0x8] sm:$0xf] %vm635, %v573
  %639 = vst.msk [vmem:[%s3 + $0xc] sm:$0xf] %vm635, %v574
  %640 = vst.msk [vmem:[%s3 + $0x10] sm:$0xf] %vm635, %v575
  %641 = vst.msk [vmem:[%s3 + $0x14] sm:$0xf] %vm635, %v576
  %642 = vst.msk [vmem:[%s3 + $0x18] sm:$0xf] %vm635, %v577
  %643 = vst.msk [vmem:[%s3 + $0x1c] sm:$0xf] %vm635, %v578
  %644 = vst.msk [vmem:[%s3 + $0x20] sm:$0xf] %vm635, %v579
  %645 = vst.msk [vmem:[%s3 + $0x24] sm:$0xf] %vm635, %v580
  %646 = vst.msk [vmem:[%s3 + $0x28] sm:$0xf] %vm635, %v581
  %647 = vst.msk [vmem:[%s3 + $0x2c] sm:$0xf] %vm635, %v582
  %648 = vst.msk [vmem:[%s3 + $0x30] sm:$0xf] %vm635, %v583
  %649 = vst.msk [vmem:[%s3 + $0x34] sm:$0xf] %vm635, %v584
  %650 = vst.msk [vmem:[%s3 + $0x38] sm:$0xf] %vm635, %v585
  %651 = vst.msk [vmem:[%s3 + $0x3c] sm:$0xf] %vm635, %v586
  %652 = vst.msk [vmem:[%s3 + $0x40] sm:$0xf] %vm635, %v587
  %653 = vst.msk [vmem:[%s3 + $0x44] sm:$0xf] %vm635, %v588
  %654 = vst.msk [vmem:[%s3 + $0x48] sm:$0xf] %vm635, %v589
  %655 = vst.msk [vmem:[%s3 + $0x4c] sm:$0xf] %vm635, %v590
  %656 = vst.msk [vmem:[%s3 + $0x50] sm:$0xf] %vm635, %v591
  %657 = vst.msk [vmem:[%s3 + $0x54] sm:$0xf] %vm635, %v592
  %658 = vst.msk [vmem:[%s3 + $0x58] sm:$0xf] %vm635, %v593
  %659 = vst.msk [vmem:[%s3 + $0x5c] sm:$0xf] %vm635, %v594
  %660 = vst.msk [vmem:[%s3 + $0x60] sm:$0xf] %vm635, %v595
  %661 = vst.msk [vmem:[%s3 + $0x64] sm:$0xf] %vm635, %v596
  %662 = vst.msk [vmem:[%s3 + $0x68] sm:$0xf] %vm635, %v597
  %663 = vst.msk [vmem:[%s3 + $0x6c] sm:$0xf] %vm635, %v598
  %664 = vst.msk [vmem:[%s3 + $0x70] sm:$0xf] %vm635, %v599
  %665 = vst.msk [vmem:[%s3 + $0x74] sm:$0xf] %vm635, %v600
  %666 = vst.msk [vmem:[%s3 + $0x78] sm:$0xf] %vm635, %v601
  %667 = vst.msk [vmem:[%s3 + $0x7c] sm:$0xf] %vm635, %v602
  %668 = vst.msk [vmem:[%s3 + $0x80] sm:$0xf] %vm635, %v603
  %669 = vst.msk [vmem:[%s3 + $0x84] sm:$0xf] %vm635, %v604
  %670 = vst.msk [vmem:[%s3 + $0x88] sm:$0xf] %vm635, %v605
  %671 = vst.msk [vmem:[%s3 + $0x8c] sm:$0xf] %vm635, %v606
  %672 = vst.msk [vmem:[%s3 + $0x90] sm:$0xf] %vm635, %v607
  %673 = vst.msk [vmem:[%s3 + $0x94] sm:$0xf] %vm635, %v608
  %674 = vst.msk [vmem:[%s3 + $0x98] sm:$0xf] %vm635, %v609
  %675 = vst.msk [vmem:[%s3 + $0x9c] sm:$0xf] %vm635, %v610
  %676 = vst.msk [vmem:[%s3 + $0xa0] sm:$0xf] %vm635, %v611
  %677 = vst.msk [vmem:[%s3 + $0xa4] sm:$0xf] %vm635, %v612
  %678 = vst.msk [vmem:[%s3 + $0xa8] sm:$0xf] %vm635, %v613
  %679 = vst.msk [vmem:[%s3 + $0xac] sm:$0xf] %vm635, %v614
  %680 = vst.msk [vmem:[%s3 + $0xb0] sm:$0xf] %vm635, %v615
  %681 = vst.msk [vmem:[%s3 + $0xb4] sm:$0xf] %vm635, %v616
  %682 = vst.msk [vmem:[%s3 + $0xb8] sm:$0xf] %vm635, %v617
  %683 = vst.msk [vmem:[%s3 + $0xbc] sm:$0xf] %vm635, %v618
  %684 = vst.msk [vmem:[%s3 + $0xc0] sm:$0xf] %vm635, %v619
  %685 = vst.msk [vmem:[%s3 + $0xc4] sm:$0xf] %vm635, %v620
  %686 = vst.msk [vmem:[%s3 + $0xc8] sm:$0xf] %vm635, %v621
  %687 = vst.msk [vmem:[%s3 + $0xcc] sm:$0xf] %vm635, %v622
  %688 = vst.msk [vmem:[%s3 + $0xd0] sm:$0xf] %vm635, %v623
  %689 = vst.msk [vmem:[%s3 + $0xd4] sm:$0xf] %vm635, %v624
  %690 = vst.msk [vmem:[%s3 + $0xd8] sm:$0xf] %vm635, %v625
  %691 = vst.msk [vmem:[%s3 + $0xdc] sm:$0xf] %vm635, %v626
  %692 = vst.msk [vmem:[%s3 + $0xe0] sm:$0xf] %vm635, %v627
  %693 = vst.msk [vmem:[%s3 + $0xe4] sm:$0xf] %vm635, %v628
  %694 = vst.msk [vmem:[%s3 + $0xe8] sm:$0xf] %vm635, %v629
  %695 = vst.msk [vmem:[%s3 + $0xec] sm:$0xf] %vm635, %v630
  %696 = vst.msk [vmem:[%s3 + $0xf0] sm:$0xf] %vm635, %v631
  %697 = vst.msk [vmem:[%s3 + $0xf4] sm:$0xf] %vm635, %v632
  %698 = vst.msk [vmem:[%s3 + $0xf8] sm:$0xf] %vm635, %v633
  %699 = vst.msk [vmem:[%s3 + $0xfc] sm:$0xf] %vm635, %v634
  // Predicated region
  $region14: #{resnet_forward.25} parent=0 // pred_check
    _
  $region15: #{resnet_forward.25} parent=0 // pred_check_branch
    %701 = sbr.rel (0) target = $region17
  $region16: #{resnet_forward.25} parent=0 // pred_region
    _
  $region17: #{resnet_forward.25} parent=0 // pred_fallthru
    _
  // Predicated region
  $region18: #{resnet_forward.25} parent=0 // pred_check
    _
  $region19: #{resnet_forward.25} parent=0 // pred_check_branch
    %703 = sbr.rel (0) target = $region21
  $region20: #{resnet_forward.25} parent=0 // pred_region
    _
  $region21: #{resnet_forward.25} parent=0 // pred_fallthru
    _

// kernel: resnet_forward.24
$region0: #{resnet_forward.24}
  #allocation0 [shape = 'u32[]', space=smem, size = 0x4, offset = 0x4, fixed_abs, tag = 'smem constant byte address 0x4 - core index']
  #allocation1 [shape = 'u32[72,128]{1,0:T(1,128)}', space=vmem, size = 0x9000, scoped, tag = 'internal scratch']
  %s0 = inlined_call_operand.vmem [shape: bf16[512,128], index: 0, kind: input, shape index: {}]
  %s1 = inlined_call_operand.vmem [shape: bf16[128,16], index: 1, kind: input, shape index: {}]
  %s2 = inlined_call_operand.vmem [shape: f32[1,16], index: 2, kind: input, shape index: {}]
  %s3 = inlined_call_operand.vmem [shape: bf16[512,16], index: 3, kind: output, shape index: {}]
  %s4 = sld [smem:[#allocation0]]
  $region22: #{resnet_forward.24} parent=0
    _
  %s6 = ssub.s32 1, %s4
  %s7 = scalar_select 0, %s6, %s4
  // Predicated region
  $region2: #{resnet_forward.24} parent=0 // pred_check
    _
  $region3: #{resnet_forward.24} parent=0 // pred_check_branch
    %9 = sbr.rel (0) target = $region5
  $region4: #{resnet_forward.24} parent=0 // pred_region
    _
  $region5: #{resnet_forward.24} parent=0 // pred_fallthru
    _
  // Predicated region
  $region6: #{resnet_forward.24} parent=0 // pred_check
    _
  $region7: #{resnet_forward.24} parent=0 // pred_check_branch
    %11 = sbr.rel (0) target = $region9
  $region8: #{resnet_forward.24} parent=0 // pred_region
    _
  $region9: #{resnet_forward.24} parent=0 // pred_fallthru
    _
  // Predicated region
  $region10: #{resnet_forward.24} parent=0 // pred_check
    _
  $region11: #{resnet_forward.24} parent=0 // pred_check_branch
    %13 = sbr.rel (0) target = $region13
  $region12: #{resnet_forward.24} parent=0 // pred_region
    _
  $region13: #{resnet_forward.24} parent=0 // pred_fallthru
    _
  %v14 = vld [vmem:[%s0] sm:$0xf]
  %v15 = vld [vmem:[%s0 + $0x4] sm:$0xf]
  %v16 = vld [vmem:[%s0 + $0x8] sm:$0xf]
  %v17 = vld [vmem:[%s0 + $0xc] sm:$0xf]
  %v18 = vld [vmem:[%s0 + $0x10] sm:$0xf]
  %v19 = vld [vmem:[%s0 + $0x14] sm:$0xf]
  %v20 = vld [vmem:[%s0 + $0x18] sm:$0xf]
  %v21 = vld [vmem:[%s0 + $0x1c] sm:$0xf]
  %v22 = vld [vmem:[%s0 + $0x20] sm:$0xf]
  %v23 = vld [vmem:[%s0 + $0x24] sm:$0xf]
  %v24 = vld [vmem:[%s0 + $0x28] sm:$0xf]
  %v25 = vld [vmem:[%s0 + $0x2c] sm:$0xf]
  %v26 = vld [vmem:[%s0 + $0x30] sm:$0xf]
  %v27 = vld [vmem:[%s0 + $0x34] sm:$0xf]
  %v28 = vld [vmem:[%s0 + $0x38] sm:$0xf]
  %v29 = vld [vmem:[%s0 + $0x3c] sm:$0xf]
  %v30 = vld [vmem:[%s0 + $0x40] sm:$0xf]
  %v31 = vld [vmem:[%s0 + $0x44] sm:$0xf]
  %v32 = vld [vmem:[%s0 + $0x48] sm:$0xf]
  %v33 = vld [vmem:[%s0 + $0x4c] sm:$0xf]
  %v34 = vld [vmem:[%s0 + $0x50] sm:$0xf]
  %v35 = vld [vmem:[%s0 + $0x54] sm:$0xf]
  %v36 = vld [vmem:[%s0 + $0x58] sm:$0xf]
  %v37 = vld [vmem:[%s0 + $0x5c] sm:$0xf]
  %v38 = vld [vmem:[%s0 + $0x60] sm:$0xf]
  %v39 = vld [vmem:[%s0 + $0x64] sm:$0xf]
  %v40 = vld [vmem:[%s0 + $0x68] sm:$0xf]
  %v41 = vld [vmem:[%s0 + $0x6c] sm:$0xf]
  %v42 = vld [vmem:[%s0 + $0x70] sm:$0xf]
  %v43 = vld [vmem:[%s0 + $0x74] sm:$0xf]
  %v44 = vld [vmem:[%s0 + $0x78] sm:$0xf]
  %v45 = vld [vmem:[%s0 + $0x7c] sm:$0xf]
  %v46 = vld [vmem:[%s0 + $0x80] sm:$0xf]
  %v47 = vld [vmem:[%s0 + $0x84] sm:$0xf]
  %v48 = vld [vmem:[%s0 + $0x88] sm:$0xf]
  %v49 = vld [vmem:[%s0 + $0x8c] sm:$0xf]
  %v50 = vld [vmem:[%s0 + $0x90] sm:$0xf]
  %v51 = vld [vmem:[%s0 + $0x94] sm:$0xf]
  %v52 = vld [vmem:[%s0 + $0x98] sm:$0xf]
  %v53 = vld [vmem:[%s0 + $0x9c] sm:$0xf]
  %v54 = vld [vmem:[%s0 + $0xa0] sm:$0xf]
  %v55 = vld [vmem:[%s0 + $0xa4] sm:$0xf]
  %v56 = vld [vmem:[%s0 + $0xa8] sm:$0xf]
  %v57 = vld [vmem:[%s0 + $0xac] sm:$0xf]
  %v58 = vld [vmem:[%s0 + $0xb0] sm:$0xf]
  %v59 = vld [vmem:[%s0 + $0xb4] sm:$0xf]
  %v60 = vld [vmem:[%s0 + $0xb8] sm:$0xf]
  %v61 = vld [vmem:[%s0 + $0xbc] sm:$0xf]
  %v62 = vld [vmem:[%s0 + $0xc0] sm:$0xf]
  %v63 = vld [vmem:[%s0 + $0xc4] sm:$0xf]
  %v64 = vld [vmem:[%s0 + $0xc8] sm:$0xf]
  %v65 = vld [vmem:[%s0 + $0xcc] sm:$0xf]
  %v66 = vld [vmem:[%s0 + $0xd0] sm:$0xf]
  %v67 = vld [vmem:[%s0 + $0xd4] sm:$0xf]
  %v68 = vld [vmem:[%s0 + $0xd8] sm:$0xf]
  %v69 = vld [vmem:[%s0 + $0xdc] sm:$0xf]
  %v70 = vld [vmem:[%s0 + $0xe0] sm:$0xf]
  %v71 = vld [vmem:[%s0 + $0xe4] sm:$0xf]
  %v72 = vld [vmem:[%s0 + $0xe8] sm:$0xf]
  %v73 = vld [vmem:[%s0 + $0xec] sm:$0xf]
  %v74 = vld [vmem:[%s0 + $0xf0] sm:$0xf]
  %v75 = vld [vmem:[%s0 + $0xf4] sm:$0xf]
  %v76 = vld [vmem:[%s0 + $0xf8] sm:$0xf]
  %v77 = vld [vmem:[%s0 + $0xfc] sm:$0xf]
  %v78 = vld [vmem:[%s1] sm:$0xf]
  %v79 = vld [vmem:[%s1 + $0x4] sm:$0xf]
  %v80 = vld [vmem:[%s1 + $0x8] sm:$0xf]
  %v81 = vld [vmem:[%s1 + $0xc] sm:$0xf]
  %v82 = vld [vmem:[%s1 + $0x10] sm:$0xf]
  %v83 = vld [vmem:[%s1 + $0x14] sm:$0xf]
  %v84 = vld [vmem:[%s1 + $0x18] sm:$0xf]
  %v85 = vld [vmem:[%s1 + $0x1c] sm:$0xf]
  %v86 = vld [vmem:[%s1 + $0x20] sm:$0xf]
  %v87 = vld [vmem:[%s1 + $0x24] sm:$0xf]
  %v88 = vld [vmem:[%s1 + $0x28] sm:$0xf]
  %v89 = vld [vmem:[%s1 + $0x2c] sm:$0xf]
  %v90 = vld [vmem:[%s1 + $0x30] sm:$0xf]
  %v91 = vld [vmem:[%s1 + $0x34] sm:$0xf]
  %v92 = vld [vmem:[%s1 + $0x38] sm:$0xf]
  %v93 = vld [vmem:[%s1 + $0x3c] sm:$0xf]
  %v94 = vld [vmem:[%s2] sm:$0x1]
  %v96 = vperm.slane %v94, 0
  %v162 = vunpack.c.l.b16 %v14
  %v163 = vunpack.c.l.b16 %v15
  %v164 = vunpack.c.l.b16 %v16
  %v165 = vunpack.c.l.b16 %v17
  %v166 = vunpack.c.l.b16 %v18
  %v167 = vunpack.c.l.b16 %v19
  %v168 = vunpack.c.l.b16 %v20
  %v169 = vunpack.c.l.b16 %v21
  %v170 = vunpack.c.l.b16 %v22
  %v171 = vunpack.c.l.b16 %v23
  %v172 = vunpack.c.l.b16 %v24
  %v173 = vunpack.c.l.b16 %v25
  %v174 = vunpack.c.l.b16 %v26
  %v175 = vunpack.c.l.b16 %v27
  %v176 = vunpack.c.l.b16 %v28
  %v177 = vunpack.c.l.b16 %v29
  %v178 = vunpack.c.l.b16 %v30
  %v179 = vunpack.c.l.b16 %v31
  %v180 = vunpack.c.l.b16 %v32
  %v181 = vunpack.c.l.b16 %v33
  %v182 = vunpack.c.l.b16 %v34
  %v183 = vunpack.c.l.b16 %v35
  %v184 = vunpack.c.l.b16 %v36
  %v185 = vunpack.c.l.b16 %v37
  %v186 = vunpack.c.l.b16 %v38
  %v187 = vunpack.c.l.b16 %v39
  %v188 = vunpack.c.l.b16 %v40
  %v189 = vunpack.c.l.b16 %v41
  %v190 = vunpack.c.l.b16 %v42
  %v191 = vunpack.c.l.b16 %v43
  %v192 = vunpack.c.l.b16 %v44
  %v193 = vunpack.c.l.b16 %v45
  %v194 = vunpack.c.l.b16 %v46
  %v195 = vunpack.c.l.b16 %v47
  %v196 = vunpack.c.l.b16 %v48
  %v197 = vunpack.c.l.b16 %v49
  %v198 = vunpack.c.l.b16 %v50
  %v199 = vunpack.c.l.b16 %v51
  %v200 = vunpack.c.l.b16 %v52
  %v201 = vunpack.c.l.b16 %v53
  %v202 = vunpack.c.l.b16 %v54
  %v203 = vunpack.c.l.b16 %v55
  %v204 = vunpack.c.l.b16 %v56
  %v205 = vunpack.c.l.b16 %v57
  %v206 = vunpack.c.l.b16 %v58
  %v207 = vunpack.c.l.b16 %v59
  %v208 = vunpack.c.l.b16 %v60
  %v209 = vunpack.c.l.b16 %v61
  %v210 = vunpack.c.l.b16 %v62
  %v211 = vunpack.c.l.b16 %v63
  %v212 = vunpack.c.l.b16 %v64
  %v213 = vunpack.c.l.b16 %v65
  %v214 = vunpack.c.l.b16 %v66
  %v215 = vunpack.c.l.b16 %v67
  %v216 = vunpack.c.l.b16 %v68
  %v217 = vunpack.c.l.b16 %v69
  %v218 = vunpack.c.l.b16 %v70
  %v219 = vunpack.c.l.b16 %v71
  %v220 = vunpack.c.l.b16 %v72
  %v221 = vunpack.c.l.b16 %v73
  %v222 = vunpack.c.l.b16 %v74
  %v223 = vunpack.c.l.b16 %v75
  %v224 = vunpack.c.l.b16 %v76
  %v225 = vunpack.c.l.b16 %v77
  %v226 = vpack.c.b16 %v163, %v162
  %v227 = vpack.c.b16 %v165, %v164
  %v228 = vpack.c.b16 %v167, %v166
  %v229 = vpack.c.b16 %v169, %v168
  %v230 = vpack.c.b16 %v171, %v170
  %v231 = vpack.c.b16 %v173, %v172
  %v232 = vpack.c.b16 %v175, %v174
  %v233 = vpack.c.b16 %v177, %v176
  %v234 = vpack.c.b16 %v179, %v178
  %v235 = vpack.c.b16 %v181, %v180
  %v236 = vpack.c.b16 %v183, %v182
  %v237 = vpack.c.b16 %v185, %v184
  %v238 = vpack.c.b16 %v187, %v186
  %v239 = vpack.c.b16 %v189, %v188
  %v240 = vpack.c.b16 %v191, %v190
  %v241 = vpack.c.b16 %v193, %v192
  %v242 = vpack.c.b16 %v195, %v194
  %v243 = vpack.c.b16 %v197, %v196
  %v244 = vpack.c.b16 %v199, %v198
  %v245 = vpack.c.b16 %v201, %v200
  %v246 = vpack.c.b16 %v203, %v202
  %v247 = vpack.c.b16 %v205, %v204
  %v248 = vpack.c.b16 %v207, %v206
  %v249 = vpack.c.b16 %v209, %v208
  %v250 = vpack.c.b16 %v211, %v210
  %v251 = vpack.c.b16 %v213, %v212
  %v252 = vpack.c.b16 %v215, %v214
  %v253 = vpack.c.b16 %v217, %v216
  %v254 = vpack.c.b16 %v219, %v218
  %v255 = vpack.c.b16 %v221, %v220
  %v256 = vpack.c.b16 %v223, %v222
  %v257 = vpack.c.b16 %v225, %v224
  %v306 = vunpack.c.l.b16 %v78
  %v307 = vunpack.c.l.b16 %v79
  %v308 = vunpack.c.l.b16 %v80
  %v309 = vunpack.c.l.b16 %v81
  %v310 = vunpack.c.l.b16 %v82
  %v311 = vunpack.c.l.b16 %v83
  %v312 = vunpack.c.l.b16 %v84
  %v313 = vunpack.c.l.b16 %v85
  %v314 = vunpack.c.l.b16 %v86
  %v315 = vunpack.c.l.b16 %v87
  %v316 = vunpack.c.l.b16 %v88
  %v317 = vunpack.c.l.b16 %v89
  %v318 = vunpack.c.l.b16 %v90
  %v319 = vunpack.c.l.b16 %v91
  %v320 = vunpack.c.l.b16 %v92
  %v321 = vunpack.c.l.b16 %v93
  %v322 = vpack.c.b16 %v307, %v306
  %v323 = vpack.c.b16 %v309, %v308
  %v324 = vpack.c.b16 %v311, %v310
  %v325 = vpack.c.b16 %v313, %v312
  %v326 = vpack.c.b16 %v315, %v314
  %v327 = vpack.c.b16 %v317, %v316
  %v328 = vpack.c.b16 %v319, %v318
  %v329 = vpack.c.b16 %v321, %v320
  %338 = vmatpush.bf16.msra.mxu0 %v329
  %339 = vmatpush.bf16.msra.mxu0 %v328
  %340 = vmatpush.bf16.msra.mxu0 %v327
  %341 = vmatpush.bf16.msra.mxu0 %v326
  %342 = vmatpush.bf16.msra.mxu0 %v325
  %343 = vmatpush.bf16.msra.mxu0 %v324
  %344 = vmatpush.bf16.msra.mxu0 %v323
  %345 = vmatpush.bf16.msra.mxu0 %v322
  %346 = vmatmul.bf16.gmra.mxu0 %v226
  %v347 = vpop.f32.mrf.mxu0
  %v348 = vadd.f32 %v96, %v347
  %v349 = vpop.f32.mrf.mxu0
  %v350 = vadd.f32 %v96, %v349
  %351 = vmatmul.bf16.gmra.mxu0 %v227
  %v352 = vpop.f32.mrf.mxu0
  %v353 = vadd.f32 %v96, %v352
  %v354 = vpop.f32.mrf.mxu0
  %v355 = vadd.f32 %v96, %v354
  %356 = vmatmul.bf16.gmra.mxu0 %v228
  %v357 = vpop.f32.mrf.mxu0
  %v358 = vadd.f32 %v96, %v357
  %v359 = vpop.f32.mrf.mxu0
  %v360 = vadd.f32 %v96, %v359
  %361 = vmatmul.bf16.gmra.mxu0 %v229
  %v362 = vpop.f32.mrf.mxu0
  %v363 = vadd.f32 %v96, %v362
  %v364 = vpop.f32.mrf.mxu0
  %v365 = vadd.f32 %v96, %v364
  %366 = vmatmul.bf16.gmra.mxu0 %v230
  %v367 = vpop.f32.mrf.mxu0
  %v368 = vadd.f32 %v96, %v367
  %v369 = vpop.f32.mrf.mxu0
  %v370 = vadd.f32 %v96, %v369
  %371 = vmatmul.bf16.gmra.mxu0 %v231
  %v372 = vpop.f32.mrf.mxu0
  %v373 = vadd.f32 %v96, %v372
  %v374 = vpop.f32.mrf.mxu0
  %v375 = vadd.f32 %v96, %v374
  %376 = vmatmul.bf16.gmra.mxu0 %v232
  %v377 = vpop.f32.mrf.mxu0
  %v378 = vadd.f32 %v96, %v377
  %v379 = vpop.f32.mrf.mxu0
  %v380 = vadd.f32 %v96, %v379
  %381 = vmatmul.bf16.gmra.mxu0 %v233
  %v382 = vpop.f32.mrf.mxu0
  %v383 = vadd.f32 %v96, %v382
  %v384 = vpop.f32.mrf.mxu0
  %v385 = vadd.f32 %v96, %v384
  %386 = vmatmul.bf16.gmra.mxu0 %v234
  %v387 = vpop.f32.mrf.mxu0
  %v388 = vadd.f32 %v96, %v387
  %v389 = vpop.f32.mrf.mxu0
  %v390 = vadd.f32 %v96, %v389
  %391 = vmatmul.bf16.gmra.mxu0 %v235
  %v392 = vpop.f32.mrf.mxu0
  %v393 = vadd.f32 %v96, %v392
  %v394 = vpop.f32.mrf.mxu0
  %v395 = vadd.f32 %v96, %v394
  %396 = vmatmul.bf16.gmra.mxu0 %v236
  %v397 = vpop.f32.mrf.mxu0
  %v398 = vadd.f32 %v96, %v397
  %v399 = vpop.f32.mrf.mxu0
  %v400 = vadd.f32 %v96, %v399
  %401 = vmatmul.bf16.gmra.mxu0 %v237
  %v402 = vpop.f32.mrf.mxu0
  %v403 = vadd.f32 %v96, %v402
  %v404 = vpop.f32.mrf.mxu0
  %v405 = vadd.f32 %v96, %v404
  %406 = vmatmul.bf16.gmra.mxu0 %v238
  %v407 = vpop.f32.mrf.mxu0
  %v408 = vadd.f32 %v96, %v407
  %v409 = vpop.f32.mrf.mxu0
  %v410 = vadd.f32 %v96, %v409
  %411 = vmatmul.bf16.gmra.mxu0 %v239
  %v412 = vpop.f32.mrf.mxu0
  %v413 = vadd.f32 %v96, %v412
  %v414 = vpop.f32.mrf.mxu0
  %v415 = vadd.f32 %v96, %v414
  %416 = vmatmul.bf16.gmra.mxu0 %v240
  %v417 = vpop.f32.mrf.mxu0
  %v418 = vadd.f32 %v96, %v417
  %v419 = vpop.f32.mrf.mxu0
  %v420 = vadd.f32 %v96, %v419
  %421 = vmatmul.bf16.gmra.mxu0 %v241
  %v422 = vpop.f32.mrf.mxu0
  %v423 = vadd.f32 %v96, %v422
  %v424 = vpop.f32.mrf.mxu0
  %v425 = vadd.f32 %v96, %v424
  %426 = vmatmul.bf16.gmra.mxu0 %v242
  %v427 = vpop.f32.mrf.mxu0
  %v428 = vadd.f32 %v96, %v427
  %v429 = vpop.f32.mrf.mxu0
  %v430 = vadd.f32 %v96, %v429
  %431 = vmatmul.bf16.gmra.mxu0 %v243
  %v432 = vpop.f32.mrf.mxu0
  %v433 = vadd.f32 %v96, %v432
  %v434 = vpop.f32.mrf.mxu0
  %v435 = vadd.f32 %v96, %v434
  %436 = vmatmul.bf16.gmra.mxu0 %v244
  %v437 = vpop.f32.mrf.mxu0
  %v438 = vadd.f32 %v96, %v437
  %v439 = vpop.f32.mrf.mxu0
  %v440 = vadd.f32 %v96, %v439
  %441 = vmatmul.bf16.gmra.mxu0 %v245
  %v442 = vpop.f32.mrf.mxu0
  %v443 = vadd.f32 %v96, %v442
  %v444 = vpop.f32.mrf.mxu0
  %v445 = vadd.f32 %v96, %v444
  %446 = vmatmul.bf16.gmra.mxu0 %v246
  %v447 = vpop.f32.mrf.mxu0
  %v448 = vadd.f32 %v96, %v447
  %v449 = vpop.f32.mrf.mxu0
  %v450 = vadd.f32 %v96, %v449
  %451 = vmatmul.bf16.gmra.mxu0 %v247
  %v452 = vpop.f32.mrf.mxu0
  %v453 = vadd.f32 %v96, %v452
  %v454 = vpop.f32.mrf.mxu0
  %v455 = vadd.f32 %v96, %v454
  %456 = vmatmul.bf16.gmra.mxu0 %v248
  %v457 = vpop.f32.mrf.mxu0
  %v458 = vadd.f32 %v96, %v457
  %v459 = vpop.f32.mrf.mxu0
  %v460 = vadd.f32 %v96, %v459
  %461 = vmatmul.bf16.gmra.mxu0 %v249
  %v462 = vpop.f32.mrf.mxu0
  %v463 = vadd.f32 %v96, %v462
  %v464 = vpop.f32.mrf.mxu0
  %v465 = vadd.f32 %v96, %v464
  %466 = vmatmul.bf16.gmra.mxu0 %v250
  %v467 = vpop.f32.mrf.mxu0
  %v468 = vadd.f32 %v96, %v467
  %v469 = vpop.f32.mrf.mxu0
  %v470 = vadd.f32 %v96, %v469
  %471 = vmatmul.bf16.gmra.mxu0 %v251
  %v472 = vpop.f32.mrf.mxu0
  %v473 = vadd.f32 %v96, %v472
  %v474 = vpop.f32.mrf.mxu0
  %v475 = vadd.f32 %v96, %v474
  %476 = vmatmul.bf16.gmra.mxu0 %v252
  %v477 = vpop.f32.mrf.mxu0
  %v478 = vadd.f32 %v96, %v477
  %v479 = vpop.f32.mrf.mxu0
  %v480 = vadd.f32 %v96, %v479
  %481 = vmatmul.bf16.gmra.mxu0 %v253
  %v482 = vpop.f32.mrf.mxu0
  %v483 = vadd.f32 %v96, %v482
  %v484 = vpop.f32.mrf.mxu0
  %v485 = vadd.f32 %v96, %v484
  %486 = vmatmul.bf16.gmra.mxu0 %v254
  %v487 = vpop.f32.mrf.mxu0
  %v488 = vadd.f32 %v96, %v487
  %v489 = vpop.f32.mrf.mxu0
  %v490 = vadd.f32 %v96, %v489
  %491 = vmatmul.bf16.gmra.mxu0 %v255
  %v492 = vpop.f32.mrf.mxu0
  %v493 = vadd.f32 %v96, %v492
  %v494 = vpop.f32.mrf.mxu0
  %v495 = vadd.f32 %v96, %v494
  %496 = vmatmul.bf16.gmra.mxu0 %v256
  %v497 = vpop.f32.mrf.mxu0
  %v498 = vadd.f32 %v96, %v497
  %v499 = vpop.f32.mrf.mxu0
  %v500 = vadd.f32 %v96, %v499
  %501 = vmatmul.bf16.gmra.mxu0 %v257
  %v502 = vpop.f32.mrf.mxu0
  %v503 = vadd.f32 %v96, %v502
  %v504 = vpop.f32.mrf.mxu0
  %v505 = vadd.f32 %v96, %v504
  %506 = vdwg.mxu0
  %v507 = vpack.c.bf16 %v348, %v348
  %v508 = vpack.c.bf16 %v350, %v350
  %v509 = vpack.c.bf16 %v353, %v353
  %v510 = vpack.c.bf16 %v355, %v355
  %v511 = vpack.c.bf16 %v358, %v358
  %v512 = vpack.c.bf16 %v360, %v360
  %v513 = vpack.c.bf16 %v363, %v363
  %v514 = vpack.c.bf16 %v365, %v365
  %v515 = vpack.c.bf16 %v368, %v368
  %v516 = vpack.c.bf16 %v370, %v370
  %v517 = vpack.c.bf16 %v373, %v373
  %v518 = vpack.c.bf16 %v375, %v375
  %v519 = vpack.c.bf16 %v378, %v378
  %v520 = vpack.c.bf16 %v380, %v380
  %v521 = vpack.c.bf16 %v383, %v383
  %v522 = vpack.c.bf16 %v385, %v385
  %v523 = vpack.c.bf16 %v388, %v388
  %v524 = vpack.c.bf16 %v390, %v390
  %v525 = vpack.c.bf16 %v393, %v393
  %v526 = vpack.c.bf16 %v395, %v395
  %v527 = vpack.c.bf16 %v398, %v398
  %v528 = vpack.c.bf16 %v400, %v400
  %v529 = vpack.c.bf16 %v403, %v403
  %v530 = vpack.c.bf16 %v405, %v405
  %v531 = vpack.c.bf16 %v408, %v408
  %v532 = vpack.c.bf16 %v410, %v410
  %v533 = vpack.c.bf16 %v413, %v413
  %v534 = vpack.c.bf16 %v415, %v415
  %v535 = vpack.c.bf16 %v418, %v418
  %v536 = vpack.c.bf16 %v420, %v420
  %v537 = vpack.c.bf16 %v423, %v423
  %v538 = vpack.c.bf16 %v425, %v425
  %v539 = vpack.c.bf16 %v428, %v428
  %v540 = vpack.c.bf16 %v430, %v430
  %v541 = vpack.c.bf16 %v433, %v433
  %v542 = vpack.c.bf16 %v435, %v435
  %v543 = vpack.c.bf16 %v438, %v438
  %v544 = vpack.c.bf16 %v440, %v440
  %v545 = vpack.c.bf16 %v443, %v443
  %v546 = vpack.c.bf16 %v445, %v445
  %v547 = vpack.c.bf16 %v448, %v448
  %v548 = vpack.c.bf16 %v450, %v450
  %v549 = vpack.c.bf16 %v453, %v453
  %v550 = vpack.c.bf16 %v455, %v455
  %v551 = vpack.c.bf16 %v458, %v458
  %v552 = vpack.c.bf16 %v460, %v460
  %v553 = vpack.c.bf16 %v463, %v463
  %v554 = vpack.c.bf16 %v465, %v465
  %v555 = vpack.c.bf16 %v468, %v468
  %v556 = vpack.c.bf16 %v470, %v470
  %v557 = vpack.c.bf16 %v473, %v473
  %v558 = vpack.c.bf16 %v475, %v475
  %v559 = vpack.c.bf16 %v478, %v478
  %v560 = vpack.c.bf16 %v480, %v480
  %v561 = vpack.c.bf16 %v483, %v483
  %v562 = vpack.c.bf16 %v485, %v485
  %v563 = vpack.c.bf16 %v488, %v488
  %v564 = vpack.c.bf16 %v490, %v490
  %v565 = vpack.c.bf16 %v493, %v493
  %v566 = vpack.c.bf16 %v495, %v495
  %v567 = vpack.c.bf16 %v498, %v498
  %v568 = vpack.c.bf16 %v500, %v500
  %v569 = vpack.c.bf16 %v503, %v503
  %v570 = vpack.c.bf16 %v505, %v505
  %vm571 = vcmask 125952
  %572 = vst.msk [vmem:[%s3] sm:$0xf] %vm571, %v507
  %573 = vst.msk [vmem:[%s3 + $0x4] sm:$0xf] %vm571, %v508
  %574 = vst.msk [vmem:[%s3 + $0x8] sm:$0xf] %vm571, %v509
  %575 = vst.msk [vmem:[%s3 + $0xc] sm:$0xf] %vm571, %v510
  %576 = vst.msk [vmem:[%s3 + $0x10] sm:$0xf] %vm571, %v511
  %577 = vst.msk [vmem:[%s3 + $0x14] sm:$0xf] %vm571, %v512
  %578 = vst.msk [vmem:[%s3 + $0x18] sm:$0xf] %vm571, %v513
  %579 = vst.msk [vmem:[%s3 + $0x1c] sm:$0xf] %vm571, %v514
  %580 = vst.msk [vmem:[%s3 + $0x20] sm:$0xf] %vm571, %v515
  %581 = vst.msk [vmem:[%s3 + $0x24] sm:$0xf] %vm571, %v516
  %582 = vst.msk [vmem:[%s3 + $0x28] sm:$0xf] %vm571, %v517
  %583 = vst.msk [vmem:[%s3 + $0x2c] sm:$0xf] %vm571, %v518
  %584 = vst.msk [vmem:[%s3 + $0x30] sm:$0xf] %vm571, %v519
  %585 = vst.msk [vmem:[%s3 + $0x34] sm:$0xf] %vm571, %v520
  %586 = vst.msk [vmem:[%s3 + $0x38] sm:$0xf] %vm571, %v521
  %587 = vst.msk [vmem:[%s3 + $0x3c] sm:$0xf] %vm571, %v522
  %588 = vst.msk [vmem:[%s3 + $0x40] sm:$0xf] %vm571, %v523
  %589 = vst.msk [vmem:[%s3 + $0x44] sm:$0xf] %vm571, %v524
  %590 = vst.msk [vmem:[%s3 + $0x48] sm:$0xf] %vm571, %v525
  %591 = vst.msk [vmem:[%s3 + $0x4c] sm:$0xf] %vm571, %v526
  %592 = vst.msk [vmem:[%s3 + $0x50] sm:$0xf] %vm571, %v527
  %593 = vst.msk [vmem:[%s3 + $0x54] sm:$0xf] %vm571, %v528
  %594 = vst.msk [vmem:[%s3 + $0x58] sm:$0xf] %vm571, %v529
  %595 = vst.msk [vmem:[%s3 + $0x5c] sm:$0xf] %vm571, %v530
  %596 = vst.msk [vmem:[%s3 + $0x60] sm:$0xf] %vm571, %v531
  %597 = vst.msk [vmem:[%s3 + $0x64] sm:$0xf] %vm571, %v532
  %598 = vst.msk [vmem:[%s3 + $0x68] sm:$0xf] %vm571, %v533
  %599 = vst.msk [vmem:[%s3 + $0x6c] sm:$0xf] %vm571, %v534
  %600 = vst.msk [vmem:[%s3 + $0x70] sm:$0xf] %vm571, %v535
  %601 = vst.msk [vmem:[%s3 + $0x74] sm:$0xf] %vm571, %v536
  %602 = vst.msk [vmem:[%s3 + $0x78] sm:$0xf] %vm571, %v537
  %603 = vst.msk [vmem:[%s3 + $0x7c] sm:$0xf] %vm571, %v538
  %604 = vst.msk [vmem:[%s3 + $0x80] sm:$0xf] %vm571, %v539
  %605 = vst.msk [vmem:[%s3 + $0x84] sm:$0xf] %vm571, %v540
  %606 = vst.msk [vmem:[%s3 + $0x88] sm:$0xf] %vm571, %v541
  %607 = vst.msk [vmem:[%s3 + $0x8c] sm:$0xf] %vm571, %v542
  %608 = vst.msk [vmem:[%s3 + $0x90] sm:$0xf] %vm571, %v543
  %609 = vst.msk [vmem:[%s3 + $0x94] sm:$0xf] %vm571, %v544
  %610 = vst.msk [vmem:[%s3 + $0x98] sm:$0xf] %vm571, %v545
  %611 = vst.msk [vmem:[%s3 + $0x9c] sm:$0xf] %vm571, %v546
  %612 = vst.msk [vmem:[%s3 + $0xa0] sm:$0xf] %vm571, %v547
  %613 = vst.msk [vmem:[%s3 + $0xa4] sm:$0xf] %vm571, %v548
  %614 = vst.msk [vmem:[%s3 + $0xa8] sm:$0xf] %vm571, %v549
  %615 = vst.msk [vmem:[%s3 + $0xac] sm:$0xf] %vm571, %v550
  %616 = vst.msk [vmem:[%s3 + $0xb0] sm:$0xf] %vm571, %v551
  %617 = vst.msk [vmem:[%s3 + $0xb4] sm:$0xf] %vm571, %v552
  %618 = vst.msk [vmem:[%s3 + $0xb8] sm:$0xf] %vm571, %v553
  %619 = vst.msk [vmem:[%s3 + $0xbc] sm:$0xf] %vm571, %v554
  %620 = vst.msk [vmem:[%s3 + $0xc0] sm:$0xf] %vm571, %v555
  %621 = vst.msk [vmem:[%s3 + $0xc4] sm:$0xf] %vm571, %v556
  %622 = vst.msk [vmem:[%s3 + $0xc8] sm:$0xf] %vm571, %v557
  %623 = vst.msk [vmem:[%s3 + $0xcc] sm:$0xf] %vm571, %v558
  %624 = vst.msk [vmem:[%s3 + $0xd0] sm:$0xf] %vm571, %v559
  %625 = vst.msk [vmem:[%s3 + $0xd4] sm:$0xf] %vm571, %v560
  %626 = vst.msk [vmem:[%s3 + $0xd8] sm:$0xf] %vm571, %v561
  %627 = vst.msk [vmem:[%s3 + $0xdc] sm:$0xf] %vm571, %v562
  %628 = vst.msk [vmem:[%s3 + $0xe0] sm:$0xf] %vm571, %v563
  %629 = vst.msk [vmem:[%s3 + $0xe4] sm:$0xf] %vm571, %v564
  %630 = vst.msk [vmem:[%s3 + $0xe8] sm:$0xf] %vm571, %v565
  %631 = vst.msk [vmem:[%s3 + $0xec] sm:$0xf] %vm571, %v566
  %632 = vst.msk [vmem:[%s3 + $0xf0] sm:$0xf] %vm571, %v567
  %633 = vst.msk [vmem:[%s3 + $0xf4] sm:$0xf] %vm571, %v568
  %634 = vst.msk [vmem:[%s3 + $0xf8] sm:$0xf] %vm571, %v569
  %635 = vst.msk [vmem:[%s3 + $0xfc] sm:$0xf] %vm571, %v570
  // Predicated region
  $region14: #{resnet_forward.24} parent=0 // pred_check
    _
  $region15: #{resnet_forward.24} parent=0 // pred_check_branch
    %637 = sbr.rel (0) target = $region17
  $region16: #{resnet_forward.24} parent=0 // pred_region
    _
  $region17: #{resnet_forward.24} parent=0 // pred_fallthru
    _
  // Predicated region
  $region18: #{resnet_forward.24} parent=0 // pred_check
    _
  $region19: #{resnet_forward.24} parent=0 // pred_check_branch
    %639 = sbr.rel (0) target = $region21
  $region20: #{resnet_forward.24} parent=0 // pred_region
    _
  $region21: #{resnet_forward.24} parent=0 // pred_fallthru
    _

// kernel: resnet_forward.27
$region0: #{resnet_forward.27}
  #allocation0 [shape = 'u32[]', space=smem, size = 0x4, offset = 0x4, fixed_abs, tag = 'smem constant byte address 0x4 - core index']
  #allocation1 [shape = 'u32[72,128]{1,0:T(1,128)}', space=vmem, size = 0x9000, scoped, tag = 'internal scratch']
  %s0 = inlined_call_operand.vmem [shape: bf16[512,256], index: 0, kind: input, shape index: {}]
  %s1 = inlined_call_operand.vmem [shape: bf16[256,16], index: 1, kind: input, shape index: {}]
  %s2 = inlined_call_operand.vmem [shape: f32[1,16], index: 2, kind: input, shape index: {}]
  %s3 = inlined_call_operand.vmem [shape: bf16[512,16], index: 3, kind: output, shape index: {}]
  %s4 = sld [smem:[#allocation0]]
  $region22: #{resnet_forward.27} parent=0
    _
  %s6 = ssub.s32 1, %s4
  %s7 = scalar_select 0, %s6, %s4
  // Predicated region
  $region2: #{resnet_forward.27} parent=0 // pred_check
    _
  $region3: #{resnet_forward.27} parent=0 // pred_check_branch
    %9 = sbr.rel (0) target = $region5
  $region4: #{resnet_forward.27} parent=0 // pred_region
    _
  $region5: #{resnet_forward.27} parent=0 // pred_fallthru
    _
  // Predicated region
  $region6: #{resnet_forward.27} parent=0 // pred_check
    _
  $region7: #{resnet_forward.27} parent=0 // pred_check_branch
    %11 = sbr.rel (0) target = $region9
  $region8: #{resnet_forward.27} parent=0 // pred_region
    _
  $region9: #{resnet_forward.27} parent=0 // pred_fallthru
    _
  // Predicated region
  $region10: #{resnet_forward.27} parent=0 // pred_check
    _
  $region11: #{resnet_forward.27} parent=0 // pred_check_branch
    %13 = sbr.rel (0) target = $region13
  $region12: #{resnet_forward.27} parent=0 // pred_region
    _
  $region13: #{resnet_forward.27} parent=0 // pred_fallthru
    _
  %v14 = vld [vmem:[%s0] sm:$0xff]
  %v15 = vld [vmem:[%s0 + $0x8] sm:$0xff]
  %v16 = vld [vmem:[%s0 + $0x10] sm:$0xff]
  %v17 = vld [vmem:[%s0 + $0x18] sm:$0xff]
  %v18 = vld [vmem:[%s0 + $0x20] sm:$0xff]
  %v19 = vld [vmem:[%s0 + $0x28] sm:$0xff]
  %v20 = vld [vmem:[%s0 + $0x30] sm:$0xff]
  %v21 = vld [vmem:[%s0 + $0x38] sm:$0xff]
  %v22 = vld [vmem:[%s0 + $0x40] sm:$0xff]
  %v23 = vld [vmem:[%s0 + $0x48] sm:$0xff]
  %v24 = vld [vmem:[%s0 + $0x50] sm:$0xff]
  %v25 = vld [vmem:[%s0 + $0x58] sm:$0xff]
  %v26 = vld [vmem:[%s0 + $0x60] sm:$0xff]
  %v27 = vld [vmem:[%s0 + $0x68] sm:$0xff]
  %v28 = vld [vmem:[%s0 + $0x70] sm:$0xff]
  %v29 = vld [vmem:[%s0 + $0x78] sm:$0xff]
  %v30 = vld [vmem:[%s0 + $0x80] sm:$0xff]
  %v31 = vld [vmem:[%s0 + $0x88] sm:$0xff]
  %v32 = vld [vmem:[%s0 + $0x90] sm:$0xff]
  %v33 = vld [vmem:[%s0 + $0x98] sm:$0xff]
  %v34 = vld [vmem:[%s0 + $0xa0] sm:$0xff]
  %v35 = vld [vmem:[%s0 + $0xa8] sm:$0xff]
  %v36 = vld [vmem:[%s0 + $0xb0] sm:$0xff]
  %v37 = vld [vmem:[%s0 + $0xb8] sm:$0xff]
  %v38 = vld [vmem:[%s0 + $0xc0] sm:$0xff]
  %v39 = vld [vmem:[%s0 + $0xc8] sm:$0xff]
  %v40 = vld [vmem:[%s0 + $0xd0] sm:$0xff]
  %v41 = vld [vmem:[%s0 + $0xd8] sm:$0xff]
  %v42 = vld [vmem:[%s0 + $0xe0] sm:$0xff]
  %v43 = vld [vmem:[%s0 + $0xe8] sm:$0xff]
  %v44 = vld [vmem:[%s0 + $0xf0] sm:$0xff]
  %v45 = vld [vmem:[%s0 + $0xf8] sm:$0xff]
  %v46 = vld [vmem:[%s0 + $0x100] sm:$0xff]
  %v47 = vld [vmem:[%s0 + $0x108] sm:$0xff]
  %v48 = vld [vmem:[%s0 + $0x110] sm:$0xff]
  %v49 = vld [vmem:[%s0 + $0x118] sm:$0xff]
  %v50 = vld [vmem:[%s0 + $0x120] sm:$0xff]
  %v51 = vld [vmem:[%s0 + $0x128] sm:$0xff]
  %v52 = vld [vmem:[%s0 + $0x130] sm:$0xff]
  %v53 = vld [vmem:[%s0 + $0x138] sm:$0xff]
  %v54 = vld [vmem:[%s0 + $0x140] sm:$0xff]
  %v55 = vld [vmem:[%s0 + $0x148] sm:$0xff]
  %v56 = vld [vmem:[%s0 + $0x150] sm:$0xff]
  %v57 = vld [vmem:[%s0 + $0x158] sm:$0xff]
  %v58 = vld [vmem:[%s0 + $0x160] sm:$0xff]
  %v59 = vld [vmem:[%s0 + $0x168] sm:$0xff]
  %v60 = vld [vmem:[%s0 + $0x170] sm:$0xff]
  %v61 = vld [vmem:[%s0 + $0x178] sm:$0xff]
  %v62 = vld [vmem:[%s0 + $0x180] sm:$0xff]
  %v63 = vld [vmem:[%s0 + $0x188] sm:$0xff]
  %v64 = vld [vmem:[%s0 + $0x190] sm:$0xff]
  %v65 = vld [vmem:[%s0 + $0x198] sm:$0xff]
  %v66 = vld [vmem:[%s0 + $0x1a0] sm:$0xff]
  %v67 = vld [vmem:[%s0 + $0x1a8] sm:$0xff]
  %v68 = vld [vmem:[%s0 + $0x1b0] sm:$0xff]
  %v69 = vld [vmem:[%s0 + $0x1b8] sm:$0xff]
  %v70 = vld [vmem:[%s0 + $0x1c0] sm:$0xff]
  %v71 = vld [vmem:[%s0 + $0x1c8] sm:$0xff]
  %v72 = vld [vmem:[%s0 + $0x1d0] sm:$0xff]
  %v73 = vld [vmem:[%s0 + $0x1d8] sm:$0xff]
  %v74 = vld [vmem:[%s0 + $0x1e0] sm:$0xff]
  %v75 = vld [vmem:[%s0 + $0x1e8] sm:$0xff]
  %v76 = vld [vmem:[%s0 + $0x1f0] sm:$0xff]
  %v77 = vld [vmem:[%s0 + $0x1f8] sm:$0xff]
  %v78 = vld [vmem:[%s1] sm:$0xf]
  %v79 = vld [vmem:[%s1 + $0x4] sm:$0xf]
  %v80 = vld [vmem:[%s1 + $0x8] sm:$0xf]
  %v81 = vld [vmem:[%s1 + $0xc] sm:$0xf]
  %v82 = vld [vmem:[%s1 + $0x10] sm:$0xf]
  %v83 = vld [vmem:[%s1 + $0x14] sm:$0xf]
  %v84 = vld [vmem:[%s1 + $0x18] sm:$0xf]
  %v85 = vld [vmem:[%s1 + $0x1c] sm:$0xf]
  %v86 = vld [vmem:[%s1 + $0x20] sm:$0xf]
  %v87 = vld [vmem:[%s1 + $0x24] sm:$0xf]
  %v88 = vld [vmem:[%s1 + $0x28] sm:$0xf]
  %v89 = vld [vmem:[%s1 + $0x2c] sm:$0xf]
  %v90 = vld [vmem:[%s1 + $0x30] sm:$0xf]
  %v91 = vld [vmem:[%s1 + $0x34] sm:$0xf]
  %v92 = vld [vmem:[%s1 + $0x38] sm:$0xf]
  %v93 = vld [vmem:[%s1 + $0x3c] sm:$0xf]
  %v94 = vld [vmem:[%s1 + $0x40] sm:$0xf]
  %v95 = vld [vmem:[%s1 + $0x44] sm:$0xf]
  %v96 = vld [vmem:[%s1 + $0x48] sm:$0xf]
  %v97 = vld [vmem:[%s1 + $0x4c] sm:$0xf]
  %v98 = vld [vmem:[%s1 + $0x50] sm:$0xf]
  %v99 = vld [vmem:[%s1 + $0x54] sm:$0xf]
  %v100 = vld [vmem:[%s1 + $0x58] sm:$0xf]
  %v101 = vld [vmem:[%s1 + $0x5c] sm:$0xf]
  %v102 = vld [vmem:[%s1 + $0x60] sm:$0xf]
  %v103 = vld [vmem:[%s1 + $0x64] sm:$0xf]
  %v104 = vld [vmem:[%s1 + $0x68] sm:$0xf]
  %v105 = vld [vmem:[%s1 + $0x6c] sm:$0xf]
  %v106 = vld [vmem:[%s1 + $0x70] sm:$0xf]
  %v107 = vld [vmem:[%s1 + $0x74] sm:$0xf]
  %v108 = vld [vmem:[%s1 + $0x78] sm:$0xf]
  %v109 = vld [vmem:[%s1 + $0x7c] sm:$0xf]
  %v110 = vld [vmem:[%s2] sm:$0x1]
  %v112 = vperm.slane %v110, 0
  %v178 = vunpack.c.l.b16 %v14
  %v179 = vunpack.c.h.b16 %v14
  %v180 = vunpack.c.l.b16 %v15
  %v181 = vunpack.c.h.b16 %v15
  %v182 = vunpack.c.l.b16 %v16
  %v183 = vunpack.c.h.b16 %v16
  %v184 = vunpack.c.l.b16 %v17
  %v185 = vunpack.c.h.b16 %v17
  %v186 = vunpack.c.l.b16 %v18
  %v187 = vunpack.c.h.b16 %v18
  %v188 = vunpack.c.l.b16 %v19
  %v189 = vunpack.c.h.b16 %v19
  %v190 = vunpack.c.l.b16 %v20
  %v191 = vunpack.c.h.b16 %v20
  %v192 = vunpack.c.l.b16 %v21
  %v193 = vunpack.c.h.b16 %v21
  %v194 = vunpack.c.l.b16 %v22
  %v195 = vunpack.c.h.b16 %v22
  %v196 = vunpack.c.l.b16 %v23
  %v197 = vunpack.c.h.b16 %v23
  %v198 = vunpack.c.l.b16 %v24
  %v199 = vunpack.c.h.b16 %v24
  %v200 = vunpack.c.l.b16 %v25
  %v201 = vunpack.c.h.b16 %v25
  %v202 = vunpack.c.l.b16 %v26
  %v203 = vunpack.c.h.b16 %v26
  %v204 = vunpack.c.l.b16 %v27
  %v205 = vunpack.c.h.b16 %v27
  %v206 = vunpack.c.l.b16 %v28
  %v207 = vunpack.c.h.b16 %v28
  %v208 = vunpack.c.l.b16 %v29
  %v209 = vunpack.c.h.b16 %v29
  %v210 = vunpack.c.l.b16 %v30
  %v211 = vunpack.c.h.b16 %v30
  %v212 = vunpack.c.l.b16 %v31
  %v213 = vunpack.c.h.b16 %v31
  %v214 = vunpack.c.l.b16 %v32
  %v215 = vunpack.c.h.b16 %v32
  %v216 = vunpack.c.l.b16 %v33
  %v217 = vunpack.c.h.b16 %v33
  %v218 = vunpack.c.l.b16 %v34
  %v219 = vunpack.c.h.b16 %v34
  %v220 = vunpack.c.l.b16 %v35
  %v221 = vunpack.c.h.b16 %v35
  %v222 = vunpack.c.l.b16 %v36
  %v223 = vunpack.c.h.b16 %v36
  %v224 = vunpack.c.l.b16 %v37
  %v225 = vunpack.c.h.b16 %v37
  %v226 = vunpack.c.l.b16 %v38
  %v227 = vunpack.c.h.b16 %v38
  %v228 = vunpack.c.l.b16 %v39
  %v229 = vunpack.c.h.b16 %v39
  %v230 = vunpack.c.l.b16 %v40
  %v231 = vunpack.c.h.b16 %v40
  %v232 = vunpack.c.l.b16 %v41
  %v233 = vunpack.c.h.b16 %v41
  %v234 = vunpack.c.l.b16 %v42
  %v235 = vunpack.c.h.b16 %v42
  %v236 = vunpack.c.l.b16 %v43
  %v237 = vunpack.c.h.b16 %v43
  %v238 = vunpack.c.l.b16 %v44
  %v239 = vunpack.c.h.b16 %v44
  %v240 = vunpack.c.l.b16 %v45
  %v241 = vunpack.c.h.b16 %v45
  %v242 = vunpack.c.l.b16 %v46
  %v243 = vunpack.c.h.b16 %v46
  %v244 = vunpack.c.l.b16 %v47
  %v245 = vunpack.c.h.b16 %v47
  %v246 = vunpack.c.l.b16 %v48
  %v247 = vunpack.c.h.b16 %v48
  %v248 = vunpack.c.l.b16 %v49
  %v249 = vunpack.c.h.b16 %v49
  %v250 = vunpack.c.l.b16 %v50
  %v251 = vunpack.c.h.b16 %v50
  %v252 = vunpack.c.l.b16 %v51
  %v253 = vunpack.c.h.b16 %v51
  %v254 = vunpack.c.l.b16 %v52
  %v255 = vunpack.c.h.b16 %v52
  %v256 = vunpack.c.l.b16 %v53
  %v257 = vunpack.c.h.b16 %v53
  %v258 = vunpack.c.l.b16 %v54
  %v259 = vunpack.c.h.b16 %v54
  %v260 = vunpack.c.l.b16 %v55
  %v261 = vunpack.c.h.b16 %v55
  %v262 = vunpack.c.l.b16 %v56
  %v263 = vunpack.c.h.b16 %v56
  %v264 = vunpack.c.l.b16 %v57
  %v265 = vunpack.c.h.b16 %v57
  %v266 = vunpack.c.l.b16 %v58
  %v267 = vunpack.c.h.b16 %v58
  %v268 = vunpack.c.l.b16 %v59
  %v269 = vunpack.c.h.b16 %v59
  %v270 = vunpack.c.l.b16 %v60
  %v271 = vunpack.c.h.b16 %v60
  %v272 = vunpack.c.l.b16 %v61
  %v273 = vunpack.c.h.b16 %v61
  %v274 = vunpack.c.l.b16 %v62
  %v275 = vunpack.c.h.b16 %v62
  %v276 = vunpack.c.l.b16 %v63
  %v277 = vunpack.c.h.b16 %v63
  %v278 = vunpack.c.l.b16 %v64
  %v279 = vunpack.c.h.b16 %v64
  %v280 = vunpack.c.l.b16 %v65
  %v281 = vunpack.c.h.b16 %v65
  %v282 = vunpack.c.l.b16 %v66
  %v283 = vunpack.c.h.b16 %v66
  %v284 = vunpack.c.l.b16 %v67
  %v285 = vunpack.c.h.b16 %v67
  %v286 = vunpack.c.l.b16 %v68
  %v287 = vunpack.c.h.b16 %v68
  %v288 = vunpack.c.l.b16 %v69
  %v289 = vunpack.c.h.b16 %v69
  %v290 = vunpack.c.l.b16 %v70
  %v291 = vunpack.c.h.b16 %v70
  %v292 = vunpack.c.l.b16 %v71
  %v293 = vunpack.c.h.b16 %v71
  %v294 = vunpack.c.l.b16 %v72
  %v295 = vunpack.c.h.b16 %v72
  %v296 = vunpack.c.l.b16 %v73
  %v297 = vunpack.c.h.b16 %v73
  %v298 = vunpack.c.l.b16 %v74
  %v299 = vunpack.c.h.b16 %v74
  %v300 = vunpack.c.l.b16 %v75
  %v301 = vunpack.c.h.b16 %v75
  %v302 = vunpack.c.l.b16 %v76
  %v303 = vunpack.c.h.b16 %v76
  %v304 = vunpack.c.l.b16 %v77
  %v305 = vunpack.c.h.b16 %v77
  %v306 = vpack.c.b16 %v180, %v178
  %v307 = vpack.c.b16 %v181, %v179
  %v308 = vpack.c.b16 %v184, %v182
  %v309 = vpack.c.b16 %v185, %v183
  %v310 = vpack.c.b16 %v188, %v186
  %v311 = vpack.c.b16 %v189, %v187
  %v312 = vpack.c.b16 %v192, %v190
  %v313 = vpack.c.b16 %v193, %v191
  %v314 = vpack.c.b16 %v196, %v194
  %v315 = vpack.c.b16 %v197, %v195
  %v316 = vpack.c.b16 %v200, %v198
  %v317 = vpack.c.b16 %v201, %v199
  %v318 = vpack.c.b16 %v204, %v202
  %v319 = vpack.c.b16 %v205, %v203
  %v320 = vpack.c.b16 %v208, %v206
  %v321 = vpack.c.b16 %v209, %v207
  %v322 = vpack.c.b16 %v212, %v210
  %v323 = vpack.c.b16 %v213, %v211
  %v324 = vpack.c.b16 %v216, %v214
  %v325 = vpack.c.b16 %v217, %v215
  %v326 = vpack.c.b16 %v220, %v218
  %v327 = vpack.c.b16 %v221, %v219
  %v328 = vpack.c.b16 %v224, %v222
  %v329 = vpack.c.b16 %v225, %v223
  %v330 = vpack.c.b16 %v228, %v226
  %v331 = vpack.c.b16 %v229, %v227
  %v332 = vpack.c.b16 %v232, %v230
  %v333 = vpack.c.b16 %v233, %v231
  %v334 = vpack.c.b16 %v236, %v234
  %v335 = vpack.c.b16 %v237, %v235
  %v336 = vpack.c.b16 %v240, %v238
  %v337 = vpack.c.b16 %v241, %v239
  %v338 = vpack.c.b16 %v244, %v242
  %v339 = vpack.c.b16 %v245, %v243
  %v340 = vpack.c.b16 %v248, %v246
  %v341 = vpack.c.b16 %v249, %v247
  %v342 = vpack.c.b16 %v252, %v250
  %v343 = vpack.c.b16 %v253, %v251
  %v344 = vpack.c.b16 %v256, %v254
  %v345 = vpack.c.b16 %v257, %v255
  %v346 = vpack.c.b16 %v260, %v258
  %v347 = vpack.c.b16 %v261, %v259
  %v348 = vpack.c.b16 %v264, %v262
  %v349 = vpack.c.b16 %v265, %v263
  %v350 = vpack.c.b16 %v268, %v266
  %v351 = vpack.c.b16 %v269, %v267
  %v352 = vpack.c.b16 %v272, %v270
  %v353 = vpack.c.b16 %v273, %v271
  %v354 = vpack.c.b16 %v276, %v274
  %v355 = vpack.c.b16 %v277, %v275
  %v356 = vpack.c.b16 %v280, %v278
  %v357 = vpack.c.b16 %v281, %v279
  %v358 = vpack.c.b16 %v284, %v282
  %v359 = vpack.c.b16 %v285, %v283
  %v360 = vpack.c.b16 %v288, %v286
  %v361 = vpack.c.b16 %v289, %v287
  %v362 = vpack.c.b16 %v292, %v290
  %v363 = vpack.c.b16 %v293, %v291
  %v364 = vpack.c.b16 %v296, %v294
  %v365 = vpack.c.b16 %v297, %v295
  %v366 = vpack.c.b16 %v300, %v298
  %v367 = vpack.c.b16 %v301, %v299
  %v368 = vpack.c.b16 %v304, %v302
  %v369 = vpack.c.b16 %v305, %v303
  %v466 = vunpack.c.l.b16 %v78
  %v467 = vunpack.c.l.b16 %v79
  %v468 = vunpack.c.l.b16 %v80
  %v469 = vunpack.c.l.b16 %v81
  %v470 = vunpack.c.l.b16 %v82
  %v471 = vunpack.c.l.b16 %v83
  %v472 = vunpack.c.l.b16 %v84
  %v473 = vunpack.c.l.b16 %v85
  %v474 = vunpack.c.l.b16 %v86
  %v475 = vunpack.c.l.b16 %v87
  %v476 = vunpack.c.l.b16 %v88
  %v477 = vunpack.c.l.b16 %v89
  %v478 = vunpack.c.l.b16 %v90
  %v479 = vunpack.c.l.b16 %v91
  %v480 = vunpack.c.l.b16 %v92
  %v481 = vunpack.c.l.b16 %v93
  %v482 = vunpack.c.l.b16 %v94
  %v483 = vunpack.c.l.b16 %v95
  %v484 = vunpack.c.l.b16 %v96
  %v485 = vunpack.c.l.b16 %v97
  %v486 = vunpack.c.l.b16 %v98
  %v487 = vunpack.c.l.b16 %v99
  %v488 = vunpack.c.l.b16 %v100
  %v489 = vunpack.c.l.b16 %v101
  %v490 = vunpack.c.l.b16 %v102
  %v491 = vunpack.c.l.b16 %v103
  %v492 = vunpack.c.l.b16 %v104
  %v493 = vunpack.c.l.b16 %v105
  %v494 = vunpack.c.l.b16 %v106
  %v495 = vunpack.c.l.b16 %v107
  %v496 = vunpack.c.l.b16 %v108
  %v497 = vunpack.c.l.b16 %v109
  %v498 = vpack.c.b16 %v467, %v466
  %v499 = vpack.c.b16 %v469, %v468
  %v500 = vpack.c.b16 %v471, %v470
  %v501 = vpack.c.b16 %v473, %v472
  %v502 = vpack.c.b16 %v475, %v474
  %v503 = vpack.c.b16 %v477, %v476
  %v504 = vpack.c.b16 %v479, %v478
  %v505 = vpack.c.b16 %v481, %v480
  %v506 = vpack.c.b16 %v483, %v482
  %v507 = vpack.c.b16 %v485, %v484
  %v508 = vpack.c.b16 %v487, %v486
  %v509 = vpack.c.b16 %v489, %v488
  %v510 = vpack.c.b16 %v491, %v490
  %v511 = vpack.c.b16 %v493, %v492
  %v512 = vpack.c.b16 %v495, %v494
  %v513 = vpack.c.b16 %v497, %v496
  %530 = vmatpush.bf16.msra.mxu0 %v505
  %531 = vmatpush.bf16.msra.mxu0 %v504
  %532 = vmatpush.bf16.msra.mxu0 %v503
  %533 = vmatpush.bf16.msra.mxu0 %v502
  %534 = vmatpush.bf16.msra.mxu0 %v501
  %535 = vmatpush.bf16.msra.mxu0 %v500
  %536 = vmatpush.bf16.msra.mxu0 %v499
  %537 = vmatpush.bf16.msra.mxu0 %v498
  %538 = vmatmul.bf16.gmra.mxu0 %v306
  %v539 = vpop.f32.mrf.mxu0
  %v540 = vadd.f32 %v112, %v539
  %v541 = vpop.f32.mrf.mxu0
  %v542 = vadd.f32 %v112, %v541
  %543 = vmatmul.bf16.gmra.mxu0 %v308
  %v544 = vpop.f32.mrf.mxu0
  %v545 = vadd.f32 %v112, %v544
  %v546 = vpop.f32.mrf.mxu0
  %v547 = vadd.f32 %v112, %v546
  %548 = vmatmul.bf16.gmra.mxu0 %v310
  %v549 = vpop.f32.mrf.mxu0
  %v550 = vadd.f32 %v112, %v549
  %v551 = vpop.f32.mrf.mxu0
  %v552 = vadd.f32 %v112, %v551
  %553 = vmatmul.bf16.gmra.mxu0 %v312
  %v554 = vpop.f32.mrf.mxu0
  %v555 = vadd.f32 %v112, %v554
  %v556 = vpop.f32.mrf.mxu0
  %v557 = vadd.f32 %v112, %v556
  %558 = vmatmul.bf16.gmra.mxu0 %v314
  %v559 = vpop.f32.mrf.mxu0
  %v560 = vadd.f32 %v112, %v559
  %v561 = vpop.f32.mrf.mxu0
  %v562 = vadd.f32 %v112, %v561
  %563 = vmatmul.bf16.gmra.mxu0 %v316
  %v564 = vpop.f32.mrf.mxu0
  %v565 = vadd.f32 %v112, %v564
  %v566 = vpop.f32.mrf.mxu0
  %v567 = vadd.f32 %v112, %v566
  %568 = vmatmul.bf16.gmra.mxu0 %v318
  %v569 = vpop.f32.mrf.mxu0
  %v570 = vadd.f32 %v112, %v569
  %v571 = vpop.f32.mrf.mxu0
  %v572 = vadd.f32 %v112, %v571
  %573 = vmatmul.bf16.gmra.mxu0 %v320
  %v574 = vpop.f32.mrf.mxu0
  %v575 = vadd.f32 %v112, %v574
  %v576 = vpop.f32.mrf.mxu0
  %v577 = vadd.f32 %v112, %v576
  %578 = vmatmul.bf16.gmra.mxu0 %v322
  %v579 = vpop.f32.mrf.mxu0
  %v580 = vadd.f32 %v112, %v579
  %v581 = vpop.f32.mrf.mxu0
  %v582 = vadd.f32 %v112, %v581
  %583 = vmatmul.bf16.gmra.mxu0 %v324
  %v584 = vpop.f32.mrf.mxu0
  %v585 = vadd.f32 %v112, %v584
  %v586 = vpop.f32.mrf.mxu0
  %v587 = vadd.f32 %v112, %v586
  %588 = vmatmul.bf16.gmra.mxu0 %v326
  %v589 = vpop.f32.mrf.mxu0
  %v590 = vadd.f32 %v112, %v589
  %v591 = vpop.f32.mrf.mxu0
  %v592 = vadd.f32 %v112, %v591
  %593 = vmatmul.bf16.gmra.mxu0 %v328
  %v594 = vpop.f32.mrf.mxu0
  %v595 = vadd.f32 %v112, %v594
  %v596 = vpop.f32.mrf.mxu0
  %v597 = vadd.f32 %v112, %v596
  %598 = vmatmul.bf16.gmra.mxu0 %v330
  %v599 = vpop.f32.mrf.mxu0
  %v600 = vadd.f32 %v112, %v599
  %v601 = vpop.f32.mrf.mxu0
  %v602 = vadd.f32 %v112, %v601
  %603 = vmatmul.bf16.gmra.mxu0 %v332
  %v604 = vpop.f32.mrf.mxu0
  %v605 = vadd.f32 %v112, %v604
  %v606 = vpop.f32.mrf.mxu0
  %v607 = vadd.f32 %v112, %v606
  %608 = vmatmul.bf16.gmra.mxu0 %v334
  %v609 = vpop.f32.mrf.mxu0
  %v610 = vadd.f32 %v112, %v609
  %v611 = vpop.f32.mrf.mxu0
  %v612 = vadd.f32 %v112, %v611
  %613 = vmatmul.bf16.gmra.mxu0 %v336
  %v614 = vpop.f32.mrf.mxu0
  %v615 = vadd.f32 %v112, %v614
  %v616 = vpop.f32.mrf.mxu0
  %v617 = vadd.f32 %v112, %v616
  %618 = vmatmul.bf16.gmra.mxu0 %v338
  %v619 = vpop.f32.mrf.mxu0
  %v620 = vadd.f32 %v112, %v619
  %v621 = vpop.f32.mrf.mxu0
  %v622 = vadd.f32 %v112, %v621
  %623 = vmatmul.bf16.gmra.mxu0 %v340
  %v624 = vpop.f32.mrf.mxu0
  %v625 = vadd.f32 %v112, %v624
  %v626 = vpop.f32.mrf.mxu0
  %v627 = vadd.f32 %v112, %v626
  %628 = vmatmul.bf16.gmra.mxu0 %v342
  %v629 = vpop.f32.mrf.mxu0
  %v630 = vadd.f32 %v112, %v629
  %v631 = vpop.f32.mrf.mxu0
  %v632 = vadd.f32 %v112, %v631
  %633 = vmatmul.bf16.gmra.mxu0 %v344
  %v634 = vpop.f32.mrf.mxu0
  %v635 = vadd.f32 %v112, %v634
  %v636 = vpop.f32.mrf.mxu0
  %v637 = vadd.f32 %v112, %v636
  %638 = vmatmul.bf16.gmra.mxu0 %v346
  %v639 = vpop.f32.mrf.mxu0
  %v640 = vadd.f32 %v112, %v639
  %v641 = vpop.f32.mrf.mxu0
  %v642 = vadd.f32 %v112, %v641
  %643 = vmatmul.bf16.gmra.mxu0 %v348
  %v644 = vpop.f32.mrf.mxu0
  %v645 = vadd.f32 %v112, %v644
  %v646 = vpop.f32.mrf.mxu0
  %v647 = vadd.f32 %v112, %v646
  %648 = vmatmul.bf16.gmra.mxu0 %v350
  %v649 = vpop.f32.mrf.mxu0
  %v650 = vadd.f32 %v112, %v649
  %v651 = vpop.f32.mrf.mxu0
  %v652 = vadd.f32 %v112, %v651
  %653 = vmatmul.bf16.gmra.mxu0 %v352
  %v654 = vpop.f32.mrf.mxu0
  %v655 = vadd.f32 %v112, %v654
  %v656 = vpop.f32.mrf.mxu0
  %v657 = vadd.f32 %v112, %v656
  %658 = vmatmul.bf16.gmra.mxu0 %v354
  %v659 = vpop.f32.mrf.mxu0
  %v660 = vadd.f32 %v112, %v659
  %v661 = vpop.f32.mrf.mxu0
  %v662 = vadd.f32 %v112, %v661
  %663 = vmatmul.bf16.gmra.mxu0 %v356
  %v664 = vpop.f32.mrf.mxu0
  %v665 = vadd.f32 %v112, %v664
  %v666 = vpop.f32.mrf.mxu0
  %v667 = vadd.f32 %v112, %v666
  %668 = vmatmul.bf16.gmra.mxu0 %v358
  %v669 = vpop.f32.mrf.mxu0
  %v670 = vadd.f32 %v112, %v669
  %v671 = vpop.f32.mrf.mxu0
  %v672 = vadd.f32 %v112, %v671
  %673 = vmatmul.bf16.gmra.mxu0 %v360
  %v674 = vpop.f32.mrf.mxu0
  %v675 = vadd.f32 %v112, %v674
  %v676 = vpop.f32.mrf.mxu0
  %v677 = vadd.f32 %v112, %v676
  %678 = vmatmul.bf16.gmra.mxu0 %v362
  %v679 = vpop.f32.mrf.mxu0
  %v680 = vadd.f32 %v112, %v679
  %v681 = vpop.f32.mrf.mxu0
  %v682 = vadd.f32 %v112, %v681
  %683 = vmatmul.bf16.gmra.mxu0 %v364
  %v684 = vpop.f32.mrf.mxu0
  %v685 = vadd.f32 %v112, %v684
  %v686 = vpop.f32.mrf.mxu0
  %v687 = vadd.f32 %v112, %v686
  %688 = vmatmul.bf16.gmra.mxu0 %v366
  %v689 = vpop.f32.mrf.mxu0
  %v690 = vadd.f32 %v112, %v689
  %v691 = vpop.f32.mrf.mxu0
  %v692 = vadd.f32 %v112, %v691
  %693 = vmatmul.bf16.gmra.mxu0 %v368
  %v694 = vpop.f32.mrf.mxu0
  %v695 = vadd.f32 %v112, %v694
  %v696 = vpop.f32.mrf.mxu0
  %v697 = vadd.f32 %v112, %v696
  %698 = vdwg.mxu0
  %699 = vmatpush.bf16.msra.mxu0 %v513
  %700 = vmatpush.bf16.msra.mxu0 %v512
  %701 = vmatpush.bf16.msra.mxu0 %v511
  %702 = vmatpush.bf16.msra.mxu0 %v510
  %703 = vmatpush.bf16.msra.mxu0 %v509
  %704 = vmatpush.bf16.msra.mxu0 %v508
  %705 = vmatpush.bf16.msra.mxu0 %v507
  %706 = vmatpush.bf16.msra.mxu0 %v506
  %707 = vmatmul.bf16.gmra.mxu0 %v307
  %v708 = vpop.f32.mrf.mxu0
  %v709 = vadd.f32 %v540, %v708
  %v710 = vpop.f32.mrf.mxu0
  %v711 = vadd.f32 %v542, %v710
  %712 = vmatmul.bf16.gmra.mxu0 %v309
  %v713 = vpop.f32.mrf.mxu0
  %v714 = vadd.f32 %v545, %v713
  %v715 = vpop.f32.mrf.mxu0
  %v716 = vadd.f32 %v547, %v715
  %717 = vmatmul.bf16.gmra.mxu0 %v311
  %v718 = vpop.f32.mrf.mxu0
  %v719 = vadd.f32 %v550, %v718
  %v720 = vpop.f32.mrf.mxu0
  %v721 = vadd.f32 %v552, %v720
  %722 = vmatmul.bf16.gmra.mxu0 %v313
  %v723 = vpop.f32.mrf.mxu0
  %v724 = vadd.f32 %v555, %v723
  %v725 = vpop.f32.mrf.mxu0
  %v726 = vadd.f32 %v557, %v725
  %727 = vmatmul.bf16.gmra.mxu0 %v315
  %v728 = vpop.f32.mrf.mxu0
  %v729 = vadd.f32 %v560, %v728
  %v730 = vpop.f32.mrf.mxu0
  %v731 = vadd.f32 %v562, %v730
  %732 = vmatmul.bf16.gmra.mxu0 %v317
  %v733 = vpop.f32.mrf.mxu0
  %v734 = vadd.f32 %v565, %v733
  %v735 = vpop.f32.mrf.mxu0
  %v736 = vadd.f32 %v567, %v735
  %737 = vmatmul.bf16.gmra.mxu0 %v319
  %v738 = vpop.f32.mrf.mxu0
  %v739 = vadd.f32 %v570, %v738
  %v740 = vpop.f32.mrf.mxu0
  %v741 = vadd.f32 %v572, %v740
  %742 = vmatmul.bf16.gmra.mxu0 %v321
  %v743 = vpop.f32.mrf.mxu0
  %v744 = vadd.f32 %v575, %v743
  %v745 = vpop.f32.mrf.mxu0
  %v746 = vadd.f32 %v577, %v745
  %747 = vmatmul.bf16.gmra.mxu0 %v323
  %v748 = vpop.f32.mrf.mxu0
  %v749 = vadd.f32 %v580, %v748
  %v750 = vpop.f32.mrf.mxu0
  %v751 = vadd.f32 %v582, %v750
  %752 = vmatmul.bf16.gmra.mxu0 %v325
  %v753 = vpop.f32.mrf.mxu0
  %v754 = vadd.f32 %v585, %v753
  %v755 = vpop.f32.mrf.mxu0
  %v756 = vadd.f32 %v587, %v755
  %757 = vmatmul.bf16.gmra.mxu0 %v327
  %v758 = vpop.f32.mrf.mxu0
  %v759 = vadd.f32 %v590, %v758
  %v760 = vpop.f32.mrf.mxu0
  %v761 = vadd.f32 %v592, %v760
  %762 = vmatmul.bf16.gmra.mxu0 %v329
  %v763 = vpop.f32.mrf.mxu0
  %v764 = vadd.f32 %v595, %v763
  %v765 = vpop.f32.mrf.mxu0
  %v766 = vadd.f32 %v597, %v765
  %767 = vmatmul.bf16.gmra.mxu0 %v331
  %v768 = vpop.f32.mrf.mxu0
  %v769 = vadd.f32 %v600, %v768
  %v770 = vpop.f32.mrf.mxu0
  %v771 = vadd.f32 %v602, %v770
  %772 = vmatmul.bf16.gmra.mxu0 %v333
  %v773 = vpop.f32.mrf.mxu0
  %v774 = vadd.f32 %v605, %v773
  %v775 = vpop.f32.mrf.mxu0
  %v776 = vadd.f32 %v607, %v775
  %777 = vmatmul.bf16.gmra.mxu0 %v335
  %v778 = vpop.f32.mrf.mxu0
  %v779 = vadd.f32 %v610, %v778
  %v780 = vpop.f32.mrf.mxu0
  %v781 = vadd.f32 %v612, %v780
  %782 = vmatmul.bf16.gmra.mxu0 %v337
  %v783 = vpop.f32.mrf.mxu0
  %v784 = vadd.f32 %v615, %v783
  %v785 = vpop.f32.mrf.mxu0
  %v786 = vadd.f32 %v617, %v785
  %787 = vmatmul.bf16.gmra.mxu0 %v339
  %v788 = vpop.f32.mrf.mxu0
  %v789 = vadd.f32 %v620, %v788
  %v790 = vpop.f32.mrf.mxu0
  %v791 = vadd.f32 %v622, %v790
  %792 = vmatmul.bf16.gmra.mxu0 %v341
  %v793 = vpop.f32.mrf.mxu0
  %v794 = vadd.f32 %v625, %v793
  %v795 = vpop.f32.mrf.mxu0
  %v796 = vadd.f32 %v627, %v795
  %797 = vmatmul.bf16.gmra.mxu0 %v343
  %v798 = vpop.f32.mrf.mxu0
  %v799 = vadd.f32 %v630, %v798
  %v800 = vpop.f32.mrf.mxu0
  %v801 = vadd.f32 %v632, %v800
  %802 = vmatmul.bf16.gmra.mxu0 %v345
  %v803 = vpop.f32.mrf.mxu0
  %v804 = vadd.f32 %v635, %v803
  %v805 = vpop.f32.mrf.mxu0
  %v806 = vadd.f32 %v637, %v805
  %807 = vmatmul.bf16.gmra.mxu0 %v347
  %v808 = vpop.f32.mrf.mxu0
  %v809 = vadd.f32 %v640, %v808
  %v810 = vpop.f32.mrf.mxu0
  %v811 = vadd.f32 %v642, %v810
  %812 = vmatmul.bf16.gmra.mxu0 %v349
  %v813 = vpop.f32.mrf.mxu0
  %v814 = vadd.f32 %v645, %v813
  %v815 = vpop.f32.mrf.mxu0
  %v816 = vadd.f32 %v647, %v815
  %817 = vmatmul.bf16.gmra.mxu0 %v351
  %v818 = vpop.f32.mrf.mxu0
  %v819 = vadd.f32 %v650, %v818
  %v820 = vpop.f32.mrf.mxu0
  %v821 = vadd.f32 %v652, %v820
  %822 = vmatmul.bf16.gmra.mxu0 %v353
  %v823 = vpop.f32.mrf.mxu0
  %v824 = vadd.f32 %v655, %v823
  %v825 = vpop.f32.mrf.mxu0
  %v826 = vadd.f32 %v657, %v825
  %827 = vmatmul.bf16.gmra.mxu0 %v355
  %v828 = vpop.f32.mrf.mxu0
  %v829 = vadd.f32 %v660, %v828
  %v830 = vpop.f32.mrf.mxu0
  %v831 = vadd.f32 %v662, %v830
  %832 = vmatmul.bf16.gmra.mxu0 %v357
  %v833 = vpop.f32.mrf.mxu0
  %v834 = vadd.f32 %v665, %v833
  %v835 = vpop.f32.mrf.mxu0
  %v836 = vadd.f32 %v667, %v835
  %837 = vmatmul.bf16.gmra.mxu0 %v359
  %v838 = vpop.f32.mrf.mxu0
  %v839 = vadd.f32 %v670, %v838
  %v840 = vpop.f32.mrf.mxu0
  %v841 = vadd.f32 %v672, %v840
  %842 = vmatmul.bf16.gmra.mxu0 %v361
  %v843 = vpop.f32.mrf.mxu0
  %v844 = vadd.f32 %v675, %v843
  %v845 = vpop.f32.mrf.mxu0
  %v846 = vadd.f32 %v677, %v845
  %847 = vmatmul.bf16.gmra.mxu0 %v363
  %v848 = vpop.f32.mrf.mxu0
  %v849 = vadd.f32 %v680, %v848
  %v850 = vpop.f32.mrf.mxu0
  %v851 = vadd.f32 %v682, %v850
  %852 = vmatmul.bf16.gmra.mxu0 %v365
  %v853 = vpop.f32.mrf.mxu0
  %v854 = vadd.f32 %v685, %v853
  %v855 = vpop.f32.mrf.mxu0
  %v856 = vadd.f32 %v687, %v855
  %857 = vmatmul.bf16.gmra.mxu0 %v367
  %v858 = vpop.f32.mrf.mxu0
  %v859 = vadd.f32 %v690, %v858
  %v860 = vpop.f32.mrf.mxu0
  %v861 = vadd.f32 %v692, %v860
  %862 = vmatmul.bf16.gmra.mxu0 %v369
  %v863 = vpop.f32.mrf.mxu0
  %v864 = vadd.f32 %v695, %v863
  %v865 = vpop.f32.mrf.mxu0
  %v866 = vadd.f32 %v697, %v865
  %867 = vdwg.mxu0
  %v868 = vmax.f32 %v709, 0.0
  %v869 = vmax.f32 %v711, 0.0
  %v870 = vmax.f32 %v714, 0.0
  %v871 = vmax.f32 %v716, 0.0
  %v872 = vmax.f32 %v719, 0.0
  %v873 = vmax.f32 %v721, 0.0
  %v874 = vmax.f32 %v724, 0.0
  %v875 = vmax.f32 %v726, 0.0
  %v876 = vmax.f32 %v729, 0.0
  %v877 = vmax.f32 %v731, 0.0
  %v878 = vmax.f32 %v734, 0.0
  %v879 = vmax.f32 %v736, 0.0
  %v880 = vmax.f32 %v739, 0.0
  %v881 = vmax.f32 %v741, 0.0
  %v882 = vmax.f32 %v744, 0.0
  %v883 = vmax.f32 %v746, 0.0
  %v884 = vmax.f32 %v749, 0.0
  %v885 = vmax.f32 %v751, 0.0
  %v886 = vmax.f32 %v754, 0.0
  %v887 = vmax.f32 %v756, 0.0
  %v888 = vmax.f32 %v759, 0.0
  %v889 = vmax.f32 %v761, 0.0
  %v890 = vmax.f32 %v764, 0.0
  %v891 = vmax.f32 %v766, 0.0
  %v892 = vmax.f32 %v769, 0.0
  %v893 = vmax.f32 %v771, 0.0
  %v894 = vmax.f32 %v774, 0.0
  %v895 = vmax.f32 %v776, 0.0
  %v896 = vmax.f32 %v779, 0.0
  %v897 = vmax.f32 %v781, 0.0
  %v898 = vmax.f32 %v784, 0.0
  %v899 = vmax.f32 %v786, 0.0
  %v900 = vmax.f32 %v789, 0.0
  %v901 = vmax.f32 %v791, 0.0
  %v902 = vmax.f32 %v794, 0.0
  %v903 = vmax.f32 %v796, 0.0
  %v904 = vmax.f32 %v799, 0.0
  %v905 = vmax.f32 %v801, 0.0
  %v906 = vmax.f32 %v804, 0.0
  %v907 = vmax.f32 %v806, 0.0
  %v908 = vmax.f32 %v809, 0.0
  %v909 = vmax.f32 %v811, 0.0
  %v910 = vmax.f32 %v814, 0.0
  %v911 = vmax.f32 %v816, 0.0
  %v912 = vmax.f32 %v819, 0.0
  %v913 = vmax.f32 %v821, 0.0
  %v914 = vmax.f32 %v824, 0.0
  %v915 = vmax.f32 %v826, 0.0
  %v916 = vmax.f32 %v829, 0.0
  %v917 = vmax.f32 %v831, 0.0
  %v918 = vmax.f32 %v834, 0.0
  %v919 = vmax.f32 %v836, 0.0
  %v920 = vmax.f32 %v839, 0.0
  %v921 = vmax.f32 %v841, 0.0
  %v922 = vmax.f32 %v844, 0.0
  %v923 = vmax.f32 %v846, 0.0
  %v924 = vmax.f32 %v849, 0.0
  %v925 = vmax.f32 %v851, 0.0
  %v926 = vmax.f32 %v854, 0.0
  %v927 = vmax.f32 %v856, 0.0
  %v928 = vmax.f32 %v859, 0.0
  %v929 = vmax.f32 %v861, 0.0
  %v930 = vmax.f32 %v864, 0.0
  %v931 = vmax.f32 %v866, 0.0
  %v932 = vpack.c.bf16 %v868, %v868
  %v933 = vpack.c.bf16 %v869, %v869
  %v934 = vpack.c.bf16 %v870, %v870
  %v935 = vpack.c.bf16 %v871, %v871
  %v936 = vpack.c.bf16 %v872, %v872
  %v937 = vpack.c.bf16 %v873, %v873
  %v938 = vpack.c.bf16 %v874, %v874
  %v939 = vpack.c.bf16 %v875, %v875
  %v940 = vpack.c.bf16 %v876, %v876
  %v941 = vpack.c.bf16 %v877, %v877
  %v942 = vpack.c.bf16 %v878, %v878
  %v943 = vpack.c.bf16 %v879, %v879
  %v944 = vpack.c.bf16 %v880, %v880
  %v945 = vpack.c.bf16 %v881, %v881
  %v946 = vpack.c.bf16 %v882, %v882
  %v947 = vpack.c.bf16 %v883, %v883
  %v948 = vpack.c.bf16 %v884, %v884
  %v949 = vpack.c.bf16 %v885, %v885
  %v950 = vpack.c.bf16 %v886, %v886
  %v951 = vpack.c.bf16 %v887, %v887
  %v952 = vpack.c.bf16 %v888, %v888
  %v953 = vpack.c.bf16 %v889, %v889
  %v954 = vpack.c.bf16 %v890, %v890
  %v955 = vpack.c.bf16 %v891, %v891
  %v956 = vpack.c.bf16 %v892, %v892
  %v957 = vpack.c.bf16 %v893, %v893
  %v958 = vpack.c.bf16 %v894, %v894
  %v959 = vpack.c.bf16 %v895, %v895
  %v960 = vpack.c.bf16 %v896, %v896
  %v961 = vpack.c.bf16 %v897, %v897
  %v962 = vpack.c.bf16 %v898, %v898
  %v963 = vpack.c.bf16 %v899, %v899
  %v964 = vpack.c.bf16 %v900, %v900
  %v965 = vpack.c.bf16 %v901, %v901
  %v966 = vpack.c.bf16 %v902, %v902
  %v967 = vpack.c.bf16 %v903, %v903
  %v968 = vpack.c.bf16 %v904, %v904
  %v969 = vpack.c.bf16 %v905, %v905
  %v970 = vpack.c.bf16 %v906, %v906
  %v971 = vpack.c.bf16 %v907, %v907
  %v972 = vpack.c.bf16 %v908, %v908
  %v973 = vpack.c.bf16 %v909, %v909
  %v974 = vpack.c.bf16 %v910, %v910
  %v975 = vpack.c.bf16 %v911, %v911
  %v976 = vpack.c.bf16 %v912, %v912
  %v977 = vpack.c.bf16 %v913, %v913
  %v978 = vpack.c.bf16 %v914, %v914
  %v979 = vpack.c.bf16 %v915, %v915
  %v980 = vpack.c.bf16 %v916, %v916
  %v981 = vpack.c.bf16 %v917, %v917
  %v982 = vpack.c.bf16 %v918, %v918
  %v983 = vpack.c.bf16 %v919, %v919
  %v984 = vpack.c.bf16 %v920, %v920
  %v985 = vpack.c.bf16 %v921, %v921
  %v986 = vpack.c.bf16 %v922, %v922
  %v987 = vpack.c.bf16 %v923, %v923
  %v988 = vpack.c.bf16 %v924, %v924
  %v989 = vpack.c.bf16 %v925, %v925
  %v990 = vpack.c.bf16 %v926, %v926
  %v991 = vpack.c.bf16 %v927, %v927
  %v992 = vpack.c.bf16 %v928, %v928
  %v993 = vpack.c.bf16 %v929, %v929
  %v994 = vpack.c.bf16 %v930, %v930
  %v995 = vpack.c.bf16 %v931, %v931
  %vm996 = vcmask 125952
  %997 = vst.msk [vmem:[%s3] sm:$0xf] %vm996, %v932
  %998 = vst.msk [vmem:[%s3 + $0x4] sm:$0xf] %vm996, %v933
  %999 = vst.msk [vmem:[%s3 + $0x8] sm:$0xf] %vm996, %v934
  %1000 = vst.msk [vmem:[%s3 + $0xc] sm:$0xf] %vm996, %v935
  %1001 = vst.msk [vmem:[%s3 + $0x10] sm:$0xf] %vm996, %v936
  %1002 = vst.msk [vmem:[%s3 + $0x14] sm:$0xf] %vm996, %v937
  %1003 = vst.msk [vmem:[%s3 + $0x18] sm:$0xf] %vm996, %v938
  %1004 = vst.msk [vmem:[%s3 + $0x1c] sm:$0xf] %vm996, %v939
  %1005 = vst.msk [vmem:[%s3 + $0x20] sm:$0xf] %vm996, %v940
  %1006 = vst.msk [vmem:[%s3 + $0x24] sm:$0xf] %vm996, %v941
  %1007 = vst.msk [vmem:[%s3 + $0x28] sm:$0xf] %vm996, %v942
  %1008 = vst.msk [vmem:[%s3 + $0x2c] sm:$0xf] %vm996, %v943
  %1009 = vst.msk [vmem:[%s3 + $0x30] sm:$0xf] %vm996, %v944
  %1010 = vst.msk [vmem:[%s3 + $0x34] sm:$0xf] %vm996, %v945
  %1011 = vst.msk [vmem:[%s3 + $0x38] sm:$0xf] %vm996, %v946
  %1012 = vst.msk [vmem:[%s3 + $0x3c] sm:$0xf] %vm996, %v947
  %1013 = vst.msk [vmem:[%s3 + $0x40] sm:$0xf] %vm996, %v948
  %1014 = vst.msk [vmem:[%s3 + $0x44] sm:$0xf] %vm996, %v949
  %1015 = vst.msk [vmem:[%s3 + $0x48] sm:$0xf] %vm996, %v950
  %1016 = vst.msk [vmem:[%s3 + $0x4c] sm:$0xf] %vm996, %v951
  %1017 = vst.msk [vmem:[%s3 + $0x50] sm:$0xf] %vm996, %v952
  %1018 = vst.msk [vmem:[%s3 + $0x54] sm:$0xf] %vm996, %v953
  %1019 = vst.msk [vmem:[%s3 + $0x58] sm:$0xf] %vm996, %v954
  %1020 = vst.msk [vmem:[%s3 + $0x5c] sm:$0xf] %vm996, %v955
  %1021 = vst.msk [vmem:[%s3 + $0x60] sm:$0xf] %vm996, %v956
  %1022 = vst.msk [vmem:[%s3 + $0x64] sm:$0xf] %vm996, %v957
  %1023 = vst.msk [vmem:[%s3 + $0x68] sm:$0xf] %vm996, %v958
  %1024 = vst.msk [vmem:[%s3 + $0x6c] sm:$0xf] %vm996, %v959
  %1025 = vst.msk [vmem:[%s3 + $0x70] sm:$0xf] %vm996, %v960
  %1026 = vst.msk [vmem:[%s3 + $0x74] sm:$0xf] %vm996, %v961
  %1027 = vst.msk [vmem:[%s3 + $0x78] sm:$0xf] %vm996, %v962
  %1028 = vst.msk [vmem:[%s3 + $0x7c] sm:$0xf] %vm996, %v963
  %1029 = vst.msk [vmem:[%s3 + $0x80] sm:$0xf] %vm996, %v964
  %1030 = vst.msk [vmem:[%s3 + $0x84] sm:$0xf] %vm996, %v965
  %1031 = vst.msk [vmem:[%s3 + $0x88] sm:$0xf] %vm996, %v966
  %1032 = vst.msk [vmem:[%s3 + $0x8c] sm:$0xf] %vm996, %v967
  %1033 = vst.msk [vmem:[%s3 + $0x90] sm:$0xf] %vm996, %v968
  %1034 = vst.msk [vmem:[%s3 + $0x94] sm:$0xf] %vm996, %v969
  %1035 = vst.msk [vmem:[%s3 + $0x98] sm:$0xf] %vm996, %v970
  %1036 = vst.msk [vmem:[%s3 + $0x9c] sm:$0xf] %vm996, %v971
  %1037 = vst.msk [vmem:[%s3 + $0xa0] sm:$0xf] %vm996, %v972
  %1038 = vst.msk [vmem:[%s3 + $0xa4] sm:$0xf] %vm996, %v973
  %1039 = vst.msk [vmem:[%s3 + $0xa8] sm:$0xf] %vm996, %v974
  %1040 = vst.msk [vmem:[%s3 + $0xac] sm:$0xf] %vm996, %v975
  %1041 = vst.msk [vmem:[%s3 + $0xb0] sm:$0xf] %vm996, %v976
  %1042 = vst.msk [vmem:[%s3 + $0xb4] sm:$0xf] %vm996, %v977
  %1043 = vst.msk [vmem:[%s3 + $0xb8] sm:$0xf] %vm996, %v978
  %1044 = vst.msk [vmem:[%s3 + $0xbc] sm:$0xf] %vm996, %v979
  %1045 = vst.msk [vmem:[%s3 + $0xc0] sm:$0xf] %vm996, %v980
  %1046 = vst.msk [vmem:[%s3 + $0xc4] sm:$0xf] %vm996, %v981
  %1047 = vst.msk [vmem:[%s3 + $0xc8] sm:$0xf] %vm996, %v982
  %1048 = vst.msk [vmem:[%s3 + $0xcc] sm:$0xf] %vm996, %v983
  %1049 = vst.msk [vmem:[%s3 + $0xd0] sm:$0xf] %vm996, %v984
  %1050 = vst.msk [vmem:[%s3 + $0xd4] sm:$0xf] %vm996, %v985
  %1051 = vst.msk [vmem:[%s3 + $0xd8] sm:$0xf] %vm996, %v986
  %1052 = vst.msk [vmem:[%s3 + $0xdc] sm:$0xf] %vm996, %v987
  %1053 = vst.msk [vmem:[%s3 + $0xe0] sm:$0xf] %vm996, %v988
  %1054 = vst.msk [vmem:[%s3 + $0xe4] sm:$0xf] %vm996, %v989
  %1055 = vst.msk [vmem:[%s3 + $0xe8] sm:$0xf] %vm996, %v990
  %1056 = vst.msk [vmem:[%s3 + $0xec] sm:$0xf] %vm996, %v991
  %1057 = vst.msk [vmem:[%s3 + $0xf0] sm:$0xf] %vm996, %v992
  %1058 = vst.msk [vmem:[%s3 + $0xf4] sm:$0xf] %vm996, %v993
  %1059 = vst.msk [vmem:[%s3 + $0xf8] sm:$0xf] %vm996, %v994
  %1060 = vst.msk [vmem:[%s3 + $0xfc] sm:$0xf] %vm996, %v995
  // Predicated region
  $region14: #{resnet_forward.27} parent=0 // pred_check
    _
  $region15: #{resnet_forward.27} parent=0 // pred_check_branch
    %1062 = sbr.rel (0) target = $region17
  $region16: #{resnet_forward.27} parent=0 // pred_region
    _
  $region17: #{resnet_forward.27} parent=0 // pred_fallthru
    _
  // Predicated region
  $region18: #{resnet_forward.27} parent=0 // pred_check
    _
  $region19: #{resnet_forward.27} parent=0 // pred_check_branch
    %1064 = sbr.rel (0) target = $region21
  $region20: #{resnet_forward.27} parent=0 // pred_region
    _
  $region21: #{resnet_forward.27} parent=0 // pred_fallthru
    _

// kernel: resnet_forward.26
$region0: #{resnet_forward.26}
  #allocation0 [shape = 'u32[]', space=smem, size = 0x4, offset = 0x4, fixed_abs, tag = 'smem constant byte address 0x4 - core index']
  #allocation1 [shape = 'u32[72,128]{1,0:T(1,128)}', space=vmem, size = 0x9000, scoped, tag = 'internal scratch']
  %s0 = inlined_call_operand.vmem [shape: bf16[512,256], index: 0, kind: input, shape index: {}]
  %s1 = inlined_call_operand.vmem [shape: bf16[256,16], index: 1, kind: input, shape index: {}]
  %s2 = inlined_call_operand.vmem [shape: f32[1,16], index: 2, kind: input, shape index: {}]
  %s3 = inlined_call_operand.vmem [shape: bf16[512,16], index: 3, kind: input, shape index: {}]
  %s4 = inlined_call_operand.vmem [shape: bf16[512,16], index: 4, kind: output, shape index: {}]
  %s5 = sld [smem:[#allocation0]]
  $region26: #{resnet_forward.26} parent=0
    _
  %s7 = ssub.s32 1, %s5
  %s8 = scalar_select 0, %s7, %s5
  // Predicated region
  $region2: #{resnet_forward.26} parent=0 // pred_check
    _
  $region3: #{resnet_forward.26} parent=0 // pred_check_branch
    %10 = sbr.rel (0) target = $region5
  $region4: #{resnet_forward.26} parent=0 // pred_region
    _
  $region5: #{resnet_forward.26} parent=0 // pred_fallthru
    _
  // Predicated region
  $region6: #{resnet_forward.26} parent=0 // pred_check
    _
  $region7: #{resnet_forward.26} parent=0 // pred_check_branch
    %12 = sbr.rel (0) target = $region9
  $region8: #{resnet_forward.26} parent=0 // pred_region
    _
  $region9: #{resnet_forward.26} parent=0 // pred_fallthru
    _
  // Predicated region
  $region10: #{resnet_forward.26} parent=0 // pred_check
    _
  $region11: #{resnet_forward.26} parent=0 // pred_check_branch
    %14 = sbr.rel (0) target = $region13
  $region12: #{resnet_forward.26} parent=0 // pred_region
    _
  $region13: #{resnet_forward.26} parent=0 // pred_fallthru
    _
  // Predicated region
  $region14: #{resnet_forward.26} parent=0 // pred_check
    _
  $region15: #{resnet_forward.26} parent=0 // pred_check_branch
    %16 = sbr.rel (0) target = $region17
  $region16: #{resnet_forward.26} parent=0 // pred_region
    _
  $region17: #{resnet_forward.26} parent=0 // pred_fallthru
    _
  %v17 = vld [vmem:[%s0] sm:$0xff]
  %v18 = vld [vmem:[%s0 + $0x8] sm:$0xff]
  %v19 = vld [vmem:[%s0 + $0x10] sm:$0xff]
  %v20 = vld [vmem:[%s0 + $0x18] sm:$0xff]
  %v21 = vld [vmem:[%s0 + $0x20] sm:$0xff]
  %v22 = vld [vmem:[%s0 + $0x28] sm:$0xff]
  %v23 = vld [vmem:[%s0 + $0x30] sm:$0xff]
  %v24 = vld [vmem:[%s0 + $0x38] sm:$0xff]
  %v25 = vld [vmem:[%s0 + $0x40] sm:$0xff]
  %v26 = vld [vmem:[%s0 + $0x48] sm:$0xff]
  %v27 = vld [vmem:[%s0 + $0x50] sm:$0xff]
  %v28 = vld [vmem:[%s0 + $0x58] sm:$0xff]
  %v29 = vld [vmem:[%s0 + $0x60] sm:$0xff]
  %v30 = vld [vmem:[%s0 + $0x68] sm:$0xff]
  %v31 = vld [vmem:[%s0 + $0x70] sm:$0xff]
  %v32 = vld [vmem:[%s0 + $0x78] sm:$0xff]
  %v33 = vld [vmem:[%s0 + $0x80] sm:$0xff]
  %v34 = vld [vmem:[%s0 + $0x88] sm:$0xff]
  %v35 = vld [vmem:[%s0 + $0x90] sm:$0xff]
  %v36 = vld [vmem:[%s0 + $0x98] sm:$0xff]
  %v37 = vld [vmem:[%s0 + $0xa0] sm:$0xff]
  %v38 = vld [vmem:[%s0 + $0xa8] sm:$0xff]
  %v39 = vld [vmem:[%s0 + $0xb0] sm:$0xff]
  %v40 = vld [vmem:[%s0 + $0xb8] sm:$0xff]
  %v41 = vld [vmem:[%s0 + $0xc0] sm:$0xff]
  %v42 = vld [vmem:[%s0 + $0xc8] sm:$0xff]
  %v43 = vld [vmem:[%s0 + $0xd0] sm:$0xff]
  %v44 = vld [vmem:[%s0 + $0xd8] sm:$0xff]
  %v45 = vld [vmem:[%s0 + $0xe0] sm:$0xff]
  %v46 = vld [vmem:[%s0 + $0xe8] sm:$0xff]
  %v47 = vld [vmem:[%s0 + $0xf0] sm:$0xff]
  %v48 = vld [vmem:[%s0 + $0xf8] sm:$0xff]
  %v49 = vld [vmem:[%s0 + $0x100] sm:$0xff]
  %v50 = vld [vmem:[%s0 + $0x108] sm:$0xff]
  %v51 = vld [vmem:[%s0 + $0x110] sm:$0xff]
  %v52 = vld [vmem:[%s0 + $0x118] sm:$0xff]
  %v53 = vld [vmem:[%s0 + $0x120] sm:$0xff]
  %v54 = vld [vmem:[%s0 + $0x128] sm:$0xff]
  %v55 = vld [vmem:[%s0 + $0x130] sm:$0xff]
  %v56 = vld [vmem:[%s0 + $0x138] sm:$0xff]
  %v57 = vld [vmem:[%s0 + $0x140] sm:$0xff]
  %v58 = vld [vmem:[%s0 + $0x148] sm:$0xff]
  %v59 = vld [vmem:[%s0 + $0x150] sm:$0xff]
  %v60 = vld [vmem:[%s0 + $0x158] sm:$0xff]
  %v61 = vld [vmem:[%s0 + $0x160] sm:$0xff]
  %v62 = vld [vmem:[%s0 + $0x168] sm:$0xff]
  %v63 = vld [vmem:[%s0 + $0x170] sm:$0xff]
  %v64 = vld [vmem:[%s0 + $0x178] sm:$0xff]
  %v65 = vld [vmem:[%s0 + $0x180] sm:$0xff]
  %v66 = vld [vmem:[%s0 + $0x188] sm:$0xff]
  %v67 = vld [vmem:[%s0 + $0x190] sm:$0xff]
  %v68 = vld [vmem:[%s0 + $0x198] sm:$0xff]
  %v69 = vld [vmem:[%s0 + $0x1a0] sm:$0xff]
  %v70 = vld [vmem:[%s0 + $0x1a8] sm:$0xff]
  %v71 = vld [vmem:[%s0 + $0x1b0] sm:$0xff]
  %v72 = vld [vmem:[%s0 + $0x1b8] sm:$0xff]
  %v73 = vld [vmem:[%s0 + $0x1c0] sm:$0xff]
  %v74 = vld [vmem:[%s0 + $0x1c8] sm:$0xff]
  %v75 = vld [vmem:[%s0 + $0x1d0] sm:$0xff]
  %v76 = vld [vmem:[%s0 + $0x1d8] sm:$0xff]
  %v77 = vld [vmem:[%s0 + $0x1e0] sm:$0xff]
  %v78 = vld [vmem:[%s0 + $0x1e8] sm:$0xff]
  %v79 = vld [vmem:[%s0 + $0x1f0] sm:$0xff]
  %v80 = vld [vmem:[%s0 + $0x1f8] sm:$0xff]
  %v81 = vld [vmem:[%s1] sm:$0xf]
  %v82 = vld [vmem:[%s1 + $0x4] sm:$0xf]
  %v83 = vld [vmem:[%s1 + $0x8] sm:$0xf]
  %v84 = vld [vmem:[%s1 + $0xc] sm:$0xf]
  %v85 = vld [vmem:[%s1 + $0x10] sm:$0xf]
  %v86 = vld [vmem:[%s1 + $0x14] sm:$0xf]
  %v87 = vld [vmem:[%s1 + $0x18] sm:$0xf]
  %v88 = vld [vmem:[%s1 + $0x1c] sm:$0xf]
  %v89 = vld [vmem:[%s1 + $0x20] sm:$0xf]
  %v90 = vld [vmem:[%s1 + $0x24] sm:$0xf]
  %v91 = vld [vmem:[%s1 + $0x28] sm:$0xf]
  %v92 = vld [vmem:[%s1 + $0x2c] sm:$0xf]
  %v93 = vld [vmem:[%s1 + $0x30] sm:$0xf]
  %v94 = vld [vmem:[%s1 + $0x34] sm:$0xf]
  %v95 = vld [vmem:[%s1 + $0x38] sm:$0xf]
  %v96 = vld [vmem:[%s1 + $0x3c] sm:$0xf]
  %v97 = vld [vmem:[%s1 + $0x40] sm:$0xf]
  %v98 = vld [vmem:[%s1 + $0x44] sm:$0xf]
  %v99 = vld [vmem:[%s1 + $0x48] sm:$0xf]
  %v100 = vld [vmem:[%s1 + $0x4c] sm:$0xf]
  %v101 = vld [vmem:[%s1 + $0x50] sm:$0xf]
  %v102 = vld [vmem:[%s1 + $0x54] sm:$0xf]
  %v103 = vld [vmem:[%s1 + $0x58] sm:$0xf]
  %v104 = vld [vmem:[%s1 + $0x5c] sm:$0xf]
  %v105 = vld [vmem:[%s1 + $0x60] sm:$0xf]
  %v106 = vld [vmem:[%s1 + $0x64] sm:$0xf]
  %v107 = vld [vmem:[%s1 + $0x68] sm:$0xf]
  %v108 = vld [vmem:[%s1 + $0x6c] sm:$0xf]
  %v109 = vld [vmem:[%s1 + $0x70] sm:$0xf]
  %v110 = vld [vmem:[%s1 + $0x74] sm:$0xf]
  %v111 = vld [vmem:[%s1 + $0x78] sm:$0xf]
  %v112 = vld [vmem:[%s1 + $0x7c] sm:$0xf]
  %v113 = vld [vmem:[%s2] sm:$0x1]
  %v115 = vperm.slane %v113, 0
  %v181 = vunpack.c.l.b16 %v17
  %v182 = vunpack.c.h.b16 %v17
  %v183 = vunpack.c.l.b16 %v18
  %v184 = vunpack.c.h.b16 %v18
  %v185 = vunpack.c.l.b16 %v19
  %v186 = vunpack.c.h.b16 %v19
  %v187 = vunpack.c.l.b16 %v20
  %v188 = vunpack.c.h.b16 %v20
  %v189 = vunpack.c.l.b16 %v21
  %v190 = vunpack.c.h.b16 %v21
  %v191 = vunpack.c.l.b16 %v22
  %v192 = vunpack.c.h.b16 %v22
  %v193 = vunpack.c.l.b16 %v23
  %v194 = vunpack.c.h.b16 %v23
  %v195 = vunpack.c.l.b16 %v24
  %v196 = vunpack.c.h.b16 %v24
  %v197 = vunpack.c.l.b16 %v25
  %v198 = vunpack.c.h.b16 %v25
  %v199 = vunpack.c.l.b16 %v26
  %v200 = vunpack.c.h.b16 %v26
  %v201 = vunpack.c.l.b16 %v27
  %v202 = vunpack.c.h.b16 %v27
  %v203 = vunpack.c.l.b16 %v28
  %v204 = vunpack.c.h.b16 %v28
  %v205 = vunpack.c.l.b16 %v29
  %v206 = vunpack.c.h.b16 %v29
  %v207 = vunpack.c.l.b16 %v30
  %v208 = vunpack.c.h.b16 %v30
  %v209 = vunpack.c.l.b16 %v31
  %v210 = vunpack.c.h.b16 %v31
  %v211 = vunpack.c.l.b16 %v32
  %v212 = vunpack.c.h.b16 %v32
  %v213 = vunpack.c.l.b16 %v33
  %v214 = vunpack.c.h.b16 %v33
  %v215 = vunpack.c.l.b16 %v34
  %v216 = vunpack.c.h.b16 %v34
  %v217 = vunpack.c.l.b16 %v35
  %v218 = vunpack.c.h.b16 %v35
  %v219 = vunpack.c.l.b16 %v36
  %v220 = vunpack.c.h.b16 %v36
  %v221 = vunpack.c.l.b16 %v37
  %v222 = vunpack.c.h.b16 %v37
  %v223 = vunpack.c.l.b16 %v38
  %v224 = vunpack.c.h.b16 %v38
  %v225 = vunpack.c.l.b16 %v39
  %v226 = vunpack.c.h.b16 %v39
  %v227 = vunpack.c.l.b16 %v40
  %v228 = vunpack.c.h.b16 %v40
  %v229 = vunpack.c.l.b16 %v41
  %v230 = vunpack.c.h.b16 %v41
  %v231 = vunpack.c.l.b16 %v42
  %v232 = vunpack.c.h.b16 %v42
  %v233 = vunpack.c.l.b16 %v43
  %v234 = vunpack.c.h.b16 %v43
  %v235 = vunpack.c.l.b16 %v44
  %v236 = vunpack.c.h.b16 %v44
  %v237 = vunpack.c.l.b16 %v45
  %v238 = vunpack.c.h.b16 %v45
  %v239 = vunpack.c.l.b16 %v46
  %v240 = vunpack.c.h.b16 %v46
  %v241 = vunpack.c.l.b16 %v47
  %v242 = vunpack.c.h.b16 %v47
  %v243 = vunpack.c.l.b16 %v48
  %v244 = vunpack.c.h.b16 %v48
  %v245 = vunpack.c.l.b16 %v49
  %v246 = vunpack.c.h.b16 %v49
  %v247 = vunpack.c.l.b16 %v50
  %v248 = vunpack.c.h.b16 %v50
  %v249 = vunpack.c.l.b16 %v51
  %v250 = vunpack.c.h.b16 %v51
  %v251 = vunpack.c.l.b16 %v52
  %v252 = vunpack.c.h.b16 %v52
  %v253 = vunpack.c.l.b16 %v53
  %v254 = vunpack.c.h.b16 %v53
  %v255 = vunpack.c.l.b16 %v54
  %v256 = vunpack.c.h.b16 %v54
  %v257 = vunpack.c.l.b16 %v55
  %v258 = vunpack.c.h.b16 %v55
  %v259 = vunpack.c.l.b16 %v56
  %v260 = vunpack.c.h.b16 %v56
  %v261 = vunpack.c.l.b16 %v57
  %v262 = vunpack.c.h.b16 %v57
  %v263 = vunpack.c.l.b16 %v58
  %v264 = vunpack.c.h.b16 %v58
  %v265 = vunpack.c.l.b16 %v59
  %v266 = vunpack.c.h.b16 %v59
  %v267 = vunpack.c.l.b16 %v60
  %v268 = vunpack.c.h.b16 %v60
  %v269 = vunpack.c.l.b16 %v61
  %v270 = vunpack.c.h.b16 %v61
  %v271 = vunpack.c.l.b16 %v62
  %v272 = vunpack.c.h.b16 %v62
  %v273 = vunpack.c.l.b16 %v63
  %v274 = vunpack.c.h.b16 %v63
  %v275 = vunpack.c.l.b16 %v64
  %v276 = vunpack.c.h.b16 %v64
  %v277 = vunpack.c.l.b16 %v65
  %v278 = vunpack.c.h.b16 %v65
  %v279 = vunpack.c.l.b16 %v66
  %v280 = vunpack.c.h.b16 %v66
  %v281 = vunpack.c.l.b16 %v67
  %v282 = vunpack.c.h.b16 %v67
  %v283 = vunpack.c.l.b16 %v68
  %v284 = vunpack.c.h.b16 %v68
  %v285 = vunpack.c.l.b16 %v69
  %v286 = vunpack.c.h.b16 %v69
  %v287 = vunpack.c.l.b16 %v70
  %v288 = vunpack.c.h.b16 %v70
  %v289 = vunpack.c.l.b16 %v71
  %v290 = vunpack.c.h.b16 %v71
  %v291 = vunpack.c.l.b16 %v72
  %v292 = vunpack.c.h.b16 %v72
  %v293 = vunpack.c.l.b16 %v73
  %v294 = vunpack.c.h.b16 %v73
  %v295 = vunpack.c.l.b16 %v74
  %v296 = vunpack.c.h.b16 %v74
  %v297 = vunpack.c.l.b16 %v75
  %v298 = vunpack.c.h.b16 %v75
  %v299 = vunpack.c.l.b16 %v76
  %v300 = vunpack.c.h.b16 %v76
  %v301 = vunpack.c.l.b16 %v77
  %v302 = vunpack.c.h.b16 %v77
  %v303 = vunpack.c.l.b16 %v78
  %v304 = vunpack.c.h.b16 %v78
  %v305 = vunpack.c.l.b16 %v79
  %v306 = vunpack.c.h.b16 %v79
  %v307 = vunpack.c.l.b16 %v80
  %v308 = vunpack.c.h.b16 %v80
  %v309 = vpack.c.b16 %v183, %v181
  %v310 = vpack.c.b16 %v184, %v182
  %v311 = vpack.c.b16 %v187, %v185
  %v312 = vpack.c.b16 %v188, %v186
  %v313 = vpack.c.b16 %v191, %v189
  %v314 = vpack.c.b16 %v192, %v190
  %v315 = vpack.c.b16 %v195, %v193
  %v316 = vpack.c.b16 %v196, %v194
  %v317 = vpack.c.b16 %v199, %v197
  %v318 = vpack.c.b16 %v200, %v198
  %v319 = vpack.c.b16 %v203, %v201
  %v320 = vpack.c.b16 %v204, %v202
  %v321 = vpack.c.b16 %v207, %v205
  %v322 = vpack.c.b16 %v208, %v206
  %v323 = vpack.c.b16 %v211, %v209
  %v324 = vpack.c.b16 %v212, %v210
  %v325 = vpack.c.b16 %v215, %v213
  %v326 = vpack.c.b16 %v216, %v214
  %v327 = vpack.c.b16 %v219, %v217
  %v328 = vpack.c.b16 %v220, %v218
  %v329 = vpack.c.b16 %v223, %v221
  %v330 = vpack.c.b16 %v224, %v222
  %v331 = vpack.c.b16 %v227, %v225
  %v332 = vpack.c.b16 %v228, %v226
  %v333 = vpack.c.b16 %v231, %v229
  %v334 = vpack.c.b16 %v232, %v230
  %v335 = vpack.c.b16 %v235, %v233
  %v336 = vpack.c.b16 %v236, %v234
  %v337 = vpack.c.b16 %v239, %v237
  %v338 = vpack.c.b16 %v240, %v238
  %v339 = vpack.c.b16 %v243, %v241
  %v340 = vpack.c.b16 %v244, %v242
  %v341 = vpack.c.b16 %v247, %v245
  %v342 = vpack.c.b16 %v248, %v246
  %v343 = vpack.c.b16 %v251, %v249
  %v344 = vpack.c.b16 %v252, %v250
  %v345 = vpack.c.b16 %v255, %v253
  %v346 = vpack.c.b16 %v256, %v254
  %v347 = vpack.c.b16 %v259, %v257
  %v348 = vpack.c.b16 %v260, %v258
  %v349 = vpack.c.b16 %v263, %v261
  %v350 = vpack.c.b16 %v264, %v262
  %v351 = vpack.c.b16 %v267, %v265
  %v352 = vpack.c.b16 %v268, %v266
  %v353 = vpack.c.b16 %v271, %v269
  %v354 = vpack.c.b16 %v272, %v270
  %v355 = vpack.c.b16 %v275, %v273
  %v356 = vpack.c.b16 %v276, %v274
  %v357 = vpack.c.b16 %v279, %v277
  %v358 = vpack.c.b16 %v280, %v278
  %v359 = vpack.c.b16 %v283, %v281
  %v360 = vpack.c.b16 %v284, %v282
  %v361 = vpack.c.b16 %v287, %v285
  %v362 = vpack.c.b16 %v288, %v286
  %v363 = vpack.c.b16 %v291, %v289
  %v364 = vpack.c.b16 %v292, %v290
  %v365 = vpack.c.b16 %v295, %v293
  %v366 = vpack.c.b16 %v296, %v294
  %v367 = vpack.c.b16 %v299, %v297
  %v368 = vpack.c.b16 %v300, %v298
  %v369 = vpack.c.b16 %v303, %v301
  %v370 = vpack.c.b16 %v304, %v302
  %v371 = vpack.c.b16 %v307, %v305
  %v372 = vpack.c.b16 %v308, %v306
  %v469 = vunpack.c.l.b16 %v81
  %v470 = vunpack.c.l.b16 %v82
  %v471 = vunpack.c.l.b16 %v83
  %v472 = vunpack.c.l.b16 %v84
  %v473 = vunpack.c.l.b16 %v85
  %v474 = vunpack.c.l.b16 %v86
  %v475 = vunpack.c.l.b16 %v87
  %v476 = vunpack.c.l.b16 %v88
  %v477 = vunpack.c.l.b16 %v89
  %v478 = vunpack.c.l.b16 %v90
  %v479 = vunpack.c.l.b16 %v91
  %v480 = vunpack.c.l.b16 %v92
  %v481 = vunpack.c.l.b16 %v93
  %v482 = vunpack.c.l.b16 %v94
  %v483 = vunpack.c.l.b16 %v95
  %v484 = vunpack.c.l.b16 %v96
  %v485 = vunpack.c.l.b16 %v97
  %v486 = vunpack.c.l.b16 %v98
  %v487 = vunpack.c.l.b16 %v99
  %v488 = vunpack.c.l.b16 %v100
  %v489 = vunpack.c.l.b16 %v101
  %v490 = vunpack.c.l.b16 %v102
  %v491 = vunpack.c.l.b16 %v103
  %v492 = vunpack.c.l.b16 %v104
  %v493 = vunpack.c.l.b16 %v105
  %v494 = vunpack.c.l.b16 %v106
  %v495 = vunpack.c.l.b16 %v107
  %v496 = vunpack.c.l.b16 %v108
  %v497 = vunpack.c.l.b16 %v109
  %v498 = vunpack.c.l.b16 %v110
  %v499 = vunpack.c.l.b16 %v111
  %v500 = vunpack.c.l.b16 %v112
  %v501 = vpack.c.b16 %v470, %v469
  %v502 = vpack.c.b16 %v472, %v471
  %v503 = vpack.c.b16 %v474, %v473
  %v504 = vpack.c.b16 %v476, %v475
  %v505 = vpack.c.b16 %v478, %v477
  %v506 = vpack.c.b16 %v480, %v479
  %v507 = vpack.c.b16 %v482, %v481
  %v508 = vpack.c.b16 %v484, %v483
  %v509 = vpack.c.b16 %v486, %v485
  %v510 = vpack.c.b16 %v488, %v487
  %v511 = vpack.c.b16 %v490, %v489
  %v512 = vpack.c.b16 %v492, %v491
  %v513 = vpack.c.b16 %v494, %v493
  %v514 = vpack.c.b16 %v496, %v495
  %v515 = vpack.c.b16 %v498, %v497
  %v516 = vpack.c.b16 %v500, %v499
  %533 = vmatpush.bf16.msra.mxu0 %v508
  %534 = vmatpush.bf16.msra.mxu0 %v507
  %535 = vmatpush.bf16.msra.mxu0 %v506
  %536 = vmatpush.bf16.msra.mxu0 %v505
  %537 = vmatpush.bf16.msra.mxu0 %v504
  %538 = vmatpush.bf16.msra.mxu0 %v503
  %539 = vmatpush.bf16.msra.mxu0 %v502
  %540 = vmatpush.bf16.msra.mxu0 %v501
  %541 = vmatmul.bf16.gmra.mxu0 %v309
  %v542 = vpop.f32.mrf.mxu0
  %v543 = vadd.f32 %v115, %v542
  %v544 = vpop.f32.mrf.mxu0
  %v545 = vadd.f32 %v115, %v544
  %546 = vmatmul.bf16.gmra.mxu0 %v311
  %v547 = vpop.f32.mrf.mxu0
  %v548 = vadd.f32 %v115, %v547
  %v549 = vpop.f32.mrf.mxu0
  %v550 = vadd.f32 %v115, %v549
  %551 = vmatmul.bf16.gmra.mxu0 %v313
  %v552 = vpop.f32.mrf.mxu0
  %v553 = vadd.f32 %v115, %v552
  %v554 = vpop.f32.mrf.mxu0
  %v555 = vadd.f32 %v115, %v554
  %556 = vmatmul.bf16.gmra.mxu0 %v315
  %v557 = vpop.f32.mrf.mxu0
  %v558 = vadd.f32 %v115, %v557
  %v559 = vpop.f32.mrf.mxu0
  %v560 = vadd.f32 %v115, %v559
  %561 = vmatmul.bf16.gmra.mxu0 %v317
  %v562 = vpop.f32.mrf.mxu0
  %v563 = vadd.f32 %v115, %v562
  %v564 = vpop.f32.mrf.mxu0
  %v565 = vadd.f32 %v115, %v564
  %566 = vmatmul.bf16.gmra.mxu0 %v319
  %v567 = vpop.f32.mrf.mxu0
  %v568 = vadd.f32 %v115, %v567
  %v569 = vpop.f32.mrf.mxu0
  %v570 = vadd.f32 %v115, %v569
  %571 = vmatmul.bf16.gmra.mxu0 %v321
  %v572 = vpop.f32.mrf.mxu0
  %v573 = vadd.f32 %v115, %v572
  %v574 = vpop.f32.mrf.mxu0
  %v575 = vadd.f32 %v115, %v574
  %576 = vmatmul.bf16.gmra.mxu0 %v323
  %v577 = vpop.f32.mrf.mxu0
  %v578 = vadd.f32 %v115, %v577
  %v579 = vpop.f32.mrf.mxu0
  %v580 = vadd.f32 %v115, %v579
  %581 = vmatmul.bf16.gmra.mxu0 %v325
  %v582 = vpop.f32.mrf.mxu0
  %v583 = vadd.f32 %v115, %v582
  %v584 = vpop.f32.mrf.mxu0
  %v585 = vadd.f32 %v115, %v584
  %586 = vmatmul.bf16.gmra.mxu0 %v327
  %v587 = vpop.f32.mrf.mxu0
  %v588 = vadd.f32 %v115, %v587
  %v589 = vpop.f32.mrf.mxu0
  %v590 = vadd.f32 %v115, %v589
  %591 = vmatmul.bf16.gmra.mxu0 %v329
  %v592 = vpop.f32.mrf.mxu0
  %v593 = vadd.f32 %v115, %v592
  %v594 = vpop.f32.mrf.mxu0
  %v595 = vadd.f32 %v115, %v594
  %596 = vmatmul.bf16.gmra.mxu0 %v331
  %v597 = vpop.f32.mrf.mxu0
  %v598 = vadd.f32 %v115, %v597
  %v599 = vpop.f32.mrf.mxu0
  %v600 = vadd.f32 %v115, %v599
  %601 = vmatmul.bf16.gmra.mxu0 %v333
  %v602 = vpop.f32.mrf.mxu0
  %v603 = vadd.f32 %v115, %v602
  %v604 = vpop.f32.mrf.mxu0
  %v605 = vadd.f32 %v115, %v604
  %606 = vmatmul.bf16.gmra.mxu0 %v335
  %v607 = vpop.f32.mrf.mxu0
  %v608 = vadd.f32 %v115, %v607
  %v609 = vpop.f32.mrf.mxu0
  %v610 = vadd.f32 %v115, %v609
  %611 = vmatmul.bf16.gmra.mxu0 %v337
  %v612 = vpop.f32.mrf.mxu0
  %v613 = vadd.f32 %v115, %v612
  %v614 = vpop.f32.mrf.mxu0
  %v615 = vadd.f32 %v115, %v614
  %616 = vmatmul.bf16.gmra.mxu0 %v339
  %v617 = vpop.f32.mrf.mxu0
  %v618 = vadd.f32 %v115, %v617
  %v619 = vpop.f32.mrf.mxu0
  %v620 = vadd.f32 %v115, %v619
  %621 = vmatmul.bf16.gmra.mxu0 %v341
  %v622 = vpop.f32.mrf.mxu0
  %v623 = vadd.f32 %v115, %v622
  %v624 = vpop.f32.mrf.mxu0
  %v625 = vadd.f32 %v115, %v624
  %626 = vmatmul.bf16.gmra.mxu0 %v343
  %v627 = vpop.f32.mrf.mxu0
  %v628 = vadd.f32 %v115, %v627
  %v629 = vpop.f32.mrf.mxu0
  %v630 = vadd.f32 %v115, %v629
  %631 = vmatmul.bf16.gmra.mxu0 %v345
  %v632 = vpop.f32.mrf.mxu0
  %v633 = vadd.f32 %v115, %v632
  %v634 = vpop.f32.mrf.mxu0
  %v635 = vadd.f32 %v115, %v634
  %636 = vmatmul.bf16.gmra.mxu0 %v347
  %v637 = vpop.f32.mrf.mxu0
  %v638 = vadd.f32 %v115, %v637
  %v639 = vpop.f32.mrf.mxu0
  %v640 = vadd.f32 %v115, %v639
  %641 = vmatmul.bf16.gmra.mxu0 %v349
  %v642 = vpop.f32.mrf.mxu0
  %v643 = vadd.f32 %v115, %v642
  %v644 = vpop.f32.mrf.mxu0
  %v645 = vadd.f32 %v115, %v644
  %646 = vmatmul.bf16.gmra.mxu0 %v351
  %v647 = vpop.f32.mrf.mxu0
  %v648 = vadd.f32 %v115, %v647
  %v649 = vpop.f32.mrf.mxu0
  %v650 = vadd.f32 %v115, %v649
  %651 = vmatmul.bf16.gmra.mxu0 %v353
  %v652 = vpop.f32.mrf.mxu0
  %v653 = vadd.f32 %v115, %v652
  %v654 = vpop.f32.mrf.mxu0
  %v655 = vadd.f32 %v115, %v654
  %656 = vmatmul.bf16.gmra.mxu0 %v355
  %v657 = vpop.f32.mrf.mxu0
  %v658 = vadd.f32 %v115, %v657
  %v659 = vpop.f32.mrf.mxu0
  %v660 = vadd.f32 %v115, %v659
  %661 = vmatmul.bf16.gmra.mxu0 %v357
  %v662 = vpop.f32.mrf.mxu0
  %v663 = vadd.f32 %v115, %v662
  %v664 = vpop.f32.mrf.mxu0
  %v665 = vadd.f32 %v115, %v664
  %666 = vmatmul.bf16.gmra.mxu0 %v359
  %v667 = vpop.f32.mrf.mxu0
  %v668 = vadd.f32 %v115, %v667
  %v669 = vpop.f32.mrf.mxu0
  %v670 = vadd.f32 %v115, %v669
  %671 = vmatmul.bf16.gmra.mxu0 %v361
  %v672 = vpop.f32.mrf.mxu0
  %v673 = vadd.f32 %v115, %v672
  %v674 = vpop.f32.mrf.mxu0
  %v675 = vadd.f32 %v115, %v674
  %676 = vmatmul.bf16.gmra.mxu0 %v363
  %v677 = vpop.f32.mrf.mxu0
  %v678 = vadd.f32 %v115, %v677
  %v679 = vpop.f32.mrf.mxu0
  %v680 = vadd.f32 %v115, %v679
  %681 = vmatmul.bf16.gmra.mxu0 %v365
  %v682 = vpop.f32.mrf.mxu0
  %v683 = vadd.f32 %v115, %v682
  %v684 = vpop.f32.mrf.mxu0
  %v685 = vadd.f32 %v115, %v684
  %686 = vmatmul.bf16.gmra.mxu0 %v367
  %v687 = vpop.f32.mrf.mxu0
  %v688 = vadd.f32 %v115, %v687
  %v689 = vpop.f32.mrf.mxu0
  %v690 = vadd.f32 %v115, %v689
  %691 = vmatmul.bf16.gmra.mxu0 %v369
  %v692 = vpop.f32.mrf.mxu0
  %v693 = vadd.f32 %v115, %v692
  %v694 = vpop.f32.mrf.mxu0
  %v695 = vadd.f32 %v115, %v694
  %696 = vmatmul.bf16.gmra.mxu0 %v371
  %v697 = vpop.f32.mrf.mxu0
  %v698 = vadd.f32 %v115, %v697
  %v699 = vpop.f32.mrf.mxu0
  %v700 = vadd.f32 %v115, %v699
  %701 = vdwg.mxu0
  %702 = vmatpush.bf16.msra.mxu0 %v516
  %703 = vmatpush.bf16.msra.mxu0 %v515
  %704 = vmatpush.bf16.msra.mxu0 %v514
  %705 = vmatpush.bf16.msra.mxu0 %v513
  %706 = vmatpush.bf16.msra.mxu0 %v512
  %707 = vmatpush.bf16.msra.mxu0 %v511
  %708 = vmatpush.bf16.msra.mxu0 %v510
  %709 = vmatpush.bf16.msra.mxu0 %v509
  %710 = vmatmul.bf16.gmra.mxu0 %v310
  %v711 = vpop.f32.mrf.mxu0
  %v712 = vadd.f32 %v543, %v711
  %v713 = vpop.f32.mrf.mxu0
  %v714 = vadd.f32 %v545, %v713
  %715 = vmatmul.bf16.gmra.mxu0 %v312
  %v716 = vpop.f32.mrf.mxu0
  %v717 = vadd.f32 %v548, %v716
  %v718 = vpop.f32.mrf.mxu0
  %v719 = vadd.f32 %v550, %v718
  %720 = vmatmul.bf16.gmra.mxu0 %v314
  %v721 = vpop.f32.mrf.mxu0
  %v722 = vadd.f32 %v553, %v721
  %v723 = vpop.f32.mrf.mxu0
  %v724 = vadd.f32 %v555, %v723
  %725 = vmatmul.bf16.gmra.mxu0 %v316
  %v726 = vpop.f32.mrf.mxu0
  %v727 = vadd.f32 %v558, %v726
  %v728 = vpop.f32.mrf.mxu0
  %v729 = vadd.f32 %v560, %v728
  %730 = vmatmul.bf16.gmra.mxu0 %v318
  %v731 = vpop.f32.mrf.mxu0
  %v732 = vadd.f32 %v563, %v731
  %v733 = vpop.f32.mrf.mxu0
  %v734 = vadd.f32 %v565, %v733
  %735 = vmatmul.bf16.gmra.mxu0 %v320
  %v736 = vpop.f32.mrf.mxu0
  %v737 = vadd.f32 %v568, %v736
  %v738 = vpop.f32.mrf.mxu0
  %v739 = vadd.f32 %v570, %v738
  %740 = vmatmul.bf16.gmra.mxu0 %v322
  %v741 = vpop.f32.mrf.mxu0
  %v742 = vadd.f32 %v573, %v741
  %v743 = vpop.f32.mrf.mxu0
  %v744 = vadd.f32 %v575, %v743
  %745 = vmatmul.bf16.gmra.mxu0 %v324
  %v746 = vpop.f32.mrf.mxu0
  %v747 = vadd.f32 %v578, %v746
  %v748 = vpop.f32.mrf.mxu0
  %v749 = vadd.f32 %v580, %v748
  %750 = vmatmul.bf16.gmra.mxu0 %v326
  %v751 = vpop.f32.mrf.mxu0
  %v752 = vadd.f32 %v583, %v751
  %v753 = vpop.f32.mrf.mxu0
  %v754 = vadd.f32 %v585, %v753
  %755 = vmatmul.bf16.gmra.mxu0 %v328
  %v756 = vpop.f32.mrf.mxu0
  %v757 = vadd.f32 %v588, %v756
  %v758 = vpop.f32.mrf.mxu0
  %v759 = vadd.f32 %v590, %v758
  %760 = vmatmul.bf16.gmra.mxu0 %v330
  %v761 = vpop.f32.mrf.mxu0
  %v762 = vadd.f32 %v593, %v761
  %v763 = vpop.f32.mrf.mxu0
  %v764 = vadd.f32 %v595, %v763
  %765 = vmatmul.bf16.gmra.mxu0 %v332
  %v766 = vpop.f32.mrf.mxu0
  %v767 = vadd.f32 %v598, %v766
  %v768 = vpop.f32.mrf.mxu0
  %v769 = vadd.f32 %v600, %v768
  %770 = vmatmul.bf16.gmra.mxu0 %v334
  %v771 = vpop.f32.mrf.mxu0
  %v772 = vadd.f32 %v603, %v771
  %v773 = vpop.f32.mrf.mxu0
  %v774 = vadd.f32 %v605, %v773
  %775 = vmatmul.bf16.gmra.mxu0 %v336
  %v776 = vpop.f32.mrf.mxu0
  %v777 = vadd.f32 %v608, %v776
  %v778 = vpop.f32.mrf.mxu0
  %v779 = vadd.f32 %v610, %v778
  %780 = vmatmul.bf16.gmra.mxu0 %v338
  %v781 = vpop.f32.mrf.mxu0
  %v782 = vadd.f32 %v613, %v781
  %v783 = vpop.f32.mrf.mxu0
  %v784 = vadd.f32 %v615, %v783
  %785 = vmatmul.bf16.gmra.mxu0 %v340
  %v786 = vpop.f32.mrf.mxu0
  %v787 = vadd.f32 %v618, %v786
  %v788 = vpop.f32.mrf.mxu0
  %v789 = vadd.f32 %v620, %v788
  %790 = vmatmul.bf16.gmra.mxu0 %v342
  %v791 = vpop.f32.mrf.mxu0
  %v792 = vadd.f32 %v623, %v791
  %v793 = vpop.f32.mrf.mxu0
  %v794 = vadd.f32 %v625, %v793
  %795 = vmatmul.bf16.gmra.mxu0 %v344
  %v796 = vpop.f32.mrf.mxu0
  %v797 = vadd.f32 %v628, %v796
  %v798 = vpop.f32.mrf.mxu0
  %v799 = vadd.f32 %v630, %v798
  %800 = vmatmul.bf16.gmra.mxu0 %v346
  %v801 = vpop.f32.mrf.mxu0
  %v802 = vadd.f32 %v633, %v801
  %v803 = vpop.f32.mrf.mxu0
  %v804 = vadd.f32 %v635, %v803
  %805 = vmatmul.bf16.gmra.mxu0 %v348
  %v806 = vpop.f32.mrf.mxu0
  %v807 = vadd.f32 %v638, %v806
  %v808 = vpop.f32.mrf.mxu0
  %v809 = vadd.f32 %v640, %v808
  %810 = vmatmul.bf16.gmra.mxu0 %v350
  %v811 = vpop.f32.mrf.mxu0
  %v812 = vadd.f32 %v643, %v811
  %v813 = vpop.f32.mrf.mxu0
  %v814 = vadd.f32 %v645, %v813
  %815 = vmatmul.bf16.gmra.mxu0 %v352
  %v816 = vpop.f32.mrf.mxu0
  %v817 = vadd.f32 %v648, %v816
  %v818 = vpop.f32.mrf.mxu0
  %v819 = vadd.f32 %v650, %v818
  %820 = vmatmul.bf16.gmra.mxu0 %v354
  %v821 = vpop.f32.mrf.mxu0
  %v822 = vadd.f32 %v653, %v821
  %v823 = vpop.f32.mrf.mxu0
  %v824 = vadd.f32 %v655, %v823
  %825 = vmatmul.bf16.gmra.mxu0 %v356
  %v826 = vpop.f32.mrf.mxu0
  %v827 = vadd.f32 %v658, %v826
  %v828 = vpop.f32.mrf.mxu0
  %v829 = vadd.f32 %v660, %v828
  %830 = vmatmul.bf16.gmra.mxu0 %v358
  %v831 = vpop.f32.mrf.mxu0
  %v832 = vadd.f32 %v663, %v831
  %v833 = vpop.f32.mrf.mxu0
  %v834 = vadd.f32 %v665, %v833
  %835 = vmatmul.bf16.gmra.mxu0 %v360
  %v836 = vpop.f32.mrf.mxu0
  %v837 = vadd.f32 %v668, %v836
  %v838 = vpop.f32.mrf.mxu0
  %v839 = vadd.f32 %v670, %v838
  %840 = vmatmul.bf16.gmra.mxu0 %v362
  %v841 = vpop.f32.mrf.mxu0
  %v842 = vadd.f32 %v673, %v841
  %v843 = vpop.f32.mrf.mxu0
  %v844 = vadd.f32 %v675, %v843
  %845 = vmatmul.bf16.gmra.mxu0 %v364
  %v846 = vpop.f32.mrf.mxu0
  %v847 = vadd.f32 %v678, %v846
  %v848 = vpop.f32.mrf.mxu0
  %v849 = vadd.f32 %v680, %v848
  %850 = vmatmul.bf16.gmra.mxu0 %v366
  %v851 = vpop.f32.mrf.mxu0
  %v852 = vadd.f32 %v683, %v851
  %v853 = vpop.f32.mrf.mxu0
  %v854 = vadd.f32 %v685, %v853
  %855 = vmatmul.bf16.gmra.mxu0 %v368
  %v856 = vpop.f32.mrf.mxu0
  %v857 = vadd.f32 %v688, %v856
  %v858 = vpop.f32.mrf.mxu0
  %v859 = vadd.f32 %v690, %v858
  %860 = vmatmul.bf16.gmra.mxu0 %v370
  %v861 = vpop.f32.mrf.mxu0
  %v862 = vadd.f32 %v693, %v861
  %v863 = vpop.f32.mrf.mxu0
  %v864 = vadd.f32 %v695, %v863
  %865 = vmatmul.bf16.gmra.mxu0 %v372
  %v866 = vpop.f32.mrf.mxu0
  %v867 = vadd.f32 %v698, %v866
  %v868 = vpop.f32.mrf.mxu0
  %v869 = vadd.f32 %v700, %v868
  %870 = vdwg.mxu0
  %v871 = vld [vmem:[%s3] sm:$0xf]
  %v872 = vld [vmem:[%s3 + $0x4] sm:$0xf]
  %v873 = vld [vmem:[%s3 + $0x8] sm:$0xf]
  %v874 = vld [vmem:[%s3 + $0xc] sm:$0xf]
  %v875 = vld [vmem:[%s3 + $0x10] sm:$0xf]
  %v876 = vld [vmem:[%s3 + $0x14] sm:$0xf]
  %v877 = vld [vmem:[%s3 + $0x18] sm:$0xf]
  %v878 = vld [vmem:[%s3 + $0x1c] sm:$0xf]
  %v879 = vld [vmem:[%s3 + $0x20] sm:$0xf]
  %v880 = vld [vmem:[%s3 + $0x24] sm:$0xf]
  %v881 = vld [vmem:[%s3 + $0x28] sm:$0xf]
  %v882 = vld [vmem:[%s3 + $0x2c] sm:$0xf]
  %v883 = vld [vmem:[%s3 + $0x30] sm:$0xf]
  %v884 = vld [vmem:[%s3 + $0x34] sm:$0xf]
  %v885 = vld [vmem:[%s3 + $0x38] sm:$0xf]
  %v886 = vld [vmem:[%s3 + $0x3c] sm:$0xf]
  %v887 = vld [vmem:[%s3 + $0x40] sm:$0xf]
  %v888 = vld [vmem:[%s3 + $0x44] sm:$0xf]
  %v889 = vld [vmem:[%s3 + $0x48] sm:$0xf]
  %v890 = vld [vmem:[%s3 + $0x4c] sm:$0xf]
  %v891 = vld [vmem:[%s3 + $0x50] sm:$0xf]
  %v892 = vld [vmem:[%s3 + $0x54] sm:$0xf]
  %v893 = vld [vmem:[%s3 + $0x58] sm:$0xf]
  %v894 = vld [vmem:[%s3 + $0x5c] sm:$0xf]
  %v895 = vld [vmem:[%s3 + $0x60] sm:$0xf]
  %v896 = vld [vmem:[%s3 + $0x64] sm:$0xf]
  %v897 = vld [vmem:[%s3 + $0x68] sm:$0xf]
  %v898 = vld [vmem:[%s3 + $0x6c] sm:$0xf]
  %v899 = vld [vmem:[%s3 + $0x70] sm:$0xf]
  %v900 = vld [vmem:[%s3 + $0x74] sm:$0xf]
  %v901 = vld [vmem:[%s3 + $0x78] sm:$0xf]
  %v902 = vld [vmem:[%s3 + $0x7c] sm:$0xf]
  %v903 = vld [vmem:[%s3 + $0x80] sm:$0xf]
  %v904 = vld [vmem:[%s3 + $0x84] sm:$0xf]
  %v905 = vld [vmem:[%s3 + $0x88] sm:$0xf]
  %v906 = vld [vmem:[%s3 + $0x8c] sm:$0xf]
  %v907 = vld [vmem:[%s3 + $0x90] sm:$0xf]
  %v908 = vld [vmem:[%s3 + $0x94] sm:$0xf]
  %v909 = vld [vmem:[%s3 + $0x98] sm:$0xf]
  %v910 = vld [vmem:[%s3 + $0x9c] sm:$0xf]
  %v911 = vld [vmem:[%s3 + $0xa0] sm:$0xf]
  %v912 = vld [vmem:[%s3 + $0xa4] sm:$0xf]
  %v913 = vld [vmem:[%s3 + $0xa8] sm:$0xf]
  %v914 = vld [vmem:[%s3 + $0xac] sm:$0xf]
  %v915 = vld [vmem:[%s3 + $0xb0] sm:$0xf]
  %v916 = vld [vmem:[%s3 + $0xb4] sm:$0xf]
  %v917 = vld [vmem:[%s3 + $0xb8] sm:$0xf]
  %v918 = vld [vmem:[%s3 + $0xbc] sm:$0xf]
  %v919 = vld [vmem:[%s3 + $0xc0] sm:$0xf]
  %v920 = vld [vmem:[%s3 + $0xc4] sm:$0xf]
  %v921 = vld [vmem:[%s3 + $0xc8] sm:$0xf]
  %v922 = vld [vmem:[%s3 + $0xcc] sm:$0xf]
  %v923 = vld [vmem:[%s3 + $0xd0] sm:$0xf]
  %v924 = vld [vmem:[%s3 + $0xd4] sm:$0xf]
  %v925 = vld [vmem:[%s3 + $0xd8] sm:$0xf]
  %v926 = vld [vmem:[%s3 + $0xdc] sm:$0xf]
  %v927 = vld [vmem:[%s3 + $0xe0] sm:$0xf]
  %v928 = vld [vmem:[%s3 + $0xe4] sm:$0xf]
  %v929 = vld [vmem:[%s3 + $0xe8] sm:$0xf]
  %v930 = vld [vmem:[%s3 + $0xec] sm:$0xf]
  %v931 = vld [vmem:[%s3 + $0xf0] sm:$0xf]
  %v932 = vld [vmem:[%s3 + $0xf4] sm:$0xf]
  %v933 = vld [vmem:[%s3 + $0xf8] sm:$0xf]
  %v934 = vld [vmem:[%s3 + $0xfc] sm:$0xf]
  %v935 = vunpack.c.l.bf16 %v871
  %v936 = vunpack.c.l.bf16 %v872
  %v937 = vunpack.c.l.bf16 %v873
  %v938 = vunpack.c.l.bf16 %v874
  %v939 = vunpack.c.l.bf16 %v875
  %v940 = vunpack.c.l.bf16 %v876
  %v941 = vunpack.c.l.bf16 %v877
  %v942 = vunpack.c.l.bf16 %v878
  %v943 = vunpack.c.l.bf16 %v879
  %v944 = vunpack.c.l.bf16 %v880
  %v945 = vunpack.c.l.bf16 %v881
  %v946 = vunpack.c.l.bf16 %v882
  %v947 = vunpack.c.l.bf16 %v883
  %v948 = vunpack.c.l.bf16 %v884
  %v949 = vunpack.c.l.bf16 %v885
  %v950 = vunpack.c.l.bf16 %v886
  %v951 = vunpack.c.l.bf16 %v887
  %v952 = vunpack.c.l.bf16 %v888
  %v953 = vunpack.c.l.bf16 %v889
  %v954 = vunpack.c.l.bf16 %v890
  %v955 = vunpack.c.l.bf16 %v891
  %v956 = vunpack.c.l.bf16 %v892
  %v957 = vunpack.c.l.bf16 %v893
  %v958 = vunpack.c.l.bf16 %v894
  %v959 = vunpack.c.l.bf16 %v895
  %v960 = vunpack.c.l.bf16 %v896
  %v961 = vunpack.c.l.bf16 %v897
  %v962 = vunpack.c.l.bf16 %v898
  %v963 = vunpack.c.l.bf16 %v899
  %v964 = vunpack.c.l.bf16 %v900
  %v965 = vunpack.c.l.bf16 %v901
  %v966 = vunpack.c.l.bf16 %v902
  %v967 = vunpack.c.l.bf16 %v903
  %v968 = vunpack.c.l.bf16 %v904
  %v969 = vunpack.c.l.bf16 %v905
  %v970 = vunpack.c.l.bf16 %v906
  %v971 = vunpack.c.l.bf16 %v907
  %v972 = vunpack.c.l.bf16 %v908
  %v973 = vunpack.c.l.bf16 %v909
  %v974 = vunpack.c.l.bf16 %v910
  %v975 = vunpack.c.l.bf16 %v911
  %v976 = vunpack.c.l.bf16 %v912
  %v977 = vunpack.c.l.bf16 %v913
  %v978 = vunpack.c.l.bf16 %v914
  %v979 = vunpack.c.l.bf16 %v915
  %v980 = vunpack.c.l.bf16 %v916
  %v981 = vunpack.c.l.bf16 %v917
  %v982 = vunpack.c.l.bf16 %v918
  %v983 = vunpack.c.l.bf16 %v919
  %v984 = vunpack.c.l.bf16 %v920
  %v985 = vunpack.c.l.bf16 %v921
  %v986 = vunpack.c.l.bf16 %v922
  %v987 = vunpack.c.l.bf16 %v923
  %v988 = vunpack.c.l.bf16 %v924
  %v989 = vunpack.c.l.bf16 %v925
  %v990 = vunpack.c.l.bf16 %v926
  %v991 = vunpack.c.l.bf16 %v927
  %v992 = vunpack.c.l.bf16 %v928
  %v993 = vunpack.c.l.bf16 %v929
  %v994 = vunpack.c.l.bf16 %v930
  %v995 = vunpack.c.l.bf16 %v931
  %v996 = vunpack.c.l.bf16 %v932
  %v997 = vunpack.c.l.bf16 %v933
  %v998 = vunpack.c.l.bf16 %v934
  %v999 = vadd.f32 %v712, %v935
  %v1000 = vadd.f32 %v714, %v936
  %v1001 = vadd.f32 %v717, %v937
  %v1002 = vadd.f32 %v719, %v938
  %v1003 = vadd.f32 %v722, %v939
  %v1004 = vadd.f32 %v724, %v940
  %v1005 = vadd.f32 %v727, %v941
  %v1006 = vadd.f32 %v729, %v942
  %v1007 = vadd.f32 %v732, %v943
  %v1008 = vadd.f32 %v734, %v944
  %v1009 = vadd.f32 %v737, %v945
  %v1010 = vadd.f32 %v739, %v946
  %v1011 = vadd.f32 %v742, %v947
  %v1012 = vadd.f32 %v744, %v948
  %v1013 = vadd.f32 %v747, %v949
  %v1014 = vadd.f32 %v749, %v950
  %v1015 = vadd.f32 %v752, %v951
  %v1016 = vadd.f32 %v754, %v952
  %v1017 = vadd.f32 %v757, %v953
  %v1018 = vadd.f32 %v759, %v954
  %v1019 = vadd.f32 %v762, %v955
  %v1020 = vadd.f32 %v764, %v956
  %v1021 = vadd.f32 %v767, %v957
  %v1022 = vadd.f32 %v769, %v958
  %v1023 = vadd.f32 %v772, %v959
  %v1024 = vadd.f32 %v774, %v960
  %v1025 = vadd.f32 %v777, %v961
  %v1026 = vadd.f32 %v779, %v962
  %v1027 = vadd.f32 %v782, %v963
  %v1028 = vadd.f32 %v784, %v964
  %v1029 = vadd.f32 %v787, %v965
  %v1030 = vadd.f32 %v789, %v966
  %v1031 = vadd.f32 %v792, %v967
  %v1032 = vadd.f32 %v794, %v968
  %v1033 = vadd.f32 %v797, %v969
  %v1034 = vadd.f32 %v799, %v970
  %v1035 = vadd.f32 %v802, %v971
  %v1036 = vadd.f32 %v804, %v972
  %v1037 = vadd.f32 %v807, %v973
  %v1038 = vadd.f32 %v809, %v974
  %v1039 = vadd.f32 %v812, %v975
  %v1040 = vadd.f32 %v814, %v976
  %v1041 = vadd.f32 %v817, %v977
  %v1042 = vadd.f32 %v819, %v978
  %v1043 = vadd.f32 %v822, %v979
  %v1044 = vadd.f32 %v824, %v980
  %v1045 = vadd.f32 %v827, %v981
  %v1046 = vadd.f32 %v829, %v982
  %v1047 = vadd.f32 %v832, %v983
  %v1048 = vadd.f32 %v834, %v984
  %v1049 = vadd.f32 %v837, %v985
  %v1050 = vadd.f32 %v839, %v986
  %v1051 = vadd.f32 %v842, %v987
  %v1052 = vadd.f32 %v844, %v988
  %v1053 = vadd.f32 %v847, %v989
  %v1054 = vadd.f32 %v849, %v990
  %v1055 = vadd.f32 %v852, %v991
  %v1056 = vadd.f32 %v854, %v992
  %v1057 = vadd.f32 %v857, %v993
  %v1058 = vadd.f32 %v859, %v994
  %v1059 = vadd.f32 %v862, %v995
  %v1060 = vadd.f32 %v864, %v996
  %v1061 = vadd.f32 %v867, %v997
  %v1062 = vadd.f32 %v869, %v998
  %v1063 = vmax.f32 %v999, 0.0
  %v1064 = vmax.f32 %v1000, 0.0
  %v1065 = vmax.f32 %v1001, 0.0
  %v1066 = vmax.f32 %v1002, 0.0
  %v1067 = vmax.f32 %v1003, 0.0
  %v1068 = vmax.f32 %v1004, 0.0
  %v1069 = vmax.f32 %v1005, 0.0
  %v1070 = vmax.f32 %v1006, 0.0
  %v1071 = vmax.f32 %v1007, 0.0
  %v1072 = vmax.f32 %v1008, 0.0
  %v1073 = vmax.f32 %v1009, 0.0
  %v1074 = vmax.f32 %v1010, 0.0
  %v1075 = vmax.f32 %v1011, 0.0
  %v1076 = vmax.f32 %v1012, 0.0
  %v1077 = vmax.f32 %v1013, 0.0
  %v1078 = vmax.f32 %v1014, 0.0
  %v1079 = vmax.f32 %v1015, 0.0
  %v1080 = vmax.f32 %v1016, 0.0
  %v1081 = vmax.f32 %v1017, 0.0
  %v1082 = vmax.f32 %v1018, 0.0
  %v1083 = vmax.f32 %v1019, 0.0
  %v1084 = vmax.f32 %v1020, 0.0
  %v1085 = vmax.f32 %v1021, 0.0
  %v1086 = vmax.f32 %v1022, 0.0
  %v1087 = vmax.f32 %v1023, 0.0
  %v1088 = vmax.f32 %v1024, 0.0
  %v1089 = vmax.f32 %v1025, 0.0
  %v1090 = vmax.f32 %v1026, 0.0
  %v1091 = vmax.f32 %v1027, 0.0
  %v1092 = vmax.f32 %v1028, 0.0
  %v1093 = vmax.f32 %v1029, 0.0
  %v1094 = vmax.f32 %v1030, 0.0
  %v1095 = vmax.f32 %v1031, 0.0
  %v1096 = vmax.f32 %v1032, 0.0
  %v1097 = vmax.f32 %v1033, 0.0
  %v1098 = vmax.f32 %v1034, 0.0
  %v1099 = vmax.f32 %v1035, 0.0
  %v1100 = vmax.f32 %v1036, 0.0
  %v1101 = vmax.f32 %v1037, 0.0
  %v1102 = vmax.f32 %v1038, 0.0
  %v1103 = vmax.f32 %v1039, 0.0
  %v1104 = vmax.f32 %v1040, 0.0
  %v1105 = vmax.f32 %v1041, 0.0
  %v1106 = vmax.f32 %v1042, 0.0
  %v1107 = vmax.f32 %v1043, 0.0
  %v1108 = vmax.f32 %v1044, 0.0
  %v1109 = vmax.f32 %v1045, 0.0
  %v1110 = vmax.f32 %v1046, 0.0
  %v1111 = vmax.f32 %v1047, 0.0
  %v1112 = vmax.f32 %v1048, 0.0
  %v1113 = vmax.f32 %v1049, 0.0
  %v1114 = vmax.f32 %v1050, 0.0
  %v1115 = vmax.f32 %v1051, 0.0
  %v1116 = vmax.f32 %v1052, 0.0
  %v1117 = vmax.f32 %v1053, 0.0
  %v1118 = vmax.f32 %v1054, 0.0
  %v1119 = vmax.f32 %v1055, 0.0
  %v1120 = vmax.f32 %v1056, 0.0
  %v1121 = vmax.f32 %v1057, 0.0
  %v1122 = vmax.f32 %v1058, 0.0
  %v1123 = vmax.f32 %v1059, 0.0
  %v1124 = vmax.f32 %v1060, 0.0
  %v1125 = vmax.f32 %v1061, 0.0
  %v1126 = vmax.f32 %v1062, 0.0
  %v1127 = vpack.c.bf16 %v1063, %v1063
  %v1128 = vpack.c.bf16 %v1064, %v1064
  %v1129 = vpack.c.bf16 %v1065, %v1065
  %v1130 = vpack.c.bf16 %v1066, %v1066
  %v1131 = vpack.c.bf16 %v1067, %v1067
  %v1132 = vpack.c.bf16 %v1068, %v1068
  %v1133 = vpack.c.bf16 %v1069, %v1069
  %v1134 = vpack.c.bf16 %v1070, %v1070
  %v1135 = vpack.c.bf16 %v1071, %v1071
  %v1136 = vpack.c.bf16 %v1072, %v1072
  %v1137 = vpack.c.bf16 %v1073, %v1073
  %v1138 = vpack.c.bf16 %v1074, %v1074
  %v1139 = vpack.c.bf16 %v1075, %v1075
  %v1140 = vpack.c.bf16 %v1076, %v1076
  %v1141 = vpack.c.bf16 %v1077, %v1077
  %v1142 = vpack.c.bf16 %v1078, %v1078
  %v1143 = vpack.c.bf16 %v1079, %v1079
  %v1144 = vpack.c.bf16 %v1080, %v1080
  %v1145 = vpack.c.bf16 %v1081, %v1081
  %v1146 = vpack.c.bf16 %v1082, %v1082
  %v1147 = vpack.c.bf16 %v1083, %v1083
  %v1148 = vpack.c.bf16 %v1084, %v1084
  %v1149 = vpack.c.bf16 %v1085, %v1085
  %v1150 = vpack.c.bf16 %v1086, %v1086
  %v1151 = vpack.c.bf16 %v1087, %v1087
  %v1152 = vpack.c.bf16 %v1088, %v1088
  %v1153 = vpack.c.bf16 %v1089, %v1089
  %v1154 = vpack.c.bf16 %v1090, %v1090
  %v1155 = vpack.c.bf16 %v1091, %v1091
  %v1156 = vpack.c.bf16 %v1092, %v1092
  %v1157 = vpack.c.bf16 %v1093, %v1093
  %v1158 = vpack.c.bf16 %v1094, %v1094
  %v1159 = vpack.c.bf16 %v1095, %v1095
  %v1160 = vpack.c.bf16 %v1096, %v1096
  %v1161 = vpack.c.bf16 %v1097, %v1097
  %v1162 = vpack.c.bf16 %v1098, %v1098
  %v1163 = vpack.c.bf16 %v1099, %v1099
  %v1164 = vpack.c.bf16 %v1100, %v1100
  %v1165 = vpack.c.bf16 %v1101, %v1101
  %v1166 = vpack.c.bf16 %v1102, %v1102
  %v1167 = vpack.c.bf16 %v1103, %v1103
  %v1168 = vpack.c.bf16 %v1104, %v1104
  %v1169 = vpack.c.bf16 %v1105, %v1105
  %v1170 = vpack.c.bf16 %v1106, %v1106
  %v1171 = vpack.c.bf16 %v1107, %v1107
  %v1172 = vpack.c.bf16 %v1108, %v1108
  %v1173 = vpack.c.bf16 %v1109, %v1109
  %v1174 = vpack.c.bf16 %v1110, %v1110
  %v1175 = vpack.c.bf16 %v1111, %v1111
  %v1176 = vpack.c.bf16 %v1112, %v1112
  %v1177 = vpack.c.bf16 %v1113, %v1113
  %v1178 = vpack.c.bf16 %v1114, %v1114
  %v1179 = vpack.c.bf16 %v1115, %v1115
  %v1180 = vpack.c.bf16 %v1116, %v1116
  %v1181 = vpack.c.bf16 %v1117, %v1117
  %v1182 = vpack.c.bf16 %v1118, %v1118
  %v1183 = vpack.c.bf16 %v1119, %v1119
  %v1184 = vpack.c.bf16 %v1120, %v1120
  %v1185 = vpack.c.bf16 %v1121, %v1121
  %v1186 = vpack.c.bf16 %v1122, %v1122
  %v1187 = vpack.c.bf16 %v1123, %v1123
  %v1188 = vpack.c.bf16 %v1124, %v1124
  %v1189 = vpack.c.bf16 %v1125, %v1125
  %v1190 = vpack.c.bf16 %v1126, %v1126
  %vm1191 = vcmask 125952
  %1192 = vst.msk [vmem:[%s4] sm:$0xf] %vm1191, %v1127
  %1193 = vst.msk [vmem:[%s4 + $0x4] sm:$0xf] %vm1191, %v1128
  %1194 = vst.msk [vmem:[%s4 + $0x8] sm:$0xf] %vm1191, %v1129
  %1195 = vst.msk [vmem:[%s4 + $0xc] sm:$0xf] %vm1191, %v1130
  %1196 = vst.msk [vmem:[%s4 + $0x10] sm:$0xf] %vm1191, %v1131
  %1197 = vst.msk [vmem:[%s4 + $0x14] sm:$0xf] %vm1191, %v1132
  %1198 = vst.msk [vmem:[%s4 + $0x18] sm:$0xf] %vm1191, %v1133
  %1199 = vst.msk [vmem:[%s4 + $0x1c] sm:$0xf] %vm1191, %v1134
  %1200 = vst.msk [vmem:[%s4 + $0x20] sm:$0xf] %vm1191, %v1135
  %1201 = vst.msk [vmem:[%s4 + $0x24] sm:$0xf] %vm1191, %v1136
  %1202 = vst.msk [vmem:[%s4 + $0x28] sm:$0xf] %vm1191, %v1137
  %1203 = vst.msk [vmem:[%s4 + $0x2c] sm:$0xf] %vm1191, %v1138
  %1204 = vst.msk [vmem:[%s4 + $0x30] sm:$0xf] %vm1191, %v1139
  %1205 = vst.msk [vmem:[%s4 + $0x34] sm:$0xf] %vm1191, %v1140
  %1206 = vst.msk [vmem:[%s4 + $0x38] sm:$0xf] %vm1191, %v1141
  %1207 = vst.msk [vmem:[%s4 + $0x3c] sm:$0xf] %vm1191, %v1142
  %1208 = vst.msk [vmem:[%s4 + $0x40] sm:$0xf] %vm1191, %v1143
  %1209 = vst.msk [vmem:[%s4 + $0x44] sm:$0xf] %vm1191, %v1144
  %1210 = vst.msk [vmem:[%s4 + $0x48] sm:$0xf] %vm1191, %v1145
  %1211 = vst.msk [vmem:[%s4 + $0x4c] sm:$0xf] %vm1191, %v1146
  %1212 = vst.msk [vmem:[%s4 + $0x50] sm:$0xf] %vm1191, %v1147
  %1213 = vst.msk [vmem:[%s4 + $0x54] sm:$0xf] %vm1191, %v1148
  %1214 = vst.msk [vmem:[%s4 + $0x58] sm:$0xf] %vm1191, %v1149
  %1215 = vst.msk [vmem:[%s4 + $0x5c] sm:$0xf] %vm1191, %v1150
  %1216 = vst.msk [vmem:[%s4 + $0x60] sm:$0xf] %vm1191, %v1151
  %1217 = vst.msk [vmem:[%s4 + $0x64] sm:$0xf] %vm1191, %v1152
  %1218 = vst.msk [vmem:[%s4 + $0x68] sm:$0xf] %vm1191, %v1153
  %1219 = vst.msk [vmem:[%s4 + $0x6c] sm:$0xf] %vm1191, %v1154
  %1220 = vst.msk [vmem:[%s4 + $0x70] sm:$0xf] %vm1191, %v1155
  %1221 = vst.msk [vmem:[%s4 + $0x74] sm:$0xf] %vm1191, %v1156
  %1222 = vst.msk [vmem:[%s4 + $0x78] sm:$0xf] %vm1191, %v1157
  %1223 = vst.msk [vmem:[%s4 + $0x7c] sm:$0xf] %vm1191, %v1158
  %1224 = vst.msk [vmem:[%s4 + $0x80] sm:$0xf] %vm1191, %v1159
  %1225 = vst.msk [vmem:[%s4 + $0x84] sm:$0xf] %vm1191, %v1160
  %1226 = vst.msk [vmem:[%s4 + $0x88] sm:$0xf] %vm1191, %v1161
  %1227 = vst.msk [vmem:[%s4 + $0x8c] sm:$0xf] %vm1191, %v1162
  %1228 = vst.msk [vmem:[%s4 + $0x90] sm:$0xf] %vm1191, %v1163
  %1229 = vst.msk [vmem:[%s4 + $0x94] sm:$0xf] %vm1191, %v1164
  %1230 = vst.msk [vmem:[%s4 + $0x98] sm:$0xf] %vm1191, %v1165
  %1231 = vst.msk [vmem:[%s4 + $0x9c] sm:$0xf] %vm1191, %v1166
  %1232 = vst.msk [vmem:[%s4 + $0xa0] sm:$0xf] %vm1191, %v1167
  %1233 = vst.msk [vmem:[%s4 + $0xa4] sm:$0xf] %vm1191, %v1168
  %1234 = vst.msk [vmem:[%s4 + $0xa8] sm:$0xf] %vm1191, %v1169
  %1235 = vst.msk [vmem:[%s4 + $0xac] sm:$0xf] %vm1191, %v1170
  %1236 = vst.msk [vmem:[%s4 + $0xb0] sm:$0xf] %vm1191, %v1171
  %1237 = vst.msk [vmem:[%s4 + $0xb4] sm:$0xf] %vm1191, %v1172
  %1238 = vst.msk [vmem:[%s4 + $0xb8] sm:$0xf] %vm1191, %v1173
  %1239 = vst.msk [vmem:[%s4 + $0xbc] sm:$0xf] %vm1191, %v1174
  %1240 = vst.msk [vmem:[%s4 + $0xc0] sm:$0xf] %vm1191, %v1175
  %1241 = vst.msk [vmem:[%s4 + $0xc4] sm:$0xf] %vm1191, %v1176
  %1242 = vst.msk [vmem:[%s4 + $0xc8] sm:$0xf] %vm1191, %v1177
  %1243 = vst.msk [vmem:[%s4 + $0xcc] sm:$0xf] %vm1191, %v1178
  %1244 = vst.msk [vmem:[%s4 + $0xd0] sm:$0xf] %vm1191, %v1179
  %1245 = vst.msk [vmem:[%s4 + $0xd4] sm:$0xf] %vm1191, %v1180
  %1246 = vst.msk [vmem:[%s4 + $0xd8] sm:$0xf] %vm1191, %v1181
  %1247 = vst.msk [vmem:[%s4 + $0xdc] sm:$0xf] %vm1191, %v1182
  %1248 = vst.msk [vmem:[%s4 + $0xe0] sm:$0xf] %vm1191, %v1183
  %1249 = vst.msk [vmem:[%s4 + $0xe4] sm:$0xf] %vm1191, %v1184
  %1250 = vst.msk [vmem:[%s4 + $0xe8] sm:$0xf] %vm1191, %v1185
  %1251 = vst.msk [vmem:[%s4 + $0xec] sm:$0xf] %vm1191, %v1186
  %1252 = vst.msk [vmem:[%s4 + $0xf0] sm:$0xf] %vm1191, %v1187
  %1253 = vst.msk [vmem:[%s4 + $0xf4] sm:$0xf] %vm1191, %v1188
  %1254 = vst.msk [vmem:[%s4 + $0xf8] sm:$0xf] %vm1191, %v1189
  %1255 = vst.msk [vmem:[%s4 + $0xfc] sm:$0xf] %vm1191, %v1190
  // Predicated region
  $region18: #{resnet_forward.26} parent=0 // pred_check
    _
  $region19: #{resnet_forward.26} parent=0 // pred_check_branch
    %1257 = sbr.rel (0) target = $region21
  $region20: #{resnet_forward.26} parent=0 // pred_region
    _
  $region21: #{resnet_forward.26} parent=0 // pred_fallthru
    _
  // Predicated region
  $region22: #{resnet_forward.26} parent=0 // pred_check
    _
  $region23: #{resnet_forward.26} parent=0 // pred_check_branch
    %1259 = sbr.rel (0) target = $region25
  $region24: #{resnet_forward.26} parent=0 // pred_region
    _
  $region25: #{resnet_forward.26} parent=0 // pred_fallthru
    _

// kernel: resnet_forward.28
$region0: #{resnet_forward.28}
  #allocation0 [shape = 'u32[]', space=smem, size = 0x4, offset = 0x4, fixed_abs, tag = 'smem constant byte address 0x4 - core index']
  #allocation1 [shape = 'u32[72,128]{1,0:T(1,128)}', space=vmem, size = 0x9000, scoped, tag = 'internal scratch']
  %s0 = inlined_call_operand.vmem [shape: bf16[16,2,8,32], index: 0, kind: input, shape index: {}]
  %s1 = inlined_call_operand.vmem [shape: bf16[16,8,16], index: 1, kind: output, shape index: {}]
  %s2 = sld [smem:[#allocation0]]
  $region14: #{resnet_forward.28} parent=0
    _
  %s4 = ssub.s32 1, %s2
  %s5 = scalar_select 0, %s4, %s2
  // Predicated region
  $region2: #{resnet_forward.28} parent=0 // pred_check
    _
  $region3: #{resnet_forward.28} parent=0 // pred_check_branch
    %7 = sbr.rel (0) target = $region5
  $region4: #{resnet_forward.28} parent=0 // pred_region
    _
  $region5: #{resnet_forward.28} parent=0 // pred_fallthru
    _
  %v8 = vld [vmem:[%s0] sm:$0xf]
  %v9 = vld [vmem:[%s0 + $0x4] sm:$0xf]
  %v10 = vld [vmem:[%s0 + $0x8] sm:$0xf]
  %v11 = vld [vmem:[%s0 + $0xc] sm:$0xf]
  %v12 = vld [vmem:[%s0 + $0x10] sm:$0xf]
  %v13 = vld [vmem:[%s0 + $0x14] sm:$0xf]
  %v14 = vld [vmem:[%s0 + $0x18] sm:$0xf]
  %v15 = vld [vmem:[%s0 + $0x1c] sm:$0xf]
  %v16 = vld [vmem:[%s0 + $0x20] sm:$0xf]
  %v17 = vld [vmem:[%s0 + $0x24] sm:$0xf]
  %v18 = vld [vmem:[%s0 + $0x28] sm:$0xf]
  %v19 = vld [vmem:[%s0 + $0x2c] sm:$0xf]
  %v20 = vld [vmem:[%s0 + $0x30] sm:$0xf]
  %v21 = vld [vmem:[%s0 + $0x34] sm:$0xf]
  %v22 = vld [vmem:[%s0 + $0x38] sm:$0xf]
  %v23 = vld [vmem:[%s0 + $0x3c] sm:$0xf]
  %v24 = vld [vmem:[%s0 + $0x40] sm:$0xf]
  %v25 = vld [vmem:[%s0 + $0x44] sm:$0xf]
  %v26 = vld [vmem:[%s0 + $0x48] sm:$0xf]
  %v27 = vld [vmem:[%s0 + $0x4c] sm:$0xf]
  %v28 = vld [vmem:[%s0 + $0x50] sm:$0xf]
  %v29 = vld [vmem:[%s0 + $0x54] sm:$0xf]
  %v30 = vld [vmem:[%s0 + $0x58] sm:$0xf]
  %v31 = vld [vmem:[%s0 + $0x5c] sm:$0xf]
  %v32 = vld [vmem:[%s0 + $0x60] sm:$0xf]
  %v33 = vld [vmem:[%s0 + $0x64] sm:$0xf]
  %v34 = vld [vmem:[%s0 + $0x68] sm:$0xf]
  %v35 = vld [vmem:[%s0 + $0x6c] sm:$0xf]
  %v36 = vld [vmem:[%s0 + $0x70] sm:$0xf]
  %v37 = vld [vmem:[%s0 + $0x74] sm:$0xf]
  %v38 = vld [vmem:[%s0 + $0x78] sm:$0xf]
  %v39 = vld [vmem:[%s0 + $0x7c] sm:$0xf]
  %v40 = vunpack.c.l.bf16 %v8
  %v41 = vunpack.c.l.bf16 %v10
  %v42 = vunpack.c.l.bf16 %v12
  %v43 = vunpack.c.l.bf16 %v14
  %v44 = vunpack.c.l.bf16 %v16
  %v45 = vunpack.c.l.bf16 %v18
  %v46 = vunpack.c.l.bf16 %v20
  %v47 = vunpack.c.l.bf16 %v22
  %v48 = vunpack.c.l.bf16 %v24
  %v49 = vunpack.c.l.bf16 %v26
  %v50 = vunpack.c.l.bf16 %v28
  %v51 = vunpack.c.l.bf16 %v30
  %v52 = vunpack.c.l.bf16 %v32
  %v53 = vunpack.c.l.bf16 %v34
  %v54 = vunpack.c.l.bf16 %v36
  %v55 = vunpack.c.l.bf16 %v38
  %v56 = vunpack.c.l.bf16 %v9
  %v57 = vunpack.c.l.bf16 %v11
  %v58 = vunpack.c.l.bf16 %v13
  %v59 = vunpack.c.l.bf16 %v15
  %v60 = vunpack.c.l.bf16 %v17
  %v61 = vunpack.c.l.bf16 %v19
  %v62 = vunpack.c.l.bf16 %v21
  %v63 = vunpack.c.l.bf16 %v23
  %v64 = vunpack.c.l.bf16 %v25
  %v65 = vunpack.c.l.bf16 %v27
  %v66 = vunpack.c.l.bf16 %v29
  %v67 = vunpack.c.l.bf16 %v31
  %v68 = vunpack.c.l.bf16 %v33
  %v69 = vunpack.c.l.bf16 %v35
  %v70 = vunpack.c.l.bf16 %v37
  %v71 = vunpack.c.l.bf16 %v39
  %v72 = vmax.f32 %v40, %v56
  %v73 = vmax.f32 %v41, %v57
  %v74 = vmax.f32 %v42, %v58
  %v75 = vmax.f32 %v43, %v59
  %v76 = vmax.f32 %v44, %v60
  %v77 = vmax.f32 %v45, %v61
  %v78 = vmax.f32 %v46, %v62
  %v79 = vmax.f32 %v47, %v63
  %v80 = vmax.f32 %v48, %v64
  %v81 = vmax.f32 %v49, %v65
  %v82 = vmax.f32 %v50, %v66
  %v83 = vmax.f32 %v51, %v67
  %v84 = vmax.f32 %v52, %v68
  %v85 = vmax.f32 %v53, %v69
  %v86 = vmax.f32 %v54, %v70
  %v87 = vmax.f32 %v55, %v71
  %v88 = vpack.c.bf16 %v72, %v72
  %v89 = vpack.c.bf16 %v73, %v73
  %v90 = vpack.c.bf16 %v74, %v74
  %v91 = vpack.c.bf16 %v75, %v75
  %v92 = vpack.c.bf16 %v76, %v76
  %v93 = vpack.c.bf16 %v77, %v77
  %v94 = vpack.c.bf16 %v78, %v78
  %v95 = vpack.c.bf16 %v79, %v79
  %v96 = vpack.c.bf16 %v80, %v80
  %v97 = vpack.c.bf16 %v81, %v81
  %v98 = vpack.c.bf16 %v82, %v82
  %v99 = vpack.c.bf16 %v83, %v83
  %v100 = vpack.c.bf16 %v84, %v84
  %v101 = vpack.c.bf16 %v85, %v85
  %v102 = vpack.c.bf16 %v86, %v86
  %v103 = vpack.c.bf16 %v87, %v87
  %v104 = vunpack.c.l.bf16 %v88
  %v105 = vunpack.c.l.bf16 %v89
  %v106 = vunpack.c.l.bf16 %v90
  %v107 = vunpack.c.l.bf16 %v91
  %v108 = vunpack.c.l.bf16 %v92
  %v109 = vunpack.c.l.bf16 %v93
  %v110 = vunpack.c.l.bf16 %v94
  %v111 = vunpack.c.l.bf16 %v95
  %v112 = vunpack.c.l.bf16 %v96
  %v113 = vunpack.c.l.bf16 %v97
  %v114 = vunpack.c.l.bf16 %v98
  %v115 = vunpack.c.l.bf16 %v99
  %v116 = vunpack.c.l.bf16 %v100
  %v117 = vunpack.c.l.bf16 %v101
  %v118 = vunpack.c.l.bf16 %v102
  %v119 = vunpack.c.l.bf16 %v103
  %136 = vrot.lane.b32.xlu0 %v104, 112
  %v137 = vpop.permute.xlu0 %136
  %138 = vrot.lane.b32.xlu0 %v105, 112
  %v139 = vpop.permute.xlu0 %138
  %140 = vrot.lane.b32.xlu0 %v106, 112
  %v141 = vpop.permute.xlu0 %140
  %142 = vrot.lane.b32.xlu0 %v107, 112
  %v143 = vpop.permute.xlu0 %142
  %144 = vrot.lane.b32.xlu0 %v108, 112
  %v145 = vpop.permute.xlu0 %144
  %146 = vrot.lane.b32.xlu0 %v109, 112
  %v147 = vpop.permute.xlu0 %146
  %148 = vrot.lane.b32.xlu0 %v110, 112
  %v149 = vpop.permute.xlu0 %148
  %150 = vrot.lane.b32.xlu0 %v111, 112
  %v151 = vpop.permute.xlu0 %150
  %152 = vrot.lane.b32.xlu0 %v112, 112
  %v153 = vpop.permute.xlu0 %152
  %154 = vrot.lane.b32.xlu0 %v113, 112
  %v155 = vpop.permute.xlu0 %154
  %156 = vrot.lane.b32.xlu0 %v114, 112
  %v157 = vpop.permute.xlu0 %156
  %158 = vrot.lane.b32.xlu0 %v115, 112
  %v159 = vpop.permute.xlu0 %158
  %160 = vrot.lane.b32.xlu0 %v116, 112
  %v161 = vpop.permute.xlu0 %160
  %162 = vrot.lane.b32.xlu0 %v117, 112
  %v163 = vpop.permute.xlu0 %162
  %164 = vrot.lane.b32.xlu0 %v118, 112
  %v165 = vpop.permute.xlu0 %164
  %166 = vrot.lane.b32.xlu0 %v119, 112
  %v167 = vpop.permute.xlu0 %166
  %v184 = vmax.f32 %v104, %v137
  %v185 = vmax.f32 %v105, %v139
  %v186 = vmax.f32 %v106, %v141
  %v187 = vmax.f32 %v107, %v143
  %v188 = vmax.f32 %v108, %v145
  %v189 = vmax.f32 %v109, %v147
  %v190 = vmax.f32 %v110, %v149
  %v191 = vmax.f32 %v111, %v151
  %v192 = vmax.f32 %v112, %v153
  %v193 = vmax.f32 %v113, %v155
  %v194 = vmax.f32 %v114, %v157
  %v195 = vmax.f32 %v115, %v159
  %v196 = vmax.f32 %v116, %v161
  %v197 = vmax.f32 %v117, %v163
  %v198 = vmax.f32 %v118, %v165
  %v199 = vmax.f32 %v119, %v167
  %v200 = vpack.c.bf16 %v184, %v184
  %v201 = vpack.c.bf16 %v185, %v185
  %v202 = vpack.c.bf16 %v186, %v186
  %v203 = vpack.c.bf16 %v187, %v187
  %v204 = vpack.c.bf16 %v188, %v188
  %v205 = vpack.c.bf16 %v189, %v189
  %v206 = vpack.c.bf16 %v190, %v190
  %v207 = vpack.c.bf16 %v191, %v191
  %v208 = vpack.c.bf16 %v192, %v192
  %v209 = vpack.c.bf16 %v193, %v193
  %v210 = vpack.c.bf16 %v194, %v194
  %v211 = vpack.c.bf16 %v195, %v195
  %v212 = vpack.c.bf16 %v196, %v196
  %v213 = vpack.c.bf16 %v197, %v197
  %v214 = vpack.c.bf16 %v198, %v198
  %v215 = vpack.c.bf16 %v199, %v199
  %vm216 = vcmask 125952
  %217 = vst.msk [vmem:[%s1] sm:$0xf] %vm216, %v200
  %218 = vst.msk [vmem:[%s1 + $0x4] sm:$0xf] %vm216, %v201
  %219 = vst.msk [vmem:[%s1 + $0x8] sm:$0xf] %vm216, %v202
  %220 = vst.msk [vmem:[%s1 + $0xc] sm:$0xf] %vm216, %v203
  %221 = vst.msk [vmem:[%s1 + $0x10] sm:$0xf] %vm216, %v204
  %222 = vst.msk [vmem:[%s1 + $0x14] sm:$0xf] %vm216, %v205
  %223 = vst.msk [vmem:[%s1 + $0x18] sm:$0xf] %vm216, %v206
  %224 = vst.msk [vmem:[%s1 + $0x1c] sm:$0xf] %vm216, %v207
  %225 = vst.msk [vmem:[%s1 + $0x20] sm:$0xf] %vm216, %v208
  %226 = vst.msk [vmem:[%s1 + $0x24] sm:$0xf] %vm216, %v209
  %227 = vst.msk [vmem:[%s1 + $0x28] sm:$0xf] %vm216, %v210
  %228 = vst.msk [vmem:[%s1 + $0x2c] sm:$0xf] %vm216, %v211
  %229 = vst.msk [vmem:[%s1 + $0x30] sm:$0xf] %vm216, %v212
  %230 = vst.msk [vmem:[%s1 + $0x34] sm:$0xf] %vm216, %v213
  %231 = vst.msk [vmem:[%s1 + $0x38] sm:$0xf] %vm216, %v214
  %232 = vst.msk [vmem:[%s1 + $0x3c] sm:$0xf] %vm216, %v215
  // Predicated region
  $region6: #{resnet_forward.28} parent=0 // pred_check
    _
  $region7: #{resnet_forward.28} parent=0 // pred_check_branch
    %234 = sbr.rel (0) target = $region9
  $region8: #{resnet_forward.28} parent=0 // pred_region
    _
  $region9: #{resnet_forward.28} parent=0 // pred_fallthru
    _
  // Predicated region
  $region10: #{resnet_forward.28} parent=0 // pred_check
    _
  $region11: #{resnet_forward.28} parent=0 // pred_check_branch
    %236 = sbr.rel (0) target = $region13
  $region12: #{resnet_forward.28} parent=0 // pred_region
    _
  $region13: #{resnet_forward.28} parent=0 // pred_fallthru
    _

// kernel: resnet_forward.30
$region0: #{resnet_forward.30}
  #allocation0 [shape = 'u32[]', space=smem, size = 0x4, offset = 0x4, fixed_abs, tag = 'smem constant byte address 0x4 - core index']
  #allocation1 [shape = 'u32[72,128]{1,0:T(1,128)}', space=vmem, size = 0x9000, scoped, tag = 'internal scratch']
  %s0 = inlined_call_operand.vmem [shape: bf16[128,256], index: 0, kind: input, shape index: {}]
  %s1 = inlined_call_operand.vmem [shape: bf16[256,32], index: 1, kind: input, shape index: {}]
  %s2 = inlined_call_operand.vmem [shape: f32[1,32], index: 2, kind: input, shape index: {}]
  %s3 = inlined_call_operand.vmem [shape: bf16[128,32], index: 3, kind: output, shape index: {}]
  %s4 = sld [smem:[#allocation0]]
  $region22: #{resnet_forward.30} parent=0
    _
  %s6 = ssub.s32 1, %s4
  %s7 = scalar_select 0, %s6, %s4
  // Predicated region
  $region2: #{resnet_forward.30} parent=0 // pred_check
    _
  $region3: #{resnet_forward.30} parent=0 // pred_check_branch
    %9 = sbr.rel (0) target = $region5
  $region4: #{resnet_forward.30} parent=0 // pred_region
    _
  $region5: #{resnet_forward.30} parent=0 // pred_fallthru
    _
  // Predicated region
  $region6: #{resnet_forward.30} parent=0 // pred_check
    _
  $region7: #{resnet_forward.30} parent=0 // pred_check_branch
    %11 = sbr.rel (0) target = $region9
  $region8: #{resnet_forward.30} parent=0 // pred_region
    _
  $region9: #{resnet_forward.30} parent=0 // pred_fallthru
    _
  // Predicated region
  $region10: #{resnet_forward.30} parent=0 // pred_check
    _
  $region11: #{resnet_forward.30} parent=0 // pred_check_branch
    %13 = sbr.rel (0) target = $region13
  $region12: #{resnet_forward.30} parent=0 // pred_region
    _
  $region13: #{resnet_forward.30} parent=0 // pred_fallthru
    _
  %v14 = vld [vmem:[%s0] sm:$0xff]
  %v15 = vld [vmem:[%s0 + $0x8] sm:$0xff]
  %v16 = vld [vmem:[%s0 + $0x10] sm:$0xff]
  %v17 = vld [vmem:[%s0 + $0x18] sm:$0xff]
  %v18 = vld [vmem:[%s0 + $0x20] sm:$0xff]
  %v19 = vld [vmem:[%s0 + $0x28] sm:$0xff]
  %v20 = vld [vmem:[%s0 + $0x30] sm:$0xff]
  %v21 = vld [vmem:[%s0 + $0x38] sm:$0xff]
  %v22 = vld [vmem:[%s0 + $0x40] sm:$0xff]
  %v23 = vld [vmem:[%s0 + $0x48] sm:$0xff]
  %v24 = vld [vmem:[%s0 + $0x50] sm:$0xff]
  %v25 = vld [vmem:[%s0 + $0x58] sm:$0xff]
  %v26 = vld [vmem:[%s0 + $0x60] sm:$0xff]
  %v27 = vld [vmem:[%s0 + $0x68] sm:$0xff]
  %v28 = vld [vmem:[%s0 + $0x70] sm:$0xff]
  %v29 = vld [vmem:[%s0 + $0x78] sm:$0xff]
  %v30 = vld [vmem:[%s1] sm:$0xf]
  %v31 = vld [vmem:[%s1 + $0x4] sm:$0xf]
  %v32 = vld [vmem:[%s1 + $0x8] sm:$0xf]
  %v33 = vld [vmem:[%s1 + $0xc] sm:$0xf]
  %v34 = vld [vmem:[%s1 + $0x10] sm:$0xf]
  %v35 = vld [vmem:[%s1 + $0x14] sm:$0xf]
  %v36 = vld [vmem:[%s1 + $0x18] sm:$0xf]
  %v37 = vld [vmem:[%s1 + $0x1c] sm:$0xf]
  %v38 = vld [vmem:[%s1 + $0x20] sm:$0xf]
  %v39 = vld [vmem:[%s1 + $0x24] sm:$0xf]
  %v40 = vld [vmem:[%s1 + $0x28] sm:$0xf]
  %v41 = vld [vmem:[%s1 + $0x2c] sm:$0xf]
  %v42 = vld [vmem:[%s1 + $0x30] sm:$0xf]
  %v43 = vld [vmem:[%s1 + $0x34] sm:$0xf]
  %v44 = vld [vmem:[%s1 + $0x38] sm:$0xf]
  %v45 = vld [vmem:[%s1 + $0x3c] sm:$0xf]
  %v46 = vld [vmem:[%s1 + $0x40] sm:$0xf]
  %v47 = vld [vmem:[%s1 + $0x44] sm:$0xf]
  %v48 = vld [vmem:[%s1 + $0x48] sm:$0xf]
  %v49 = vld [vmem:[%s1 + $0x4c] sm:$0xf]
  %v50 = vld [vmem:[%s1 + $0x50] sm:$0xf]
  %v51 = vld [vmem:[%s1 + $0x54] sm:$0xf]
  %v52 = vld [vmem:[%s1 + $0x58] sm:$0xf]
  %v53 = vld [vmem:[%s1 + $0x5c] sm:$0xf]
  %v54 = vld [vmem:[%s1 + $0x60] sm:$0xf]
  %v55 = vld [vmem:[%s1 + $0x64] sm:$0xf]
  %v56 = vld [vmem:[%s1 + $0x68] sm:$0xf]
  %v57 = vld [vmem:[%s1 + $0x6c] sm:$0xf]
  %v58 = vld [vmem:[%s1 + $0x70] sm:$0xf]
  %v59 = vld [vmem:[%s1 + $0x74] sm:$0xf]
  %v60 = vld [vmem:[%s1 + $0x78] sm:$0xf]
  %v61 = vld [vmem:[%s1 + $0x7c] sm:$0xf]
  %v62 = vld [vmem:[%s2] sm:$0x1]
  %v64 = vperm.slane %v62, 0
  %v82 = vunpack.c.l.b16 %v14
  %v83 = vunpack.c.h.b16 %v14
  %v84 = vunpack.c.l.b16 %v15
  %v85 = vunpack.c.h.b16 %v15
  %v86 = vunpack.c.l.b16 %v16
  %v87 = vunpack.c.h.b16 %v16
  %v88 = vunpack.c.l.b16 %v17
  %v89 = vunpack.c.h.b16 %v17
  %v90 = vunpack.c.l.b16 %v18
  %v91 = vunpack.c.h.b16 %v18
  %v92 = vunpack.c.l.b16 %v19
  %v93 = vunpack.c.h.b16 %v19
  %v94 = vunpack.c.l.b16 %v20
  %v95 = vunpack.c.h.b16 %v20
  %v96 = vunpack.c.l.b16 %v21
  %v97 = vunpack.c.h.b16 %v21
  %v98 = vunpack.c.l.b16 %v22
  %v99 = vunpack.c.h.b16 %v22
  %v100 = vunpack.c.l.b16 %v23
  %v101 = vunpack.c.h.b16 %v23
  %v102 = vunpack.c.l.b16 %v24
  %v103 = vunpack.c.h.b16 %v24
  %v104 = vunpack.c.l.b16 %v25
  %v105 = vunpack.c.h.b16 %v25
  %v106 = vunpack.c.l.b16 %v26
  %v107 = vunpack.c.h.b16 %v26
  %v108 = vunpack.c.l.b16 %v27
  %v109 = vunpack.c.h.b16 %v27
  %v110 = vunpack.c.l.b16 %v28
  %v111 = vunpack.c.h.b16 %v28
  %v112 = vunpack.c.l.b16 %v29
  %v113 = vunpack.c.h.b16 %v29
  %v114 = vpack.c.b16 %v84, %v82
  %v115 = vpack.c.b16 %v85, %v83
  %v116 = vpack.c.b16 %v88, %v86
  %v117 = vpack.c.b16 %v89, %v87
  %v118 = vpack.c.b16 %v92, %v90
  %v119 = vpack.c.b16 %v93, %v91
  %v120 = vpack.c.b16 %v96, %v94
  %v121 = vpack.c.b16 %v97, %v95
  %v122 = vpack.c.b16 %v100, %v98
  %v123 = vpack.c.b16 %v101, %v99
  %v124 = vpack.c.b16 %v104, %v102
  %v125 = vpack.c.b16 %v105, %v103
  %v126 = vpack.c.b16 %v108, %v106
  %v127 = vpack.c.b16 %v109, %v107
  %v128 = vpack.c.b16 %v112, %v110
  %v129 = vpack.c.b16 %v113, %v111
  %v178 = vunpack.c.l.b16 %v30
  %v179 = vunpack.c.l.b16 %v31
  %v180 = vunpack.c.l.b16 %v32
  %v181 = vunpack.c.l.b16 %v33
  %v182 = vunpack.c.l.b16 %v34
  %v183 = vunpack.c.l.b16 %v35
  %v184 = vunpack.c.l.b16 %v36
  %v185 = vunpack.c.l.b16 %v37
  %v186 = vunpack.c.l.b16 %v38
  %v187 = vunpack.c.l.b16 %v39
  %v188 = vunpack.c.l.b16 %v40
  %v189 = vunpack.c.l.b16 %v41
  %v190 = vunpack.c.l.b16 %v42
  %v191 = vunpack.c.l.b16 %v43
  %v192 = vunpack.c.l.b16 %v44
  %v193 = vunpack.c.l.b16 %v45
  %v194 = vunpack.c.l.b16 %v46
  %v195 = vunpack.c.l.b16 %v47
  %v196 = vunpack.c.l.b16 %v48
  %v197 = vunpack.c.l.b16 %v49
  %v198 = vunpack.c.l.b16 %v50
  %v199 = vunpack.c.l.b16 %v51
  %v200 = vunpack.c.l.b16 %v52
  %v201 = vunpack.c.l.b16 %v53
  %v202 = vunpack.c.l.b16 %v54
  %v203 = vunpack.c.l.b16 %v55
  %v204 = vunpack.c.l.b16 %v56
  %v205 = vunpack.c.l.b16 %v57
  %v206 = vunpack.c.l.b16 %v58
  %v207 = vunpack.c.l.b16 %v59
  %v208 = vunpack.c.l.b16 %v60
  %v209 = vunpack.c.l.b16 %v61
  %v210 = vpack.c.b16 %v179, %v178
  %v211 = vpack.c.b16 %v181, %v180
  %v212 = vpack.c.b16 %v183, %v182
  %v213 = vpack.c.b16 %v185, %v184
  %v214 = vpack.c.b16 %v187, %v186
  %v215 = vpack.c.b16 %v189, %v188
  %v216 = vpack.c.b16 %v191, %v190
  %v217 = vpack.c.b16 %v193, %v192
  %v218 = vpack.c.b16 %v195, %v194
  %v219 = vpack.c.b16 %v197, %v196
  %v220 = vpack.c.b16 %v199, %v198
  %v221 = vpack.c.b16 %v201, %v200
  %v222 = vpack.c.b16 %v203, %v202
  %v223 = vpack.c.b16 %v205, %v204
  %v224 = vpack.c.b16 %v207, %v206
  %v225 = vpack.c.b16 %v209, %v208
  %242 = vmatpush.bf16.msra.mxu0 %v217
  %243 = vmatpush.bf16.msra.mxu0 %v216
  %244 = vmatpush.bf16.msra.mxu0 %v215
  %245 = vmatpush.bf16.msra.mxu0 %v214
  %246 = vmatpush.bf16.msra.mxu0 %v213
  %247 = vmatpush.bf16.msra.mxu0 %v212
  %248 = vmatpush.bf16.msra.mxu0 %v211
  %249 = vmatpush.bf16.msra.mxu0 %v210
  %250 = vmatmul.bf16.gmra.mxu0 %v114
  %v251 = vpop.f32.mrf.mxu0
  %v252 = vadd.f32 %v64, %v251
  %v253 = vpop.f32.mrf.mxu0
  %v254 = vadd.f32 %v64, %v253
  %255 = vmatmul.bf16.gmra.mxu0 %v116
  %v256 = vpop.f32.mrf.mxu0
  %v257 = vadd.f32 %v64, %v256
  %v258 = vpop.f32.mrf.mxu0
  %v259 = vadd.f32 %v64, %v258
  %260 = vmatmul.bf16.gmra.mxu0 %v118
  %v261 = vpop.f32.mrf.mxu0
  %v262 = vadd.f32 %v64, %v261
  %v263 = vpop.f32.mrf.mxu0
  %v264 = vadd.f32 %v64, %v263
  %265 = vmatmul.bf16.gmra.mxu0 %v120
  %v266 = vpop.f32.mrf.mxu0
  %v267 = vadd.f32 %v64, %v266
  %v268 = vpop.f32.mrf.mxu0
  %v269 = vadd.f32 %v64, %v268
  %270 = vmatmul.bf16.gmra.mxu0 %v122
  %v271 = vpop.f32.mrf.mxu0
  %v272 = vadd.f32 %v64, %v271
  %v273 = vpop.f32.mrf.mxu0
  %v274 = vadd.f32 %v64, %v273
  %275 = vmatmul.bf16.gmra.mxu0 %v124
  %v276 = vpop.f32.mrf.mxu0
  %v277 = vadd.f32 %v64, %v276
  %v278 = vpop.f32.mrf.mxu0
  %v279 = vadd.f32 %v64, %v278
  %280 = vmatmul.bf16.gmra.mxu0 %v126
  %v281 = vpop.f32.mrf.mxu0
  %v282 = vadd.f32 %v64, %v281
  %v283 = vpop.f32.mrf.mxu0
  %v284 = vadd.f32 %v64, %v283
  %285 = vmatmul.bf16.gmra.mxu0 %v128
  %v286 = vpop.f32.mrf.mxu0
  %v287 = vadd.f32 %v64, %v286
  %v288 = vpop.f32.mrf.mxu0
  %v289 = vadd.f32 %v64, %v288
  %290 = vdwg.mxu0
  %291 = vmatpush.bf16.msra.mxu0 %v225
  %292 = vmatpush.bf16.msra.mxu0 %v224
  %293 = vmatpush.bf16.msra.mxu0 %v223
  %294 = vmatpush.bf16.msra.mxu0 %v222
  %295 = vmatpush.bf16.msra.mxu0 %v221
  %296 = vmatpush.bf16.msra.mxu0 %v220
  %297 = vmatpush.bf16.msra.mxu0 %v219
  %298 = vmatpush.bf16.msra.mxu0 %v218
  %299 = vmatmul.bf16.gmra.mxu0 %v115
  %v300 = vpop.f32.mrf.mxu0
  %v301 = vadd.f32 %v252, %v300
  %v302 = vpop.f32.mrf.mxu0
  %v303 = vadd.f32 %v254, %v302
  %304 = vmatmul.bf16.gmra.mxu0 %v117
  %v305 = vpop.f32.mrf.mxu0
  %v306 = vadd.f32 %v257, %v305
  %v307 = vpop.f32.mrf.mxu0
  %v308 = vadd.f32 %v259, %v307
  %309 = vmatmul.bf16.gmra.mxu0 %v119
  %v310 = vpop.f32.mrf.mxu0
  %v311 = vadd.f32 %v262, %v310
  %v312 = vpop.f32.mrf.mxu0
  %v313 = vadd.f32 %v264, %v312
  %314 = vmatmul.bf16.gmra.mxu0 %v121
  %v315 = vpop.f32.mrf.mxu0
  %v316 = vadd.f32 %v267, %v315
  %v317 = vpop.f32.mrf.mxu0
  %v318 = vadd.f32 %v269, %v317
  %319 = vmatmul.bf16.gmra.mxu0 %v123
  %v320 = vpop.f32.mrf.mxu0
  %v321 = vadd.f32 %v272, %v320
  %v322 = vpop.f32.mrf.mxu0
  %v323 = vadd.f32 %v274, %v322
  %324 = vmatmul.bf16.gmra.mxu0 %v125
  %v325 = vpop.f32.mrf.mxu0
  %v326 = vadd.f32 %v277, %v325
  %v327 = vpop.f32.mrf.mxu0
  %v328 = vadd.f32 %v279, %v327
  %329 = vmatmul.bf16.gmra.mxu0 %v127
  %v330 = vpop.f32.mrf.mxu0
  %v331 = vadd.f32 %v282, %v330
  %v332 = vpop.f32.mrf.mxu0
  %v333 = vadd.f32 %v284, %v332
  %334 = vmatmul.bf16.gmra.mxu0 %v129
  %v335 = vpop.f32.mrf.mxu0
  %v336 = vadd.f32 %v287, %v335
  %v337 = vpop.f32.mrf.mxu0
  %v338 = vadd.f32 %v289, %v337
  %339 = vdwg.mxu0
  %v340 = vmax.f32 %v301, 0.0
  %v341 = vmax.f32 %v303, 0.0
  %v342 = vmax.f32 %v306, 0.0
  %v343 = vmax.f32 %v308, 0.0
  %v344 = vmax.f32 %v311, 0.0
  %v345 = vmax.f32 %v313, 0.0
  %v346 = vmax.f32 %v316, 0.0
  %v347 = vmax.f32 %v318, 0.0
  %v348 = vmax.f32 %v321, 0.0
  %v349 = vmax.f32 %v323, 0.0
  %v350 = vmax.f32 %v326, 0.0
  %v351 = vmax.f32 %v328, 0.0
  %v352 = vmax.f32 %v331, 0.0
  %v353 = vmax.f32 %v333, 0.0
  %v354 = vmax.f32 %v336, 0.0
  %v355 = vmax.f32 %v338, 0.0
  %v356 = vpack.c.bf16 %v340, %v340
  %v357 = vpack.c.bf16 %v341, %v341
  %v358 = vpack.c.bf16 %v342, %v342
  %v359 = vpack.c.bf16 %v343, %v343
  %v360 = vpack.c.bf16 %v344, %v344
  %v361 = vpack.c.bf16 %v345, %v345
  %v362 = vpack.c.bf16 %v346, %v346
  %v363 = vpack.c.bf16 %v347, %v347
  %v364 = vpack.c.bf16 %v348, %v348
  %v365 = vpack.c.bf16 %v349, %v349
  %v366 = vpack.c.bf16 %v350, %v350
  %v367 = vpack.c.bf16 %v351, %v351
  %v368 = vpack.c.bf16 %v352, %v352
  %v369 = vpack.c.bf16 %v353, %v353
  %v370 = vpack.c.bf16 %v354, %v354
  %v371 = vpack.c.bf16 %v355, %v355
  %vm372 = vcmask 257024
  %373 = vst.msk [vmem:[%s3] sm:$0xf] %vm372, %v356
  %374 = vst.msk [vmem:[%s3 + $0x4] sm:$0xf] %vm372, %v357
  %375 = vst.msk [vmem:[%s3 + $0x8] sm:$0xf] %vm372, %v358
  %376 = vst.msk [vmem:[%s3 + $0xc] sm:$0xf] %vm372, %v359
  %377 = vst.msk [vmem:[%s3 + $0x10] sm:$0xf] %vm372, %v360
  %378 = vst.msk [vmem:[%s3 + $0x14] sm:$0xf] %vm372, %v361
  %379 = vst.msk [vmem:[%s3 + $0x18] sm:$0xf] %vm372, %v362
  %380 = vst.msk [vmem:[%s3 + $0x1c] sm:$0xf] %vm372, %v363
  %381 = vst.msk [vmem:[%s3 + $0x20] sm:$0xf] %vm372, %v364
  %382 = vst.msk [vmem:[%s3 + $0x24] sm:$0xf] %vm372, %v365
  %383 = vst.msk [vmem:[%s3 + $0x28] sm:$0xf] %vm372, %v366
  %384 = vst.msk [vmem:[%s3 + $0x2c] sm:$0xf] %vm372, %v367
  %385 = vst.msk [vmem:[%s3 + $0x30] sm:$0xf] %vm372, %v368
  %386 = vst.msk [vmem:[%s3 + $0x34] sm:$0xf] %vm372, %v369
  %387 = vst.msk [vmem:[%s3 + $0x38] sm:$0xf] %vm372, %v370
  %388 = vst.msk [vmem:[%s3 + $0x3c] sm:$0xf] %vm372, %v371
  // Predicated region
  $region14: #{resnet_forward.30} parent=0 // pred_check
    _
  $region15: #{resnet_forward.30} parent=0 // pred_check_branch
    %390 = sbr.rel (0) target = $region17
  $region16: #{resnet_forward.30} parent=0 // pred_region
    _
  $region17: #{resnet_forward.30} parent=0 // pred_fallthru
    _
  // Predicated region
  $region18: #{resnet_forward.30} parent=0 // pred_check
    _
  $region19: #{resnet_forward.30} parent=0 // pred_check_branch
    %392 = sbr.rel (0) target = $region21
  $region20: #{resnet_forward.30} parent=0 // pred_region
    _
  $region21: #{resnet_forward.30} parent=0 // pred_fallthru
    _

// kernel: resnet_forward.29
$region0: #{resnet_forward.29}
  #allocation0 [shape = 'u32[]', space=smem, size = 0x4, offset = 0x4, fixed_abs, tag = 'smem constant byte address 0x4 - core index']
  #allocation1 [shape = 'u32[72,128]{1,0:T(1,128)}', space=vmem, size = 0x9000, scoped, tag = 'internal scratch']
  %s0 = inlined_call_operand.vmem [shape: bf16[128,128], index: 0, kind: input, shape index: {}]
  %s1 = inlined_call_operand.vmem [shape: bf16[128,32], index: 1, kind: input, shape index: {}]
  %s2 = inlined_call_operand.vmem [shape: f32[1,32], index: 2, kind: input, shape index: {}]
  %s3 = inlined_call_operand.vmem [shape: bf16[128,32], index: 3, kind: output, shape index: {}]
  %s4 = sld [smem:[#allocation0]]
  $region22: #{resnet_forward.29} parent=0
    _
  %s6 = ssub.s32 1, %s4
  %s7 = scalar_select 0, %s6, %s4
  // Predicated region
  $region2: #{resnet_forward.29} parent=0 // pred_check
    _
  $region3: #{resnet_forward.29} parent=0 // pred_check_branch
    %9 = sbr.rel (0) target = $region5
  $region4: #{resnet_forward.29} parent=0 // pred_region
    _
  $region5: #{resnet_forward.29} parent=0 // pred_fallthru
    _
  // Predicated region
  $region6: #{resnet_forward.29} parent=0 // pred_check
    _
  $region7: #{resnet_forward.29} parent=0 // pred_check_branch
    %11 = sbr.rel (0) target = $region9
  $region8: #{resnet_forward.29} parent=0 // pred_region
    _
  $region9: #{resnet_forward.29} parent=0 // pred_fallthru
    _
  // Predicated region
  $region10: #{resnet_forward.29} parent=0 // pred_check
    _
  $region11: #{resnet_forward.29} parent=0 // pred_check_branch
    %13 = sbr.rel (0) target = $region13
  $region12: #{resnet_forward.29} parent=0 // pred_region
    _
  $region13: #{resnet_forward.29} parent=0 // pred_fallthru
    _
  %v14 = vld [vmem:[%s0] sm:$0xf]
  %v15 = vld [vmem:[%s0 + $0x4] sm:$0xf]
  %v16 = vld [vmem:[%s0 + $0x8] sm:$0xf]
  %v17 = vld [vmem:[%s0 + $0xc] sm:$0xf]
  %v18 = vld [vmem:[%s0 + $0x10] sm:$0xf]
  %v19 = vld [vmem:[%s0 + $0x14] sm:$0xf]
  %v20 = vld [vmem:[%s0 + $0x18] sm:$0xf]
  %v21 = vld [vmem:[%s0 + $0x1c] sm:$0xf]
  %v22 = vld [vmem:[%s0 + $0x20] sm:$0xf]
  %v23 = vld [vmem:[%s0 + $0x24] sm:$0xf]
  %v24 = vld [vmem:[%s0 + $0x28] sm:$0xf]
  %v25 = vld [vmem:[%s0 + $0x2c] sm:$0xf]
  %v26 = vld [vmem:[%s0 + $0x30] sm:$0xf]
  %v27 = vld [vmem:[%s0 + $0x34] sm:$0xf]
  %v28 = vld [vmem:[%s0 + $0x38] sm:$0xf]
  %v29 = vld [vmem:[%s0 + $0x3c] sm:$0xf]
  %v30 = vld [vmem:[%s1] sm:$0xf]
  %v31 = vld [vmem:[%s1 + $0x4] sm:$0xf]
  %v32 = vld [vmem:[%s1 + $0x8] sm:$0xf]
  %v33 = vld [vmem:[%s1 + $0xc] sm:$0xf]
  %v34 = vld [vmem:[%s1 + $0x10] sm:$0xf]
  %v35 = vld [vmem:[%s1 + $0x14] sm:$0xf]
  %v36 = vld [vmem:[%s1 + $0x18] sm:$0xf]
  %v37 = vld [vmem:[%s1 + $0x1c] sm:$0xf]
  %v38 = vld [vmem:[%s1 + $0x20] sm:$0xf]
  %v39 = vld [vmem:[%s1 + $0x24] sm:$0xf]
  %v40 = vld [vmem:[%s1 + $0x28] sm:$0xf]
  %v41 = vld [vmem:[%s1 + $0x2c] sm:$0xf]
  %v42 = vld [vmem:[%s1 + $0x30] sm:$0xf]
  %v43 = vld [vmem:[%s1 + $0x34] sm:$0xf]
  %v44 = vld [vmem:[%s1 + $0x38] sm:$0xf]
  %v45 = vld [vmem:[%s1 + $0x3c] sm:$0xf]
  %v46 = vld [vmem:[%s2] sm:$0x1]
  %v48 = vperm.slane %v46, 0
  %v66 = vunpack.c.l.b16 %v14
  %v67 = vunpack.c.l.b16 %v15
  %v68 = vunpack.c.l.b16 %v16
  %v69 = vunpack.c.l.b16 %v17
  %v70 = vunpack.c.l.b16 %v18
  %v71 = vunpack.c.l.b16 %v19
  %v72 = vunpack.c.l.b16 %v20
  %v73 = vunpack.c.l.b16 %v21
  %v74 = vunpack.c.l.b16 %v22
  %v75 = vunpack.c.l.b16 %v23
  %v76 = vunpack.c.l.b16 %v24
  %v77 = vunpack.c.l.b16 %v25
  %v78 = vunpack.c.l.b16 %v26
  %v79 = vunpack.c.l.b16 %v27
  %v80 = vunpack.c.l.b16 %v28
  %v81 = vunpack.c.l.b16 %v29
  %v82 = vpack.c.b16 %v67, %v66
  %v83 = vpack.c.b16 %v69, %v68
  %v84 = vpack.c.b16 %v71, %v70
  %v85 = vpack.c.b16 %v73, %v72
  %v86 = vpack.c.b16 %v75, %v74
  %v87 = vpack.c.b16 %v77, %v76
  %v88 = vpack.c.b16 %v79, %v78
  %v89 = vpack.c.b16 %v81, %v80
  %v114 = vunpack.c.l.b16 %v30
  %v115 = vunpack.c.l.b16 %v31
  %v116 = vunpack.c.l.b16 %v32
  %v117 = vunpack.c.l.b16 %v33
  %v118 = vunpack.c.l.b16 %v34
  %v119 = vunpack.c.l.b16 %v35
  %v120 = vunpack.c.l.b16 %v36
  %v121 = vunpack.c.l.b16 %v37
  %v122 = vunpack.c.l.b16 %v38
  %v123 = vunpack.c.l.b16 %v39
  %v124 = vunpack.c.l.b16 %v40
  %v125 = vunpack.c.l.b16 %v41
  %v126 = vunpack.c.l.b16 %v42
  %v127 = vunpack.c.l.b16 %v43
  %v128 = vunpack.c.l.b16 %v44
  %v129 = vunpack.c.l.b16 %v45
  %v130 = vpack.c.b16 %v115, %v114
  %v131 = vpack.c.b16 %v117, %v116
  %v132 = vpack.c.b16 %v119, %v118
  %v133 = vpack.c.b16 %v121, %v120
  %v134 = vpack.c.b16 %v123, %v122
  %v135 = vpack.c.b16 %v125, %v124
  %v136 = vpack.c.b16 %v127, %v126
  %v137 = vpack.c.b16 %v129, %v128
  %146 = vmatpush.bf16.msra.mxu0 %v137
  %147 = vmatpush.bf16.msra.mxu0 %v136
  %148 = vmatpush.bf16.msra.mxu0 %v135
  %149 = vmatpush.bf16.msra.mxu0 %v134
  %150 = vmatpush.bf16.msra.mxu0 %v133
  %151 = vmatpush.bf16.msra.mxu0 %v132
  %152 = vmatpush.bf16.msra.mxu0 %v131
  %153 = vmatpush.bf16.msra.mxu0 %v130
  %154 = vmatmul.bf16.gmra.mxu0 %v82
  %v155 = vpop.f32.mrf.mxu0
  %v156 = vadd.f32 %v48, %v155
  %v157 = vpop.f32.mrf.mxu0
  %v158 = vadd.f32 %v48, %v157
  %159 = vmatmul.bf16.gmra.mxu0 %v83
  %v160 = vpop.f32.mrf.mxu0
  %v161 = vadd.f32 %v48, %v160
  %v162 = vpop.f32.mrf.mxu0
  %v163 = vadd.f32 %v48, %v162
  %164 = vmatmul.bf16.gmra.mxu0 %v84
  %v165 = vpop.f32.mrf.mxu0
  %v166 = vadd.f32 %v48, %v165
  %v167 = vpop.f32.mrf.mxu0
  %v168 = vadd.f32 %v48, %v167
  %169 = vmatmul.bf16.gmra.mxu0 %v85
  %v170 = vpop.f32.mrf.mxu0
  %v171 = vadd.f32 %v48, %v170
  %v172 = vpop.f32.mrf.mxu0
  %v173 = vadd.f32 %v48, %v172
  %174 = vmatmul.bf16.gmra.mxu0 %v86
  %v175 = vpop.f32.mrf.mxu0
  %v176 = vadd.f32 %v48, %v175
  %v177 = vpop.f32.mrf.mxu0
  %v178 = vadd.f32 %v48, %v177
  %179 = vmatmul.bf16.gmra.mxu0 %v87
  %v180 = vpop.f32.mrf.mxu0
  %v181 = vadd.f32 %v48, %v180
  %v182 = vpop.f32.mrf.mxu0
  %v183 = vadd.f32 %v48, %v182
  %184 = vmatmul.bf16.gmra.mxu0 %v88
  %v185 = vpop.f32.mrf.mxu0
  %v186 = vadd.f32 %v48, %v185
  %v187 = vpop.f32.mrf.mxu0
  %v188 = vadd.f32 %v48, %v187
  %189 = vmatmul.bf16.gmra.mxu0 %v89
  %v190 = vpop.f32.mrf.mxu0
  %v191 = vadd.f32 %v48, %v190
  %v192 = vpop.f32.mrf.mxu0
  %v193 = vadd.f32 %v48, %v192
  %194 = vdwg.mxu0
  %v195 = vpack.c.bf16 %v156, %v156
  %v196 = vpack.c.bf16 %v158, %v158
  %v197 = vpack.c.bf16 %v161, %v161
  %v198 = vpack.c.bf16 %v163, %v163
  %v199 = vpack.c.bf16 %v166, %v166
  %v200 = vpack.c.bf16 %v168, %v168
  %v201 = vpack.c.bf16 %v171, %v171
  %v202 = vpack.c.bf16 %v173, %v173
  %v203 = vpack.c.bf16 %v176, %v176
  %v204 = vpack.c.bf16 %v178, %v178
  %v205 = vpack.c.bf16 %v181, %v181
  %v206 = vpack.c.bf16 %v183, %v183
  %v207 = vpack.c.bf16 %v186, %v186
  %v208 = vpack.c.bf16 %v188, %v188
  %v209 = vpack.c.bf16 %v191, %v191
  %v210 = vpack.c.bf16 %v193, %v193
  %vm211 = vcmask 257024
  %212 = vst.msk [vmem:[%s3] sm:$0xf] %vm211, %v195
  %213 = vst.msk [vmem:[%s3 + $0x4] sm:$0xf] %vm211, %v196
  %214 = vst.msk [vmem:[%s3 + $0x8] sm:$0xf] %vm211, %v197
  %215 = vst.msk [vmem:[%s3 + $0xc] sm:$0xf] %vm211, %v198
  %216 = vst.msk [vmem:[%s3 + $0x10] sm:$0xf] %vm211, %v199
  %217 = vst.msk [vmem:[%s3 + $0x14] sm:$0xf] %vm211, %v200
  %218 = vst.msk [vmem:[%s3 + $0x18] sm:$0xf] %vm211, %v201
  %219 = vst.msk [vmem:[%s3 + $0x1c] sm:$0xf] %vm211, %v202
  %220 = vst.msk [vmem:[%s3 + $0x20] sm:$0xf] %vm211, %v203
  %221 = vst.msk [vmem:[%s3 + $0x24] sm:$0xf] %vm211, %v204
  %222 = vst.msk [vmem:[%s3 + $0x28] sm:$0xf] %vm211, %v205
  %223 = vst.msk [vmem:[%s3 + $0x2c] sm:$0xf] %vm211, %v206
  %224 = vst.msk [vmem:[%s3 + $0x30] sm:$0xf] %vm211, %v207
  %225 = vst.msk [vmem:[%s3 + $0x34] sm:$0xf] %vm211, %v208
  %226 = vst.msk [vmem:[%s3 + $0x38] sm:$0xf] %vm211, %v209
  %227 = vst.msk [vmem:[%s3 + $0x3c] sm:$0xf] %vm211, %v210
  // Predicated region
  $region14: #{resnet_forward.29} parent=0 // pred_check
    _
  $region15: #{resnet_forward.29} parent=0 // pred_check_branch
    %229 = sbr.rel (0) target = $region17
  $region16: #{resnet_forward.29} parent=0 // pred_region
    _
  $region17: #{resnet_forward.29} parent=0 // pred_fallthru
    _
  // Predicated region
  $region18: #{resnet_forward.29} parent=0 // pred_check
    _
  $region19: #{resnet_forward.29} parent=0 // pred_check_branch
    %231 = sbr.rel (0) target = $region21
  $region20: #{resnet_forward.29} parent=0 // pred_region
    _
  $region21: #{resnet_forward.29} parent=0 // pred_fallthru
    _

// kernel: resnet_forward.32
$region0: #{resnet_forward.32}
  #allocation0 [shape = 'u32[]', space=smem, size = 0x4, offset = 0x4, fixed_abs, tag = 'smem constant byte address 0x4 - core index']
  #allocation1 [shape = 'u32[72,128]{1,0:T(1,128)}', space=vmem, size = 0x9000, scoped, tag = 'internal scratch']
  %s0 = inlined_call_operand.vmem [shape: bf16[128,384], index: 0, kind: input, shape index: {}]
  %s1 = inlined_call_operand.vmem [shape: bf16[384,32], index: 1, kind: input, shape index: {}]
  %s2 = inlined_call_operand.vmem [shape: f32[1,32], index: 2, kind: input, shape index: {}]
  %s3 = inlined_call_operand.vmem [shape: bf16[128,32], index: 3, kind: output, shape index: {}]
  %s4 = sld [smem:[#allocation0]]
  $region22: #{resnet_forward.32} parent=0
    _
  %s6 = ssub.s32 1, %s4
  %s7 = scalar_select 0, %s6, %s4
  // Predicated region
  $region2: #{resnet_forward.32} parent=0 // pred_check
    _
  $region3: #{resnet_forward.32} parent=0 // pred_check_branch
    %9 = sbr.rel (0) target = $region5
  $region4: #{resnet_forward.32} parent=0 // pred_region
    _
  $region5: #{resnet_forward.32} parent=0 // pred_fallthru
    _
  // Predicated region
  $region6: #{resnet_forward.32} parent=0 // pred_check
    _
  $region7: #{resnet_forward.32} parent=0 // pred_check_branch
    %11 = sbr.rel (0) target = $region9
  $region8: #{resnet_forward.32} parent=0 // pred_region
    _
  $region9: #{resnet_forward.32} parent=0 // pred_fallthru
    _
  // Predicated region
  $region10: #{resnet_forward.32} parent=0 // pred_check
    _
  $region11: #{resnet_forward.32} parent=0 // pred_check_branch
    %13 = sbr.rel (0) target = $region13
  $region12: #{resnet_forward.32} parent=0 // pred_region
    _
  $region13: #{resnet_forward.32} parent=0 // pred_fallthru
    _
  %v14 = vld [vmem:[%s0] sm:$0xff]
  %v15 = vld [vmem:[%s0 + $0x8] sm:$0xf]
  %v16 = vld [vmem:[%s0 + $0xc] sm:$0xff]
  %v17 = vld [vmem:[%s0 + $0x14] sm:$0xf]
  %v18 = vld [vmem:[%s0 + $0x18] sm:$0xff]
  %v19 = vld [vmem:[%s0 + $0x20] sm:$0xf]
  %v20 = vld [vmem:[%s0 + $0x24] sm:$0xff]
  %v21 = vld [vmem:[%s0 + $0x2c] sm:$0xf]
  %v22 = vld [vmem:[%s0 + $0x30] sm:$0xff]
  %v23 = vld [vmem:[%s0 + $0x38] sm:$0xf]
  %v24 = vld [vmem:[%s0 + $0x3c] sm:$0xff]
  %v25 = vld [vmem:[%s0 + $0x44] sm:$0xf]
  %v26 = vld [vmem:[%s0 + $0x48] sm:$0xff]
  %v27 = vld [vmem:[%s0 + $0x50] sm:$0xf]
  %v28 = vld [vmem:[%s0 + $0x54] sm:$0xff]
  %v29 = vld [vmem:[%s0 + $0x5c] sm:$0xf]
  %v30 = vld [vmem:[%s0 + $0x60] sm:$0xff]
  %v31 = vld [vmem:[%s0 + $0x68] sm:$0xf]
  %v32 = vld [vmem:[%s0 + $0x6c] sm:$0xff]
  %v33 = vld [vmem:[%s0 + $0x74] sm:$0xf]
  %v34 = vld [vmem:[%s0 + $0x78] sm:$0xff]
  %v35 = vld [vmem:[%s0 + $0x80] sm:$0xf]
  %v36 = vld [vmem:[%s0 + $0x84] sm:$0xff]
  %v37 = vld [vmem:[%s0 + $0x8c] sm:$0xf]
  %v38 = vld [vmem:[%s0 + $0x90] sm:$0xff]
  %v39 = vld [vmem:[%s0 + $0x98] sm:$0xf]
  %v40 = vld [vmem:[%s0 + $0x9c] sm:$0xff]
  %v41 = vld [vmem:[%s0 + $0xa4] sm:$0xf]
  %v42 = vld [vmem:[%s0 + $0xa8] sm:$0xff]
  %v43 = vld [vmem:[%s0 + $0xb0] sm:$0xf]
  %v44 = vld [vmem:[%s0 + $0xb4] sm:$0xff]
  %v45 = vld [vmem:[%s0 + $0xbc] sm:$0xf]
  %v46 = vld [vmem:[%s1] sm:$0xf]
  %v47 = vld [vmem:[%s1 + $0x4] sm:$0xf]
  %v48 = vld [vmem:[%s1 + $0x8] sm:$0xf]
  %v49 = vld [vmem:[%s1 + $0xc] sm:$0xf]
  %v50 = vld [vmem:[%s1 + $0x10] sm:$0xf]
  %v51 = vld [vmem:[%s1 + $0x14] sm:$0xf]
  %v52 = vld [vmem:[%s1 + $0x18] sm:$0xf]
  %v53 = vld [vmem:[%s1 + $0x1c] sm:$0xf]
  %v54 = vld [vmem:[%s1 + $0x20] sm:$0xf]
  %v55 = vld [vmem:[%s1 + $0x24] sm:$0xf]
  %v56 = vld [vmem:[%s1 + $0x28] sm:$0xf]
  %v57 = vld [vmem:[%s1 + $0x2c] sm:$0xf]
  %v58 = vld [vmem:[%s1 + $0x30] sm:$0xf]
  %v59 = vld [vmem:[%s1 + $0x34] sm:$0xf]
  %v60 = vld [vmem:[%s1 + $0x38] sm:$0xf]
  %v61 = vld [vmem:[%s1 + $0x3c] sm:$0xf]
  %v62 = vld [vmem:[%s1 + $0x40] sm:$0xf]
  %v63 = vld [vmem:[%s1 + $0x44] sm:$0xf]
  %v64 = vld [vmem:[%s1 + $0x48] sm:$0xf]
  %v65 = vld [vmem:[%s1 + $0x4c] sm:$0xf]
  %v66 = vld [vmem:[%s1 + $0x50] sm:$0xf]
  %v67 = vld [vmem:[%s1 + $0x54] sm:$0xf]
  %v68 = vld [vmem:[%s1 + $0x58] sm:$0xf]
  %v69 = vld [vmem:[%s1 + $0x5c] sm:$0xf]
  %v70 = vld [vmem:[%s1 + $0x60] sm:$0xf]
  %v71 = vld [vmem:[%s1 + $0x64] sm:$0xf]
  %v72 = vld [vmem:[%s1 + $0x68] sm:$0xf]
  %v73 = vld [vmem:[%s1 + $0x6c] sm:$0xf]
  %v74 = vld [vmem:[%s1 + $0x70] sm:$0xf]
  %v75 = vld [vmem:[%s1 + $0x74] sm:$0xf]
  %v76 = vld [vmem:[%s1 + $0x78] sm:$0xf]
  %v77 = vld [vmem:[%s1 + $0x7c] sm:$0xf]
  %v78 = vld [vmem:[%s1 + $0x80] sm:$0xf]
  %v79 = vld [vmem:[%s1 + $0x84] sm:$0xf]
  %v80 = vld [vmem:[%s1 + $0x88] sm:$0xf]
  %v81 = vld [vmem:[%s1 + $0x8c] sm:$0xf]
  %v82 = vld [vmem:[%s1 + $0x90] sm:$0xf]
  %v83 = vld [vmem:[%s1 + $0x94] sm:$0xf]
  %v84 = vld [vmem:[%s1 + $0x98] sm:$0xf]
  %v85 = vld [vmem:[%s1 + $0x9c] sm:$0xf]
  %v86 = vld [vmem:[%s1 + $0xa0] sm:$0xf]
  %v87 = vld [vmem:[%s1 + $0xa4] sm:$0xf]
  %v88 = vld [vmem:[%s1 + $0xa8] sm:$0xf]
  %v89 = vld [vmem:[%s1 + $0xac] sm:$0xf]
  %v90 = vld [vmem:[%s1 + $0xb0] sm:$0xf]
  %v91 = vld [vmem:[%s1 + $0xb4] sm:$0xf]
  %v92 = vld [vmem:[%s1 + $0xb8] sm:$0xf]
  %v93 = vld [vmem:[%s1 + $0xbc] sm:$0xf]
  %v94 = vld [vmem:[%s2] sm:$0x1]
  %v96 = vperm.slane %v94, 0
  %v130 = vunpack.c.l.b16 %v14
  %v131 = vunpack.c.h.b16 %v14
  %v132 = vunpack.c.l.b16 %v15
  %v133 = vunpack.c.l.b16 %v16
  %v134 = vunpack.c.h.b16 %v16
  %v135 = vunpack.c.l.b16 %v17
  %v136 = vunpack.c.l.b16 %v18
  %v137 = vunpack.c.h.b16 %v18
  %v138 = vunpack.c.l.b16 %v19
  %v139 = vunpack.c.l.b16 %v20
  %v140 = vunpack.c.h.b16 %v20
  %v141 = vunpack.c.l.b16 %v21
  %v142 = vunpack.c.l.b16 %v22
  %v143 = vunpack.c.h.b16 %v22
  %v144 = vunpack.c.l.b16 %v23
  %v145 = vunpack.c.l.b16 %v24
  %v146 = vunpack.c.h.b16 %v24
  %v147 = vunpack.c.l.b16 %v25
  %v148 = vunpack.c.l.b16 %v26
  %v149 = vunpack.c.h.b16 %v26
  %v150 = vunpack.c.l.b16 %v27
  %v151 = vunpack.c.l.b16 %v28
  %v152 = vunpack.c.h.b16 %v28
  %v153 = vunpack.c.l.b16 %v29
  %v154 = vunpack.c.l.b16 %v30
  %v155 = vunpack.c.h.b16 %v30
  %v156 = vunpack.c.l.b16 %v31
  %v157 = vunpack.c.l.b16 %v32
  %v158 = vunpack.c.h.b16 %v32
  %v159 = vunpack.c.l.b16 %v33
  %v160 = vunpack.c.l.b16 %v34
  %v161 = vunpack.c.h.b16 %v34
  %v162 = vunpack.c.l.b16 %v35
  %v163 = vunpack.c.l.b16 %v36
  %v164 = vunpack.c.h.b16 %v36
  %v165 = vunpack.c.l.b16 %v37
  %v166 = vunpack.c.l.b16 %v38
  %v167 = vunpack.c.h.b16 %v38
  %v168 = vunpack.c.l.b16 %v39
  %v169 = vunpack.c.l.b16 %v40
  %v170 = vunpack.c.h.b16 %v40
  %v171 = vunpack.c.l.b16 %v41
  %v172 = vunpack.c.l.b16 %v42
  %v173 = vunpack.c.h.b16 %v42
  %v174 = vunpack.c.l.b16 %v43
  %v175 = vunpack.c.l.b16 %v44
  %v176 = vunpack.c.h.b16 %v44
  %v177 = vunpack.c.l.b16 %v45
  %v178 = vpack.c.b16 %v133, %v130
  %v179 = vpack.c.b16 %v134, %v131
  %v180 = vpack.c.b16 %v135, %v132
  %v181 = vpack.c.b16 %v139, %v136
  %v182 = vpack.c.b16 %v140, %v137
  %v183 = vpack.c.b16 %v141, %v138
  %v184 = vpack.c.b16 %v145, %v142
  %v185 = vpack.c.b16 %v146, %v143
  %v186 = vpack.c.b16 %v147, %v144
  %v187 = vpack.c.b16 %v151, %v148
  %v188 = vpack.c.b16 %v152, %v149
  %v189 = vpack.c.b16 %v153, %v150
  %v190 = vpack.c.b16 %v157, %v154
  %v191 = vpack.c.b16 %v158, %v155
  %v192 = vpack.c.b16 %v159, %v156
  %v193 = vpack.c.b16 %v163, %v160
  %v194 = vpack.c.b16 %v164, %v161
  %v195 = vpack.c.b16 %v165, %v162
  %v196 = vpack.c.b16 %v169, %v166
  %v197 = vpack.c.b16 %v170, %v167
  %v198 = vpack.c.b16 %v171, %v168
  %v199 = vpack.c.b16 %v175, %v172
  %v200 = vpack.c.b16 %v176, %v173
  %v201 = vpack.c.b16 %v177, %v174
  %v274 = vunpack.c.l.b16 %v46
  %v275 = vunpack.c.l.b16 %v47
  %v276 = vunpack.c.l.b16 %v48
  %v277 = vunpack.c.l.b16 %v49
  %v278 = vunpack.c.l.b16 %v50
  %v279 = vunpack.c.l.b16 %v51
  %v280 = vunpack.c.l.b16 %v52
  %v281 = vunpack.c.l.b16 %v53
  %v282 = vunpack.c.l.b16 %v54
  %v283 = vunpack.c.l.b16 %v55
  %v284 = vunpack.c.l.b16 %v56
  %v285 = vunpack.c.l.b16 %v57
  %v286 = vunpack.c.l.b16 %v58
  %v287 = vunpack.c.l.b16 %v59
  %v288 = vunpack.c.l.b16 %v60
  %v289 = vunpack.c.l.b16 %v61
  %v290 = vunpack.c.l.b16 %v62
  %v291 = vunpack.c.l.b16 %v63
  %v292 = vunpack.c.l.b16 %v64
  %v293 = vunpack.c.l.b16 %v65
  %v294 = vunpack.c.l.b16 %v66
  %v295 = vunpack.c.l.b16 %v67
  %v296 = vunpack.c.l.b16 %v68
  %v297 = vunpack.c.l.b16 %v69
  %v298 = vunpack.c.l.b16 %v70
  %v299 = vunpack.c.l.b16 %v71
  %v300 = vunpack.c.l.b16 %v72
  %v301 = vunpack.c.l.b16 %v73
  %v302 = vunpack.c.l.b16 %v74
  %v303 = vunpack.c.l.b16 %v75
  %v304 = vunpack.c.l.b16 %v76
  %v305 = vunpack.c.l.b16 %v77
  %v306 = vunpack.c.l.b16 %v78
  %v307 = vunpack.c.l.b16 %v79
  %v308 = vunpack.c.l.b16 %v80
  %v309 = vunpack.c.l.b16 %v81
  %v310 = vunpack.c.l.b16 %v82
  %v311 = vunpack.c.l.b16 %v83
  %v312 = vunpack.c.l.b16 %v84
  %v313 = vunpack.c.l.b16 %v85
  %v314 = vunpack.c.l.b16 %v86
  %v315 = vunpack.c.l.b16 %v87
  %v316 = vunpack.c.l.b16 %v88
  %v317 = vunpack.c.l.b16 %v89
  %v318 = vunpack.c.l.b16 %v90
  %v319 = vunpack.c.l.b16 %v91
  %v320 = vunpack.c.l.b16 %v92
  %v321 = vunpack.c.l.b16 %v93
  %v322 = vpack.c.b16 %v275, %v274
  %v323 = vpack.c.b16 %v277, %v276
  %v324 = vpack.c.b16 %v279, %v278
  %v325 = vpack.c.b16 %v281, %v280
  %v326 = vpack.c.b16 %v283, %v282
  %v327 = vpack.c.b16 %v285, %v284
  %v328 = vpack.c.b16 %v287, %v286
  %v329 = vpack.c.b16 %v289, %v288
  %v330 = vpack.c.b16 %v291, %v290
  %v331 = vpack.c.b16 %v293, %v292
  %v332 = vpack.c.b16 %v295, %v294
  %v333 = vpack.c.b16 %v297, %v296
  %v334 = vpack.c.b16 %v299, %v298
  %v335 = vpack.c.b16 %v301, %v300
  %v336 = vpack.c.b16 %v303, %v302
  %v337 = vpack.c.b16 %v305, %v304
  %v338 = vpack.c.b16 %v307, %v306
  %v339 = vpack.c.b16 %v309, %v308
  %v340 = vpack.c.b16 %v311, %v310
  %v341 = vpack.c.b16 %v313, %v312
  %v342 = vpack.c.b16 %v315, %v314
  %v343 = vpack.c.b16 %v317, %v316
  %v344 = vpack.c.b16 %v319, %v318
  %v345 = vpack.c.b16 %v321, %v320
  %370 = vmatpush.bf16.msra.mxu0 %v329
  %371 = vmatpush.bf16.msra.mxu0 %v328
  %372 = vmatpush.bf16.msra.mxu0 %v327
  %373 = vmatpush.bf16.msra.mxu0 %v326
  %374 = vmatpush.bf16.msra.mxu0 %v325
  %375 = vmatpush.bf16.msra.mxu0 %v324
  %376 = vmatpush.bf16.msra.mxu0 %v323
  %377 = vmatpush.bf16.msra.mxu0 %v322
  %378 = vmatmul.bf16.gmra.mxu0 %v178
  %v379 = vpop.f32.mrf.mxu0
  %v380 = vadd.f32 %v96, %v379
  %v381 = vpop.f32.mrf.mxu0
  %v382 = vadd.f32 %v96, %v381
  %383 = vmatmul.bf16.gmra.mxu0 %v181
  %v384 = vpop.f32.mrf.mxu0
  %v385 = vadd.f32 %v96, %v384
  %v386 = vpop.f32.mrf.mxu0
  %v387 = vadd.f32 %v96, %v386
  %388 = vmatmul.bf16.gmra.mxu0 %v184
  %v389 = vpop.f32.mrf.mxu0
  %v390 = vadd.f32 %v96, %v389
  %v391 = vpop.f32.mrf.mxu0
  %v392 = vadd.f32 %v96, %v391
  %393 = vmatmul.bf16.gmra.mxu0 %v187
  %v394 = vpop.f32.mrf.mxu0
  %v395 = vadd.f32 %v96, %v394
  %v396 = vpop.f32.mrf.mxu0
  %v397 = vadd.f32 %v96, %v396
  %398 = vmatmul.bf16.gmra.mxu0 %v190
  %v399 = vpop.f32.mrf.mxu0
  %v400 = vadd.f32 %v96, %v399
  %v401 = vpop.f32.mrf.mxu0
  %v402 = vadd.f32 %v96, %v401
  %403 = vmatmul.bf16.gmra.mxu0 %v193
  %v404 = vpop.f32.mrf.mxu0
  %v405 = vadd.f32 %v96, %v404
  %v406 = vpop.f32.mrf.mxu0
  %v407 = vadd.f32 %v96, %v406
  %408 = vmatmul.bf16.gmra.mxu0 %v196
  %v409 = vpop.f32.mrf.mxu0
  %v410 = vadd.f32 %v96, %v409
  %v411 = vpop.f32.mrf.mxu0
  %v412 = vadd.f32 %v96, %v411
  %413 = vmatmul.bf16.gmra.mxu0 %v199
  %v414 = vpop.f32.mrf.mxu0
  %v415 = vadd.f32 %v96, %v414
  %v416 = vpop.f32.mrf.mxu0
  %v417 = vadd.f32 %v96, %v416
  %418 = vdwg.mxu0
  %419 = vmatpush.bf16.msra.mxu0 %v337
  %420 = vmatpush.bf16.msra.mxu0 %v336
  %421 = vmatpush.bf16.msra.mxu0 %v335
  %422 = vmatpush.bf16.msra.mxu0 %v334
  %423 = vmatpush.bf16.msra.mxu0 %v333
  %424 = vmatpush.bf16.msra.mxu0 %v332
  %425 = vmatpush.bf16.msra.mxu0 %v331
  %426 = vmatpush.bf16.msra.mxu0 %v330
  %427 = vmatmul.bf16.gmra.mxu0 %v179
  %v428 = vpop.f32.mrf.mxu0
  %v429 = vadd.f32 %v380, %v428
  %v430 = vpop.f32.mrf.mxu0
  %v431 = vadd.f32 %v382, %v430
  %432 = vmatmul.bf16.gmra.mxu0 %v182
  %v433 = vpop.f32.mrf.mxu0
  %v434 = vadd.f32 %v385, %v433
  %v435 = vpop.f32.mrf.mxu0
  %v436 = vadd.f32 %v387, %v435
  %437 = vmatmul.bf16.gmra.mxu0 %v185
  %v438 = vpop.f32.mrf.mxu0
  %v439 = vadd.f32 %v390, %v438
  %v440 = vpop.f32.mrf.mxu0
  %v441 = vadd.f32 %v392, %v440
  %442 = vmatmul.bf16.gmra.mxu0 %v188
  %v443 = vpop.f32.mrf.mxu0
  %v444 = vadd.f32 %v395, %v443
  %v445 = vpop.f32.mrf.mxu0
  %v446 = vadd.f32 %v397, %v445
  %447 = vmatmul.bf16.gmra.mxu0 %v191
  %v448 = vpop.f32.mrf.mxu0
  %v449 = vadd.f32 %v400, %v448
  %v450 = vpop.f32.mrf.mxu0
  %v451 = vadd.f32 %v402, %v450
  %452 = vmatmul.bf16.gmra.mxu0 %v194
  %v453 = vpop.f32.mrf.mxu0
  %v454 = vadd.f32 %v405, %v453
  %v455 = vpop.f32.mrf.mxu0
  %v456 = vadd.f32 %v407, %v455
  %457 = vmatmul.bf16.gmra.mxu0 %v197
  %v458 = vpop.f32.mrf.mxu0
  %v459 = vadd.f32 %v410, %v458
  %v460 = vpop.f32.mrf.mxu0
  %v461 = vadd.f32 %v412, %v460
  %462 = vmatmul.bf16.gmra.mxu0 %v200
  %v463 = vpop.f32.mrf.mxu0
  %v464 = vadd.f32 %v415, %v463
  %v465 = vpop.f32.mrf.mxu0
  %v466 = vadd.f32 %v417, %v465
  %467 = vdwg.mxu0
  %468 = vmatpush.bf16.msra.mxu0 %v345
  %469 = vmatpush.bf16.msra.mxu0 %v344
  %470 = vmatpush.bf16.msra.mxu0 %v343
  %471 = vmatpush.bf16.msra.mxu0 %v342
  %472 = vmatpush.bf16.msra.mxu0 %v341
  %473 = vmatpush.bf16.msra.mxu0 %v340
  %474 = vmatpush.bf16.msra.mxu0 %v339
  %475 = vmatpush.bf16.msra.mxu0 %v338
  %476 = vmatmul.bf16.gmra.mxu0 %v180
  %v477 = vpop.f32.mrf.mxu0
  %v478 = vadd.f32 %v429, %v477
  %v479 = vpop.f32.mrf.mxu0
  %v480 = vadd.f32 %v431, %v479
  %481 = vmatmul.bf16.gmra.mxu0 %v183
  %v482 = vpop.f32.mrf.mxu0
  %v483 = vadd.f32 %v434, %v482
  %v484 = vpop.f32.mrf.mxu0
  %v485 = vadd.f32 %v436, %v484
  %486 = vmatmul.bf16.gmra.mxu0 %v186
  %v487 = vpop.f32.mrf.mxu0
  %v488 = vadd.f32 %v439, %v487
  %v489 = vpop.f32.mrf.mxu0
  %v490 = vadd.f32 %v441, %v489
  %491 = vmatmul.bf16.gmra.mxu0 %v189
  %v492 = vpop.f32.mrf.mxu0
  %v493 = vadd.f32 %v444, %v492
  %v494 = vpop.f32.mrf.mxu0
  %v495 = vadd.f32 %v446, %v494
  %496 = vmatmul.bf16.gmra.mxu0 %v192
  %v497 = vpop.f32.mrf.mxu0
  %v498 = vadd.f32 %v449, %v497
  %v499 = vpop.f32.mrf.mxu0
  %v500 = vadd.f32 %v451, %v499
  %501 = vmatmul.bf16.gmra.mxu0 %v195
  %v502 = vpop.f32.mrf.mxu0
  %v503 = vadd.f32 %v454, %v502
  %v504 = vpop.f32.mrf.mxu0
  %v505 = vadd.f32 %v456, %v504
  %506 = vmatmul.bf16.gmra.mxu0 %v198
  %v507 = vpop.f32.mrf.mxu0
  %v508 = vadd.f32 %v459, %v507
  %v509 = vpop.f32.mrf.mxu0
  %v510 = vadd.f32 %v461, %v509
  %511 = vmatmul.bf16.gmra.mxu0 %v201
  %v512 = vpop.f32.mrf.mxu0
  %v513 = vadd.f32 %v464, %v512
  %v514 = vpop.f32.mrf.mxu0
  %v515 = vadd.f32 %v466, %v514
  %516 = vdwg.mxu0
  %v517 = vmax.f32 %v478, 0.0
  %v518 = vmax.f32 %v480, 0.0
  %v519 = vmax.f32 %v483, 0.0
  %v520 = vmax.f32 %v485, 0.0
  %v521 = vmax.f32 %v488, 0.0
  %v522 = vmax.f32 %v490, 0.0
  %v523 = vmax.f32 %v493, 0.0
  %v524 = vmax.f32 %v495, 0.0
  %v525 = vmax.f32 %v498, 0.0
  %v526 = vmax.f32 %v500, 0.0
  %v527 = vmax.f32 %v503, 0.0
  %v528 = vmax.f32 %v505, 0.0
  %v529 = vmax.f32 %v508, 0.0
  %v530 = vmax.f32 %v510, 0.0
  %v531 = vmax.f32 %v513, 0.0
  %v532 = vmax.f32 %v515, 0.0
  %v533 = vpack.c.bf16 %v517, %v517
  %v534 = vpack.c.bf16 %v518, %v518
  %v535 = vpack.c.bf16 %v519, %v519
  %v536 = vpack.c.bf16 %v520, %v520
  %v537 = vpack.c.bf16 %v521, %v521
  %v538 = vpack.c.bf16 %v522, %v522
  %v539 = vpack.c.bf16 %v523, %v523
  %v540 = vpack.c.bf16 %v524, %v524
  %v541 = vpack.c.bf16 %v525, %v525
  %v542 = vpack.c.bf16 %v526, %v526
  %v543 = vpack.c.bf16 %v527, %v527
  %v544 = vpack.c.bf16 %v528, %v528
  %v545 = vpack.c.bf16 %v529, %v529
  %v546 = vpack.c.bf16 %v530, %v530
  %v547 = vpack.c.bf16 %v531, %v531
  %v548 = vpack.c.bf16 %v532, %v532
  %vm549 = vcmask 257024
  %550 = vst.msk [vmem:[%s3] sm:$0xf] %vm549, %v533
  %551 = vst.msk [vmem:[%s3 + $0x4] sm:$0xf] %vm549, %v534
  %552 = vst.msk [vmem:[%s3 + $0x8] sm:$0xf] %vm549, %v535
  %553 = vst.msk [vmem:[%s3 + $0xc] sm:$0xf] %vm549, %v536
  %554 = vst.msk [vmem:[%s3 + $0x10] sm:$0xf] %vm549, %v537
  %555 = vst.msk [vmem:[%s3 + $0x14] sm:$0xf] %vm549, %v538
  %556 = vst.msk [vmem:[%s3 + $0x18] sm:$0xf] %vm549, %v539
  %557 = vst.msk [vmem:[%s3 + $0x1c] sm:$0xf] %vm549, %v540
  %558 = vst.msk [vmem:[%s3 + $0x20] sm:$0xf] %vm549, %v541
  %559 = vst.msk [vmem:[%s3 + $0x24] sm:$0xf] %vm549, %v542
  %560 = vst.msk [vmem:[%s3 + $0x28] sm:$0xf] %vm549, %v543
  %561 = vst.msk [vmem:[%s3 + $0x2c] sm:$0xf] %vm549, %v544
  %562 = vst.msk [vmem:[%s3 + $0x30] sm:$0xf] %vm549, %v545
  %563 = vst.msk [vmem:[%s3 + $0x34] sm:$0xf] %vm549, %v546
  %564 = vst.msk [vmem:[%s3 + $0x38] sm:$0xf] %vm549, %v547
  %565 = vst.msk [vmem:[%s3 + $0x3c] sm:$0xf] %vm549, %v548
  // Predicated region
  $region14: #{resnet_forward.32} parent=0 // pred_check
    _
  $region15: #{resnet_forward.32} parent=0 // pred_check_branch
    %567 = sbr.rel (0) target = $region17
  $region16: #{resnet_forward.32} parent=0 // pred_region
    _
  $region17: #{resnet_forward.32} parent=0 // pred_fallthru
    _
  // Predicated region
  $region18: #{resnet_forward.32} parent=0 // pred_check
    _
  $region19: #{resnet_forward.32} parent=0 // pred_check_branch
    %569 = sbr.rel (0) target = $region21
  $region20: #{resnet_forward.32} parent=0 // pred_region
    _
  $region21: #{resnet_forward.32} parent=0 // pred_fallthru
    _

// kernel: resnet_forward.33
$region0: #{resnet_forward.33}
  #allocation0 [shape = 'u32[]', space=smem, size = 0x4, offset = 0x4, fixed_abs, tag = 'smem constant byte address 0x4 - core index']
  #allocation1 [shape = 'u32[72,128]{1,0:T(1,128)}', space=vmem, size = 0x9000, scoped, tag = 'internal scratch']
  %s0 = inlined_call_operand.vmem [shape: bf16[8,2,10,32], index: 0, kind: input, shape index: {}]
  %s1 = inlined_call_operand.vmem [shape: bf16[8,9,32], index: 1, kind: output, shape index: {}]
  %s2 = sld [smem:[#allocation0]]
  $region14: #{resnet_forward.33} parent=0
    _
  %s4 = ssub.s32 1, %s2
  %s5 = scalar_select 0, %s4, %s2
  // Predicated region
  $region2: #{resnet_forward.33} parent=0 // pred_check
    _
  $region3: #{resnet_forward.33} parent=0 // pred_check_branch
    %7 = sbr.rel (0) target = $region5
  $region4: #{resnet_forward.33} parent=0 // pred_region
    _
  $region5: #{resnet_forward.33} parent=0 // pred_fallthru
    _
  %v8 = vld [vmem:[%s0] sm:$0xf]
  %v9 = vld [vmem:[%s0 + $0x4] sm:$0x1]
  %v10 = vld [vmem:[%s0 + $0x8] sm:$0xf]
  %v11 = vld [vmem:[%s0 + $0xc] sm:$0x1]
  %v12 = vld [vmem:[%s0 + $0x10] sm:$0xf]
  %v13 = vld [vmem:[%s0 + $0x14] sm:$0x1]
  %v14 = vld [vmem:[%s0 + $0x18] sm:$0xf]
  %v15 = vld [vmem:[%s0 + $0x1c] sm:$0x1]
  %v16 = vld [vmem:[%s0 + $0x20] sm:$0xf]
  %v17 = vld [vmem:[%s0 + $0x24] sm:$0x1]
  %v18 = vld [vmem:[%s0 + $0x28] sm:$0xf]
  %v19 = vld [vmem:[%s0 + $0x2c] sm:$0x1]
  %v20 = vld [vmem:[%s0 + $0x30] sm:$0xf]
  %v21 = vld [vmem:[%s0 + $0x34] sm:$0x1]
  %v22 = vld [vmem:[%s0 + $0x38] sm:$0xf]
  %v23 = vld [vmem:[%s0 + $0x3c] sm:$0x1]
  %v24 = vld [vmem:[%s0 + $0x40] sm:$0xf]
  %v25 = vld [vmem:[%s0 + $0x44] sm:$0x1]
  %v26 = vld [vmem:[%s0 + $0x48] sm:$0xf]
  %v27 = vld [vmem:[%s0 + $0x4c] sm:$0x1]
  %v28 = vld [vmem:[%s0 + $0x50] sm:$0xf]
  %v29 = vld [vmem:[%s0 + $0x54] sm:$0x1]
  %v30 = vld [vmem:[%s0 + $0x58] sm:$0xf]
  %v31 = vld [vmem:[%s0 + $0x5c] sm:$0x1]
  %v32 = vld [vmem:[%s0 + $0x60] sm:$0xf]
  %v33 = vld [vmem:[%s0 + $0x64] sm:$0x1]
  %v34 = vld [vmem:[%s0 + $0x68] sm:$0xf]
  %v35 = vld [vmem:[%s0 + $0x6c] sm:$0x1]
  %v36 = vld [vmem:[%s0 + $0x70] sm:$0xf]
  %v37 = vld [vmem:[%s0 + $0x74] sm:$0x1]
  %v38 = vld [vmem:[%s0 + $0x78] sm:$0xf]
  %v39 = vld [vmem:[%s0 + $0x7c] sm:$0x1]
  %v40 = vunpack.c.l.bf16 %v8
  %v41 = vunpack.c.l.bf16 %v9
  %v42 = vunpack.c.l.bf16 %v12
  %v43 = vunpack.c.l.bf16 %v13
  %v44 = vunpack.c.l.bf16 %v16
  %v45 = vunpack.c.l.bf16 %v17
  %v46 = vunpack.c.l.bf16 %v20
  %v47 = vunpack.c.l.bf16 %v21
  %v48 = vunpack.c.l.bf16 %v24
  %v49 = vunpack.c.l.bf16 %v25
  %v50 = vunpack.c.l.bf16 %v28
  %v51 = vunpack.c.l.bf16 %v29
  %v52 = vunpack.c.l.bf16 %v32
  %v53 = vunpack.c.l.bf16 %v33
  %v54 = vunpack.c.l.bf16 %v36
  %v55 = vunpack.c.l.bf16 %v37
  %v56 = vunpack.c.l.bf16 %v10
  %v57 = vunpack.c.l.bf16 %v11
  %v58 = vunpack.c.l.bf16 %v14
  %v59 = vunpack.c.l.bf16 %v15
  %v60 = vunpack.c.l.bf16 %v18
  %v61 = vunpack.c.l.bf16 %v19
  %v62 = vunpack.c.l.bf16 %v22
  %v63 = vunpack.c.l.bf16 %v23
  %v64 = vunpack.c.l.bf16 %v26
  %v65 = vunpack.c.l.bf16 %v27
  %v66 = vunpack.c.l.bf16 %v30
  %v67 = vunpack.c.l.bf16 %v31
  %v68 = vunpack.c.l.bf16 %v34
  %v69 = vunpack.c.l.bf16 %v35
  %v70 = vunpack.c.l.bf16 %v38
  %v71 = vunpack.c.l.bf16 %v39
  %v72 = vmax.f32 %v40, %v56
  %v73 = vmax.f32 %v41, %v57
  %v74 = vmax.f32 %v42, %v58
  %v75 = vmax.f32 %v43, %v59
  %v76 = vmax.f32 %v44, %v60
  %v77 = vmax.f32 %v45, %v61
  %v78 = vmax.f32 %v46, %v62
  %v79 = vmax.f32 %v47, %v63
  %v80 = vmax.f32 %v48, %v64
  %v81 = vmax.f32 %v49, %v65
  %v82 = vmax.f32 %v50, %v66
  %v83 = vmax.f32 %v51, %v67
  %v84 = vmax.f32 %v52, %v68
  %v85 = vmax.f32 %v53, %v69
  %v86 = vmax.f32 %v54, %v70
  %v87 = vmax.f32 %v55, %v71
  %v88 = vpack.c.bf16 %v72, %v72
  %v89 = vpack.c.bf16 %v73, %v73
  %v90 = vpack.c.bf16 %v74, %v74
  %v91 = vpack.c.bf16 %v75, %v75
  %v92 = vpack.c.bf16 %v76, %v76
  %v93 = vpack.c.bf16 %v77, %v77
  %v94 = vpack.c.bf16 %v78, %v78
  %v95 = vpack.c.bf16 %v79, %v79
  %v96 = vpack.c.bf16 %v80, %v80
  %v97 = vpack.c.bf16 %v81, %v81
  %v98 = vpack.c.bf16 %v82, %v82
  %v99 = vpack.c.bf16 %v83, %v83
  %v100 = vpack.c.bf16 %v84, %v84
  %v101 = vpack.c.bf16 %v85, %v85
  %v102 = vpack.c.bf16 %v86, %v86
  %v103 = vpack.c.bf16 %v87, %v87
  %v104 = vunpack.c.l.bf16 %v88
  %v105 = vunpack.c.l.bf16 %v89
  %v106 = vunpack.c.l.bf16 %v90
  %v107 = vunpack.c.l.bf16 %v91
  %v108 = vunpack.c.l.bf16 %v92
  %v109 = vunpack.c.l.bf16 %v93
  %v110 = vunpack.c.l.bf16 %v94
  %v111 = vunpack.c.l.bf16 %v95
  %v112 = vunpack.c.l.bf16 %v96
  %v113 = vunpack.c.l.bf16 %v97
  %v114 = vunpack.c.l.bf16 %v98
  %v115 = vunpack.c.l.bf16 %v99
  %v116 = vunpack.c.l.bf16 %v100
  %v117 = vunpack.c.l.bf16 %v101
  %v118 = vunpack.c.l.bf16 %v102
  %v119 = vunpack.c.l.bf16 %v103
  %vm136 = vcmask 1046528
  %v137 = vrot.slane %v104, 1
  %v138 = vrot.slane %v105, 1
  %v139 = vsel %vm136, %v137, %v138
  %v140 = vrot.slane %v106, 1
  %v141 = vrot.slane %v107, 1
  %v142 = vsel %vm136, %v140, %v141
  %v143 = vrot.slane %v108, 1
  %v144 = vrot.slane %v109, 1
  %v145 = vsel %vm136, %v143, %v144
  %v146 = vrot.slane %v110, 1
  %v147 = vrot.slane %v111, 1
  %v148 = vsel %vm136, %v146, %v147
  %v149 = vrot.slane %v112, 1
  %v150 = vrot.slane %v113, 1
  %v151 = vsel %vm136, %v149, %v150
  %v152 = vrot.slane %v114, 1
  %v153 = vrot.slane %v115, 1
  %v154 = vsel %vm136, %v152, %v153
  %v155 = vrot.slane %v116, 1
  %v156 = vrot.slane %v117, 1
  %v157 = vsel %vm136, %v155, %v156
  %v158 = vrot.slane %v118, 1
  %v159 = vrot.slane %v119, 1
  %v160 = vsel %vm136, %v158, %v159
  %v177 = vmax.f32 %v104, %v139
  %v178 = vmax.f32 %v105, %v138
  %v179 = vmax.f32 %v106, %v142
  %v180 = vmax.f32 %v107, %v141
  %v181 = vmax.f32 %v108, %v145
  %v182 = vmax.f32 %v109, %v144
  %v183 = vmax.f32 %v110, %v148
  %v184 = vmax.f32 %v111, %v147
  %v185 = vmax.f32 %v112, %v151
  %v186 = vmax.f32 %v113, %v150
  %v187 = vmax.f32 %v114, %v154
  %v188 = vmax.f32 %v115, %v153
  %v189 = vmax.f32 %v116, %v157
  %v190 = vmax.f32 %v117, %v156
  %v191 = vmax.f32 %v118, %v160
  %v192 = vmax.f32 %v119, %v159
  %v193 = vpack.c.bf16 %v177, %v177
  %v194 = vpack.c.bf16 %v178, %v178
  %v195 = vpack.c.bf16 %v179, %v179
  %v196 = vpack.c.bf16 %v180, %v180
  %v197 = vpack.c.bf16 %v181, %v181
  %v198 = vpack.c.bf16 %v182, %v182
  %v199 = vpack.c.bf16 %v183, %v183
  %v200 = vpack.c.bf16 %v184, %v184
  %v201 = vpack.c.bf16 %v185, %v185
  %v202 = vpack.c.bf16 %v186, %v186
  %v203 = vpack.c.bf16 %v187, %v187
  %v204 = vpack.c.bf16 %v188, %v188
  %v205 = vpack.c.bf16 %v189, %v189
  %v206 = vpack.c.bf16 %v190, %v190
  %v207 = vpack.c.bf16 %v191, %v191
  %v208 = vpack.c.bf16 %v192, %v192
  %vm209 = vcmask 257024
  %210 = vst.msk [vmem:[%s1] sm:$0xf] %vm209, %v193
  %vm211 = vcmask 253952
  %vm212 = vsmask.f32 256
  %vm213 = vmand %vm211, %vm212
  %v214 = vld [vmem:[%s1 + $0x4] sm:$0x1]
  %v215 = vsel %vm213, %v194, %v214
  %216 = vst [vmem:[%s1 + $0x4] sm:$0x1] %v215
  %217 = vst.msk [vmem:[%s1 + $0x8] sm:$0xf] %vm209, %v195
  %v218 = vld [vmem:[%s1 + $0xc] sm:$0x1]
  %v219 = vsel %vm213, %v196, %v218
  %220 = vst [vmem:[%s1 + $0xc] sm:$0x1] %v219
  %221 = vst.msk [vmem:[%s1 + $0x10] sm:$0xf] %vm209, %v197
  %v222 = vld [vmem:[%s1 + $0x14] sm:$0x1]
  %v223 = vsel %vm213, %v198, %v222
  %224 = vst [vmem:[%s1 + $0x14] sm:$0x1] %v223
  %225 = vst.msk [vmem:[%s1 + $0x18] sm:$0xf] %vm209, %v199
  %v226 = vld [vmem:[%s1 + $0x1c] sm:$0x1]
  %v227 = vsel %vm213, %v200, %v226
  %228 = vst [vmem:[%s1 + $0x1c] sm:$0x1] %v227
  %229 = vst.msk [vmem:[%s1 + $0x20] sm:$0xf] %vm209, %v201
  %v230 = vld [vmem:[%s1 + $0x24] sm:$0x1]
  %v231 = vsel %vm213, %v202, %v230
  %232 = vst [vmem:[%s1 + $0x24] sm:$0x1] %v231
  %233 = vst.msk [vmem:[%s1 + $0x28] sm:$0xf] %vm209, %v203
  %v234 = vld [vmem:[%s1 + $0x2c] sm:$0x1]
  %v235 = vsel %vm213, %v204, %v234
  %236 = vst [vmem:[%s1 + $0x2c] sm:$0x1] %v235
  %237 = vst.msk [vmem:[%s1 + $0x30] sm:$0xf] %vm209, %v205
  %v238 = vld [vmem:[%s1 + $0x34] sm:$0x1]
  %v239 = vsel %vm213, %v206, %v238
  %240 = vst [vmem:[%s1 + $0x34] sm:$0x1] %v239
  %241 = vst.msk [vmem:[%s1 + $0x38] sm:$0xf] %vm209, %v207
  %v242 = vld [vmem:[%s1 + $0x3c] sm:$0x1]
  %v243 = vsel %vm213, %v208, %v242
  %244 = vst [vmem:[%s1 + $0x3c] sm:$0x1] %v243
  // Predicated region
  $region6: #{resnet_forward.33} parent=0 // pred_check
    _
  $region7: #{resnet_forward.33} parent=0 // pred_check_branch
    %246 = sbr.rel (0) target = $region9
  $region8: #{resnet_forward.33} parent=0 // pred_region
    _
  $region9: #{resnet_forward.33} parent=0 // pred_fallthru
    _
  // Predicated region
  $region10: #{resnet_forward.33} parent=0 // pred_check
    _
  $region11: #{resnet_forward.33} parent=0 // pred_check_branch
    %248 = sbr.rel (0) target = $region13
  $region12: #{resnet_forward.33} parent=0 // pred_region
    _
  $region13: #{resnet_forward.33} parent=0 // pred_fallthru
    _

// kernel: resnet_forward.31
$region0: #{resnet_forward.31}
  #allocation0 [shape = 'u32[]', space=smem, size = 0x4, offset = 0x4, fixed_abs, tag = 'smem constant byte address 0x4 - core index']
  #allocation1 [shape = 'u32[72,128]{1,0:T(1,128)}', space=vmem, size = 0x9000, scoped, tag = 'internal scratch']
  %s0 = inlined_call_operand.vmem [shape: bf16[128,384], index: 0, kind: input, shape index: {}]
  %s1 = inlined_call_operand.vmem [shape: bf16[384,32], index: 1, kind: input, shape index: {}]
  %s2 = inlined_call_operand.vmem [shape: f32[1,32], index: 2, kind: input, shape index: {}]
  %s3 = inlined_call_operand.vmem [shape: bf16[128,32], index: 3, kind: input, shape index: {}]
  %s4 = inlined_call_operand.vmem [shape: bf16[128,32], index: 4, kind: output, shape index: {}]
  %s5 = sld [smem:[#allocation0]]
  $region26: #{resnet_forward.31} parent=0
    _
  %s7 = ssub.s32 1, %s5
  %s8 = scalar_select 0, %s7, %s5
  // Predicated region
  $region2: #{resnet_forward.31} parent=0 // pred_check
    _
  $region3: #{resnet_forward.31} parent=0 // pred_check_branch
    %10 = sbr.rel (0) target = $region5
  $region4: #{resnet_forward.31} parent=0 // pred_region
    _
  $region5: #{resnet_forward.31} parent=0 // pred_fallthru
    _
  // Predicated region
  $region6: #{resnet_forward.31} parent=0 // pred_check
    _
  $region7: #{resnet_forward.31} parent=0 // pred_check_branch
    %12 = sbr.rel (0) target = $region9
  $region8: #{resnet_forward.31} parent=0 // pred_region
    _
  $region9: #{resnet_forward.31} parent=0 // pred_fallthru
    _
  // Predicated region
  $region10: #{resnet_forward.31} parent=0 // pred_check
    _
  $region11: #{resnet_forward.31} parent=0 // pred_check_branch
    %14 = sbr.rel (0) target = $region13
  $region12: #{resnet_forward.31} parent=0 // pred_region
    _
  $region13: #{resnet_forward.31} parent=0 // pred_fallthru
    _
  // Predicated region
  $region14: #{resnet_forward.31} parent=0 // pred_check
    _
  $region15: #{resnet_forward.31} parent=0 // pred_check_branch
    %16 = sbr.rel (0) target = $region17
  $region16: #{resnet_forward.31} parent=0 // pred_region
    _
  $region17: #{resnet_forward.31} parent=0 // pred_fallthru
    _
  %v17 = vld [vmem:[%s0] sm:$0xff]
  %v18 = vld [vmem:[%s0 + $0x8] sm:$0xf]
  %v19 = vld [vmem:[%s0 + $0xc] sm:$0xff]
  %v20 = vld [vmem:[%s0 + $0x14] sm:$0xf]
  %v21 = vld [vmem:[%s0 + $0x18] sm:$0xff]
  %v22 = vld [vmem:[%s0 + $0x20] sm:$0xf]
  %v23 = vld [vmem:[%s0 + $0x24] sm:$0xff]
  %v24 = vld [vmem:[%s0 + $0x2c] sm:$0xf]
  %v25 = vld [vmem:[%s0 + $0x30] sm:$0xff]
  %v26 = vld [vmem:[%s0 + $0x38] sm:$0xf]
  %v27 = vld [vmem:[%s0 + $0x3c] sm:$0xff]
  %v28 = vld [vmem:[%s0 + $0x44] sm:$0xf]
  %v29 = vld [vmem:[%s0 + $0x48] sm:$0xff]
  %v30 = vld [vmem:[%s0 + $0x50] sm:$0xf]
  %v31 = vld [vmem:[%s0 + $0x54] sm:$0xff]
  %v32 = vld [vmem:[%s0 + $0x5c] sm:$0xf]
  %v33 = vld [vmem:[%s0 + $0x60] sm:$0xff]
  %v34 = vld [vmem:[%s0 + $0x68] sm:$0xf]
  %v35 = vld [vmem:[%s0 + $0x6c] sm:$0xff]
  %v36 = vld [vmem:[%s0 + $0x74] sm:$0xf]
  %v37 = vld [vmem:[%s0 + $0x78] sm:$0xff]
  %v38 = vld [vmem:[%s0 + $0x80] sm:$0xf]
  %v39 = vld [vmem:[%s0 + $0x84] sm:$0xff]
  %v40 = vld [vmem:[%s0 + $0x8c] sm:$0xf]
  %v41 = vld [vmem:[%s0 + $0x90] sm:$0xff]
  %v42 = vld [vmem:[%s0 + $0x98] sm:$0xf]
  %v43 = vld [vmem:[%s0 + $0x9c] sm:$0xff]
  %v44 = vld [vmem:[%s0 + $0xa4] sm:$0xf]
  %v45 = vld [vmem:[%s0 + $0xa8] sm:$0xff]
  %v46 = vld [vmem:[%s0 + $0xb0] sm:$0xf]
  %v47 = vld [vmem:[%s0 + $0xb4] sm:$0xff]
  %v48 = vld [vmem:[%s0 + $0xbc] sm:$0xf]
  %v49 = vld [vmem:[%s1] sm:$0xf]
  %v50 = vld [vmem:[%s1 + $0x4] sm:$0xf]
  %v51 = vld [vmem:[%s1 + $0x8] sm:$0xf]
  %v52 = vld [vmem:[%s1 + $0xc] sm:$0xf]
  %v53 = vld [vmem:[%s1 + $0x10] sm:$0xf]
  %v54 = vld [vmem:[%s1 + $0x14] sm:$0xf]
  %v55 = vld [vmem:[%s1 + $0x18] sm:$0xf]
  %v56 = vld [vmem:[%s1 + $0x1c] sm:$0xf]
  %v57 = vld [vmem:[%s1 + $0x20] sm:$0xf]
  %v58 = vld [vmem:[%s1 + $0x24] sm:$0xf]
  %v59 = vld [vmem:[%s1 + $0x28] sm:$0xf]
  %v60 = vld [vmem:[%s1 + $0x2c] sm:$0xf]
  %v61 = vld [vmem:[%s1 + $0x30] sm:$0xf]
  %v62 = vld [vmem:[%s1 + $0x34] sm:$0xf]
  %v63 = vld [vmem:[%s1 + $0x38] sm:$0xf]
  %v64 = vld [vmem:[%s1 + $0x3c] sm:$0xf]
  %v65 = vld [vmem:[%s1 + $0x40] sm:$0xf]
  %v66 = vld [vmem:[%s1 + $0x44] sm:$0xf]
  %v67 = vld [vmem:[%s1 + $0x48] sm:$0xf]
  %v68 = vld [vmem:[%s1 + $0x4c] sm:$0xf]
  %v69 = vld [vmem:[%s1 + $0x50] sm:$0xf]
  %v70 = vld [vmem:[%s1 + $0x54] sm:$0xf]
  %v71 = vld [vmem:[%s1 + $0x58] sm:$0xf]
  %v72 = vld [vmem:[%s1 + $0x5c] sm:$0xf]
  %v73 = vld [vmem:[%s1 + $0x60] sm:$0xf]
  %v74 = vld [vmem:[%s1 + $0x64] sm:$0xf]
  %v75 = vld [vmem:[%s1 + $0x68] sm:$0xf]
  %v76 = vld [vmem:[%s1 + $0x6c] sm:$0xf]
  %v77 = vld [vmem:[%s1 + $0x70] sm:$0xf]
  %v78 = vld [vmem:[%s1 + $0x74] sm:$0xf]
  %v79 = vld [vmem:[%s1 + $0x78] sm:$0xf]
  %v80 = vld [vmem:[%s1 + $0x7c] sm:$0xf]
  %v81 = vld [vmem:[%s1 + $0x80] sm:$0xf]
  %v82 = vld [vmem:[%s1 + $0x84] sm:$0xf]
  %v83 = vld [vmem:[%s1 + $0x88] sm:$0xf]
  %v84 = vld [vmem:[%s1 + $0x8c] sm:$0xf]
  %v85 = vld [vmem:[%s1 + $0x90] sm:$0xf]
  %v86 = vld [vmem:[%s1 + $0x94] sm:$0xf]
  %v87 = vld [vmem:[%s1 + $0x98] sm:$0xf]
  %v88 = vld [vmem:[%s1 + $0x9c] sm:$0xf]
  %v89 = vld [vmem:[%s1 + $0xa0] sm:$0xf]
  %v90 = vld [vmem:[%s1 + $0xa4] sm:$0xf]
  %v91 = vld [vmem:[%s1 + $0xa8] sm:$0xf]
  %v92 = vld [vmem:[%s1 + $0xac] sm:$0xf]
  %v93 = vld [vmem:[%s1 + $0xb0] sm:$0xf]
  %v94 = vld [vmem:[%s1 + $0xb4] sm:$0xf]
  %v95 = vld [vmem:[%s1 + $0xb8] sm:$0xf]
  %v96 = vld [vmem:[%s1 + $0xbc] sm:$0xf]
  %v97 = vld [vmem:[%s2] sm:$0x1]
  %v99 = vperm.slane %v97, 0
  %v133 = vunpack.c.l.b16 %v17
  %v134 = vunpack.c.h.b16 %v17
  %v135 = vunpack.c.l.b16 %v18
  %v136 = vunpack.c.l.b16 %v19
  %v137 = vunpack.c.h.b16 %v19
  %v138 = vunpack.c.l.b16 %v20
  %v139 = vunpack.c.l.b16 %v21
  %v140 = vunpack.c.h.b16 %v21
  %v141 = vunpack.c.l.b16 %v22
  %v142 = vunpack.c.l.b16 %v23
  %v143 = vunpack.c.h.b16 %v23
  %v144 = vunpack.c.l.b16 %v24
  %v145 = vunpack.c.l.b16 %v25
  %v146 = vunpack.c.h.b16 %v25
  %v147 = vunpack.c.l.b16 %v26
  %v148 = vunpack.c.l.b16 %v27
  %v149 = vunpack.c.h.b16 %v27
  %v150 = vunpack.c.l.b16 %v28
  %v151 = vunpack.c.l.b16 %v29
  %v152 = vunpack.c.h.b16 %v29
  %v153 = vunpack.c.l.b16 %v30
  %v154 = vunpack.c.l.b16 %v31
  %v155 = vunpack.c.h.b16 %v31
  %v156 = vunpack.c.l.b16 %v32
  %v157 = vunpack.c.l.b16 %v33
  %v158 = vunpack.c.h.b16 %v33
  %v159 = vunpack.c.l.b16 %v34
  %v160 = vunpack.c.l.b16 %v35
  %v161 = vunpack.c.h.b16 %v35
  %v162 = vunpack.c.l.b16 %v36
  %v163 = vunpack.c.l.b16 %v37
  %v164 = vunpack.c.h.b16 %v37
  %v165 = vunpack.c.l.b16 %v38
  %v166 = vunpack.c.l.b16 %v39
  %v167 = vunpack.c.h.b16 %v39
  %v168 = vunpack.c.l.b16 %v40
  %v169 = vunpack.c.l.b16 %v41
  %v170 = vunpack.c.h.b16 %v41
  %v171 = vunpack.c.l.b16 %v42
  %v172 = vunpack.c.l.b16 %v43
  %v173 = vunpack.c.h.b16 %v43
  %v174 = vunpack.c.l.b16 %v44
  %v175 = vunpack.c.l.b16 %v45
  %v176 = vunpack.c.h.b16 %v45
  %v177 = vunpack.c.l.b16 %v46
  %v178 = vunpack.c.l.b16 %v47
  %v179 = vunpack.c.h.b16 %v47
  %v180 = vunpack.c.l.b16 %v48
  %v181 = vpack.c.b16 %v136, %v133
  %v182 = vpack.c.b16 %v137, %v134
  %v183 = vpack.c.b16 %v138, %v135
  %v184 = vpack.c.b16 %v142, %v139
  %v185 = vpack.c.b16 %v143, %v140
  %v186 = vpack.c.b16 %v144, %v141
  %v187 = vpack.c.b16 %v148, %v145
  %v188 = vpack.c.b16 %v149, %v146
  %v189 = vpack.c.b16 %v150, %v147
  %v190 = vpack.c.b16 %v154, %v151
  %v191 = vpack.c.b16 %v155, %v152
  %v192 = vpack.c.b16 %v156, %v153
  %v193 = vpack.c.b16 %v160, %v157
  %v194 = vpack.c.b16 %v161, %v158
  %v195 = vpack.c.b16 %v162, %v159
  %v196 = vpack.c.b16 %v166, %v163
  %v197 = vpack.c.b16 %v167, %v164
  %v198 = vpack.c.b16 %v168, %v165
  %v199 = vpack.c.b16 %v172, %v169
  %v200 = vpack.c.b16 %v173, %v170
  %v201 = vpack.c.b16 %v174, %v171
  %v202 = vpack.c.b16 %v178, %v175
  %v203 = vpack.c.b16 %v179, %v176
  %v204 = vpack.c.b16 %v180, %v177
  %v277 = vunpack.c.l.b16 %v49
  %v278 = vunpack.c.l.b16 %v50
  %v279 = vunpack.c.l.b16 %v51
  %v280 = vunpack.c.l.b16 %v52
  %v281 = vunpack.c.l.b16 %v53
  %v282 = vunpack.c.l.b16 %v54
  %v283 = vunpack.c.l.b16 %v55
  %v284 = vunpack.c.l.b16 %v56
  %v285 = vunpack.c.l.b16 %v57
  %v286 = vunpack.c.l.b16 %v58
  %v287 = vunpack.c.l.b16 %v59
  %v288 = vunpack.c.l.b16 %v60
  %v289 = vunpack.c.l.b16 %v61
  %v290 = vunpack.c.l.b16 %v62
  %v291 = vunpack.c.l.b16 %v63
  %v292 = vunpack.c.l.b16 %v64
  %v293 = vunpack.c.l.b16 %v65
  %v294 = vunpack.c.l.b16 %v66
  %v295 = vunpack.c.l.b16 %v67
  %v296 = vunpack.c.l.b16 %v68
  %v297 = vunpack.c.l.b16 %v69
  %v298 = vunpack.c.l.b16 %v70
  %v299 = vunpack.c.l.b16 %v71
  %v300 = vunpack.c.l.b16 %v72
  %v301 = vunpack.c.l.b16 %v73
  %v302 = vunpack.c.l.b16 %v74
  %v303 = vunpack.c.l.b16 %v75
  %v304 = vunpack.c.l.b16 %v76
  %v305 = vunpack.c.l.b16 %v77
  %v306 = vunpack.c.l.b16 %v78
  %v307 = vunpack.c.l.b16 %v79
  %v308 = vunpack.c.l.b16 %v80
  %v309 = vunpack.c.l.b16 %v81
  %v310 = vunpack.c.l.b16 %v82
  %v311 = vunpack.c.l.b16 %v83
  %v312 = vunpack.c.l.b16 %v84
  %v313 = vunpack.c.l.b16 %v85
  %v314 = vunpack.c.l.b16 %v86
  %v315 = vunpack.c.l.b16 %v87
  %v316 = vunpack.c.l.b16 %v88
  %v317 = vunpack.c.l.b16 %v89
  %v318 = vunpack.c.l.b16 %v90
  %v319 = vunpack.c.l.b16 %v91
  %v320 = vunpack.c.l.b16 %v92
  %v321 = vunpack.c.l.b16 %v93
  %v322 = vunpack.c.l.b16 %v94
  %v323 = vunpack.c.l.b16 %v95
  %v324 = vunpack.c.l.b16 %v96
  %v325 = vpack.c.b16 %v278, %v277
  %v326 = vpack.c.b16 %v280, %v279
  %v327 = vpack.c.b16 %v282, %v281
  %v328 = vpack.c.b16 %v284, %v283
  %v329 = vpack.c.b16 %v286, %v285
  %v330 = vpack.c.b16 %v288, %v287
  %v331 = vpack.c.b16 %v290, %v289
  %v332 = vpack.c.b16 %v292, %v291
  %v333 = vpack.c.b16 %v294, %v293
  %v334 = vpack.c.b16 %v296, %v295
  %v335 = vpack.c.b16 %v298, %v297
  %v336 = vpack.c.b16 %v300, %v299
  %v337 = vpack.c.b16 %v302, %v301
  %v338 = vpack.c.b16 %v304, %v303
  %v339 = vpack.c.b16 %v306, %v305
  %v340 = vpack.c.b16 %v308, %v307
  %v341 = vpack.c.b16 %v310, %v309
  %v342 = vpack.c.b16 %v312, %v311
  %v343 = vpack.c.b16 %v314, %v313
  %v344 = vpack.c.b16 %v316, %v315
  %v345 = vpack.c.b16 %v318, %v317
  %v346 = vpack.c.b16 %v320, %v319
  %v347 = vpack.c.b16 %v322, %v321
  %v348 = vpack.c.b16 %v324, %v323
  %373 = vmatpush.bf16.msra.mxu0 %v332
  %374 = vmatpush.bf16.msra.mxu0 %v331
  %375 = vmatpush.bf16.msra.mxu0 %v330
  %376 = vmatpush.bf16.msra.mxu0 %v329
  %377 = vmatpush.bf16.msra.mxu0 %v328
  %378 = vmatpush.bf16.msra.mxu0 %v327
  %379 = vmatpush.bf16.msra.mxu0 %v326
  %380 = vmatpush.bf16.msra.mxu0 %v325
  %381 = vmatmul.bf16.gmra.mxu0 %v181
  %v382 = vpop.f32.mrf.mxu0
  %v383 = vadd.f32 %v99, %v382
  %v384 = vpop.f32.mrf.mxu0
  %v385 = vadd.f32 %v99, %v384
  %386 = vmatmul.bf16.gmra.mxu0 %v184
  %v387 = vpop.f32.mrf.mxu0
  %v388 = vadd.f32 %v99, %v387
  %v389 = vpop.f32.mrf.mxu0
  %v390 = vadd.f32 %v99, %v389
  %391 = vmatmul.bf16.gmra.mxu0 %v187
  %v392 = vpop.f32.mrf.mxu0
  %v393 = vadd.f32 %v99, %v392
  %v394 = vpop.f32.mrf.mxu0
  %v395 = vadd.f32 %v99, %v394
  %396 = vmatmul.bf16.gmra.mxu0 %v190
  %v397 = vpop.f32.mrf.mxu0
  %v398 = vadd.f32 %v99, %v397
  %v399 = vpop.f32.mrf.mxu0
  %v400 = vadd.f32 %v99, %v399
  %401 = vmatmul.bf16.gmra.mxu0 %v193
  %v402 = vpop.f32.mrf.mxu0
  %v403 = vadd.f32 %v99, %v402
  %v404 = vpop.f32.mrf.mxu0
  %v405 = vadd.f32 %v99, %v404
  %406 = vmatmul.bf16.gmra.mxu0 %v196
  %v407 = vpop.f32.mrf.mxu0
  %v408 = vadd.f32 %v99, %v407
  %v409 = vpop.f32.mrf.mxu0
  %v410 = vadd.f32 %v99, %v409
  %411 = vmatmul.bf16.gmra.mxu0 %v199
  %v412 = vpop.f32.mrf.mxu0
  %v413 = vadd.f32 %v99, %v412
  %v414 = vpop.f32.mrf.mxu0
  %v415 = vadd.f32 %v99, %v414
  %416 = vmatmul.bf16.gmra.mxu0 %v202
  %v417 = vpop.f32.mrf.mxu0
  %v418 = vadd.f32 %v99, %v417
  %v419 = vpop.f32.mrf.mxu0
  %v420 = vadd.f32 %v99, %v419
  %421 = vdwg.mxu0
  %422 = vmatpush.bf16.msra.mxu0 %v340
  %423 = vmatpush.bf16.msra.mxu0 %v339
  %424 = vmatpush.bf16.msra.mxu0 %v338
  %425 = vmatpush.bf16.msra.mxu0 %v337
  %426 = vmatpush.bf16.msra.mxu0 %v336
  %427 = vmatpush.bf16.msra.mxu0 %v335
  %428 = vmatpush.bf16.msra.mxu0 %v334
  %429 = vmatpush.bf16.msra.mxu0 %v333
  %430 = vmatmul.bf16.gmra.mxu0 %v182
  %v431 = vpop.f32.mrf.mxu0
  %v432 = vadd.f32 %v383, %v431
  %v433 = vpop.f32.mrf.mxu0
  %v434 = vadd.f32 %v385, %v433
  %435 = vmatmul.bf16.gmra.mxu0 %v185
  %v436 = vpop.f32.mrf.mxu0
  %v437 = vadd.f32 %v388, %v436
  %v438 = vpop.f32.mrf.mxu0
  %v439 = vadd.f32 %v390, %v438
  %440 = vmatmul.bf16.gmra.mxu0 %v188
  %v441 = vpop.f32.mrf.mxu0
  %v442 = vadd.f32 %v393, %v441
  %v443 = vpop.f32.mrf.mxu0
  %v444 = vadd.f32 %v395, %v443
  %445 = vmatmul.bf16.gmra.mxu0 %v191
  %v446 = vpop.f32.mrf.mxu0
  %v447 = vadd.f32 %v398, %v446
  %v448 = vpop.f32.mrf.mxu0
  %v449 = vadd.f32 %v400, %v448
  %450 = vmatmul.bf16.gmra.mxu0 %v194
  %v451 = vpop.f32.mrf.mxu0
  %v452 = vadd.f32 %v403, %v451
  %v453 = vpop.f32.mrf.mxu0
  %v454 = vadd.f32 %v405, %v453
  %455 = vmatmul.bf16.gmra.mxu0 %v197
  %v456 = vpop.f32.mrf.mxu0
  %v457 = vadd.f32 %v408, %v456
  %v458 = vpop.f32.mrf.mxu0
  %v459 = vadd.f32 %v410, %v458
  %460 = vmatmul.bf16.gmra.mxu0 %v200
  %v461 = vpop.f32.mrf.mxu0
  %v462 = vadd.f32 %v413, %v461
  %v463 = vpop.f32.mrf.mxu0
  %v464 = vadd.f32 %v415, %v463
  %465 = vmatmul.bf16.gmra.mxu0 %v203
  %v466 = vpop.f32.mrf.mxu0
  %v467 = vadd.f32 %v418, %v466
  %v468 = vpop.f32.mrf.mxu0
  %v469 = vadd.f32 %v420, %v468
  %470 = vdwg.mxu0
  %471 = vmatpush.bf16.msra.mxu0 %v348
  %472 = vmatpush.bf16.msra.mxu0 %v347
  %473 = vmatpush.bf16.msra.mxu0 %v346
  %474 = vmatpush.bf16.msra.mxu0 %v345
  %475 = vmatpush.bf16.msra.mxu0 %v344
  %476 = vmatpush.bf16.msra.mxu0 %v343
  %477 = vmatpush.bf16.msra.mxu0 %v342
  %478 = vmatpush.bf16.msra.mxu0 %v341
  %479 = vmatmul.bf16.gmra.mxu0 %v183
  %v480 = vpop.f32.mrf.mxu0
  %v481 = vadd.f32 %v432, %v480
  %v482 = vpop.f32.mrf.mxu0
  %v483 = vadd.f32 %v434, %v482
  %484 = vmatmul.bf16.gmra.mxu0 %v186
  %v485 = vpop.f32.mrf.mxu0
  %v486 = vadd.f32 %v437, %v485
  %v487 = vpop.f32.mrf.mxu0
  %v488 = vadd.f32 %v439, %v487
  %489 = vmatmul.bf16.gmra.mxu0 %v189
  %v490 = vpop.f32.mrf.mxu0
  %v491 = vadd.f32 %v442, %v490
  %v492 = vpop.f32.mrf.mxu0
  %v493 = vadd.f32 %v444, %v492
  %494 = vmatmul.bf16.gmra.mxu0 %v192
  %v495 = vpop.f32.mrf.mxu0
  %v496 = vadd.f32 %v447, %v495
  %v497 = vpop.f32.mrf.mxu0
  %v498 = vadd.f32 %v449, %v497
  %499 = vmatmul.bf16.gmra.mxu0 %v195
  %v500 = vpop.f32.mrf.mxu0
  %v501 = vadd.f32 %v452, %v500
  %v502 = vpop.f32.mrf.mxu0
  %v503 = vadd.f32 %v454, %v502
  %504 = vmatmul.bf16.gmra.mxu0 %v198
  %v505 = vpop.f32.mrf.mxu0
  %v506 = vadd.f32 %v457, %v505
  %v507 = vpop.f32.mrf.mxu0
  %v508 = vadd.f32 %v459, %v507
  %509 = vmatmul.bf16.gmra.mxu0 %v201
  %v510 = vpop.f32.mrf.mxu0
  %v511 = vadd.f32 %v462, %v510
  %v512 = vpop.f32.mrf.mxu0
  %v513 = vadd.f32 %v464, %v512
  %514 = vmatmul.bf16.gmra.mxu0 %v204
  %v515 = vpop.f32.mrf.mxu0
  %v516 = vadd.f32 %v467, %v515
  %v517 = vpop.f32.mrf.mxu0
  %v518 = vadd.f32 %v469, %v517
  %519 = vdwg.mxu0
  %v520 = vld [vmem:[%s3] sm:$0xf]
  %v521 = vld [vmem:[%s3 + $0x4] sm:$0xf]
  %v522 = vld [vmem:[%s3 + $0x8] sm:$0xf]
  %v523 = vld [vmem:[%s3 + $0xc] sm:$0xf]
  %v524 = vld [vmem:[%s3 + $0x10] sm:$0xf]
  %v525 = vld [vmem:[%s3 + $0x14] sm:$0xf]
  %v526 = vld [vmem:[%s3 + $0x18] sm:$0xf]
  %v527 = vld [vmem:[%s3 + $0x1c] sm:$0xf]
  %v528 = vld [vmem:[%s3 + $0x20] sm:$0xf]
  %v529 = vld [vmem:[%s3 + $0x24] sm:$0xf]
  %v530 = vld [vmem:[%s3 + $0x28] sm:$0xf]
  %v531 = vld [vmem:[%s3 + $0x2c] sm:$0xf]
  %v532 = vld [vmem:[%s3 + $0x30] sm:$0xf]
  %v533 = vld [vmem:[%s3 + $0x34] sm:$0xf]
  %v534 = vld [vmem:[%s3 + $0x38] sm:$0xf]
  %v535 = vld [vmem:[%s3 + $0x3c] sm:$0xf]
  %v536 = vunpack.c.l.bf16 %v520
  %v537 = vunpack.c.l.bf16 %v521
  %v538 = vunpack.c.l.bf16 %v522
  %v539 = vunpack.c.l.bf16 %v523
  %v540 = vunpack.c.l.bf16 %v524
  %v541 = vunpack.c.l.bf16 %v525
  %v542 = vunpack.c.l.bf16 %v526
  %v543 = vunpack.c.l.bf16 %v527
  %v544 = vunpack.c.l.bf16 %v528
  %v545 = vunpack.c.l.bf16 %v529
  %v546 = vunpack.c.l.bf16 %v530
  %v547 = vunpack.c.l.bf16 %v531
  %v548 = vunpack.c.l.bf16 %v532
  %v549 = vunpack.c.l.bf16 %v533
  %v550 = vunpack.c.l.bf16 %v534
  %v551 = vunpack.c.l.bf16 %v535
  %v552 = vadd.f32 %v481, %v536
  %v553 = vadd.f32 %v483, %v537
  %v554 = vadd.f32 %v486, %v538
  %v555 = vadd.f32 %v488, %v539
  %v556 = vadd.f32 %v491, %v540
  %v557 = vadd.f32 %v493, %v541
  %v558 = vadd.f32 %v496, %v542
  %v559 = vadd.f32 %v498, %v543
  %v560 = vadd.f32 %v501, %v544
  %v561 = vadd.f32 %v503, %v545
  %v562 = vadd.f32 %v506, %v546
  %v563 = vadd.f32 %v508, %v547
  %v564 = vadd.f32 %v511, %v548
  %v565 = vadd.f32 %v513, %v549
  %v566 = vadd.f32 %v516, %v550
  %v567 = vadd.f32 %v518, %v551
  %v568 = vmax.f32 %v552, 0.0
  %v569 = vmax.f32 %v553, 0.0
  %v570 = vmax.f32 %v554, 0.0
  %v571 = vmax.f32 %v555, 0.0
  %v572 = vmax.f32 %v556, 0.0
  %v573 = vmax.f32 %v557, 0.0
  %v574 = vmax.f32 %v558, 0.0
  %v575 = vmax.f32 %v559, 0.0
  %v576 = vmax.f32 %v560, 0.0
  %v577 = vmax.f32 %v561, 0.0
  %v578 = vmax.f32 %v562, 0.0
  %v579 = vmax.f32 %v563, 0.0
  %v580 = vmax.f32 %v564, 0.0
  %v581 = vmax.f32 %v565, 0.0
  %v582 = vmax.f32 %v566, 0.0
  %v583 = vmax.f32 %v567, 0.0
  %v584 = vpack.c.bf16 %v568, %v568
  %v585 = vpack.c.bf16 %v569, %v569
  %v586 = vpack.c.bf16 %v570, %v570
  %v587 = vpack.c.bf16 %v571, %v571
  %v588 = vpack.c.bf16 %v572, %v572
  %v589 = vpack.c.bf16 %v573, %v573
  %v590 = vpack.c.bf16 %v574, %v574
  %v591 = vpack.c.bf16 %v575, %v575
  %v592 = vpack.c.bf16 %v576, %v576
  %v593 = vpack.c.bf16 %v577, %v577
  %v594 = vpack.c.bf16 %v578, %v578
  %v595 = vpack.c.bf16 %v579, %v579
  %v596 = vpack.c.bf16 %v580, %v580
  %v597 = vpack.c.bf16 %v581, %v581
  %v598 = vpack.c.bf16 %v582, %v582
  %v599 = vpack.c.bf16 %v583, %v583
  %vm600 = vcmask 257024
  %601 = vst.msk [vmem:[%s4] sm:$0xf] %vm600, %v584
  %602 = vst.msk [vmem:[%s4 + $0x4] sm:$0xf] %vm600, %v585
  %603 = vst.msk [vmem:[%s4 + $0x8] sm:$0xf] %vm600, %v586
  %604 = vst.msk [vmem:[%s4 + $0xc] sm:$0xf] %vm600, %v587
  %605 = vst.msk [vmem:[%s4 + $0x10] sm:$0xf] %vm600, %v588
  %606 = vst.msk [vmem:[%s4 + $0x14] sm:$0xf] %vm600, %v589
  %607 = vst.msk [vmem:[%s4 + $0x18] sm:$0xf] %vm600, %v590
  %608 = vst.msk [vmem:[%s4 + $0x1c] sm:$0xf] %vm600, %v591
  %609 = vst.msk [vmem:[%s4 + $0x20] sm:$0xf] %vm600, %v592
  %610 = vst.msk [vmem:[%s4 + $0x24] sm:$0xf] %vm600, %v593
  %611 = vst.msk [vmem:[%s4 + $0x28] sm:$0xf] %vm600, %v594
  %612 = vst.msk [vmem:[%s4 + $0x2c] sm:$0xf] %vm600, %v595
  %613 = vst.msk [vmem:[%s4 + $0x30] sm:$0xf] %vm600, %v596
  %614 = vst.msk [vmem:[%s4 + $0x34] sm:$0xf] %vm600, %v597
  %615 = vst.msk [vmem:[%s4 + $0x38] sm:$0xf] %vm600, %v598
  %616 = vst.msk [vmem:[%s4 + $0x3c] sm:$0xf] %vm600, %v599
  // Predicated region
  $region18: #{resnet_forward.31} parent=0 // pred_check
    _
  $region19: #{resnet_forward.31} parent=0 // pred_check_branch
    %618 = sbr.rel (0) target = $region21
  $region20: #{resnet_forward.31} parent=0 // pred_region
    _
  $region21: #{resnet_forward.31} parent=0 // pred_fallthru
    _
  // Predicated region
  $region22: #{resnet_forward.31} parent=0 // pred_check
    _
  $region23: #{resnet_forward.31} parent=0 // pred_check_branch
    %620 = sbr.rel (0) target = $region25
  $region24: #{resnet_forward.31} parent=0 // pred_region
    _
  $region25: #{resnet_forward.31} parent=0 // pred_fallthru
    _

// kernel: resnet_forward.35
$region0: #{resnet_forward.35}
  #allocation0 [shape = 'u32[]', space=smem, size = 0x4, offset = 0x4, fixed_abs, tag = 'smem constant byte address 0x4 - core index']
  #allocation1 [shape = 'u32[72,128]{1,0:T(1,128)}', space=vmem, size = 0x9000, scoped, tag = 'internal scratch']
  %s0 = inlined_call_operand.vmem [shape: bf16[72,384], index: 0, kind: input, shape index: {}]
  %s1 = inlined_call_operand.vmem [shape: bf16[384,64], index: 1, kind: input, shape index: {}]
  %s2 = inlined_call_operand.vmem [shape: f32[1,64], index: 2, kind: input, shape index: {}]
  %s3 = inlined_call_operand.vmem [shape: bf16[72,64], index: 3, kind: output, shape index: {}]
  %s4 = sld [smem:[#allocation0]]
  $region22: #{resnet_forward.35} parent=0
    _
  %s6 = ssub.s32 1, %s4
  %s7 = scalar_select 0, %s6, %s4
  // Predicated region
  $region2: #{resnet_forward.35} parent=0 // pred_check
    _
  $region3: #{resnet_forward.35} parent=0 // pred_check_branch
    %9 = sbr.rel (0) target = $region5
  $region4: #{resnet_forward.35} parent=0 // pred_region
    _
  $region5: #{resnet_forward.35} parent=0 // pred_fallthru
    _
  // Predicated region
  $region6: #{resnet_forward.35} parent=0 // pred_check
    _
  $region7: #{resnet_forward.35} parent=0 // pred_check_branch
    %11 = sbr.rel (0) target = $region9
  $region8: #{resnet_forward.35} parent=0 // pred_region
    _
  $region9: #{resnet_forward.35} parent=0 // pred_fallthru
    _
  // Predicated region
  $region10: #{resnet_forward.35} parent=0 // pred_check
    _
  $region11: #{resnet_forward.35} parent=0 // pred_check_branch
    %13 = sbr.rel (0) target = $region13
  $region12: #{resnet_forward.35} parent=0 // pred_region
    _
  $region13: #{resnet_forward.35} parent=0 // pred_fallthru
    _
  %v14 = vld [vmem:[%s0] sm:$0xff]
  %v15 = vld [vmem:[%s0 + $0x8] sm:$0xf]
  %v16 = vld [vmem:[%s0 + $0xc] sm:$0xff]
  %v17 = vld [vmem:[%s0 + $0x14] sm:$0xf]
  %v18 = vld [vmem:[%s0 + $0x18] sm:$0xff]
  %v19 = vld [vmem:[%s0 + $0x20] sm:$0xf]
  %v20 = vld [vmem:[%s0 + $0x24] sm:$0xff]
  %v21 = vld [vmem:[%s0 + $0x2c] sm:$0xf]
  %v22 = vld [vmem:[%s0 + $0x30] sm:$0xff]
  %v23 = vld [vmem:[%s0 + $0x38] sm:$0xf]
  %v24 = vld [vmem:[%s0 + $0x3c] sm:$0xff]
  %v25 = vld [vmem:[%s0 + $0x44] sm:$0xf]
  %v26 = vld [vmem:[%s0 + $0x48] sm:$0xff]
  %v27 = vld [vmem:[%s0 + $0x50] sm:$0xf]
  %v28 = vld [vmem:[%s0 + $0x54] sm:$0xff]
  %v29 = vld [vmem:[%s0 + $0x5c] sm:$0xf]
  %v30 = vld [vmem:[%s0 + $0x60] sm:$0xff]
  %v31 = vld [vmem:[%s0 + $0x68] sm:$0xf]
  %v32 = vld [vmem:[%s1] sm:$0xf]
  %v33 = vld [vmem:[%s1 + $0x4] sm:$0xf]
  %v34 = vld [vmem:[%s1 + $0x8] sm:$0xf]
  %v35 = vld [vmem:[%s1 + $0xc] sm:$0xf]
  %v36 = vld [vmem:[%s1 + $0x10] sm:$0xf]
  %v37 = vld [vmem:[%s1 + $0x14] sm:$0xf]
  %v38 = vld [vmem:[%s1 + $0x18] sm:$0xf]
  %v39 = vld [vmem:[%s1 + $0x1c] sm:$0xf]
  %v40 = vld [vmem:[%s1 + $0x20] sm:$0xf]
  %v41 = vld [vmem:[%s1 + $0x24] sm:$0xf]
  %v42 = vld [vmem:[%s1 + $0x28] sm:$0xf]
  %v43 = vld [vmem:[%s1 + $0x2c] sm:$0xf]
  %v44 = vld [vmem:[%s1 + $0x30] sm:$0xf]
  %v45 = vld [vmem:[%s1 + $0x34] sm:$0xf]
  %v46 = vld [vmem:[%s1 + $0x38] sm:$0xf]
  %v47 = vld [vmem:[%s1 + $0x3c] sm:$0xf]
  %v48 = vld [vmem:[%s1 + $0x40] sm:$0xf]
  %v49 = vld [vmem:[%s1 + $0x44] sm:$0xf]
  %v50 = vld [vmem:[%s1 + $0x48] sm:$0xf]
  %v51 = vld [vmem:[%s1 + $0x4c] sm:$0xf]
  %v52 = vld [vmem:[%s1 + $0x50] sm:$0xf]
  %v53 = vld [vmem:[%s1 + $0x54] sm:$0xf]
  %v54 = vld [vmem:[%s1 + $0x58] sm:$0xf]
  %v55 = vld [vmem:[%s1 + $0x5c] sm:$0xf]
  %v56 = vld [vmem:[%s1 + $0x60] sm:$0xf]
  %v57 = vld [vmem:[%s1 + $0x64] sm:$0xf]
  %v58 = vld [vmem:[%s1 + $0x68] sm:$0xf]
  %v59 = vld [vmem:[%s1 + $0x6c] sm:$0xf]
  %v60 = vld [vmem:[%s1 + $0x70] sm:$0xf]
  %v61 = vld [vmem:[%s1 + $0x74] sm:$0xf]
  %v62 = vld [vmem:[%s1 + $0x78] sm:$0xf]
  %v63 = vld [vmem:[%s1 + $0x7c] sm:$0xf]
  %v64 = vld [vmem:[%s1 + $0x80] sm:$0xf]
  %v65 = vld [vmem:[%s1 + $0x84] sm:$0xf]
  %v66 = vld [vmem:[%s1 + $0x88] sm:$0xf]
  %v67 = vld [vmem:[%s1 + $0x8c] sm:$0xf]
  %v68 = vld [vmem:[%s1 + $0x90] sm:$0xf]
  %v69 = vld [vmem:[%s1 + $0x94] sm:$0xf]
  %v70 = vld [vmem:[%s1 + $0x98] sm:$0xf]
  %v71 = vld [vmem:[%s1 + $0x9c] sm:$0xf]
  %v72 = vld [vmem:[%s1 + $0xa0] sm:$0xf]
  %v73 = vld [vmem:[%s1 + $0xa4] sm:$0xf]
  %v74 = vld [vmem:[%s1 + $0xa8] sm:$0xf]
  %v75 = vld [vmem:[%s1 + $0xac] sm:$0xf]
  %v76 = vld [vmem:[%s1 + $0xb0] sm:$0xf]
  %v77 = vld [vmem:[%s1 + $0xb4] sm:$0xf]
  %v78 = vld [vmem:[%s1 + $0xb8] sm:$0xf]
  %v79 = vld [vmem:[%s1 + $0xbc] sm:$0xf]
  %v80 = vld [vmem:[%s2] sm:$0x1]
  %v82 = vperm.slane %v80, 0
  %v102 = vunpack.c.l.b16 %v14
  %v103 = vunpack.c.h.b16 %v14
  %v104 = vunpack.c.l.b16 %v15
  %v105 = vunpack.c.l.b16 %v16
  %v106 = vunpack.c.h.b16 %v16
  %v107 = vunpack.c.l.b16 %v17
  %v108 = vunpack.c.l.b16 %v18
  %v109 = vunpack.c.h.b16 %v18
  %v110 = vunpack.c.l.b16 %v19
  %v111 = vunpack.c.l.b16 %v20
  %v112 = vunpack.c.h.b16 %v20
  %v113 = vunpack.c.l.b16 %v21
  %v114 = vunpack.c.l.b16 %v22
  %v115 = vunpack.c.h.b16 %v22
  %v116 = vunpack.c.l.b16 %v23
  %v117 = vunpack.c.l.b16 %v24
  %v118 = vunpack.c.h.b16 %v24
  %v119 = vunpack.c.l.b16 %v25
  %v120 = vunpack.c.l.b16 %v26
  %v121 = vunpack.c.h.b16 %v26
  %v122 = vunpack.c.l.b16 %v27
  %v123 = vunpack.c.l.b16 %v28
  %v124 = vunpack.c.h.b16 %v28
  %v125 = vunpack.c.l.b16 %v29
  %v126 = vunpack.c.l.b16 %v30
  %v127 = vunpack.c.h.b16 %v30
  %v128 = vunpack.c.l.b16 %v31
  %v129 = vpack.c.b16 %v105, %v102
  %v130 = vpack.c.b16 %v106, %v103
  %v131 = vpack.c.b16 %v107, %v104
  %v132 = vpack.c.b16 %v111, %v108
  %v133 = vpack.c.b16 %v112, %v109
  %v134 = vpack.c.b16 %v113, %v110
  %v135 = vpack.c.b16 %v117, %v114
  %v136 = vpack.c.b16 %v118, %v115
  %v137 = vpack.c.b16 %v119, %v116
  %v138 = vpack.c.b16 %v123, %v120
  %v139 = vpack.c.b16 %v124, %v121
  %v140 = vpack.c.b16 %v125, %v122
  %v141 = vpack.c.b16 %v126, %v126
  %v142 = vpack.c.b16 %v127, %v127
  %v143 = vpack.c.b16 %v128, %v128
  %v207 = vunpack.c.l.b16 %v32
  %v208 = vunpack.c.l.b16 %v33
  %v209 = vunpack.c.l.b16 %v34
  %v210 = vunpack.c.l.b16 %v35
  %v211 = vunpack.c.l.b16 %v36
  %v212 = vunpack.c.l.b16 %v37
  %v213 = vunpack.c.l.b16 %v38
  %v214 = vunpack.c.l.b16 %v39
  %v215 = vunpack.c.l.b16 %v40
  %v216 = vunpack.c.l.b16 %v41
  %v217 = vunpack.c.l.b16 %v42
  %v218 = vunpack.c.l.b16 %v43
  %v219 = vunpack.c.l.b16 %v44
  %v220 = vunpack.c.l.b16 %v45
  %v221 = vunpack.c.l.b16 %v46
  %v222 = vunpack.c.l.b16 %v47
  %v223 = vunpack.c.l.b16 %v48
  %v224 = vunpack.c.l.b16 %v49
  %v225 = vunpack.c.l.b16 %v50
  %v226 = vunpack.c.l.b16 %v51
  %v227 = vunpack.c.l.b16 %v52
  %v228 = vunpack.c.l.b16 %v53
  %v229 = vunpack.c.l.b16 %v54
  %v230 = vunpack.c.l.b16 %v55
  %v231 = vunpack.c.l.b16 %v56
  %v232 = vunpack.c.l.b16 %v57
  %v233 = vunpack.c.l.b16 %v58
  %v234 = vunpack.c.l.b16 %v59
  %v235 = vunpack.c.l.b16 %v60
  %v236 = vunpack.c.l.b16 %v61
  %v237 = vunpack.c.l.b16 %v62
  %v238 = vunpack.c.l.b16 %v63
  %v239 = vunpack.c.l.b16 %v64
  %v240 = vunpack.c.l.b16 %v65
  %v241 = vunpack.c.l.b16 %v66
  %v242 = vunpack.c.l.b16 %v67
  %v243 = vunpack.c.l.b16 %v68
  %v244 = vunpack.c.l.b16 %v69
  %v245 = vunpack.c.l.b16 %v70
  %v246 = vunpack.c.l.b16 %v71
  %v247 = vunpack.c.l.b16 %v72
  %v248 = vunpack.c.l.b16 %v73
  %v249 = vunpack.c.l.b16 %v74
  %v250 = vunpack.c.l.b16 %v75
  %v251 = vunpack.c.l.b16 %v76
  %v252 = vunpack.c.l.b16 %v77
  %v253 = vunpack.c.l.b16 %v78
  %v254 = vunpack.c.l.b16 %v79
  %v255 = vpack.c.b16 %v208, %v207
  %v256 = vpack.c.b16 %v210, %v209
  %v257 = vpack.c.b16 %v212, %v211
  %v258 = vpack.c.b16 %v214, %v213
  %v259 = vpack.c.b16 %v216, %v215
  %v260 = vpack.c.b16 %v218, %v217
  %v261 = vpack.c.b16 %v220, %v219
  %v262 = vpack.c.b16 %v222, %v221
  %v263 = vpack.c.b16 %v224, %v223
  %v264 = vpack.c.b16 %v226, %v225
  %v265 = vpack.c.b16 %v228, %v227
  %v266 = vpack.c.b16 %v230, %v229
  %v267 = vpack.c.b16 %v232, %v231
  %v268 = vpack.c.b16 %v234, %v233
  %v269 = vpack.c.b16 %v236, %v235
  %v270 = vpack.c.b16 %v238, %v237
  %v271 = vpack.c.b16 %v240, %v239
  %v272 = vpack.c.b16 %v242, %v241
  %v273 = vpack.c.b16 %v244, %v243
  %v274 = vpack.c.b16 %v246, %v245
  %v275 = vpack.c.b16 %v248, %v247
  %v276 = vpack.c.b16 %v250, %v249
  %v277 = vpack.c.b16 %v252, %v251
  %v278 = vpack.c.b16 %v254, %v253
  %303 = vmatpush.bf16.msra.mxu0 %v262
  %304 = vmatpush.bf16.msra.mxu0 %v261
  %305 = vmatpush.bf16.msra.mxu0 %v260
  %306 = vmatpush.bf16.msra.mxu0 %v259
  %307 = vmatpush.bf16.msra.mxu0 %v258
  %308 = vmatpush.bf16.msra.mxu0 %v257
  %309 = vmatpush.bf16.msra.mxu0 %v256
  %310 = vmatpush.bf16.msra.mxu0 %v255
  %311 = vmatmul.bf16.gmra.mxu0 %v129
  %v312 = vpop.f32.mrf.mxu0
  %v313 = vadd.f32 %v82, %v312
  %v314 = vpop.f32.mrf.mxu0
  %v315 = vadd.f32 %v82, %v314
  %316 = vmatmul.bf16.gmra.mxu0 %v132
  %v317 = vpop.f32.mrf.mxu0
  %v318 = vadd.f32 %v82, %v317
  %v319 = vpop.f32.mrf.mxu0
  %v320 = vadd.f32 %v82, %v319
  %321 = vmatmul.bf16.gmra.mxu0 %v135
  %v322 = vpop.f32.mrf.mxu0
  %v323 = vadd.f32 %v82, %v322
  %v324 = vpop.f32.mrf.mxu0
  %v325 = vadd.f32 %v82, %v324
  %326 = vmatmul.bf16.gmra.mxu0 %v138
  %v327 = vpop.f32.mrf.mxu0
  %v328 = vadd.f32 %v82, %v327
  %v329 = vpop.f32.mrf.mxu0
  %v330 = vadd.f32 %v82, %v329
  %331 = vmatmul.bf16.gmra.mxu0 %v141
  %v332 = vpop.f32.mrf.mxu0
  %v333 = vadd.f32 %v82, %v332
  %v334 = vpop.f32.mrf.mxu0
  %335 = vdwg.mxu0
  %336 = vmatpush.bf16.msra.mxu0 %v270
  %337 = vmatpush.bf16.msra.mxu0 %v269
  %338 = vmatpush.bf16.msra.mxu0 %v268
  %339 = vmatpush.bf16.msra.mxu0 %v267
  %340 = vmatpush.bf16.msra.mxu0 %v266
  %341 = vmatpush.bf16.msra.mxu0 %v265
  %342 = vmatpush.bf16.msra.mxu0 %v264
  %343 = vmatpush.bf16.msra.mxu0 %v263
  %344 = vmatmul.bf16.gmra.mxu0 %v130
  %v345 = vpop.f32.mrf.mxu0
  %v346 = vadd.f32 %v313, %v345
  %v347 = vpop.f32.mrf.mxu0
  %v348 = vadd.f32 %v315, %v347
  %349 = vmatmul.bf16.gmra.mxu0 %v133
  %v350 = vpop.f32.mrf.mxu0
  %v351 = vadd.f32 %v318, %v350
  %v352 = vpop.f32.mrf.mxu0
  %v353 = vadd.f32 %v320, %v352
  %354 = vmatmul.bf16.gmra.mxu0 %v136
  %v355 = vpop.f32.mrf.mxu0
  %v356 = vadd.f32 %v323, %v355
  %v357 = vpop.f32.mrf.mxu0
  %v358 = vadd.f32 %v325, %v357
  %359 = vmatmul.bf16.gmra.mxu0 %v139
  %v360 = vpop.f32.mrf.mxu0
  %v361 = vadd.f32 %v328, %v360
  %v362 = vpop.f32.mrf.mxu0
  %v363 = vadd.f32 %v330, %v362
  %364 = vmatmul.bf16.gmra.mxu0 %v142
  %v365 = vpop.f32.mrf.mxu0
  %v366 = vadd.f32 %v333, %v365
  %v367 = vpop.f32.mrf.mxu0
  %368 = vdwg.mxu0
  %369 = vmatpush.bf16.msra.mxu0 %v278
  %370 = vmatpush.bf16.msra.mxu0 %v277
  %371 = vmatpush.bf16.msra.mxu0 %v276
  %372 = vmatpush.bf16.msra.mxu0 %v275
  %373 = vmatpush.bf16.msra.mxu0 %v274
  %374 = vmatpush.bf16.msra.mxu0 %v273
  %375 = vmatpush.bf16.msra.mxu0 %v272
  %376 = vmatpush.bf16.msra.mxu0 %v271
  %377 = vmatmul.bf16.gmra.mxu0 %v131
  %v378 = vpop.f32.mrf.mxu0
  %v379 = vadd.f32 %v346, %v378
  %v380 = vpop.f32.mrf.mxu0
  %v381 = vadd.f32 %v348, %v380
  %382 = vmatmul.bf16.gmra.mxu0 %v134
  %v383 = vpop.f32.mrf.mxu0
  %v384 = vadd.f32 %v351, %v383
  %v385 = vpop.f32.mrf.mxu0
  %v386 = vadd.f32 %v353, %v385
  %387 = vmatmul.bf16.gmra.mxu0 %v137
  %v388 = vpop.f32.mrf.mxu0
  %v389 = vadd.f32 %v356, %v388
  %v390 = vpop.f32.mrf.mxu0
  %v391 = vadd.f32 %v358, %v390
  %392 = vmatmul.bf16.gmra.mxu0 %v140
  %v393 = vpop.f32.mrf.mxu0
  %v394 = vadd.f32 %v361, %v393
  %v395 = vpop.f32.mrf.mxu0
  %v396 = vadd.f32 %v363, %v395
  %397 = vmatmul.bf16.gmra.mxu0 %v143
  %v398 = vpop.f32.mrf.mxu0
  %v399 = vadd.f32 %v366, %v398
  %v400 = vpop.f32.mrf.mxu0
  %401 = vdwg.mxu0
  %v402 = vmax.f32 %v379, 0.0
  %v403 = vmax.f32 %v381, 0.0
  %v404 = vmax.f32 %v384, 0.0
  %v405 = vmax.f32 %v386, 0.0
  %v406 = vmax.f32 %v389, 0.0
  %v407 = vmax.f32 %v391, 0.0
  %v408 = vmax.f32 %v394, 0.0
  %v409 = vmax.f32 %v396, 0.0
  %v410 = vmax.f32 %v399, 0.0
  %v411 = vpack.c.bf16 %v402, %v402
  %v412 = vpack.c.bf16 %v403, %v403
  %v413 = vpack.c.bf16 %v404, %v404
  %v414 = vpack.c.bf16 %v405, %v405
  %v415 = vpack.c.bf16 %v406, %v406
  %v416 = vpack.c.bf16 %v407, %v407
  %v417 = vpack.c.bf16 %v408, %v408
  %v418 = vpack.c.bf16 %v409, %v409
  %v419 = vpack.c.bf16 %v410, %v410
  %vm420 = vcmask 519168
  %421 = vst.msk [vmem:[%s3] sm:$0xf] %vm420, %v411
  %422 = vst.msk [vmem:[%s3 + $0x4] sm:$0xf] %vm420, %v412
  %423 = vst.msk [vmem:[%s3 + $0x8] sm:$0xf] %vm420, %v413
  %424 = vst.msk [vmem:[%s3 + $0xc] sm:$0xf] %vm420, %v414
  %425 = vst.msk [vmem:[%s3 + $0x10] sm:$0xf] %vm420, %v415
  %426 = vst.msk [vmem:[%s3 + $0x14] sm:$0xf] %vm420, %v416
  %427 = vst.msk [vmem:[%s3 + $0x18] sm:$0xf] %vm420, %v417
  %428 = vst.msk [vmem:[%s3 + $0x1c] sm:$0xf] %vm420, %v418
  %429 = vst.msk [vmem:[%s3 + $0x20] sm:$0xf] %vm420, %v419
  // Predicated region
  $region14: #{resnet_forward.35} parent=0 // pred_check
    _
  $region15: #{resnet_forward.35} parent=0 // pred_check_branch
    %431 = sbr.rel (0) target = $region17
  $region16: #{resnet_forward.35} parent=0 // pred_region
    _
  $region17: #{resnet_forward.35} parent=0 // pred_fallthru
    _
  // Predicated region
  $region18: #{resnet_forward.35} parent=0 // pred_check
    _
  $region19: #{resnet_forward.35} parent=0 // pred_check_branch
    %433 = sbr.rel (0) target = $region21
  $region20: #{resnet_forward.35} parent=0 // pred_region
    _
  $region21: #{resnet_forward.35} parent=0 // pred_fallthru
    _

// kernel: resnet_forward.34
$region0: #{resnet_forward.34}
  #allocation0 [shape = 'u32[]', space=smem, size = 0x4, offset = 0x4, fixed_abs, tag = 'smem constant byte address 0x4 - core index']
  #allocation1 [shape = 'u32[72,128]{1,0:T(1,128)}', space=vmem, size = 0x9000, scoped, tag = 'internal scratch']
  %s0 = inlined_call_operand.vmem [shape: bf16[72,128], index: 0, kind: input, shape index: {}]
  %s1 = inlined_call_operand.vmem [shape: bf16[128,64], index: 1, kind: input, shape index: {}]
  %s2 = inlined_call_operand.vmem [shape: f32[1,64], index: 2, kind: input, shape index: {}]
  %s3 = inlined_call_operand.vmem [shape: bf16[72,64], index: 3, kind: output, shape index: {}]
  %s4 = sld [smem:[#allocation0]]
  $region22: #{resnet_forward.34} parent=0
    _
  %s6 = ssub.s32 1, %s4
  %s7 = scalar_select 0, %s6, %s4
  // Predicated region
  $region2: #{resnet_forward.34} parent=0 // pred_check
    _
  $region3: #{resnet_forward.34} parent=0 // pred_check_branch
    %9 = sbr.rel (0) target = $region5
  $region4: #{resnet_forward.34} parent=0 // pred_region
    _
  $region5: #{resnet_forward.34} parent=0 // pred_fallthru
    _
  // Predicated region
  $region6: #{resnet_forward.34} parent=0 // pred_check
    _
  $region7: #{resnet_forward.34} parent=0 // pred_check_branch
    %11 = sbr.rel (0) target = $region9
  $region8: #{resnet_forward.34} parent=0 // pred_region
    _
  $region9: #{resnet_forward.34} parent=0 // pred_fallthru
    _
  // Predicated region
  $region10: #{resnet_forward.34} parent=0 // pred_check
    _
  $region11: #{resnet_forward.34} parent=0 // pred_check_branch
    %13 = sbr.rel (0) target = $region13
  $region12: #{resnet_forward.34} parent=0 // pred_region
    _
  $region13: #{resnet_forward.34} parent=0 // pred_fallthru
    _
  %v14 = vld [vmem:[%s0] sm:$0xf]
  %v15 = vld [vmem:[%s0 + $0x4] sm:$0xf]
  %v16 = vld [vmem:[%s0 + $0x8] sm:$0xf]
  %v17 = vld [vmem:[%s0 + $0xc] sm:$0xf]
  %v18 = vld [vmem:[%s0 + $0x10] sm:$0xf]
  %v19 = vld [vmem:[%s0 + $0x14] sm:$0xf]
  %v20 = vld [vmem:[%s0 + $0x18] sm:$0xf]
  %v21 = vld [vmem:[%s0 + $0x1c] sm:$0xf]
  %v22 = vld [vmem:[%s0 + $0x20] sm:$0xf]
  %v23 = vld [vmem:[%s1] sm:$0xf]
  %v24 = vld [vmem:[%s1 + $0x4] sm:$0xf]
  %v25 = vld [vmem:[%s1 + $0x8] sm:$0xf]
  %v26 = vld [vmem:[%s1 + $0xc] sm:$0xf]
  %v27 = vld [vmem:[%s1 + $0x10] sm:$0xf]
  %v28 = vld [vmem:[%s1 + $0x14] sm:$0xf]
  %v29 = vld [vmem:[%s1 + $0x18] sm:$0xf]
  %v30 = vld [vmem:[%s1 + $0x1c] sm:$0xf]
  %v31 = vld [vmem:[%s1 + $0x20] sm:$0xf]
  %v32 = vld [vmem:[%s1 + $0x24] sm:$0xf]
  %v33 = vld [vmem:[%s1 + $0x28] sm:$0xf]
  %v34 = vld [vmem:[%s1 + $0x2c] sm:$0xf]
  %v35 = vld [vmem:[%s1 + $0x30] sm:$0xf]
  %v36 = vld [vmem:[%s1 + $0x34] sm:$0xf]
  %v37 = vld [vmem:[%s1 + $0x38] sm:$0xf]
  %v38 = vld [vmem:[%s1 + $0x3c] sm:$0xf]
  %v39 = vld [vmem:[%s2] sm:$0x1]
  %v41 = vperm.slane %v39, 0
  %v52 = vunpack.c.l.b16 %v14
  %v53 = vunpack.c.l.b16 %v15
  %v54 = vunpack.c.l.b16 %v16
  %v55 = vunpack.c.l.b16 %v17
  %v56 = vunpack.c.l.b16 %v18
  %v57 = vunpack.c.l.b16 %v19
  %v58 = vunpack.c.l.b16 %v20
  %v59 = vunpack.c.l.b16 %v21
  %v60 = vunpack.c.l.b16 %v22
  %v61 = vpack.c.b16 %v53, %v52
  %v62 = vpack.c.b16 %v55, %v54
  %v63 = vpack.c.b16 %v57, %v56
  %v64 = vpack.c.b16 %v59, %v58
  %v65 = vpack.c.b16 %v60, %v60
  %v87 = vunpack.c.l.b16 %v23
  %v88 = vunpack.c.l.b16 %v24
  %v89 = vunpack.c.l.b16 %v25
  %v90 = vunpack.c.l.b16 %v26
  %v91 = vunpack.c.l.b16 %v27
  %v92 = vunpack.c.l.b16 %v28
  %v93 = vunpack.c.l.b16 %v29
  %v94 = vunpack.c.l.b16 %v30
  %v95 = vunpack.c.l.b16 %v31
  %v96 = vunpack.c.l.b16 %v32
  %v97 = vunpack.c.l.b16 %v33
  %v98 = vunpack.c.l.b16 %v34
  %v99 = vunpack.c.l.b16 %v35
  %v100 = vunpack.c.l.b16 %v36
  %v101 = vunpack.c.l.b16 %v37
  %v102 = vunpack.c.l.b16 %v38
  %v103 = vpack.c.b16 %v88, %v87
  %v104 = vpack.c.b16 %v90, %v89
  %v105 = vpack.c.b16 %v92, %v91
  %v106 = vpack.c.b16 %v94, %v93
  %v107 = vpack.c.b16 %v96, %v95
  %v108 = vpack.c.b16 %v98, %v97
  %v109 = vpack.c.b16 %v100, %v99
  %v110 = vpack.c.b16 %v102, %v101
  %119 = vmatpush.bf16.msra.mxu0 %v110
  %120 = vmatpush.bf16.msra.mxu0 %v109
  %121 = vmatpush.bf16.msra.mxu0 %v108
  %122 = vmatpush.bf16.msra.mxu0 %v107
  %123 = vmatpush.bf16.msra.mxu0 %v106
  %124 = vmatpush.bf16.msra.mxu0 %v105
  %125 = vmatpush.bf16.msra.mxu0 %v104
  %126 = vmatpush.bf16.msra.mxu0 %v103
  %127 = vmatmul.bf16.gmra.mxu0 %v61
  %v128 = vpop.f32.mrf.mxu0
  %v129 = vadd.f32 %v41, %v128
  %v130 = vpop.f32.mrf.mxu0
  %v131 = vadd.f32 %v41, %v130
  %132 = vmatmul.bf16.gmra.mxu0 %v62
  %v133 = vpop.f32.mrf.mxu0
  %v134 = vadd.f32 %v41, %v133
  %v135 = vpop.f32.mrf.mxu0
  %v136 = vadd.f32 %v41, %v135
  %137 = vmatmul.bf16.gmra.mxu0 %v63
  %v138 = vpop.f32.mrf.mxu0
  %v139 = vadd.f32 %v41, %v138
  %v140 = vpop.f32.mrf.mxu0
  %v141 = vadd.f32 %v41, %v140
  %142 = vmatmul.bf16.gmra.mxu0 %v64
  %v143 = vpop.f32.mrf.mxu0
  %v144 = vadd.f32 %v41, %v143
  %v145 = vpop.f32.mrf.mxu0
  %v146 = vadd.f32 %v41, %v145
  %147 = vmatmul.bf16.gmra.mxu0 %v65
  %v148 = vpop.f32.mrf.mxu0
  %v149 = vadd.f32 %v41, %v148
  %v150 = vpop.f32.mrf.mxu0
  %151 = vdwg.mxu0
  %v152 = vpack.c.bf16 %v129, %v129
  %v153 = vpack.c.bf16 %v131, %v131
  %v154 = vpack.c.bf16 %v134, %v134
  %v155 = vpack.c.bf16 %v136, %v136
  %v156 = vpack.c.bf16 %v139, %v139
  %v157 = vpack.c.bf16 %v141, %v141
  %v158 = vpack.c.bf16 %v144, %v144
  %v159 = vpack.c.bf16 %v146, %v146
  %v160 = vpack.c.bf16 %v149, %v149
  %vm161 = vcmask 519168
  %162 = vst.msk [vmem:[%s3] sm:$0xf] %vm161, %v152
  %163 = vst.msk [vmem:[%s3 + $0x4] sm:$0xf] %vm161, %v153
  %164 = vst.msk [vmem:[%s3 + $0x8] sm:$0xf] %vm161, %v154
  %165 = vst.msk [vmem:[%s3 + $0xc] sm:$0xf] %vm161, %v155
  %166 = vst.msk [vmem:[%s3 + $0x10] sm:$0xf] %vm161, %v156
  %167 = vst.msk [vmem:[%s3 + $0x14] sm:$0xf] %vm161, %v157
  %168 = vst.msk [vmem:[%s3 + $0x18] sm:$0xf] %vm161, %v158
  %169 = vst.msk [vmem:[%s3 + $0x1c] sm:$0xf] %vm161, %v159
  %170 = vst.msk [vmem:[%s3 + $0x20] sm:$0xf] %vm161, %v160
  // Predicated region
  $region14: #{resnet_forward.34} parent=0 // pred_check
    _
  $region15: #{resnet_forward.34} parent=0 // pred_check_branch
    %172 = sbr.rel (0) target = $region17
  $region16: #{resnet_forward.34} parent=0 // pred_region
    _
  $region17: #{resnet_forward.34} parent=0 // pred_fallthru
    _
  // Predicated region
  $region18: #{resnet_forward.34} parent=0 // pred_check
    _
  $region19: #{resnet_forward.34} parent=0 // pred_check_branch
    %174 = sbr.rel (0) target = $region21
  $region20: #{resnet_forward.34} parent=0 // pred_region
    _
  $region21: #{resnet_forward.34} parent=0 // pred_fallthru
    _

// kernel: resnet_forward.37
$region0: #{resnet_forward.37}
  #allocation0 [shape = 'u32[]', space=smem, size = 0x4, offset = 0x4, fixed_abs, tag = 'smem constant byte address 0x4 - core index']
  #allocation1 [shape = 'u32[72,128]{1,0:T(1,128)}', space=vmem, size = 0x9000, scoped, tag = 'internal scratch']
  %s0 = inlined_call_operand.vmem [shape: bf16[72,640], index: 0, kind: input, shape index: {}]
  %s1 = inlined_call_operand.vmem [shape: bf16[640,64], index: 1, kind: input, shape index: {}]
  %s2 = inlined_call_operand.vmem [shape: f32[1,64], index: 2, kind: input, shape index: {}]
  %s3 = inlined_call_operand.vmem [shape: bf16[72,64], index: 3, kind: output, shape index: {}]
  %s4 = sld [smem:[#allocation0]]
  $region22: #{resnet_forward.37} parent=0
    _
  %s6 = ssub.s32 1, %s4
  %s7 = scalar_select 0, %s6, %s4
  // Predicated region
  $region2: #{resnet_forward.37} parent=0 // pred_check
    _
  $region3: #{resnet_forward.37} parent=0 // pred_check_branch
    %9 = sbr.rel (0) target = $region5
  $region4: #{resnet_forward.37} parent=0 // pred_region
    _
  $region5: #{resnet_forward.37} parent=0 // pred_fallthru
    _
  // Predicated region
  $region6: #{resnet_forward.37} parent=0 // pred_check
    _
  $region7: #{resnet_forward.37} parent=0 // pred_check_branch
    %11 = sbr.rel (0) target = $region9
  $region8: #{resnet_forward.37} parent=0 // pred_region
    _
  $region9: #{resnet_forward.37} parent=0 // pred_fallthru
    _
  // Predicated region
  $region10: #{resnet_forward.37} parent=0 // pred_check
    _
  $region11: #{resnet_forward.37} parent=0 // pred_check_branch
    %13 = sbr.rel (0) target = $region13
  $region12: #{resnet_forward.37} parent=0 // pred_region
    _
  $region13: #{resnet_forward.37} parent=0 // pred_fallthru
    _
  %v14 = vld [vmem:[%s0] sm:$0xff]
  %v15 = vld [vmem:[%s0 + $0x8] sm:$0xff]
  %v16 = vld [vmem:[%s0 + $0x10] sm:$0xf]
  %v17 = vld [vmem:[%s0 + $0x14] sm:$0xff]
  %v18 = vld [vmem:[%s0 + $0x1c] sm:$0xff]
  %v19 = vld [vmem:[%s0 + $0x24] sm:$0xf]
  %v20 = vld [vmem:[%s0 + $0x28] sm:$0xff]
  %v21 = vld [vmem:[%s0 + $0x30] sm:$0xff]
  %v22 = vld [vmem:[%s0 + $0x38] sm:$0xf]
  %v23 = vld [vmem:[%s0 + $0x3c] sm:$0xff]
  %v24 = vld [vmem:[%s0 + $0x44] sm:$0xff]
  %v25 = vld [vmem:[%s0 + $0x4c] sm:$0xf]
  %v26 = vld [vmem:[%s0 + $0x50] sm:$0xff]
  %v27 = vld [vmem:[%s0 + $0x58] sm:$0xff]
  %v28 = vld [vmem:[%s0 + $0x60] sm:$0xf]
  %v29 = vld [vmem:[%s0 + $0x64] sm:$0xff]
  %v30 = vld [vmem:[%s0 + $0x6c] sm:$0xff]
  %v31 = vld [vmem:[%s0 + $0x74] sm:$0xf]
  %v32 = vld [vmem:[%s0 + $0x78] sm:$0xff]
  %v33 = vld [vmem:[%s0 + $0x80] sm:$0xff]
  %v34 = vld [vmem:[%s0 + $0x88] sm:$0xf]
  %v35 = vld [vmem:[%s0 + $0x8c] sm:$0xff]
  %v36 = vld [vmem:[%s0 + $0x94] sm:$0xff]
  %v37 = vld [vmem:[%s0 + $0x9c] sm:$0xf]
  %v38 = vld [vmem:[%s0 + $0xa0] sm:$0xff]
  %v39 = vld [vmem:[%s0 + $0xa8] sm:$0xff]
  %v40 = vld [vmem:[%s0 + $0xb0] sm:$0xf]
  %v41 = vld [vmem:[%s1] sm:$0xf]
  %v42 = vld [vmem:[%s1 + $0x4] sm:$0xf]
  %v43 = vld [vmem:[%s1 + $0x8] sm:$0xf]
  %v44 = vld [vmem:[%s1 + $0xc] sm:$0xf]
  %v45 = vld [vmem:[%s1 + $0x10] sm:$0xf]
  %v46 = vld [vmem:[%s1 + $0x14] sm:$0xf]
  %v47 = vld [vmem:[%s1 + $0x18] sm:$0xf]
  %v48 = vld [vmem:[%s1 + $0x1c] sm:$0xf]
  %v49 = vld [vmem:[%s1 + $0x20] sm:$0xf]
  %v50 = vld [vmem:[%s1 + $0x24] sm:$0xf]
  %v51 = vld [vmem:[%s1 + $0x28] sm:$0xf]
  %v52 = vld [vmem:[%s1 + $0x2c] sm:$0xf]
  %v53 = vld [vmem:[%s1 + $0x30] sm:$0xf]
  %v54 = vld [vmem:[%s1 + $0x34] sm:$0xf]
  %v55 = vld [vmem:[%s1 + $0x38] sm:$0xf]
  %v56 = vld [vmem:[%s1 + $0x3c] sm:$0xf]
  %v57 = vld [vmem:[%s1 + $0x40] sm:$0xf]
  %v58 = vld [vmem:[%s1 + $0x44] sm:$0xf]
  %v59 = vld [vmem:[%s1 + $0x48] sm:$0xf]
  %v60 = vld [vmem:[%s1 + $0x4c] sm:$0xf]
  %v61 = vld [vmem:[%s1 + $0x50] sm:$0xf]
  %v62 = vld [vmem:[%s1 + $0x54] sm:$0xf]
  %v63 = vld [vmem:[%s1 + $0x58] sm:$0xf]
  %v64 = vld [vmem:[%s1 + $0x5c] sm:$0xf]
  %v65 = vld [vmem:[%s1 + $0x60] sm:$0xf]
  %v66 = vld [vmem:[%s1 + $0x64] sm:$0xf]
  %v67 = vld [vmem:[%s1 + $0x68] sm:$0xf]
  %v68 = vld [vmem:[%s1 + $0x6c] sm:$0xf]
  %v69 = vld [vmem:[%s1 + $0x70] sm:$0xf]
  %v70 = vld [vmem:[%s1 + $0x74] sm:$0xf]
  %v71 = vld [vmem:[%s1 + $0x78] sm:$0xf]
  %v72 = vld [vmem:[%s1 + $0x7c] sm:$0xf]
  %v73 = vld [vmem:[%s1 + $0x80] sm:$0xf]
  %v74 = vld [vmem:[%s1 + $0x84] sm:$0xf]
  %v75 = vld [vmem:[%s1 + $0x88] sm:$0xf]
  %v76 = vld [vmem:[%s1 + $0x8c] sm:$0xf]
  %v77 = vld [vmem:[%s1 + $0x90] sm:$0xf]
  %v78 = vld [vmem:[%s1 + $0x94] sm:$0xf]
  %v79 = vld [vmem:[%s1 + $0x98] sm:$0xf]
  %v80 = vld [vmem:[%s1 + $0x9c] sm:$0xf]
  %v81 = vld [vmem:[%s1 + $0xa0] sm:$0xf]
  %v82 = vld [vmem:[%s1 + $0xa4] sm:$0xf]
  %v83 = vld [vmem:[%s1 + $0xa8] sm:$0xf]
  %v84 = vld [vmem:[%s1 + $0xac] sm:$0xf]
  %v85 = vld [vmem:[%s1 + $0xb0] sm:$0xf]
  %v86 = vld [vmem:[%s1 + $0xb4] sm:$0xf]
  %v87 = vld [vmem:[%s1 + $0xb8] sm:$0xf]
  %v88 = vld [vmem:[%s1 + $0xbc] sm:$0xf]
  %v89 = vld [vmem:[%s1 + $0xc0] sm:$0xf]
  %v90 = vld [vmem:[%s1 + $0xc4] sm:$0xf]
  %v91 = vld [vmem:[%s1 + $0xc8] sm:$0xf]
  %v92 = vld [vmem:[%s1 + $0xcc] sm:$0xf]
  %v93 = vld [vmem:[%s1 + $0xd0] sm:$0xf]
  %v94 = vld [vmem:[%s1 + $0xd4] sm:$0xf]
  %v95 = vld [vmem:[%s1 + $0xd8] sm:$0xf]
  %v96 = vld [vmem:[%s1 + $0xdc] sm:$0xf]
  %v97 = vld [vmem:[%s1 + $0xe0] sm:$0xf]
  %v98 = vld [vmem:[%s1 + $0xe4] sm:$0xf]
  %v99 = vld [vmem:[%s1 + $0xe8] sm:$0xf]
  %v100 = vld [vmem:[%s1 + $0xec] sm:$0xf]
  %v101 = vld [vmem:[%s1 + $0xf0] sm:$0xf]
  %v102 = vld [vmem:[%s1 + $0xf4] sm:$0xf]
  %v103 = vld [vmem:[%s1 + $0xf8] sm:$0xf]
  %v104 = vld [vmem:[%s1 + $0xfc] sm:$0xf]
  %v105 = vld [vmem:[%s1 + $0x100] sm:$0xf]
  %v106 = vld [vmem:[%s1 + $0x104] sm:$0xf]
  %v107 = vld [vmem:[%s1 + $0x108] sm:$0xf]
  %v108 = vld [vmem:[%s1 + $0x10c] sm:$0xf]
  %v109 = vld [vmem:[%s1 + $0x110] sm:$0xf]
  %v110 = vld [vmem:[%s1 + $0x114] sm:$0xf]
  %v111 = vld [vmem:[%s1 + $0x118] sm:$0xf]
  %v112 = vld [vmem:[%s1 + $0x11c] sm:$0xf]
  %v113 = vld [vmem:[%s1 + $0x120] sm:$0xf]
  %v114 = vld [vmem:[%s1 + $0x124] sm:$0xf]
  %v115 = vld [vmem:[%s1 + $0x128] sm:$0xf]
  %v116 = vld [vmem:[%s1 + $0x12c] sm:$0xf]
  %v117 = vld [vmem:[%s1 + $0x130] sm:$0xf]
  %v118 = vld [vmem:[%s1 + $0x134] sm:$0xf]
  %v119 = vld [vmem:[%s1 + $0x138] sm:$0xf]
  %v120 = vld [vmem:[%s1 + $0x13c] sm:$0xf]
  %v121 = vld [vmem:[%s2] sm:$0x1]
  %v123 = vperm.slane %v121, 0
  %v152 = vunpack.c.l.b16 %v14
  %v153 = vunpack.c.h.b16 %v14
  %v154 = vunpack.c.l.b16 %v15
  %v155 = vunpack.c.h.b16 %v15
  %v156 = vunpack.c.l.b16 %v16
  %v157 = vunpack.c.l.b16 %v17
  %v158 = vunpack.c.h.b16 %v17
  %v159 = vunpack.c.l.b16 %v18
  %v160 = vunpack.c.h.b16 %v18
  %v161 = vunpack.c.l.b16 %v19
  %v162 = vunpack.c.l.b16 %v20
  %v163 = vunpack.c.h.b16 %v20
  %v164 = vunpack.c.l.b16 %v21
  %v165 = vunpack.c.h.b16 %v21
  %v166 = vunpack.c.l.b16 %v22
  %v167 = vunpack.c.l.b16 %v23
  %v168 = vunpack.c.h.b16 %v23
  %v169 = vunpack.c.l.b16 %v24
  %v170 = vunpack.c.h.b16 %v24
  %v171 = vunpack.c.l.b16 %v25
  %v172 = vunpack.c.l.b16 %v26
  %v173 = vunpack.c.h.b16 %v26
  %v174 = vunpack.c.l.b16 %v27
  %v175 = vunpack.c.h.b16 %v27
  %v176 = vunpack.c.l.b16 %v28
  %v177 = vunpack.c.l.b16 %v29
  %v178 = vunpack.c.h.b16 %v29
  %v179 = vunpack.c.l.b16 %v30
  %v180 = vunpack.c.h.b16 %v30
  %v181 = vunpack.c.l.b16 %v31
  %v182 = vunpack.c.l.b16 %v32
  %v183 = vunpack.c.h.b16 %v32
  %v184 = vunpack.c.l.b16 %v33
  %v185 = vunpack.c.h.b16 %v33
  %v186 = vunpack.c.l.b16 %v34
  %v187 = vunpack.c.l.b16 %v35
  %v188 = vunpack.c.h.b16 %v35
  %v189 = vunpack.c.l.b16 %v36
  %v190 = vunpack.c.h.b16 %v36
  %v191 = vunpack.c.l.b16 %v37
  %v192 = vunpack.c.l.b16 %v38
  %v193 = vunpack.c.h.b16 %v38
  %v194 = vunpack.c.l.b16 %v39
  %v195 = vunpack.c.h.b16 %v39
  %v196 = vunpack.c.l.b16 %v40
  %v197 = vpack.c.b16 %v157, %v152
  %v198 = vpack.c.b16 %v158, %v153
  %v199 = vpack.c.b16 %v159, %v154
  %v200 = vpack.c.b16 %v160, %v155
  %v201 = vpack.c.b16 %v161, %v156
  %v202 = vpack.c.b16 %v167, %v162
  %v203 = vpack.c.b16 %v168, %v163
  %v204 = vpack.c.b16 %v169, %v164
  %v205 = vpack.c.b16 %v170, %v165
  %v206 = vpack.c.b16 %v171, %v166
  %v207 = vpack.c.b16 %v177, %v172
  %v208 = vpack.c.b16 %v178, %v173
  %v209 = vpack.c.b16 %v179, %v174
  %v210 = vpack.c.b16 %v180, %v175
  %v211 = vpack.c.b16 %v181, %v176
  %v212 = vpack.c.b16 %v187, %v182
  %v213 = vpack.c.b16 %v188, %v183
  %v214 = vpack.c.b16 %v189, %v184
  %v215 = vpack.c.b16 %v190, %v185
  %v216 = vpack.c.b16 %v191, %v186
  %v217 = vpack.c.b16 %v192, %v192
  %v218 = vpack.c.b16 %v193, %v193
  %v219 = vpack.c.b16 %v194, %v194
  %v220 = vpack.c.b16 %v195, %v195
  %v221 = vpack.c.b16 %v196, %v196
  %v327 = vunpack.c.l.b16 %v41
  %v328 = vunpack.c.l.b16 %v42
  %v329 = vunpack.c.l.b16 %v43
  %v330 = vunpack.c.l.b16 %v44
  %v331 = vunpack.c.l.b16 %v45
  %v332 = vunpack.c.l.b16 %v46
  %v333 = vunpack.c.l.b16 %v47
  %v334 = vunpack.c.l.b16 %v48
  %v335 = vunpack.c.l.b16 %v49
  %v336 = vunpack.c.l.b16 %v50
  %v337 = vunpack.c.l.b16 %v51
  %v338 = vunpack.c.l.b16 %v52
  %v339 = vunpack.c.l.b16 %v53
  %v340 = vunpack.c.l.b16 %v54
  %v341 = vunpack.c.l.b16 %v55
  %v342 = vunpack.c.l.b16 %v56
  %v343 = vunpack.c.l.b16 %v57
  %v344 = vunpack.c.l.b16 %v58
  %v345 = vunpack.c.l.b16 %v59
  %v346 = vunpack.c.l.b16 %v60
  %v347 = vunpack.c.l.b16 %v61
  %v348 = vunpack.c.l.b16 %v62
  %v349 = vunpack.c.l.b16 %v63
  %v350 = vunpack.c.l.b16 %v64
  %v351 = vunpack.c.l.b16 %v65
  %v352 = vunpack.c.l.b16 %v66
  %v353 = vunpack.c.l.b16 %v67
  %v354 = vunpack.c.l.b16 %v68
  %v355 = vunpack.c.l.b16 %v69
  %v356 = vunpack.c.l.b16 %v70
  %v357 = vunpack.c.l.b16 %v71
  %v358 = vunpack.c.l.b16 %v72
  %v359 = vunpack.c.l.b16 %v73
  %v360 = vunpack.c.l.b16 %v74
  %v361 = vunpack.c.l.b16 %v75
  %v362 = vunpack.c.l.b16 %v76
  %v363 = vunpack.c.l.b16 %v77
  %v364 = vunpack.c.l.b16 %v78
  %v365 = vunpack.c.l.b16 %v79
  %v366 = vunpack.c.l.b16 %v80
  %v367 = vunpack.c.l.b16 %v81
  %v368 = vunpack.c.l.b16 %v82
  %v369 = vunpack.c.l.b16 %v83
  %v370 = vunpack.c.l.b16 %v84
  %v371 = vunpack.c.l.b16 %v85
  %v372 = vunpack.c.l.b16 %v86
  %v373 = vunpack.c.l.b16 %v87
  %v374 = vunpack.c.l.b16 %v88
  %v375 = vunpack.c.l.b16 %v89
  %v376 = vunpack.c.l.b16 %v90
  %v377 = vunpack.c.l.b16 %v91
  %v378 = vunpack.c.l.b16 %v92
  %v379 = vunpack.c.l.b16 %v93
  %v380 = vunpack.c.l.b16 %v94
  %v381 = vunpack.c.l.b16 %v95
  %v382 = vunpack.c.l.b16 %v96
  %v383 = vunpack.c.l.b16 %v97
  %v384 = vunpack.c.l.b16 %v98
  %v385 = vunpack.c.l.b16 %v99
  %v386 = vunpack.c.l.b16 %v100
  %v387 = vunpack.c.l.b16 %v101
  %v388 = vunpack.c.l.b16 %v102
  %v389 = vunpack.c.l.b16 %v103
  %v390 = vunpack.c.l.b16 %v104
  %v391 = vunpack.c.l.b16 %v105
  %v392 = vunpack.c.l.b16 %v106
  %v393 = vunpack.c.l.b16 %v107
  %v394 = vunpack.c.l.b16 %v108
  %v395 = vunpack.c.l.b16 %v109
  %v396 = vunpack.c.l.b16 %v110
  %v397 = vunpack.c.l.b16 %v111
  %v398 = vunpack.c.l.b16 %v112
  %v399 = vunpack.c.l.b16 %v113
  %v400 = vunpack.c.l.b16 %v114
  %v401 = vunpack.c.l.b16 %v115
  %v402 = vunpack.c.l.b16 %v116
  %v403 = vunpack.c.l.b16 %v117
  %v404 = vunpack.c.l.b16 %v118
  %v405 = vunpack.c.l.b16 %v119
  %v406 = vunpack.c.l.b16 %v120
  %v407 = vpack.c.b16 %v328, %v327
  %v408 = vpack.c.b16 %v330, %v329
  %v409 = vpack.c.b16 %v332, %v331
  %v410 = vpack.c.b16 %v334, %v333
  %v411 = vpack.c.b16 %v336, %v335
  %v412 = vpack.c.b16 %v338, %v337
  %v413 = vpack.c.b16 %v340, %v339
  %v414 = vpack.c.b16 %v342, %v341
  %v415 = vpack.c.b16 %v344, %v343
  %v416 = vpack.c.b16 %v346, %v345
  %v417 = vpack.c.b16 %v348, %v347
  %v418 = vpack.c.b16 %v350, %v349
  %v419 = vpack.c.b16 %v352, %v351
  %v420 = vpack.c.b16 %v354, %v353
  %v421 = vpack.c.b16 %v356, %v355
  %v422 = vpack.c.b16 %v358, %v357
  %v423 = vpack.c.b16 %v360, %v359
  %v424 = vpack.c.b16 %v362, %v361
  %v425 = vpack.c.b16 %v364, %v363
  %v426 = vpack.c.b16 %v366, %v365
  %v427 = vpack.c.b16 %v368, %v367
  %v428 = vpack.c.b16 %v370, %v369
  %v429 = vpack.c.b16 %v372, %v371
  %v430 = vpack.c.b16 %v374, %v373
  %v431 = vpack.c.b16 %v376, %v375
  %v432 = vpack.c.b16 %v378, %v377
  %v433 = vpack.c.b16 %v380, %v379
  %v434 = vpack.c.b16 %v382, %v381
  %v435 = vpack.c.b16 %v384, %v383
  %v436 = vpack.c.b16 %v386, %v385
  %v437 = vpack.c.b16 %v388, %v387
  %v438 = vpack.c.b16 %v390, %v389
  %v439 = vpack.c.b16 %v392, %v391
  %v440 = vpack.c.b16 %v394, %v393
  %v441 = vpack.c.b16 %v396, %v395
  %v442 = vpack.c.b16 %v398, %v397
  %v443 = vpack.c.b16 %v400, %v399
  %v444 = vpack.c.b16 %v402, %v401
  %v445 = vpack.c.b16 %v404, %v403
  %v446 = vpack.c.b16 %v406, %v405
  %487 = vmatpush.bf16.msra.mxu0 %v414
  %488 = vmatpush.bf16.msra.mxu0 %v413
  %489 = vmatpush.bf16.msra.mxu0 %v412
  %490 = vmatpush.bf16.msra.mxu0 %v411
  %491 = vmatpush.bf16.msra.mxu0 %v410
  %492 = vmatpush.bf16.msra.mxu0 %v409
  %493 = vmatpush.bf16.msra.mxu0 %v408
  %494 = vmatpush.bf16.msra.mxu0 %v407
  %495 = vmatmul.bf16.gmra.mxu0 %v197
  %v496 = vpop.f32.mrf.mxu0
  %v497 = vadd.f32 %v123, %v496
  %v498 = vpop.f32.mrf.mxu0
  %v499 = vadd.f32 %v123, %v498
  %500 = vmatmul.bf16.gmra.mxu0 %v202
  %v501 = vpop.f32.mrf.mxu0
  %v502 = vadd.f32 %v123, %v501
  %v503 = vpop.f32.mrf.mxu0
  %v504 = vadd.f32 %v123, %v503
  %505 = vmatmul.bf16.gmra.mxu0 %v207
  %v506 = vpop.f32.mrf.mxu0
  %v507 = vadd.f32 %v123, %v506
  %v508 = vpop.f32.mrf.mxu0
  %v509 = vadd.f32 %v123, %v508
  %510 = vmatmul.bf16.gmra.mxu0 %v212
  %v511 = vpop.f32.mrf.mxu0
  %v512 = vadd.f32 %v123, %v511
  %v513 = vpop.f32.mrf.mxu0
  %v514 = vadd.f32 %v123, %v513
  %515 = vmatmul.bf16.gmra.mxu0 %v217
  %v516 = vpop.f32.mrf.mxu0
  %v517 = vadd.f32 %v123, %v516
  %v518 = vpop.f32.mrf.mxu0
  %519 = vdwg.mxu0
  %520 = vmatpush.bf16.msra.mxu0 %v422
  %521 = vmatpush.bf16.msra.mxu0 %v421
  %522 = vmatpush.bf16.msra.mxu0 %v420
  %523 = vmatpush.bf16.msra.mxu0 %v419
  %524 = vmatpush.bf16.msra.mxu0 %v418
  %525 = vmatpush.bf16.msra.mxu0 %v417
  %526 = vmatpush.bf16.msra.mxu0 %v416
  %527 = vmatpush.bf16.msra.mxu0 %v415
  %528 = vmatmul.bf16.gmra.mxu0 %v198
  %v529 = vpop.f32.mrf.mxu0
  %v530 = vadd.f32 %v497, %v529
  %v531 = vpop.f32.mrf.mxu0
  %v532 = vadd.f32 %v499, %v531
  %533 = vmatmul.bf16.gmra.mxu0 %v203
  %v534 = vpop.f32.mrf.mxu0
  %v535 = vadd.f32 %v502, %v534
  %v536 = vpop.f32.mrf.mxu0
  %v537 = vadd.f32 %v504, %v536
  %538 = vmatmul.bf16.gmra.mxu0 %v208
  %v539 = vpop.f32.mrf.mxu0
  %v540 = vadd.f32 %v507, %v539
  %v541 = vpop.f32.mrf.mxu0
  %v542 = vadd.f32 %v509, %v541
  %543 = vmatmul.bf16.gmra.mxu0 %v213
  %v544 = vpop.f32.mrf.mxu0
  %v545 = vadd.f32 %v512, %v544
  %v546 = vpop.f32.mrf.mxu0
  %v547 = vadd.f32 %v514, %v546
  %548 = vmatmul.bf16.gmra.mxu0 %v218
  %v549 = vpop.f32.mrf.mxu0
  %v550 = vadd.f32 %v517, %v549
  %v551 = vpop.f32.mrf.mxu0
  %552 = vdwg.mxu0
  %553 = vmatpush.bf16.msra.mxu0 %v430
  %554 = vmatpush.bf16.msra.mxu0 %v429
  %555 = vmatpush.bf16.msra.mxu0 %v428
  %556 = vmatpush.bf16.msra.mxu0 %v427
  %557 = vmatpush.bf16.msra.mxu0 %v426
  %558 = vmatpush.bf16.msra.mxu0 %v425
  %559 = vmatpush.bf16.msra.mxu0 %v424
  %560 = vmatpush.bf16.msra.mxu0 %v423
  %561 = vmatmul.bf16.gmra.mxu0 %v199
  %v562 = vpop.f32.mrf.mxu0
  %v563 = vadd.f32 %v530, %v562
  %v564 = vpop.f32.mrf.mxu0
  %v565 = vadd.f32 %v532, %v564
  %566 = vmatmul.bf16.gmra.mxu0 %v204
  %v567 = vpop.f32.mrf.mxu0
  %v568 = vadd.f32 %v535, %v567
  %v569 = vpop.f32.mrf.mxu0
  %v570 = vadd.f32 %v537, %v569
  %571 = vmatmul.bf16.gmra.mxu0 %v209
  %v572 = vpop.f32.mrf.mxu0
  %v573 = vadd.f32 %v540, %v572
  %v574 = vpop.f32.mrf.mxu0
  %v575 = vadd.f32 %v542, %v574
  %576 = vmatmul.bf16.gmra.mxu0 %v214
  %v577 = vpop.f32.mrf.mxu0
  %v578 = vadd.f32 %v545, %v577
  %v579 = vpop.f32.mrf.mxu0
  %v580 = vadd.f32 %v547, %v579
  %581 = vmatmul.bf16.gmra.mxu0 %v219
  %v582 = vpop.f32.mrf.mxu0
  %v583 = vadd.f32 %v550, %v582
  %v584 = vpop.f32.mrf.mxu0
  %585 = vdwg.mxu0
  %586 = vmatpush.bf16.msra.mxu0 %v438
  %587 = vmatpush.bf16.msra.mxu0 %v437
  %588 = vmatpush.bf16.msra.mxu0 %v436
  %589 = vmatpush.bf16.msra.mxu0 %v435
  %590 = vmatpush.bf16.msra.mxu0 %v434
  %591 = vmatpush.bf16.msra.mxu0 %v433
  %592 = vmatpush.bf16.msra.mxu0 %v432
  %593 = vmatpush.bf16.msra.mxu0 %v431
  %594 = vmatmul.bf16.gmra.mxu0 %v200
  %v595 = vpop.f32.mrf.mxu0
  %v596 = vadd.f32 %v563, %v595
  %v597 = vpop.f32.mrf.mxu0
  %v598 = vadd.f32 %v565, %v597
  %599 = vmatmul.bf16.gmra.mxu0 %v205
  %v600 = vpop.f32.mrf.mxu0
  %v601 = vadd.f32 %v568, %v600
  %v602 = vpop.f32.mrf.mxu0
  %v603 = vadd.f32 %v570, %v602
  %604 = vmatmul.bf16.gmra.mxu0 %v210
  %v605 = vpop.f32.mrf.mxu0
  %v606 = vadd.f32 %v573, %v605
  %v607 = vpop.f32.mrf.mxu0
  %v608 = vadd.f32 %v575, %v607
  %609 = vmatmul.bf16.gmra.mxu0 %v215
  %v610 = vpop.f32.mrf.mxu0
  %v611 = vadd.f32 %v578, %v610
  %v612 = vpop.f32.mrf.mxu0
  %v613 = vadd.f32 %v580, %v612
  %614 = vmatmul.bf16.gmra.mxu0 %v220
  %v615 = vpop.f32.mrf.mxu0
  %v616 = vadd.f32 %v583, %v615
  %v617 = vpop.f32.mrf.mxu0
  %618 = vdwg.mxu0
  %619 = vmatpush.bf16.msra.mxu0 %v446
  %620 = vmatpush.bf16.msra.mxu0 %v445
  %621 = vmatpush.bf16.msra.mxu0 %v444
  %622 = vmatpush.bf16.msra.mxu0 %v443
  %623 = vmatpush.bf16.msra.mxu0 %v442
  %624 = vmatpush.bf16.msra.mxu0 %v441
  %625 = vmatpush.bf16.msra.mxu0 %v440
  %626 = vmatpush.bf16.msra.mxu0 %v439
  %627 = vmatmul.bf16.gmra.mxu0 %v201
  %v628 = vpop.f32.mrf.mxu0
  %v629 = vadd.f32 %v596, %v628
  %v630 = vpop.f32.mrf.mxu0
  %v631 = vadd.f32 %v598, %v630
  %632 = vmatmul.bf16.gmra.mxu0 %v206
  %v633 = vpop.f32.mrf.mxu0
  %v634 = vadd.f32 %v601, %v633
  %v635 = vpop.f32.mrf.mxu0
  %v636 = vadd.f32 %v603, %v635
  %637 = vmatmul.bf16.gmra.mxu0 %v211
  %v638 = vpop.f32.mrf.mxu0
  %v639 = vadd.f32 %v606, %v638
  %v640 = vpop.f32.mrf.mxu0
  %v641 = vadd.f32 %v608, %v640
  %642 = vmatmul.bf16.gmra.mxu0 %v216
  %v643 = vpop.f32.mrf.mxu0
  %v644 = vadd.f32 %v611, %v643
  %v645 = vpop.f32.mrf.mxu0
  %v646 = vadd.f32 %v613, %v645
  %647 = vmatmul.bf16.gmra.mxu0 %v221
  %v648 = vpop.f32.mrf.mxu0
  %v649 = vadd.f32 %v616, %v648
  %v650 = vpop.f32.mrf.mxu0
  %651 = vdwg.mxu0
  %v652 = vmax.f32 %v629, 0.0
  %v653 = vmax.f32 %v631, 0.0
  %v654 = vmax.f32 %v634, 0.0
  %v655 = vmax.f32 %v636, 0.0
  %v656 = vmax.f32 %v639, 0.0
  %v657 = vmax.f32 %v641, 0.0
  %v658 = vmax.f32 %v644, 0.0
  %v659 = vmax.f32 %v646, 0.0
  %v660 = vmax.f32 %v649, 0.0
  %v661 = vpack.c.bf16 %v652, %v652
  %v662 = vpack.c.bf16 %v653, %v653
  %v663 = vpack.c.bf16 %v654, %v654
  %v664 = vpack.c.bf16 %v655, %v655
  %v665 = vpack.c.bf16 %v656, %v656
  %v666 = vpack.c.bf16 %v657, %v657
  %v667 = vpack.c.bf16 %v658, %v658
  %v668 = vpack.c.bf16 %v659, %v659
  %v669 = vpack.c.bf16 %v660, %v660
  %vm670 = vcmask 519168
  %671 = vst.msk [vmem:[%s3] sm:$0xf] %vm670, %v661
  %672 = vst.msk [vmem:[%s3 + $0x4] sm:$0xf] %vm670, %v662
  %673 = vst.msk [vmem:[%s3 + $0x8] sm:$0xf] %vm670, %v663
  %674 = vst.msk [vmem:[%s3 + $0xc] sm:$0xf] %vm670, %v664
  %675 = vst.msk [vmem:[%s3 + $0x10] sm:$0xf] %vm670, %v665
  %676 = vst.msk [vmem:[%s3 + $0x14] sm:$0xf] %vm670, %v666
  %677 = vst.msk [vmem:[%s3 + $0x18] sm:$0xf] %vm670, %v667
  %678 = vst.msk [vmem:[%s3 + $0x1c] sm:$0xf] %vm670, %v668
  %679 = vst.msk [vmem:[%s3 + $0x20] sm:$0xf] %vm670, %v669
  // Predicated region
  $region14: #{resnet_forward.37} parent=0 // pred_check
    _
  $region15: #{resnet_forward.37} parent=0 // pred_check_branch
    %681 = sbr.rel (0) target = $region17
  $region16: #{resnet_forward.37} parent=0 // pred_region
    _
  $region17: #{resnet_forward.37} parent=0 // pred_fallthru
    _
  // Predicated region
  $region18: #{resnet_forward.37} parent=0 // pred_check
    _
  $region19: #{resnet_forward.37} parent=0 // pred_check_branch
    %683 = sbr.rel (0) target = $region21
  $region20: #{resnet_forward.37} parent=0 // pred_region
    _
  $region21: #{resnet_forward.37} parent=0 // pred_fallthru
    _

// kernel: resnet_forward.40
$region0: #{resnet_forward.40}
  #allocation0 [shape = 'u32[]', space=smem, size = 0x4, offset = 0x4, fixed_abs, tag = 'smem constant byte address 0x4 - core index']
  #allocation1 [shape = 'u32[72,128]{1,0:T(1,128)}', space=vmem, size = 0x9000, scoped, tag = 'internal scratch']
  %s0 = inlined_call_operand.vmem [shape: bf16[40,256], index: 0, kind: input, shape index: {}]
  %s1 = inlined_call_operand.vmem [shape: bf16[256,64], index: 1, kind: input, shape index: {}]
  %s2 = inlined_call_operand.vmem [shape: f32[1,64], index: 2, kind: input, shape index: {}]
  %s3 = inlined_call_operand.vmem [shape: bf16[40,64], index: 3, kind: output, shape index: {}]
  %s4 = sld [smem:[#allocation0]]
  $region22: #{resnet_forward.40} parent=0
    _
  %s6 = ssub.s32 1, %s4
  %s7 = scalar_select 0, %s6, %s4
  // Predicated region
  $region2: #{resnet_forward.40} parent=0 // pred_check
    _
  $region3: #{resnet_forward.40} parent=0 // pred_check_branch
    %9 = sbr.rel (0) target = $region5
  $region4: #{resnet_forward.40} parent=0 // pred_region
    _
  $region5: #{resnet_forward.40} parent=0 // pred_fallthru
    _
  // Predicated region
  $region6: #{resnet_forward.40} parent=0 // pred_check
    _
  $region7: #{resnet_forward.40} parent=0 // pred_check_branch
    %11 = sbr.rel (0) target = $region9
  $region8: #{resnet_forward.40} parent=0 // pred_region
    _
  $region9: #{resnet_forward.40} parent=0 // pred_fallthru
    _
  // Predicated region
  $region10: #{resnet_forward.40} parent=0 // pred_check
    _
  $region11: #{resnet_forward.40} parent=0 // pred_check_branch
    %13 = sbr.rel (0) target = $region13
  $region12: #{resnet_forward.40} parent=0 // pred_region
    _
  $region13: #{resnet_forward.40} parent=0 // pred_fallthru
    _
  %v14 = vld [vmem:[%s0] sm:$0xff]
  %v15 = vld [vmem:[%s0 + $0x8] sm:$0xff]
  %v16 = vld [vmem:[%s0 + $0x10] sm:$0xff]
  %v17 = vld [vmem:[%s0 + $0x18] sm:$0xff]
  %v18 = vld [vmem:[%s0 + $0x20] sm:$0xff]
  %v19 = vld [vmem:[%s1] sm:$0xf]
  %v20 = vld [vmem:[%s1 + $0x4] sm:$0xf]
  %v21 = vld [vmem:[%s1 + $0x8] sm:$0xf]
  %v22 = vld [vmem:[%s1 + $0xc] sm:$0xf]
  %v23 = vld [vmem:[%s1 + $0x10] sm:$0xf]
  %v24 = vld [vmem:[%s1 + $0x14] sm:$0xf]
  %v25 = vld [vmem:[%s1 + $0x18] sm:$0xf]
  %v26 = vld [vmem:[%s1 + $0x1c] sm:$0xf]
  %v27 = vld [vmem:[%s1 + $0x20] sm:$0xf]
  %v28 = vld [vmem:[%s1 + $0x24] sm:$0xf]
  %v29 = vld [vmem:[%s1 + $0x28] sm:$0xf]
  %v30 = vld [vmem:[%s1 + $0x2c] sm:$0xf]
  %v31 = vld [vmem:[%s1 + $0x30] sm:$0xf]
  %v32 = vld [vmem:[%s1 + $0x34] sm:$0xf]
  %v33 = vld [vmem:[%s1 + $0x38] sm:$0xf]
  %v34 = vld [vmem:[%s1 + $0x3c] sm:$0xf]
  %v35 = vld [vmem:[%s1 + $0x40] sm:$0xf]
  %v36 = vld [vmem:[%s1 + $0x44] sm:$0xf]
  %v37 = vld [vmem:[%s1 + $0x48] sm:$0xf]
  %v38 = vld [vmem:[%s1 + $0x4c] sm:$0xf]
  %v39 = vld [vmem:[%s1 + $0x50] sm:$0xf]
  %v40 = vld [vmem:[%s1 + $0x54] sm:$0xf]
  %v41 = vld [vmem:[%s1 + $0x58] sm:$0xf]
  %v42 = vld [vmem:[%s1 + $0x5c] sm:$0xf]
  %v43 = vld [vmem:[%s1 + $0x60] sm:$0xf]
  %v44 = vld [vmem:[%s1 + $0x64] sm:$0xf]
  %v45 = vld [vmem:[%s1 + $0x68] sm:$0xf]
  %v46 = vld [vmem:[%s1 + $0x6c] sm:$0xf]
  %v47 = vld [vmem:[%s1 + $0x70] sm:$0xf]
  %v48 = vld [vmem:[%s1 + $0x74] sm:$0xf]
  %v49 = vld [vmem:[%s1 + $0x78] sm:$0xf]
  %v50 = vld [vmem:[%s1 + $0x7c] sm:$0xf]
  %v51 = vld [vmem:[%s2] sm:$0x1]
  %v53 = vperm.slane %v51, 0
  %v60 = vunpack.c.l.b16 %v14
  %v61 = vunpack.c.h.b16 %v14
  %v62 = vunpack.c.l.b16 %v15
  %v63 = vunpack.c.h.b16 %v15
  %v64 = vunpack.c.l.b16 %v16
  %v65 = vunpack.c.h.b16 %v16
  %v66 = vunpack.c.l.b16 %v17
  %v67 = vunpack.c.h.b16 %v17
  %v68 = vunpack.c.l.b16 %v18
  %v69 = vunpack.c.h.b16 %v18
  %v70 = vpack.c.b16 %v62, %v60
  %v71 = vpack.c.b16 %v63, %v61
  %v72 = vpack.c.b16 %v66, %v64
  %v73 = vpack.c.b16 %v67, %v65
  %v74 = vpack.c.b16 %v68, %v68
  %v75 = vpack.c.b16 %v69, %v69
  %v114 = vunpack.c.l.b16 %v19
  %v115 = vunpack.c.l.b16 %v20
  %v116 = vunpack.c.l.b16 %v21
  %v117 = vunpack.c.l.b16 %v22
  %v118 = vunpack.c.l.b16 %v23
  %v119 = vunpack.c.l.b16 %v24
  %v120 = vunpack.c.l.b16 %v25
  %v121 = vunpack.c.l.b16 %v26
  %v122 = vunpack.c.l.b16 %v27
  %v123 = vunpack.c.l.b16 %v28
  %v124 = vunpack.c.l.b16 %v29
  %v125 = vunpack.c.l.b16 %v30
  %v126 = vunpack.c.l.b16 %v31
  %v127 = vunpack.c.l.b16 %v32
  %v128 = vunpack.c.l.b16 %v33
  %v129 = vunpack.c.l.b16 %v34
  %v130 = vunpack.c.l.b16 %v35
  %v131 = vunpack.c.l.b16 %v36
  %v132 = vunpack.c.l.b16 %v37
  %v133 = vunpack.c.l.b16 %v38
  %v134 = vunpack.c.l.b16 %v39
  %v135 = vunpack.c.l.b16 %v40
  %v136 = vunpack.c.l.b16 %v41
  %v137 = vunpack.c.l.b16 %v42
  %v138 = vunpack.c.l.b16 %v43
  %v139 = vunpack.c.l.b16 %v44
  %v140 = vunpack.c.l.b16 %v45
  %v141 = vunpack.c.l.b16 %v46
  %v142 = vunpack.c.l.b16 %v47
  %v143 = vunpack.c.l.b16 %v48
  %v144 = vunpack.c.l.b16 %v49
  %v145 = vunpack.c.l.b16 %v50
  %v146 = vpack.c.b16 %v115, %v114
  %v147 = vpack.c.b16 %v117, %v116
  %v148 = vpack.c.b16 %v119, %v118
  %v149 = vpack.c.b16 %v121, %v120
  %v150 = vpack.c.b16 %v123, %v122
  %v151 = vpack.c.b16 %v125, %v124
  %v152 = vpack.c.b16 %v127, %v126
  %v153 = vpack.c.b16 %v129, %v128
  %v154 = vpack.c.b16 %v131, %v130
  %v155 = vpack.c.b16 %v133, %v132
  %v156 = vpack.c.b16 %v135, %v134
  %v157 = vpack.c.b16 %v137, %v136
  %v158 = vpack.c.b16 %v139, %v138
  %v159 = vpack.c.b16 %v141, %v140
  %v160 = vpack.c.b16 %v143, %v142
  %v161 = vpack.c.b16 %v145, %v144
  %178 = vmatpush.bf16.msra.mxu0 %v153
  %179 = vmatpush.bf16.msra.mxu0 %v152
  %180 = vmatpush.bf16.msra.mxu0 %v151
  %181 = vmatpush.bf16.msra.mxu0 %v150
  %182 = vmatpush.bf16.msra.mxu0 %v149
  %183 = vmatpush.bf16.msra.mxu0 %v148
  %184 = vmatpush.bf16.msra.mxu0 %v147
  %185 = vmatpush.bf16.msra.mxu0 %v146
  %186 = vmatmul.bf16.gmra.mxu0 %v70
  %v187 = vpop.f32.mrf.mxu0
  %v188 = vadd.f32 %v53, %v187
  %v189 = vpop.f32.mrf.mxu0
  %v190 = vadd.f32 %v53, %v189
  %191 = vmatmul.bf16.gmra.mxu0 %v72
  %v192 = vpop.f32.mrf.mxu0
  %v193 = vadd.f32 %v53, %v192
  %v194 = vpop.f32.mrf.mxu0
  %v195 = vadd.f32 %v53, %v194
  %196 = vmatmul.bf16.gmra.mxu0 %v74
  %v197 = vpop.f32.mrf.mxu0
  %v198 = vadd.f32 %v53, %v197
  %v199 = vpop.f32.mrf.mxu0
  %200 = vdwg.mxu0
  %201 = vmatpush.bf16.msra.mxu0 %v161
  %202 = vmatpush.bf16.msra.mxu0 %v160
  %203 = vmatpush.bf16.msra.mxu0 %v159
  %204 = vmatpush.bf16.msra.mxu0 %v158
  %205 = vmatpush.bf16.msra.mxu0 %v157
  %206 = vmatpush.bf16.msra.mxu0 %v156
  %207 = vmatpush.bf16.msra.mxu0 %v155
  %208 = vmatpush.bf16.msra.mxu0 %v154
  %209 = vmatmul.bf16.gmra.mxu0 %v71
  %v210 = vpop.f32.mrf.mxu0
  %v211 = vadd.f32 %v188, %v210
  %v212 = vpop.f32.mrf.mxu0
  %v213 = vadd.f32 %v190, %v212
  %214 = vmatmul.bf16.gmra.mxu0 %v73
  %v215 = vpop.f32.mrf.mxu0
  %v216 = vadd.f32 %v193, %v215
  %v217 = vpop.f32.mrf.mxu0
  %v218 = vadd.f32 %v195, %v217
  %219 = vmatmul.bf16.gmra.mxu0 %v75
  %v220 = vpop.f32.mrf.mxu0
  %v221 = vadd.f32 %v198, %v220
  %v222 = vpop.f32.mrf.mxu0
  %223 = vdwg.mxu0
  %v224 = vmax.f32 %v211, 0.0
  %v225 = vmax.f32 %v213, 0.0
  %v226 = vmax.f32 %v216, 0.0
  %v227 = vmax.f32 %v218, 0.0
  %v228 = vmax.f32 %v221, 0.0
  %v229 = vpack.c.bf16 %v224, %v224
  %v230 = vpack.c.bf16 %v225, %v225
  %v231 = vpack.c.bf16 %v226, %v226
  %v232 = vpack.c.bf16 %v227, %v227
  %v233 = vpack.c.bf16 %v228, %v228
  %vm234 = vcmask 519168
  %235 = vst.msk [vmem:[%s3] sm:$0xf] %vm234, %v229
  %236 = vst.msk [vmem:[%s3 + $0x4] sm:$0xf] %vm234, %v230
  %237 = vst.msk [vmem:[%s3 + $0x8] sm:$0xf] %vm234, %v231
  %238 = vst.msk [vmem:[%s3 + $0xc] sm:$0xf] %vm234, %v232
  %239 = vst.msk [vmem:[%s3 + $0x10] sm:$0xf] %vm234, %v233
  // Predicated region
  $region14: #{resnet_forward.40} parent=0 // pred_check
    _
  $region15: #{resnet_forward.40} parent=0 // pred_check_branch
    %241 = sbr.rel (0) target = $region17
  $region16: #{resnet_forward.40} parent=0 // pred_region
    _
  $region17: #{resnet_forward.40} parent=0 // pred_fallthru
    _
  // Predicated region
  $region18: #{resnet_forward.40} parent=0 // pred_check
    _
  $region19: #{resnet_forward.40} parent=0 // pred_check_branch
    %243 = sbr.rel (0) target = $region21
  $region20: #{resnet_forward.40} parent=0 // pred_region
    _
  $region21: #{resnet_forward.40} parent=0 // pred_fallthru
    _

// kernel: resnet_forward.36
$region0: #{resnet_forward.36}
  #allocation0 [shape = 'u32[]', space=smem, size = 0x4, offset = 0x4, fixed_abs, tag = 'smem constant byte address 0x4 - core index']
  #allocation1 [shape = 'u32[72,128]{1,0:T(1,128)}', space=vmem, size = 0x9000, scoped, tag = 'internal scratch']
  %s0 = inlined_call_operand.vmem [shape: bf16[72,640], index: 0, kind: input, shape index: {}]
  %s1 = inlined_call_operand.vmem [shape: bf16[640,64], index: 1, kind: input, shape index: {}]
  %s2 = inlined_call_operand.vmem [shape: f32[1,64], index: 2, kind: input, shape index: {}]
  %s3 = inlined_call_operand.vmem [shape: bf16[72,64], index: 3, kind: input, shape index: {}]
  %s4 = inlined_call_operand.vmem [shape: bf16[72,64], index: 4, kind: output, shape index: {}]
  %s5 = sld [smem:[#allocation0]]
  $region26: #{resnet_forward.36} parent=0
    _
  %s7 = ssub.s32 1, %s5
  %s8 = scalar_select 0, %s7, %s5
  // Predicated region
  $region2: #{resnet_forward.36} parent=0 // pred_check
    _
  $region3: #{resnet_forward.36} parent=0 // pred_check_branch
    %10 = sbr.rel (0) target = $region5
  $region4: #{resnet_forward.36} parent=0 // pred_region
    _
  $region5: #{resnet_forward.36} parent=0 // pred_fallthru
    _
  // Predicated region
  $region6: #{resnet_forward.36} parent=0 // pred_check
    _
  $region7: #{resnet_forward.36} parent=0 // pred_check_branch
    %12 = sbr.rel (0) target = $region9
  $region8: #{resnet_forward.36} parent=0 // pred_region
    _
  $region9: #{resnet_forward.36} parent=0 // pred_fallthru
    _
  // Predicated region
  $region10: #{resnet_forward.36} parent=0 // pred_check
    _
  $region11: #{resnet_forward.36} parent=0 // pred_check_branch
    %14 = sbr.rel (0) target = $region13
  $region12: #{resnet_forward.36} parent=0 // pred_region
    _
  $region13: #{resnet_forward.36} parent=0 // pred_fallthru
    _
  // Predicated region
  $region14: #{resnet_forward.36} parent=0 // pred_check
    _
  $region15: #{resnet_forward.36} parent=0 // pred_check_branch
    %16 = sbr.rel (0) target = $region17
  $region16: #{resnet_forward.36} parent=0 // pred_region
    _
  $region17: #{resnet_forward.36} parent=0 // pred_fallthru
    _
  %v17 = vld [vmem:[%s0] sm:$0xff]
  %v18 = vld [vmem:[%s0 + $0x8] sm:$0xff]
  %v19 = vld [vmem:[%s0 + $0x10] sm:$0xf]
  %v20 = vld [vmem:[%s0 + $0x14] sm:$0xff]
  %v21 = vld [vmem:[%s0 + $0x1c] sm:$0xff]
  %v22 = vld [vmem:[%s0 + $0x24] sm:$0xf]
  %v23 = vld [vmem:[%s0 + $0x28] sm:$0xff]
  %v24 = vld [vmem:[%s0 + $0x30] sm:$0xff]
  %v25 = vld [vmem:[%s0 + $0x38] sm:$0xf]
  %v26 = vld [vmem:[%s0 + $0x3c] sm:$0xff]
  %v27 = vld [vmem:[%s0 + $0x44] sm:$0xff]
  %v28 = vld [vmem:[%s0 + $0x4c] sm:$0xf]
  %v29 = vld [vmem:[%s0 + $0x50] sm:$0xff]
  %v30 = vld [vmem:[%s0 + $0x58] sm:$0xff]
  %v31 = vld [vmem:[%s0 + $0x60] sm:$0xf]
  %v32 = vld [vmem:[%s0 + $0x64] sm:$0xff]
  %v33 = vld [vmem:[%s0 + $0x6c] sm:$0xff]
  %v34 = vld [vmem:[%s0 + $0x74] sm:$0xf]
  %v35 = vld [vmem:[%s0 + $0x78] sm:$0xff]
  %v36 = vld [vmem:[%s0 + $0x80] sm:$0xff]
  %v37 = vld [vmem:[%s0 + $0x88] sm:$0xf]
  %v38 = vld [vmem:[%s0 + $0x8c] sm:$0xff]
  %v39 = vld [vmem:[%s0 + $0x94] sm:$0xff]
  %v40 = vld [vmem:[%s0 + $0x9c] sm:$0xf]
  %v41 = vld [vmem:[%s0 + $0xa0] sm:$0xff]
  %v42 = vld [vmem:[%s0 + $0xa8] sm:$0xff]
  %v43 = vld [vmem:[%s0 + $0xb0] sm:$0xf]
  %v44 = vld [vmem:[%s1] sm:$0xf]
  %v45 = vld [vmem:[%s1 + $0x4] sm:$0xf]
  %v46 = vld [vmem:[%s1 + $0x8] sm:$0xf]
  %v47 = vld [vmem:[%s1 + $0xc] sm:$0xf]
  %v48 = vld [vmem:[%s1 + $0x10] sm:$0xf]
  %v49 = vld [vmem:[%s1 + $0x14] sm:$0xf]
  %v50 = vld [vmem:[%s1 + $0x18] sm:$0xf]
  %v51 = vld [vmem:[%s1 + $0x1c] sm:$0xf]
  %v52 = vld [vmem:[%s1 + $0x20] sm:$0xf]
  %v53 = vld [vmem:[%s1 + $0x24] sm:$0xf]
  %v54 = vld [vmem:[%s1 + $0x28] sm:$0xf]
  %v55 = vld [vmem:[%s1 + $0x2c] sm:$0xf]
  %v56 = vld [vmem:[%s1 + $0x30] sm:$0xf]
  %v57 = vld [vmem:[%s1 + $0x34] sm:$0xf]
  %v58 = vld [vmem:[%s1 + $0x38] sm:$0xf]
  %v59 = vld [vmem:[%s1 + $0x3c] sm:$0xf]
  %v60 = vld [vmem:[%s1 + $0x40] sm:$0xf]
  %v61 = vld [vmem:[%s1 + $0x44] sm:$0xf]
  %v62 = vld [vmem:[%s1 + $0x48] sm:$0xf]
  %v63 = vld [vmem:[%s1 + $0x4c] sm:$0xf]
  %v64 = vld [vmem:[%s1 + $0x50] sm:$0xf]
  %v65 = vld [vmem:[%s1 + $0x54] sm:$0xf]
  %v66 = vld [vmem:[%s1 + $0x58] sm:$0xf]
  %v67 = vld [vmem:[%s1 + $0x5c] sm:$0xf]
  %v68 = vld [vmem:[%s1 + $0x60] sm:$0xf]
  %v69 = vld [vmem:[%s1 + $0x64] sm:$0xf]
  %v70 = vld [vmem:[%s1 + $0x68] sm:$0xf]
  %v71 = vld [vmem:[%s1 + $0x6c] sm:$0xf]
  %v72 = vld [vmem:[%s1 + $0x70] sm:$0xf]
  %v73 = vld [vmem:[%s1 + $0x74] sm:$0xf]
  %v74 = vld [vmem:[%s1 + $0x78] sm:$0xf]
  %v75 = vld [vmem:[%s1 + $0x7c] sm:$0xf]
  %v76 = vld [vmem:[%s1 + $0x80] sm:$0xf]
  %v77 = vld [vmem:[%s1 + $0x84] sm:$0xf]
  %v78 = vld [vmem:[%s1 + $0x88] sm:$0xf]
  %v79 = vld [vmem:[%s1 + $0x8c] sm:$0xf]
  %v80 = vld [vmem:[%s1 + $0x90] sm:$0xf]
  %v81 = vld [vmem:[%s1 + $0x94] sm:$0xf]
  %v82 = vld [vmem:[%s1 + $0x98] sm:$0xf]
  %v83 = vld [vmem:[%s1 + $0x9c] sm:$0xf]
  %v84 = vld [vmem:[%s1 + $0xa0] sm:$0xf]
  %v85 = vld [vmem:[%s1 + $0xa4] sm:$0xf]
  %v86 = vld [vmem:[%s1 + $0xa8] sm:$0xf]
  %v87 = vld [vmem:[%s1 + $0xac] sm:$0xf]
  %v88 = vld [vmem:[%s1 + $0xb0] sm:$0xf]
  %v89 = vld [vmem:[%s1 + $0xb4] sm:$0xf]
  %v90 = vld [vmem:[%s1 + $0xb8] sm:$0xf]
  %v91 = vld [vmem:[%s1 + $0xbc] sm:$0xf]
  %v92 = vld [vmem:[%s1 + $0xc0] sm:$0xf]
  %v93 = vld [vmem:[%s1 + $0xc4] sm:$0xf]
  %v94 = vld [vmem:[%s1 + $0xc8] sm:$0xf]
  %v95 = vld [vmem:[%s1 + $0xcc] sm:$0xf]
  %v96 = vld [vmem:[%s1 + $0xd0] sm:$0xf]
  %v97 = vld [vmem:[%s1 + $0xd4] sm:$0xf]
  %v98 = vld [vmem:[%s1 + $0xd8] sm:$0xf]
  %v99 = vld [vmem:[%s1 + $0xdc] sm:$0xf]
  %v100 = vld [vmem:[%s1 + $0xe0] sm:$0xf]
  %v101 = vld [vmem:[%s1 + $0xe4] sm:$0xf]
  %v102 = vld [vmem:[%s1 + $0xe8] sm:$0xf]
  %v103 = vld [vmem:[%s1 + $0xec] sm:$0xf]
  %v104 = vld [vmem:[%s1 + $0xf0] sm:$0xf]
  %v105 = vld [vmem:[%s1 + $0xf4] sm:$0xf]
  %v106 = vld [vmem:[%s1 + $0xf8] sm:$0xf]
  %v107 = vld [vmem:[%s1 + $0xfc] sm:$0xf]
  %v108 = vld [vmem:[%s1 + $0x100] sm:$0xf]
  %v109 = vld [vmem:[%s1 + $0x104] sm:$0xf]
  %v110 = vld [vmem:[%s1 + $0x108] sm:$0xf]
  %v111 = vld [vmem:[%s1 + $0x10c] sm:$0xf]
  %v112 = vld [vmem:[%s1 + $0x110] sm:$0xf]
  %v113 = vld [vmem:[%s1 + $0x114] sm:$0xf]
  %v114 = vld [vmem:[%s1 + $0x118] sm:$0xf]
  %v115 = vld [vmem:[%s1 + $0x11c] sm:$0xf]
  %v116 = vld [vmem:[%s1 + $0x120] sm:$0xf]
  %v117 = vld [vmem:[%s1 + $0x124] sm:$0xf]
  %v118 = vld [vmem:[%s1 + $0x128] sm:$0xf]
  %v119 = vld [vmem:[%s1 + $0x12c] sm:$0xf]
  %v120 = vld [vmem:[%s1 + $0x130] sm:$0xf]
  %v121 = vld [vmem:[%s1 + $0x134] sm:$0xf]
  %v122 = vld [vmem:[%s1 + $0x138] sm:$0xf]
  %v123 = vld [vmem:[%s1 + $0x13c] sm:$0xf]
  %v124 = vld [vmem:[%s2] sm:$0x1]
  %v126 = vperm.slane %v124, 0
  %v155 = vunpack.c.l.b16 %v17
  %v156 = vunpack.c.h.b16 %v17
  %v157 = vunpack.c.l.b16 %v18
  %v158 = vunpack.c.h.b16 %v18
  %v159 = vunpack.c.l.b16 %v19
  %v160 = vunpack.c.l.b16 %v20
  %v161 = vunpack.c.h.b16 %v20
  %v162 = vunpack.c.l.b16 %v21
  %v163 = vunpack.c.h.b16 %v21
  %v164 = vunpack.c.l.b16 %v22
  %v165 = vunpack.c.l.b16 %v23
  %v166 = vunpack.c.h.b16 %v23
  %v167 = vunpack.c.l.b16 %v24
  %v168 = vunpack.c.h.b16 %v24
  %v169 = vunpack.c.l.b16 %v25
  %v170 = vunpack.c.l.b16 %v26
  %v171 = vunpack.c.h.b16 %v26
  %v172 = vunpack.c.l.b16 %v27
  %v173 = vunpack.c.h.b16 %v27
  %v174 = vunpack.c.l.b16 %v28
  %v175 = vunpack.c.l.b16 %v29
  %v176 = vunpack.c.h.b16 %v29
  %v177 = vunpack.c.l.b16 %v30
  %v178 = vunpack.c.h.b16 %v30
  %v179 = vunpack.c.l.b16 %v31
  %v180 = vunpack.c.l.b16 %v32
  %v181 = vunpack.c.h.b16 %v32
  %v182 = vunpack.c.l.b16 %v33
  %v183 = vunpack.c.h.b16 %v33
  %v184 = vunpack.c.l.b16 %v34
  %v185 = vunpack.c.l.b16 %v35
  %v186 = vunpack.c.h.b16 %v35
  %v187 = vunpack.c.l.b16 %v36
  %v188 = vunpack.c.h.b16 %v36
  %v189 = vunpack.c.l.b16 %v37
  %v190 = vunpack.c.l.b16 %v38
  %v191 = vunpack.c.h.b16 %v38
  %v192 = vunpack.c.l.b16 %v39
  %v193 = vunpack.c.h.b16 %v39
  %v194 = vunpack.c.l.b16 %v40
  %v195 = vunpack.c.l.b16 %v41
  %v196 = vunpack.c.h.b16 %v41
  %v197 = vunpack.c.l.b16 %v42
  %v198 = vunpack.c.h.b16 %v42
  %v199 = vunpack.c.l.b16 %v43
  %v200 = vpack.c.b16 %v160, %v155
  %v201 = vpack.c.b16 %v161, %v156
  %v202 = vpack.c.b16 %v162, %v157
  %v203 = vpack.c.b16 %v163, %v158
  %v204 = vpack.c.b16 %v164, %v159
  %v205 = vpack.c.b16 %v170, %v165
  %v206 = vpack.c.b16 %v171, %v166
  %v207 = vpack.c.b16 %v172, %v167
  %v208 = vpack.c.b16 %v173, %v168
  %v209 = vpack.c.b16 %v174, %v169
  %v210 = vpack.c.b16 %v180, %v175
  %v211 = vpack.c.b16 %v181, %v176
  %v212 = vpack.c.b16 %v182, %v177
  %v213 = vpack.c.b16 %v183, %v178
  %v214 = vpack.c.b16 %v184, %v179
  %v215 = vpack.c.b16 %v190, %v185
  %v216 = vpack.c.b16 %v191, %v186
  %v217 = vpack.c.b16 %v192, %v187
  %v218 = vpack.c.b16 %v193, %v188
  %v219 = vpack.c.b16 %v194, %v189
  %v220 = vpack.c.b16 %v195, %v195
  %v221 = vpack.c.b16 %v196, %v196
  %v222 = vpack.c.b16 %v197, %v197
  %v223 = vpack.c.b16 %v198, %v198
  %v224 = vpack.c.b16 %v199, %v199
  %v330 = vunpack.c.l.b16 %v44
  %v331 = vunpack.c.l.b16 %v45
  %v332 = vunpack.c.l.b16 %v46
  %v333 = vunpack.c.l.b16 %v47
  %v334 = vunpack.c.l.b16 %v48
  %v335 = vunpack.c.l.b16 %v49
  %v336 = vunpack.c.l.b16 %v50
  %v337 = vunpack.c.l.b16 %v51
  %v338 = vunpack.c.l.b16 %v52
  %v339 = vunpack.c.l.b16 %v53
  %v340 = vunpack.c.l.b16 %v54
  %v341 = vunpack.c.l.b16 %v55
  %v342 = vunpack.c.l.b16 %v56
  %v343 = vunpack.c.l.b16 %v57
  %v344 = vunpack.c.l.b16 %v58
  %v345 = vunpack.c.l.b16 %v59
  %v346 = vunpack.c.l.b16 %v60
  %v347 = vunpack.c.l.b16 %v61
  %v348 = vunpack.c.l.b16 %v62
  %v349 = vunpack.c.l.b16 %v63
  %v350 = vunpack.c.l.b16 %v64
  %v351 = vunpack.c.l.b16 %v65
  %v352 = vunpack.c.l.b16 %v66
  %v353 = vunpack.c.l.b16 %v67
  %v354 = vunpack.c.l.b16 %v68
  %v355 = vunpack.c.l.b16 %v69
  %v356 = vunpack.c.l.b16 %v70
  %v357 = vunpack.c.l.b16 %v71
  %v358 = vunpack.c.l.b16 %v72
  %v359 = vunpack.c.l.b16 %v73
  %v360 = vunpack.c.l.b16 %v74
  %v361 = vunpack.c.l.b16 %v75
  %v362 = vunpack.c.l.b16 %v76
  %v363 = vunpack.c.l.b16 %v77
  %v364 = vunpack.c.l.b16 %v78
  %v365 = vunpack.c.l.b16 %v79
  %v366 = vunpack.c.l.b16 %v80
  %v367 = vunpack.c.l.b16 %v81
  %v368 = vunpack.c.l.b16 %v82
  %v369 = vunpack.c.l.b16 %v83
  %v370 = vunpack.c.l.b16 %v84
  %v371 = vunpack.c.l.b16 %v85
  %v372 = vunpack.c.l.b16 %v86
  %v373 = vunpack.c.l.b16 %v87
  %v374 = vunpack.c.l.b16 %v88
  %v375 = vunpack.c.l.b16 %v89
  %v376 = vunpack.c.l.b16 %v90
  %v377 = vunpack.c.l.b16 %v91
  %v378 = vunpack.c.l.b16 %v92
  %v379 = vunpack.c.l.b16 %v93
  %v380 = vunpack.c.l.b16 %v94
  %v381 = vunpack.c.l.b16 %v95
  %v382 = vunpack.c.l.b16 %v96
  %v383 = vunpack.c.l.b16 %v97
  %v384 = vunpack.c.l.b16 %v98
  %v385 = vunpack.c.l.b16 %v99
  %v386 = vunpack.c.l.b16 %v100
  %v387 = vunpack.c.l.b16 %v101
  %v388 = vunpack.c.l.b16 %v102
  %v389 = vunpack.c.l.b16 %v103
  %v390 = vunpack.c.l.b16 %v104
  %v391 = vunpack.c.l.b16 %v105
  %v392 = vunpack.c.l.b16 %v106
  %v393 = vunpack.c.l.b16 %v107
  %v394 = vunpack.c.l.b16 %v108
  %v395 = vunpack.c.l.b16 %v109
  %v396 = vunpack.c.l.b16 %v110
  %v397 = vunpack.c.l.b16 %v111
  %v398 = vunpack.c.l.b16 %v112
  %v399 = vunpack.c.l.b16 %v113
  %v400 = vunpack.c.l.b16 %v114
  %v401 = vunpack.c.l.b16 %v115
  %v402 = vunpack.c.l.b16 %v116
  %v403 = vunpack.c.l.b16 %v117
  %v404 = vunpack.c.l.b16 %v118
  %v405 = vunpack.c.l.b16 %v119
  %v406 = vunpack.c.l.b16 %v120
  %v407 = vunpack.c.l.b16 %v121
  %v408 = vunpack.c.l.b16 %v122
  %v409 = vunpack.c.l.b16 %v123
  %v410 = vpack.c.b16 %v331, %v330
  %v411 = vpack.c.b16 %v333, %v332
  %v412 = vpack.c.b16 %v335, %v334
  %v413 = vpack.c.b16 %v337, %v336
  %v414 = vpack.c.b16 %v339, %v338
  %v415 = vpack.c.b16 %v341, %v340
  %v416 = vpack.c.b16 %v343, %v342
  %v417 = vpack.c.b16 %v345, %v344
  %v418 = vpack.c.b16 %v347, %v346
  %v419 = vpack.c.b16 %v349, %v348
  %v420 = vpack.c.b16 %v351, %v350
  %v421 = vpack.c.b16 %v353, %v352
  %v422 = vpack.c.b16 %v355, %v354
  %v423 = vpack.c.b16 %v357, %v356
  %v424 = vpack.c.b16 %v359, %v358
  %v425 = vpack.c.b16 %v361, %v360
  %v426 = vpack.c.b16 %v363, %v362
  %v427 = vpack.c.b16 %v365, %v364
  %v428 = vpack.c.b16 %v367, %v366
  %v429 = vpack.c.b16 %v369, %v368
  %v430 = vpack.c.b16 %v371, %v370
  %v431 = vpack.c.b16 %v373, %v372
  %v432 = vpack.c.b16 %v375, %v374
  %v433 = vpack.c.b16 %v377, %v376
  %v434 = vpack.c.b16 %v379, %v378
  %v435 = vpack.c.b16 %v381, %v380
  %v436 = vpack.c.b16 %v383, %v382
  %v437 = vpack.c.b16 %v385, %v384
  %v438 = vpack.c.b16 %v387, %v386
  %v439 = vpack.c.b16 %v389, %v388
  %v440 = vpack.c.b16 %v391, %v390
  %v441 = vpack.c.b16 %v393, %v392
  %v442 = vpack.c.b16 %v395, %v394
  %v443 = vpack.c.b16 %v397, %v396
  %v444 = vpack.c.b16 %v399, %v398
  %v445 = vpack.c.b16 %v401, %v400
  %v446 = vpack.c.b16 %v403, %v402
  %v447 = vpack.c.b16 %v405, %v404
  %v448 = vpack.c.b16 %v407, %v406
  %v449 = vpack.c.b16 %v409, %v408
  %490 = vmatpush.bf16.msra.mxu0 %v417
  %491 = vmatpush.bf16.msra.mxu0 %v416
  %492 = vmatpush.bf16.msra.mxu0 %v415
  %493 = vmatpush.bf16.msra.mxu0 %v414
  %494 = vmatpush.bf16.msra.mxu0 %v413
  %495 = vmatpush.bf16.msra.mxu0 %v412
  %496 = vmatpush.bf16.msra.mxu0 %v411
  %497 = vmatpush.bf16.msra.mxu0 %v410
  %498 = vmatmul.bf16.gmra.mxu0 %v200
  %v499 = vpop.f32.mrf.mxu0
  %v500 = vadd.f32 %v126, %v499
  %v501 = vpop.f32.mrf.mxu0
  %v502 = vadd.f32 %v126, %v501
  %503 = vmatmul.bf16.gmra.mxu0 %v205
  %v504 = vpop.f32.mrf.mxu0
  %v505 = vadd.f32 %v126, %v504
  %v506 = vpop.f32.mrf.mxu0
  %v507 = vadd.f32 %v126, %v506
  %508 = vmatmul.bf16.gmra.mxu0 %v210
  %v509 = vpop.f32.mrf.mxu0
  %v510 = vadd.f32 %v126, %v509
  %v511 = vpop.f32.mrf.mxu0
  %v512 = vadd.f32 %v126, %v511
  %513 = vmatmul.bf16.gmra.mxu0 %v215
  %v514 = vpop.f32.mrf.mxu0
  %v515 = vadd.f32 %v126, %v514
  %v516 = vpop.f32.mrf.mxu0
  %v517 = vadd.f32 %v126, %v516
  %518 = vmatmul.bf16.gmra.mxu0 %v220
  %v519 = vpop.f32.mrf.mxu0
  %v520 = vadd.f32 %v126, %v519
  %v521 = vpop.f32.mrf.mxu0
  %522 = vdwg.mxu0
  %523 = vmatpush.bf16.msra.mxu0 %v425
  %524 = vmatpush.bf16.msra.mxu0 %v424
  %525 = vmatpush.bf16.msra.mxu0 %v423
  %526 = vmatpush.bf16.msra.mxu0 %v422
  %527 = vmatpush.bf16.msra.mxu0 %v421
  %528 = vmatpush.bf16.msra.mxu0 %v420
  %529 = vmatpush.bf16.msra.mxu0 %v419
  %530 = vmatpush.bf16.msra.mxu0 %v418
  %531 = vmatmul.bf16.gmra.mxu0 %v201
  %v532 = vpop.f32.mrf.mxu0
  %v533 = vadd.f32 %v500, %v532
  %v534 = vpop.f32.mrf.mxu0
  %v535 = vadd.f32 %v502, %v534
  %536 = vmatmul.bf16.gmra.mxu0 %v206
  %v537 = vpop.f32.mrf.mxu0
  %v538 = vadd.f32 %v505, %v537
  %v539 = vpop.f32.mrf.mxu0
  %v540 = vadd.f32 %v507, %v539
  %541 = vmatmul.bf16.gmra.mxu0 %v211
  %v542 = vpop.f32.mrf.mxu0
  %v543 = vadd.f32 %v510, %v542
  %v544 = vpop.f32.mrf.mxu0
  %v545 = vadd.f32 %v512, %v544
  %546 = vmatmul.bf16.gmra.mxu0 %v216
  %v547 = vpop.f32.mrf.mxu0
  %v548 = vadd.f32 %v515, %v547
  %v549 = vpop.f32.mrf.mxu0
  %v550 = vadd.f32 %v517, %v549
  %551 = vmatmul.bf16.gmra.mxu0 %v221
  %v552 = vpop.f32.mrf.mxu0
  %v553 = vadd.f32 %v520, %v552
  %v554 = vpop.f32.mrf.mxu0
  %555 = vdwg.mxu0
  %556 = vmatpush.bf16.msra.mxu0 %v433
  %557 = vmatpush.bf16.msra.mxu0 %v432
  %558 = vmatpush.bf16.msra.mxu0 %v431
  %559 = vmatpush.bf16.msra.mxu0 %v430
  %560 = vmatpush.bf16.msra.mxu0 %v429
  %561 = vmatpush.bf16.msra.mxu0 %v428
  %562 = vmatpush.bf16.msra.mxu0 %v427
  %563 = vmatpush.bf16.msra.mxu0 %v426
  %564 = vmatmul.bf16.gmra.mxu0 %v202
  %v565 = vpop.f32.mrf.mxu0
  %v566 = vadd.f32 %v533, %v565
  %v567 = vpop.f32.mrf.mxu0
  %v568 = vadd.f32 %v535, %v567
  %569 = vmatmul.bf16.gmra.mxu0 %v207
  %v570 = vpop.f32.mrf.mxu0
  %v571 = vadd.f32 %v538, %v570
  %v572 = vpop.f32.mrf.mxu0
  %v573 = vadd.f32 %v540, %v572
  %574 = vmatmul.bf16.gmra.mxu0 %v212
  %v575 = vpop.f32.mrf.mxu0
  %v576 = vadd.f32 %v543, %v575
  %v577 = vpop.f32.mrf.mxu0
  %v578 = vadd.f32 %v545, %v577
  %579 = vmatmul.bf16.gmra.mxu0 %v217
  %v580 = vpop.f32.mrf.mxu0
  %v581 = vadd.f32 %v548, %v580
  %v582 = vpop.f32.mrf.mxu0
  %v583 = vadd.f32 %v550, %v582
  %584 = vmatmul.bf16.gmra.mxu0 %v222
  %v585 = vpop.f32.mrf.mxu0
  %v586 = vadd.f32 %v553, %v585
  %v587 = vpop.f32.mrf.mxu0
  %588 = vdwg.mxu0
  %589 = vmatpush.bf16.msra.mxu0 %v441
  %590 = vmatpush.bf16.msra.mxu0 %v440
  %591 = vmatpush.bf16.msra.mxu0 %v439
  %592 = vmatpush.bf16.msra.mxu0 %v438
  %593 = vmatpush.bf16.msra.mxu0 %v437
  %594 = vmatpush.bf16.msra.mxu0 %v436
  %595 = vmatpush.bf16.msra.mxu0 %v435
  %596 = vmatpush.bf16.msra.mxu0 %v434
  %597 = vmatmul.bf16.gmra.mxu0 %v203
  %v598 = vpop.f32.mrf.mxu0
  %v599 = vadd.f32 %v566, %v598
  %v600 = vpop.f32.mrf.mxu0
  %v601 = vadd.f32 %v568, %v600
  %602 = vmatmul.bf16.gmra.mxu0 %v208
  %v603 = vpop.f32.mrf.mxu0
  %v604 = vadd.f32 %v571, %v603
  %v605 = vpop.f32.mrf.mxu0
  %v606 = vadd.f32 %v573, %v605
  %607 = vmatmul.bf16.gmra.mxu0 %v213
  %v608 = vpop.f32.mrf.mxu0
  %v609 = vadd.f32 %v576, %v608
  %v610 = vpop.f32.mrf.mxu0
  %v611 = vadd.f32 %v578, %v610
  %612 = vmatmul.bf16.gmra.mxu0 %v218
  %v613 = vpop.f32.mrf.mxu0
  %v614 = vadd.f32 %v581, %v613
  %v615 = vpop.f32.mrf.mxu0
  %v616 = vadd.f32 %v583, %v615
  %617 = vmatmul.bf16.gmra.mxu0 %v223
  %v618 = vpop.f32.mrf.mxu0
  %v619 = vadd.f32 %v586, %v618
  %v620 = vpop.f32.mrf.mxu0
  %621 = vdwg.mxu0
  %622 = vmatpush.bf16.msra.mxu0 %v449
  %623 = vmatpush.bf16.msra.mxu0 %v448
  %624 = vmatpush.bf16.msra.mxu0 %v447
  %625 = vmatpush.bf16.msra.mxu0 %v446
  %626 = vmatpush.bf16.msra.mxu0 %v445
  %627 = vmatpush.bf16.msra.mxu0 %v444
  %628 = vmatpush.bf16.msra.mxu0 %v443
  %629 = vmatpush.bf16.msra.mxu0 %v442
  %630 = vmatmul.bf16.gmra.mxu0 %v204
  %v631 = vpop.f32.mrf.mxu0
  %v632 = vadd.f32 %v599, %v631
  %v633 = vpop.f32.mrf.mxu0
  %v634 = vadd.f32 %v601, %v633
  %635 = vmatmul.bf16.gmra.mxu0 %v209
  %v636 = vpop.f32.mrf.mxu0
  %v637 = vadd.f32 %v604, %v636
  %v638 = vpop.f32.mrf.mxu0
  %v639 = vadd.f32 %v606, %v638
  %640 = vmatmul.bf16.gmra.mxu0 %v214
  %v641 = vpop.f32.mrf.mxu0
  %v642 = vadd.f32 %v609, %v641
  %v643 = vpop.f32.mrf.mxu0
  %v644 = vadd.f32 %v611, %v643
  %645 = vmatmul.bf16.gmra.mxu0 %v219
  %v646 = vpop.f32.mrf.mxu0
  %v647 = vadd.f32 %v614, %v646
  %v648 = vpop.f32.mrf.mxu0
  %v649 = vadd.f32 %v616, %v648
  %650 = vmatmul.bf16.gmra.mxu0 %v224
  %v651 = vpop.f32.mrf.mxu0
  %v652 = vadd.f32 %v619, %v651
  %v653 = vpop.f32.mrf.mxu0
  %654 = vdwg.mxu0
  %v655 = vld [vmem:[%s3] sm:$0xf]
  %v656 = vld [vmem:[%s3 + $0x4] sm:$0xf]
  %v657 = vld [vmem:[%s3 + $0x8] sm:$0xf]
  %v658 = vld [vmem:[%s3 + $0xc] sm:$0xf]
  %v659 = vld [vmem:[%s3 + $0x10] sm:$0xf]
  %v660 = vld [vmem:[%s3 + $0x14] sm:$0xf]
  %v661 = vld [vmem:[%s3 + $0x18] sm:$0xf]
  %v662 = vld [vmem:[%s3 + $0x1c] sm:$0xf]
  %v663 = vld [vmem:[%s3 + $0x20] sm:$0xf]
  %v664 = vunpack.c.l.bf16 %v655
  %v665 = vunpack.c.l.bf16 %v656
  %v666 = vunpack.c.l.bf16 %v657
  %v667 = vunpack.c.l.bf16 %v658
  %v668 = vunpack.c.l.bf16 %v659
  %v669 = vunpack.c.l.bf16 %v660
  %v670 = vunpack.c.l.bf16 %v661
  %v671 = vunpack.c.l.bf16 %v662
  %v672 = vunpack.c.l.bf16 %v663
  %v673 = vadd.f32 %v632, %v664
  %v674 = vadd.f32 %v634, %v665
  %v675 = vadd.f32 %v637, %v666
  %v676 = vadd.f32 %v639, %v667
  %v677 = vadd.f32 %v642, %v668
  %v678 = vadd.f32 %v644, %v669
  %v679 = vadd.f32 %v647, %v670
  %v680 = vadd.f32 %v649, %v671
  %v681 = vadd.f32 %v652, %v672
  %v682 = vmax.f32 %v673, 0.0
  %v683 = vmax.f32 %v674, 0.0
  %v684 = vmax.f32 %v675, 0.0
  %v685 = vmax.f32 %v676, 0.0
  %v686 = vmax.f32 %v677, 0.0
  %v687 = vmax.f32 %v678, 0.0
  %v688 = vmax.f32 %v679, 0.0
  %v689 = vmax.f32 %v680, 0.0
  %v690 = vmax.f32 %v681, 0.0
  %v691 = vpack.c.bf16 %v682, %v682
  %v692 = vpack.c.bf16 %v683, %v683
  %v693 = vpack.c.bf16 %v684, %v684
  %v694 = vpack.c.bf16 %v685, %v685
  %v695 = vpack.c.bf16 %v686, %v686
  %v696 = vpack.c.bf16 %v687, %v687
  %v697 = vpack.c.bf16 %v688, %v688
  %v698 = vpack.c.bf16 %v689, %v689
  %v699 = vpack.c.bf16 %v690, %v690
  %vm700 = vcmask 519168
  %701 = vst.msk [vmem:[%s4] sm:$0xf] %vm700, %v691
  %702 = vst.msk [vmem:[%s4 + $0x4] sm:$0xf] %vm700, %v692
  %703 = vst.msk [vmem:[%s4 + $0x8] sm:$0xf] %vm700, %v693
  %704 = vst.msk [vmem:[%s4 + $0xc] sm:$0xf] %vm700, %v694
  %705 = vst.msk [vmem:[%s4 + $0x10] sm:$0xf] %vm700, %v695
  %706 = vst.msk [vmem:[%s4 + $0x14] sm:$0xf] %vm700, %v696
  %707 = vst.msk [vmem:[%s4 + $0x18] sm:$0xf] %vm700, %v697
  %708 = vst.msk [vmem:[%s4 + $0x1c] sm:$0xf] %vm700, %v698
  %709 = vst.msk [vmem:[%s4 + $0x20] sm:$0xf] %vm700, %v699
  // Predicated region
  $region18: #{resnet_forward.36} parent=0 // pred_check
    _
  $region19: #{resnet_forward.36} parent=0 // pred_check_branch
    %711 = sbr.rel (0) target = $region21
  $region20: #{resnet_forward.36} parent=0 // pred_region
    _
  $region21: #{resnet_forward.36} parent=0 // pred_fallthru
    _
  // Predicated region
  $region22: #{resnet_forward.36} parent=0 // pred_check
    _
  $region23: #{resnet_forward.36} parent=0 // pred_check_branch
    %713 = sbr.rel (0) target = $region25
  $region24: #{resnet_forward.36} parent=0 // pred_region
    _
  $region25: #{resnet_forward.36} parent=0 // pred_fallthru
    _

// kernel: resnet_forward.41
$region0: #{resnet_forward.41}
  #allocation0 [shape = 'u32[]', space=smem, size = 0x4, offset = 0x4, fixed_abs, tag = 'smem constant byte address 0x4 - core index']
  #allocation1 [shape = 'u32[72,128]{1,0:T(1,128)}', space=vmem, size = 0x9000, scoped, tag = 'internal scratch']
  %s0 = inlined_call_operand.vmem [shape: bf16[18,256], index: 0, kind: input, shape index: {}]
  %s1 = inlined_call_operand.vmem [shape: bf16[256,64], index: 1, kind: input, shape index: {}]
  %s2 = inlined_call_operand.vmem [shape: f32[1,64], index: 2, kind: input, shape index: {}]
  %s3 = inlined_call_operand.vmem [shape: bf16[18,64], index: 3, kind: output, shape index: {}]
  %s4 = sld [smem:[#allocation0]]
  $region22: #{resnet_forward.41} parent=0
    _
  %s6 = ssub.s32 1, %s4
  %s7 = scalar_select 0, %s6, %s4
  // Predicated region
  $region2: #{resnet_forward.41} parent=0 // pred_check
    _
  $region3: #{resnet_forward.41} parent=0 // pred_check_branch
    %9 = sbr.rel (0) target = $region5
  $region4: #{resnet_forward.41} parent=0 // pred_region
    _
  $region5: #{resnet_forward.41} parent=0 // pred_fallthru
    _
  // Predicated region
  $region6: #{resnet_forward.41} parent=0 // pred_check
    _
  $region7: #{resnet_forward.41} parent=0 // pred_check_branch
    %11 = sbr.rel (0) target = $region9
  $region8: #{resnet_forward.41} parent=0 // pred_region
    _
  $region9: #{resnet_forward.41} parent=0 // pred_fallthru
    _
  // Predicated region
  $region10: #{resnet_forward.41} parent=0 // pred_check
    _
  $region11: #{resnet_forward.41} parent=0 // pred_check_branch
    %13 = sbr.rel (0) target = $region13
  $region12: #{resnet_forward.41} parent=0 // pred_region
    _
  $region13: #{resnet_forward.41} parent=0 // pred_fallthru
    _
  %v14 = vld [vmem:[%s0] sm:$0xff]
  %v15 = vld [vmem:[%s0 + $0x8] sm:$0xff]
  %v16 = vld [vmem:[%s0 + $0x10] sm:$0x11]
  %v17 = vld [vmem:[%s1] sm:$0xf]
  %v18 = vld [vmem:[%s1 + $0x4] sm:$0xf]
  %v19 = vld [vmem:[%s1 + $0x8] sm:$0xf]
  %v20 = vld [vmem:[%s1 + $0xc] sm:$0xf]
  %v21 = vld [vmem:[%s1 + $0x10] sm:$0xf]
  %v22 = vld [vmem:[%s1 + $0x14] sm:$0xf]
  %v23 = vld [vmem:[%s1 + $0x18] sm:$0xf]
  %v24 = vld [vmem:[%s1 + $0x1c] sm:$0xf]
  %v25 = vld [vmem:[%s1 + $0x20] sm:$0xf]
  %v26 = vld [vmem:[%s1 + $0x24] sm:$0xf]
  %v27 = vld [vmem:[%s1 + $0x28] sm:$0xf]
  %v28 = vld [vmem:[%s1 + $0x2c] sm:$0xf]
  %v29 = vld [vmem:[%s1 + $0x30] sm:$0xf]
  %v30 = vld [vmem:[%s1 + $0x34] sm:$0xf]
  %v31 = vld [vmem:[%s1 + $0x38] sm:$0xf]
  %v32 = vld [vmem:[%s1 + $0x3c] sm:$0xf]
  %v33 = vld [vmem:[%s1 + $0x40] sm:$0xf]
  %v34 = vld [vmem:[%s1 + $0x44] sm:$0xf]
  %v35 = vld [vmem:[%s1 + $0x48] sm:$0xf]
  %v36 = vld [vmem:[%s1 + $0x4c] sm:$0xf]
  %v37 = vld [vmem:[%s1 + $0x50] sm:$0xf]
  %v38 = vld [vmem:[%s1 + $0x54] sm:$0xf]
  %v39 = vld [vmem:[%s1 + $0x58] sm:$0xf]
  %v40 = vld [vmem:[%s1 + $0x5c] sm:$0xf]
  %v41 = vld [vmem:[%s1 + $0x60] sm:$0xf]
  %v42 = vld [vmem:[%s1 + $0x64] sm:$0xf]
  %v43 = vld [vmem:[%s1 + $0x68] sm:$0xf]
  %v44 = vld [vmem:[%s1 + $0x6c] sm:$0xf]
  %v45 = vld [vmem:[%s1 + $0x70] sm:$0xf]
  %v46 = vld [vmem:[%s1 + $0x74] sm:$0xf]
  %v47 = vld [vmem:[%s1 + $0x78] sm:$0xf]
  %v48 = vld [vmem:[%s1 + $0x7c] sm:$0xf]
  %v49 = vld [vmem:[%s2] sm:$0x1]
  %v51 = vperm.slane %v49, 0
  %v56 = vunpack.c.l.b16 %v14
  %v57 = vunpack.c.h.b16 %v14
  %v58 = vunpack.c.l.b16 %v15
  %v59 = vunpack.c.h.b16 %v15
  %v60 = vunpack.c.l.b16 %v16
  %v61 = vunpack.c.h.b16 %v16
  %v62 = vpack.c.b16 %v58, %v56
  %v63 = vpack.c.b16 %v59, %v57
  %v64 = vpack.c.b16 %v60, %v60
  %v65 = vpack.c.b16 %v61, %v61
  %v102 = vunpack.c.l.b16 %v17
  %v103 = vunpack.c.l.b16 %v18
  %v104 = vunpack.c.l.b16 %v19
  %v105 = vunpack.c.l.b16 %v20
  %v106 = vunpack.c.l.b16 %v21
  %v107 = vunpack.c.l.b16 %v22
  %v108 = vunpack.c.l.b16 %v23
  %v109 = vunpack.c.l.b16 %v24
  %v110 = vunpack.c.l.b16 %v25
  %v111 = vunpack.c.l.b16 %v26
  %v112 = vunpack.c.l.b16 %v27
  %v113 = vunpack.c.l.b16 %v28
  %v114 = vunpack.c.l.b16 %v29
  %v115 = vunpack.c.l.b16 %v30
  %v116 = vunpack.c.l.b16 %v31
  %v117 = vunpack.c.l.b16 %v32
  %v118 = vunpack.c.l.b16 %v33
  %v119 = vunpack.c.l.b16 %v34
  %v120 = vunpack.c.l.b16 %v35
  %v121 = vunpack.c.l.b16 %v36
  %v122 = vunpack.c.l.b16 %v37
  %v123 = vunpack.c.l.b16 %v38
  %v124 = vunpack.c.l.b16 %v39
  %v125 = vunpack.c.l.b16 %v40
  %v126 = vunpack.c.l.b16 %v41
  %v127 = vunpack.c.l.b16 %v42
  %v128 = vunpack.c.l.b16 %v43
  %v129 = vunpack.c.l.b16 %v44
  %v130 = vunpack.c.l.b16 %v45
  %v131 = vunpack.c.l.b16 %v46
  %v132 = vunpack.c.l.b16 %v47
  %v133 = vunpack.c.l.b16 %v48
  %v134 = vpack.c.b16 %v103, %v102
  %v135 = vpack.c.b16 %v105, %v104
  %v136 = vpack.c.b16 %v107, %v106
  %v137 = vpack.c.b16 %v109, %v108
  %v138 = vpack.c.b16 %v111, %v110
  %v139 = vpack.c.b16 %v113, %v112
  %v140 = vpack.c.b16 %v115, %v114
  %v141 = vpack.c.b16 %v117, %v116
  %v142 = vpack.c.b16 %v119, %v118
  %v143 = vpack.c.b16 %v121, %v120
  %v144 = vpack.c.b16 %v123, %v122
  %v145 = vpack.c.b16 %v125, %v124
  %v146 = vpack.c.b16 %v127, %v126
  %v147 = vpack.c.b16 %v129, %v128
  %v148 = vpack.c.b16 %v131, %v130
  %v149 = vpack.c.b16 %v133, %v132
  %166 = vmatpush.bf16.msra.mxu0 %v141
  %167 = vmatpush.bf16.msra.mxu0 %v140
  %168 = vmatpush.bf16.msra.mxu0 %v139
  %169 = vmatpush.bf16.msra.mxu0 %v138
  %170 = vmatpush.bf16.msra.mxu0 %v137
  %171 = vmatpush.bf16.msra.mxu0 %v136
  %172 = vmatpush.bf16.msra.mxu0 %v135
  %173 = vmatpush.bf16.msra.mxu0 %v134
  %174 = vmatmul.bf16.gmra.mxu0 %v62
  %v175 = vpop.f32.mrf.mxu0
  %v176 = vadd.f32 %v51, %v175
  %v177 = vpop.f32.mrf.mxu0
  %v178 = vadd.f32 %v51, %v177
  %179 = vmatmul.bf16.gmra.mxu0 %v64
  %v180 = vpop.f32.mrf.mxu0
  %v181 = vadd.f32 %v51, %v180
  %v182 = vpop.f32.mrf.mxu0
  %183 = vdwg.mxu0
  %184 = vmatpush.bf16.msra.mxu0 %v149
  %185 = vmatpush.bf16.msra.mxu0 %v148
  %186 = vmatpush.bf16.msra.mxu0 %v147
  %187 = vmatpush.bf16.msra.mxu0 %v146
  %188 = vmatpush.bf16.msra.mxu0 %v145
  %189 = vmatpush.bf16.msra.mxu0 %v144
  %190 = vmatpush.bf16.msra.mxu0 %v143
  %191 = vmatpush.bf16.msra.mxu0 %v142
  %192 = vmatmul.bf16.gmra.mxu0 %v63
  %v193 = vpop.f32.mrf.mxu0
  %v194 = vadd.f32 %v176, %v193
  %v195 = vpop.f32.mrf.mxu0
  %v196 = vadd.f32 %v178, %v195
  %197 = vmatmul.bf16.gmra.mxu0 %v65
  %v198 = vpop.f32.mrf.mxu0
  %v199 = vadd.f32 %v181, %v198
  %v200 = vpop.f32.mrf.mxu0
  %201 = vdwg.mxu0
  %v202 = vmax.f32 %v194, 0.0
  %v203 = vmax.f32 %v196, 0.0
  %v204 = vmax.f32 %v199, 0.0
  %v205 = vpack.c.bf16 %v202, %v202
  %v206 = vpack.c.bf16 %v203, %v203
  %v207 = vpack.c.bf16 %v204, %v204
  %vm208 = vcmask 519168
  %209 = vst.msk [vmem:[%s3] sm:$0xf] %vm208, %v205
  %210 = vst.msk [vmem:[%s3 + $0x4] sm:$0xf] %vm208, %v206
  %vm211 = vcmask 516096
  %212 = vst.msk [vmem:[%s3 + $0x8] sm:$0x1] %vm211, %v207
  // Predicated region
  $region14: #{resnet_forward.41} parent=0 // pred_check
    _
  $region15: #{resnet_forward.41} parent=0 // pred_check_branch
    %214 = sbr.rel (0) target = $region17
  $region16: #{resnet_forward.41} parent=0 // pred_region
    _
  $region17: #{resnet_forward.41} parent=0 // pred_fallthru
    _
  // Predicated region
  $region18: #{resnet_forward.41} parent=0 // pred_check
    _
  $region19: #{resnet_forward.41} parent=0 // pred_check_branch
    %216 = sbr.rel (0) target = $region21
  $region20: #{resnet_forward.41} parent=0 // pred_region
    _
  $region21: #{resnet_forward.41} parent=0 // pred_fallthru
    _

</llo_original>
